<compile_context>
chip_gen: v5e
topology: v5e:2x2
jax: 0.10.0
libtpu: 0.0.40
codegen_flags: <defaults>
</compile_context>

<pallas_src>
import functools

import numpy as np
import jax
import jax.numpy as jnp
from jax.experimental import pallas as pl
from jax.experimental.pallas import tpu as pltpu

# ----------------------------- config (scaled-down swin_t) -----------------------------
BATCH = 2
IMG = 32
PATCH = 4
EMBED = 32
DEPTHS = (2, 2)
HEADS = (2, 4)
WINDOW = 4
SHIFT = 2
MLP_RATIO = 4
NUM_BACKBONE_CLASSES = 1000   # swin_t ImageNet head size (explicit in the module)
NUM_CLASSES = 3               # fc1 = nn.Linear(1000, 3)
EPS = 1e-5
T_WIN = WINDOW * WINDOW


def _stage_res():
    res, h = [], IMG // PATCH
    for _ in DEPTHS:
        res.append(h)
        h //= 2
    return tuple(res)


STAGE_RES = _stage_res()
L0 = STAGE_RES[0] * STAGE_RES[0]          # 64 tokens in stage 0
L1 = STAGE_RES[1] * STAGE_RES[1]          # 16 tokens in stage 1


# ----------------------------- static tables (numpy, built once) -----------------------------
def relative_position_index(ws):
    coords = np.stack(np.meshgrid(np.arange(ws), np.arange(ws), indexing="ij"))
    coords_flat = coords.reshape(2, -1)
    rel = coords_flat[:, :, None] - coords_flat[:, None, :]
    rel = rel.transpose(1, 2, 0).astype(np.int64)
    rel[:, :, 0] += ws - 1
    rel[:, :, 1] += ws - 1
    rel[:, :, 0] *= 2 * ws - 1
    return rel.sum(-1).astype(np.int32)        # (T, T)


REL_IDX = relative_position_index(WINDOW)


def _window_layout(R, ws, shift):
    """Full-(L,L) tables so (shifted-)window attention needs NO roll / window partition.

    Returns:
      rel_idx_full: (L, L) int32 indices into the (2ws-1)^2 rel-pos table
      add_full:     (L, L) f32 additive mask: 0 within a (shifted) window,
                    -100 for cross-region pairs inside a shifted window (torchvision
                    SW-MSA mask), -1e9 across windows (underflows to 0 after softmax).
    """
    H = W = R
    hh, ww = np.meshgrid(np.arange(H), np.arange(W), indexing="ij")
    hr = (hh - shift) % H           # position after torch.roll(x, (-shift, -shift))
    wr = (ww - shift) % W
    win = (hr // ws) * (W // ws) + (wr // ws)       # shifted-window id per token
    pos = (hr % ws) * ws + (wr % ws)                # within-window flattened position
    win = win.reshape(-1)
    pos = pos.reshape(-1)
    same = win[:, None] == win[None, :]
    rel_idx_full = REL_IDX[pos[:, None], pos[None, :]].astype(np.int32)
    add = np.where(same, np.float32(0.0), np.float32(-1e9)).astype(np.float32)
    if shift > 0:
        img_mask = np.zeros((H, W), np.float32)
        cnt = 0
        for hs in (slice(0, H - ws), slice(H - ws, H - shift), slice(H - shift, H)):
            for wsl in (slice(0, W - ws), slice(W - ws, W - shift), slice(W - shift, W)):
                img_mask[hs, wsl] = cnt
                cnt += 1
        region = img_mask[hr, wr].reshape(-1)
        add = add + np.where(same & (region[:, None] != region[None, :]),
                             np.float32(-100.0), np.float32(0.0))
    return rel_idx_full, add


# shift clamps to 0 when the window covers the whole grid (torchvision behavior)
BLOCK_SHIFTS = {(s, d): (SHIFT if (d % 2 == 1 and WINDOW < STAGE_RES[s]) else 0)
                for s in range(len(DEPTHS)) for d in range(DEPTHS[s])}
BLOCK_LAYOUT = {(s, d): _window_layout(STAGE_RES[s], WINDOW, BLOCK_SHIFTS[(s, d)])
                for s in range(len(DEPTHS)) for d in range(DEPTHS[s])}

BLOCK_KEYS = ("norm1_g", "norm1_b", "qkv_w", "qkv_b", "attn_bias",
              "proj_w", "proj_b", "norm2_g", "norm2_b",
              "fc1_w", "fc1_b", "fc2_w", "fc2_b")


# ----------------------------- in-kernel building blocks -----------------------------
def _ln(x, g, b, eps):
    mu = jnp.mean(x, axis=-1, keepdims=True)
    xc = x - mu
    var = jnp.mean(xc * xc, axis=-1, keepdims=True)
    return xc * jax.lax.rsqrt(var + eps) * g + b


def _swin_block_body(x, refs, heads, eps):
    """One Swin block on the full token matrix x: (L, C) -> (L, C).

    (Shifted-)window attention is expressed as full-L attention plus a precomputed
    (heads, L, L) additive matrix (rel-pos bias + SW-MSA mask + cross-window -1e9),
    so no roll / window partition / un-partition is needed.
    """
    (ln1g, ln1b, qkvw, qkvb, bias, projw, projb,
     ln2g, ln2b, fc1w, fc1b, fc2w, fc2b) = refs
    L, C = x.shape
    hd = C // heads
    scale = float(hd) ** -0.5

    # ---------- W-MSA / SW-MSA ----------
    h = _ln(x, ln1g[...], ln1b[...], eps)
    qkv = jnp.dot(h.astype(jnp.bfloat16), qkvw[...],
                  preferred_element_type=jnp.float32) + qkvb[...]          # (L, 3C)
    pw = projw[...]                                                        # (C, C) bf16

    attn = jnp.zeros_like(x)
    for hi in range(heads):                       # static unroll, heads <= 4
        q = qkv[:, hi * hd:(hi + 1) * hd].astype(jnp.bfloat16)
        k = qkv[:, C + hi * hd:C + (hi + 1) * hd].astype(jnp.bfloat16)
        v = qkv[:, 2 * C + hi * hd:2 * C + (hi + 1) * hd].astype(jnp.bfloat16)
        s = jnp.dot(q, k.T, preferred_element_type=jnp.float32) * scale    # (L, L)
        s = s + bias[hi]
        s = s - jnp.max(s, axis=-1, keepdims=True)
        p = jnp.exp(s)
        p = p / jnp.sum(p, axis=-1, keepdims=True)         # exact division (review note)
        o_h = jnp.dot(p.astype(jnp.bfloat16), v, preferred_element_type=jnp.float32)
        # concat-over-heads folded into the proj matmul: sum_h o_h @ proj_w[rows of h]
        attn = attn + jnp.dot(o_h.astype(jnp.bfloat16), pw[hi * hd:(hi + 1) * hd, :],
                              preferred_element_type=jnp.float32)
    x = x + attn + projb[...]

    # ---------- MLP ----------
    h2 = _ln(x, ln2g[...], ln2b[...], eps)
    m = jnp.dot(h2.astype(jnp.bfloat16), fc1w[...],
                preferred_element_type=jnp.float32) + fc1b[...]
    # TODO(synk): torchvision Swin uses exact-erf GELU; tanh approximation used here.
    m = 0.5 * m * (1.0 + jnp.tanh(0.7978845608028654 * (m + 0.044715 * m * m * m)))
    m = jnp.dot(m.astype(jnp.bfloat16), fc2w[...],
                preferred_element_type=jnp.float32) + fc2b[...]
    return x + m


# ----------------------------- fused Pallas kernels -----------------------------
def _stage0_kernel(*refs, heads, eps):
    """Per batch element: patch-embed (conv-as-matmul + LN) + both stage-0 blocks."""
    o_ref = refs[-1]
    it = iter(refs[:-1])
    nxt = lambda n: [next(it) for _ in range(n)]
    (xp_ref,) = nxt(1)
    pe_w, pe_b, pe_g, pe_beta = nxt(4)
    blocks = [nxt(len(BLOCK_KEYS)) for _ in range(DEPTHS[0])]

    xp = xp_ref[0]                                                   # (L0, P*P*3) bf16
    y = jnp.dot(xp, pe_w[...], preferred_element_type=jnp.float32) + pe_b[...]
    x = _ln(y, pe_g[...], pe_beta[...], eps)                         # (L0, EMBED)
    for blk in blocks:
        x = _swin_block_body(x, blk, heads, eps)
    o_ref[0] = x.astype(o_ref.dtype)


def _stage1_head_kernel(*refs, heads, eps):
    """Per batch element: patch-merge LN + reduction, both stage-1 blocks,
    final LN -> global average pool -> folded 1000->3 classifier -> softmax."""
    o_ref = refs[-1]
    it = iter(refs[:-1])
    nxt = lambda n: [next(it) for _ in range(n)]
    xm_ref, mg, mb, red_w = nxt(4)
    blocks = [nxt(len(BLOCK_KEYS)) for _ in range(DEPTHS[1])]
    fg, fb, wc, bc = nxt(4)

    xm = xm_ref[0].astype(jnp.float32)                               # (L1, 4*EMBED)
    h = _ln(xm, mg[...], mb[...], eps)                               # patch-merging LN
    x = jnp.dot(h.astype(jnp.bfloat16), red_w[...],
                preferred_element_type=jnp.float32)                  # (L1, 2*EMBED)
    for blk in blocks:
        x = _swin_block_body(x, blk, heads, eps)

    y = _ln(x, fg[...], fb[...], eps)                                # final LN
    feat = jnp.mean(y, axis=0, keepdims=True)                        # global avg pool (1, C)
    logits = jnp.dot(feat, wc[...], preferred_element_type=jnp.float32) + bc[...]
    logits = logits - jnp.max(logits, axis=-1, keepdims=True)
    e = jnp.exp(logits)
    o_ref[0] = (e / jnp.sum(e, axis=-1, keepdims=True)).astype(o_ref.dtype)


# ----------------------------- spec helpers -----------------------------
def _const_map(ndim):
    def im(b):
        return (0,) * ndim
    return im


def _rep_spec(a):
    """Weight replicated across the batch grid axis (same block every step)."""
    return pl.BlockSpec(a.shape, _const_map(a.ndim))


def _batch_spec(a):
    """Block = one batch element of a (B, ...) array."""
    nd = a.ndim

    def im(b):
        return (b,) + (0,) * (nd - 1)

    return pl.BlockSpec((1,) + tuple(a.shape[1:]), im)


# ----------------------------- XLA glue (one-time data movement) -----------------------------
def _im2col(x_nchw):
    # NCHW -> NHWC -> 4x4/s4 patches as rows; one-time XLA transpose (acknowledged).
    B = x_nchw.shape[0]
    G = IMG // PATCH
    x = jnp.transpose(x_nchw, (0, 2, 3, 1))
    xp = (x.reshape(B, G, PATCH, G, PATCH, 3)
            .transpose(0, 1, 3, 2, 4, 5)
            .reshape(B, G * G, PATCH * PATCH * 3))
    return xp.astype(jnp.bfloat16)


def _merge_gather(x):
    # Exact torchvision patch-merging gather/concat (tiny: 8 KB), kept in XLA so the
    # gather stays bit-exact; LN + reduction happen inside the stage-1 kernel.
    B, _, C = x.shape
    G = STAGE_RES[0]
    xg = x.reshape(B, G, G, C)
    parts = (xg[:, 0::2, 0::2], xg[:, 1::2, 0::2],
             xg[:, 0::2, 1::2], xg[:, 1::2, 1::2])
    return jnp.concatenate(parts, axis=-1).reshape(B, (G // 2) * (G // 2), 4 * C)


# ----------------------------- forward -----------------------------
def forward(x_nchw, params):
    B = x_nchw.shape[0]
    xp = _im2col(x_nchw)

    # ---- kernel 1: patch embed + stage 0 (2 blocks), grid over batch ----
    pe = params["patch"]
    ops0 = [xp, pe["w"], pe["b"], pe["norm_g"], pe["norm_b"]]
    for blk in params["stages"][0]:
        ops0 += [blk[k] for k in BLOCK_KEYS]
    x0 = pl.pallas_call(
        functools.partial(_stage0_kernel, heads=HEADS[0], eps=EPS),
        out_shape=jax.ShapeDtypeStruct((B, L0, EMBED), jnp.float32),
        grid=(B,),
        in_specs=[_batch_spec(xp)] + [_rep_spec(a) for a in ops0[1:]],
        out_specs=pl.BlockSpec((1, L0, EMBED), lambda b: (b, 0, 0)),
        compiler_params=pltpu.CompilerParams(dimension_semantics=("parallel",)),
    )(*ops0)

    xm = _merge_gather(x0)

    # ---- kernel 2: merge LN/reduce + stage 1 (2 blocks) + LN/pool/classifier/softmax ----
    mg = params["merge"]
    ops1 = [xm, mg["norm_g"], mg["norm_b"], mg["red_w"]]
    for blk in params["stages"][1]:
        ops1 += [blk[k] for k in BLOCK_KEYS]
    ops1 += [params["norm_g"], params["norm_b"], params["cls_w"], params["cls_b"]]
    probs = pl.pallas_call(
        functools.partial(_stage1_head_kernel, heads=HEADS[1], eps=EPS),
        out_shape=jax.ShapeDtypeStruct((B, 1, NUM_CLASSES), jnp.float32),
        grid=(B,),
        in_specs=[_batch_spec(xm)] + [_rep_spec(a) for a in ops1[1:]],
        out_specs=pl.BlockSpec((1, 1, NUM_CLASSES), lambda b: (b, 0, 0)),
        compiler_params=pltpu.CompilerParams(dimension_semantics=("parallel",)),
    )(*ops1)
    return probs.reshape(B, NUM_CLASSES)


# ----------------------------- deterministic parameter init -----------------------------
def init_params(key):
    keys = iter(jax.random.split(key, 128))

    def nrm(shape, scale=0.02):
        return scale * jax.random.normal(next(keys), shape, dtype=jnp.float32)

    def bf16(x):
        return x.astype(jnp.bfloat16)   # matmul operands stored in bf16 (halves DMA bytes)

    params = {}
    in_dim = PATCH * PATCH * 3
    params["patch"] = dict(w=bf16(nrm((in_dim, EMBED))), b=nrm((1, EMBED)),
                           norm_g=jnp.ones((1, EMBED)), norm_b=jnp.zeros((1, EMBED)))

    stages = []
    dim = EMBED
    for s, (depth, heads) in enumerate(zip(DEPTHS, HEADS)):
        R = STAGE_RES[s]
        L = R * R
        blocks = []
        for d in range(depth):
            rel_idx_full, add_full = BLOCK_LAYOUT[(s, d)]
            rel_table = nrm(((2 * WINDOW - 1) ** 2, heads))
            # One-time init gather: expand the rel-pos table onto a full (heads, L, L)
            # additive matrix that also folds the cyclic shift, the SW-MSA region mask
            # (-100) and the cross-window mask (-1e9).
            bias = rel_table[rel_idx_full.reshape(-1)].reshape(L, L, heads)
            bias = jnp.transpose(bias, (2, 0, 1)) + jnp.asarray(add_full)[None]
            blocks.append(dict(
                norm1_g=jnp.ones((1, dim)), norm1_b=jnp.zeros((1, dim)),
                qkv_w=bf16(nrm((dim, 3 * dim))), qkv_b=nrm((1, 3 * dim)),
                attn_bias=bias,
                proj_w=bf16(nrm((dim, dim))), proj_b=nrm((1, dim)),
                norm2_g=jnp.ones((1, dim)), norm2_b=jnp.zeros((1, dim)),
                fc1_w=bf16(nrm((dim, MLP_RATIO * dim))), fc1_b=nrm((1, MLP_RATIO * dim)),
                fc2_w=bf16(nrm((MLP_RATIO * dim, dim))), fc2_b=nrm((1, dim)),
            ))
        stages.append(blocks)
        if s < len(DEPTHS) - 1:
            params["merge"] = dict(norm_g=jnp.ones((1, 4 * dim)),
                                   norm_b=jnp.zeros((1, 4 * dim)),
                                   red_w=bf16(nrm((4 * dim, 2 * dim))))
            dim *= 2
    params["stages"] = stages
    params["norm_g"] = jnp.ones((1, dim))
    params["norm_b"] = jnp.zeros((1, dim))

    # Backbone 1000-way head folded exactly into the 3-way classifier AT INIT (no
    # per-forward (C,1000)x(1000,3) matmul or 1000-class weight DMA):
    #   (feat @ Wh + bh) @ Wf + bf == feat @ (Wh @ Wf) + (bh @ Wf + bf)
    head_w = nrm((dim, NUM_BACKBONE_CLASSES))
    head_b = nrm((NUM_BACKBONE_CLASSES,))
    fc1_w = nrm((NUM_BACKBONE_CLASSES, NUM_CLASSES))
    fc1_b = nrm((NUM_CLASSES,))
    params["cls_w"] = jnp.dot(head_w, fc1_w)                          # (dim, 3)
    params["cls_b"] = (jnp.dot(head_b, fc1_w) + fc1_b).reshape(1, NUM_CLASSES)
    return params


if __name__ == "__main__":
    key = jax.random.PRNGKey(0)
    pkey, xkey = jax.random.split(key)
    params = init_params(pkey)
    x = jax.random.normal(xkey, (BATCH, 3, IMG, IMG), dtype=jnp.float32)  # NCHW like PyTorch
    out = jax.jit(forward)(x, params)
    out = jax.block_until_ready(out)
    assert out.shape == (BATCH, NUM_CLASSES)
    assert bool(jnp.all(jnp.isfinite(out)))
    assert bool(jnp.allclose(jnp.sum(out, axis=1), 1.0, atol=1e-5))  # softmax(dim=1) rows
    print("KERNEL_OK")
</pallas_src>

<mosaic_0001>
module attributes {stable_mosaic.version = 11 : i64} {
  func.func @_stage0_kernel(%arg0: i32, %arg1: memref<1x64x48xbf16, #tpu.memory_space<vmem>>, %arg2: memref<48x32xbf16, #tpu.memory_space<vmem>>, %arg3: memref<1x32xf32, #tpu.memory_space<vmem>>, %arg4: memref<1x32xf32, #tpu.memory_space<vmem>>, %arg5: memref<1x32xf32, #tpu.memory_space<vmem>>, %arg6: memref<1x32xf32, #tpu.memory_space<vmem>>, %arg7: memref<1x32xf32, #tpu.memory_space<vmem>>, %arg8: memref<32x96xbf16, #tpu.memory_space<vmem>>, %arg9: memref<1x96xf32, #tpu.memory_space<vmem>>, %arg10: memref<2x64x64xf32, #tpu.memory_space<vmem>>, %arg11: memref<32x32xbf16, #tpu.memory_space<vmem>>, %arg12: memref<1x32xf32, #tpu.memory_space<vmem>>, %arg13: memref<1x32xf32, #tpu.memory_space<vmem>>, %arg14: memref<1x32xf32, #tpu.memory_space<vmem>>, %arg15: memref<32x128xbf16, #tpu.memory_space<vmem>>, %arg16: memref<1x128xf32, #tpu.memory_space<vmem>>, %arg17: memref<128x32xbf16, #tpu.memory_space<vmem>>, %arg18: memref<1x32xf32, #tpu.memory_space<vmem>>, %arg19: memref<1x32xf32, #tpu.memory_space<vmem>>, %arg20: memref<1x32xf32, #tpu.memory_space<vmem>>, %arg21: memref<32x96xbf16, #tpu.memory_space<vmem>>, %arg22: memref<1x96xf32, #tpu.memory_space<vmem>>, %arg23: memref<2x64x64xf32, #tpu.memory_space<vmem>>, %arg24: memref<32x32xbf16, #tpu.memory_space<vmem>>, %arg25: memref<1x32xf32, #tpu.memory_space<vmem>>, %arg26: memref<1x32xf32, #tpu.memory_space<vmem>>, %arg27: memref<1x32xf32, #tpu.memory_space<vmem>>, %arg28: memref<32x128xbf16, #tpu.memory_space<vmem>>, %arg29: memref<1x128xf32, #tpu.memory_space<vmem>>, %arg30: memref<128x32xbf16, #tpu.memory_space<vmem>>, %arg31: memref<1x32xf32, #tpu.memory_space<vmem>>, %arg32: memref<1x64x32xf32, #tpu.memory_space<vmem>>) attributes {dimension_semantics = [#tpu.dimension_semantics<parallel>], iteration_bounds = array<i64: 2>, scalar_prefetch = 0 : i64, scratch_operands = 0 : i64, tpu.core_type = #tpu.core_type<tc>, window_params = [{transform_indices = @transform_0, window_bounds = array<i64: 1, 64, 48>}, {pipeline_mode = #tpu.pipeline_mode<synchronous>, transform_indices = @transform_1, window_bounds = array<i64: 48, 32>}, {pipeline_mode = #tpu.pipeline_mode<synchronous>, transform_indices = @transform_2, window_bounds = array<i64: 1, 32>}, {pipeline_mode = #tpu.pipeline_mode<synchronous>, transform_indices = @transform_3, window_bounds = array<i64: 1, 32>}, {pipeline_mode = #tpu.pipeline_mode<synchronous>, transform_indices = @transform_4, window_bounds = array<i64: 1, 32>}, {pipeline_mode = #tpu.pipeline_mode<synchronous>, transform_indices = @transform_5, window_bounds = array<i64: 1, 32>}, {pipeline_mode = #tpu.pipeline_mode<synchronous>, transform_indices = @transform_6, window_bounds = array<i64: 1, 32>}, {pipeline_mode = #tpu.pipeline_mode<synchronous>, transform_indices = @transform_7, window_bounds = array<i64: 32, 96>}, {pipeline_mode = #tpu.pipeline_mode<synchronous>, transform_indices = @transform_8, window_bounds = array<i64: 1, 96>}, {pipeline_mode = #tpu.pipeline_mode<synchronous>, transform_indices = @transform_9, window_bounds = array<i64: 2, 64, 64>}, {pipeline_mode = #tpu.pipeline_mode<synchronous>, transform_indices = @transform_10, window_bounds = array<i64: 32, 32>}, {pipeline_mode = #tpu.pipeline_mode<synchronous>, transform_indices = @transform_11, window_bounds = array<i64: 1, 32>}, {pipeline_mode = #tpu.pipeline_mode<synchronous>, transform_indices = @transform_12, window_bounds = array<i64: 1, 32>}, {pipeline_mode = #tpu.pipeline_mode<synchronous>, transform_indices = @transform_13, window_bounds = array<i64: 1, 32>}, {pipeline_mode = #tpu.pipeline_mode<synchronous>, transform_indices = @transform_14, window_bounds = array<i64: 32, 128>}, {pipeline_mode = #tpu.pipeline_mode<synchronous>, transform_indices = @transform_15, window_bounds = array<i64: 1, 128>}, {pipeline_mode = #tpu.pipeline_mode<synchronous>, transform_indices = @transform_16, window_bounds = array<i64: 128, 32>}, {pipeline_mode = #tpu.pipeline_mode<synchronous>, transform_indices = @transform_17, window_bounds = array<i64: 1, 32>}, {pipeline_mode = #tpu.pipeline_mode<synchronous>, transform_indices = @transform_18, window_bounds = array<i64: 1, 32>}, {pipeline_mode = #tpu.pipeline_mode<synchronous>, transform_indices = @transform_19, window_bounds = array<i64: 1, 32>}, {pipeline_mode = #tpu.pipeline_mode<synchronous>, transform_indices = @transform_20, window_bounds = array<i64: 32, 96>}, {pipeline_mode = #tpu.pipeline_mode<synchronous>, transform_indices = @transform_21, window_bounds = array<i64: 1, 96>}, {pipeline_mode = #tpu.pipeline_mode<synchronous>, transform_indices = @transform_22, window_bounds = array<i64: 2, 64, 64>}, {pipeline_mode = #tpu.pipeline_mode<synchronous>, transform_indices = @transform_23, window_bounds = array<i64: 32, 32>}, {pipeline_mode = #tpu.pipeline_mode<synchronous>, transform_indices = @transform_24, window_bounds = array<i64: 1, 32>}, {pipeline_mode = #tpu.pipeline_mode<synchronous>, transform_indices = @transform_25, window_bounds = array<i64: 1, 32>}, {pipeline_mode = #tpu.pipeline_mode<synchronous>, transform_indices = @transform_26, window_bounds = array<i64: 1, 32>}, {pipeline_mode = #tpu.pipeline_mode<synchronous>, transform_indices = @transform_27, window_bounds = array<i64: 32, 128>}, {pipeline_mode = #tpu.pipeline_mode<synchronous>, transform_indices = @transform_28, window_bounds = array<i64: 1, 128>}, {pipeline_mode = #tpu.pipeline_mode<synchronous>, transform_indices = @transform_29, window_bounds = array<i64: 128, 32>}, {pipeline_mode = #tpu.pipeline_mode<synchronous>, transform_indices = @transform_30, window_bounds = array<i64: 1, 32>}, {transform_indices = @transform_31, window_bounds = array<i64: 1, 64, 32>}]} {
    %c0 = arith.constant 0 : index
    %c0_0 = arith.constant 0 : index
    %c0_1 = arith.constant 0 : index
    %0 = vector.load %arg1[%c0, %c0_0, %c0_1] : memref<1x64x48xbf16, #tpu.memory_space<vmem>>, vector<1x64x48xbf16>
    %1 = vector.shape_cast %0 : vector<1x64x48xbf16> to vector<64x48xbf16>
    %c0_2 = arith.constant 0 : index
    %c0_3 = arith.constant 0 : index
    %2 = vector.load %arg2[%c0_2, %c0_3] : memref<48x32xbf16, #tpu.memory_space<vmem>>, vector<48x32xbf16>
    %cst = arith.constant dense<0.000000e+00> : vector<64x32xf32>
    %3 = tpu.matmul %1, %2, %cst {dimension_numbers = #tpu.dot_dimension_numbers<[1], [0], [0], [1], [0, 0, 1, 1], [], []>} : vector<64x48xbf16>, vector<48x32xbf16>, vector<64x32xf32> -> vector<64x32xf32>
    %c0_4 = arith.constant 0 : index
    %c0_5 = arith.constant 0 : index
    %4 = vector.load %arg3[%c0_4, %c0_5] : memref<1x32xf32, #tpu.memory_space<vmem>>, vector<1x32xf32>
    %5 = vector.broadcast %4 : vector<1x32xf32> to vector<64x32xf32>
    %6 = arith.addf %3, %5 : vector<64x32xf32>
    %c0_6 = arith.constant 0 : index
    %c0_7 = arith.constant 0 : index
    %7 = vector.load %arg4[%c0_6, %c0_7] : memref<1x32xf32, #tpu.memory_space<vmem>>, vector<1x32xf32>
    %c0_8 = arith.constant 0 : index
    %c0_9 = arith.constant 0 : index
    %8 = vector.load %arg5[%c0_8, %c0_9] : memref<1x32xf32, #tpu.memory_space<vmem>>, vector<1x32xf32>
    %cst_10 = arith.constant dense<0.000000e+00> : vector<64xf32>
    %9 = vector.multi_reduction <add>, %6, %cst_10 [1] : vector<64x32xf32> to vector<64xf32>
    %10 = vector.shape_cast %9 : vector<64xf32> to vector<64x1xf32>
    %cst_11 = arith.constant 3.200000e+01 : f32
    %11 = vector.broadcast %cst_11 : f32 to vector<64x1xf32>
    %12 = arith.divf %10, %11 : vector<64x1xf32>
    %13 = vector.broadcast %12 : vector<64x1xf32> to vector<64x32xf32>
    %14 = arith.subf %6, %13 : vector<64x32xf32>
    %15 = arith.mulf %14, %14 : vector<64x32xf32>
    %cst_12 = arith.constant dense<0.000000e+00> : vector<64xf32>
    %16 = vector.multi_reduction <add>, %15, %cst_12 [1] : vector<64x32xf32> to vector<64xf32>
    %17 = vector.shape_cast %16 : vector<64xf32> to vector<64x1xf32>
    %cst_13 = arith.constant 3.200000e+01 : f32
    %18 = vector.broadcast %cst_13 : f32 to vector<64x1xf32>
    %19 = arith.divf %17, %18 : vector<64x1xf32>
    %cst_14 = arith.constant 9.99999974E-6 : f32
    %20 = vector.broadcast %cst_14 : f32 to vector<64x1xf32>
    %21 = arith.addf %19, %20 : vector<64x1xf32>
    %22 = math.rsqrt %21 : vector<64x1xf32>
    %23 = vector.broadcast %22 : vector<64x1xf32> to vector<64x32xf32>
    %24 = arith.mulf %14, %23 : vector<64x32xf32>
    %25 = vector.broadcast %7 : vector<1x32xf32> to vector<64x32xf32>
    %26 = arith.mulf %24, %25 : vector<64x32xf32>
    %27 = vector.broadcast %8 : vector<1x32xf32> to vector<64x32xf32>
    %28 = arith.addf %26, %27 : vector<64x32xf32>
    %c0_15 = arith.constant 0 : index
    %c0_16 = arith.constant 0 : index
    %29 = vector.load %arg6[%c0_15, %c0_16] : memref<1x32xf32, #tpu.memory_space<vmem>>, vector<1x32xf32>
    %c0_17 = arith.constant 0 : index
    %c0_18 = arith.constant 0 : index
    %30 = vector.load %arg7[%c0_17, %c0_18] : memref<1x32xf32, #tpu.memory_space<vmem>>, vector<1x32xf32>
    %cst_19 = arith.constant dense<0.000000e+00> : vector<64xf32>
    %31 = vector.multi_reduction <add>, %28, %cst_19 [1] : vector<64x32xf32> to vector<64xf32>
    %32 = vector.shape_cast %31 : vector<64xf32> to vector<64x1xf32>
    %cst_20 = arith.constant 3.200000e+01 : f32
    %33 = vector.broadcast %cst_20 : f32 to vector<64x1xf32>
    %34 = arith.divf %32, %33 : vector<64x1xf32>
    %35 = vector.broadcast %34 : vector<64x1xf32> to vector<64x32xf32>
    %36 = arith.subf %28, %35 : vector<64x32xf32>
    %37 = arith.mulf %36, %36 : vector<64x32xf32>
    %cst_21 = arith.constant dense<0.000000e+00> : vector<64xf32>
    %38 = vector.multi_reduction <add>, %37, %cst_21 [1] : vector<64x32xf32> to vector<64xf32>
    %39 = vector.shape_cast %38 : vector<64xf32> to vector<64x1xf32>
    %cst_22 = arith.constant 3.200000e+01 : f32
    %40 = vector.broadcast %cst_22 : f32 to vector<64x1xf32>
    %41 = arith.divf %39, %40 : vector<64x1xf32>
    %cst_23 = arith.constant 9.99999974E-6 : f32
    %42 = vector.broadcast %cst_23 : f32 to vector<64x1xf32>
    %43 = arith.addf %41, %42 : vector<64x1xf32>
    %44 = math.rsqrt %43 : vector<64x1xf32>
    %45 = vector.broadcast %44 : vector<64x1xf32> to vector<64x32xf32>
    %46 = arith.mulf %36, %45 : vector<64x32xf32>
    %47 = vector.broadcast %29 : vector<1x32xf32> to vector<64x32xf32>
    %48 = arith.mulf %46, %47 : vector<64x32xf32>
    %49 = vector.broadcast %30 : vector<1x32xf32> to vector<64x32xf32>
    %50 = arith.addf %48, %49 : vector<64x32xf32>
    %51 = arith.truncf %50 : vector<64x32xf32> to vector<64x32xbf16>
    %c0_24 = arith.constant 0 : index
    %c0_25 = arith.constant 0 : index
    %52 = vector.load %arg8[%c0_24, %c0_25] : memref<32x96xbf16, #tpu.memory_space<vmem>>, vector<32x96xbf16>
    %cst_26 = arith.constant dense<0.000000e+00> : vector<64x96xf32>
    %53 = tpu.matmul %51, %52, %cst_26 {dimension_numbers = #tpu.dot_dimension_numbers<[1], [0], [0], [1], [0, 0, 1, 1], [], []>} : vector<64x32xbf16>, vector<32x96xbf16>, vector<64x96xf32> -> vector<64x96xf32>
    %c0_27 = arith.constant 0 : index
    %c0_28 = arith.constant 0 : index
    %54 = vector.load %arg9[%c0_27, %c0_28] : memref<1x96xf32, #tpu.memory_space<vmem>>, vector<1x96xf32>
    %55 = vector.broadcast %54 : vector<1x96xf32> to vector<64x96xf32>
    %56 = arith.addf %53, %55 : vector<64x96xf32>
    %c0_29 = arith.constant 0 : index
    %c0_30 = arith.constant 0 : index
    %57 = vector.load %arg11[%c0_29, %c0_30] : memref<32x32xbf16, #tpu.memory_space<vmem>>, vector<32x32xbf16>
    %cst_31 = arith.constant 0.000000e+00 : f32
    %58 = vector.broadcast %cst_31 : f32 to vector<64x32xf32>
    %59 = vector.extract_strided_slice %56 {offsets = [0, 0], sizes = [64, 16], strides = [1, 1]} : vector<64x96xf32> to vector<64x16xf32>
    %60 = arith.truncf %59 : vector<64x16xf32> to vector<64x16xbf16>
    %61 = vector.extract_strided_slice %56 {offsets = [0, 32], sizes = [64, 16], strides = [1, 1]} : vector<64x96xf32> to vector<64x16xf32>
    %62 = arith.truncf %61 : vector<64x16xf32> to vector<64x16xbf16>
    %63 = vector.extract_strided_slice %56 {offsets = [0, 64], sizes = [64, 16], strides = [1, 1]} : vector<64x96xf32> to vector<64x16xf32>
    %64 = arith.truncf %63 : vector<64x16xf32> to vector<64x16xbf16>
    %65 = tpu.transpose %62, [1, 0] : vector<64x16xbf16> -> vector<16x64xbf16>
    %cst_32 = arith.constant dense<0.000000e+00> : vector<64x64xf32>
    %66 = tpu.matmul %60, %65, %cst_32 {dimension_numbers = #tpu.dot_dimension_numbers<[1], [0], [0], [1], [0, 0, 1, 1], [], []>} : vector<64x16xbf16>, vector<16x64xbf16>, vector<64x64xf32> -> vector<64x64xf32>
    %cst_33 = arith.constant 2.500000e-01 : f32
    %67 = vector.broadcast %cst_33 : f32 to vector<64x64xf32>
    %68 = arith.mulf %66, %67 : vector<64x64xf32>
    %c0_34 = arith.constant 0 : index
    %c0_35 = arith.constant 0 : index
    %c0_36 = arith.constant 0 : index
    %69 = vector.load %arg10[%c0_34, %c0_35, %c0_36] : memref<2x64x64xf32, #tpu.memory_space<vmem>>, vector<1x64x64xf32>
    %70 = vector.shape_cast %69 : vector<1x64x64xf32> to vector<64x64xf32>
    %71 = arith.addf %68, %70 : vector<64x64xf32>
    %cst_37 = arith.constant dense<0xFF800000> : vector<64xf32>
    %72 = vector.multi_reduction <maximumf>, %71, %cst_37 [1] : vector<64x64xf32> to vector<64xf32>
    %73 = vector.shape_cast %72 : vector<64xf32> to vector<64x1xf32>
    %74 = vector.broadcast %73 : vector<64x1xf32> to vector<64x64xf32>
    %75 = arith.subf %71, %74 : vector<64x64xf32>
    %76 = math.exp %75 : vector<64x64xf32>
    %cst_38 = arith.constant dense<0.000000e+00> : vector<64xf32>
    %77 = vector.multi_reduction <add>, %76, %cst_38 [1] : vector<64x64xf32> to vector<64xf32>
    %78 = vector.shape_cast %77 : vector<64xf32> to vector<64x1xf32>
    %79 = vector.broadcast %78 : vector<64x1xf32> to vector<64x64xf32>
    %80 = arith.divf %76, %79 : vector<64x64xf32>
    %81 = arith.truncf %80 : vector<64x64xf32> to vector<64x64xbf16>
    %cst_39 = arith.constant dense<0.000000e+00> : vector<64x16xf32>
    %82 = tpu.matmul %81, %64, %cst_39 {dimension_numbers = #tpu.dot_dimension_numbers<[1], [0], [0], [1], [0, 0, 1, 1], [], []>} : vector<64x64xbf16>, vector<64x16xbf16>, vector<64x16xf32> -> vector<64x16xf32>
    %83 = arith.truncf %82 : vector<64x16xf32> to vector<64x16xbf16>
    %84 = vector.extract_strided_slice %57 {offsets = [0, 0], sizes = [16, 32], strides = [1, 1]} : vector<32x32xbf16> to vector<16x32xbf16>
    %cst_40 = arith.constant dense<0.000000e+00> : vector<64x32xf32>
    %85 = tpu.matmul %83, %84, %cst_40 {dimension_numbers = #tpu.dot_dimension_numbers<[1], [0], [0], [1], [0, 0, 1, 1], [], []>} : vector<64x16xbf16>, vector<16x32xbf16>, vector<64x32xf32> -> vector<64x32xf32>
    %86 = arith.addf %58, %85 : vector<64x32xf32>
    %87 = vector.extract_strided_slice %56 {offsets = [0, 16], sizes = [64, 16], strides = [1, 1]} : vector<64x96xf32> to vector<64x16xf32>
    %88 = arith.truncf %87 : vector<64x16xf32> to vector<64x16xbf16>
    %89 = vector.extract_strided_slice %56 {offsets = [0, 48], sizes = [64, 16], strides = [1, 1]} : vector<64x96xf32> to vector<64x16xf32>
    %90 = arith.truncf %89 : vector<64x16xf32> to vector<64x16xbf16>
    %91 = vector.extract_strided_slice %56 {offsets = [0, 80], sizes = [64, 16], strides = [1, 1]} : vector<64x96xf32> to vector<64x16xf32>
    %92 = arith.truncf %91 : vector<64x16xf32> to vector<64x16xbf16>
    %93 = tpu.transpose %90, [1, 0] : vector<64x16xbf16> -> vector<16x64xbf16>
    %cst_41 = arith.constant dense<0.000000e+00> : vector<64x64xf32>
    %94 = tpu.matmul %88, %93, %cst_41 {dimension_numbers = #tpu.dot_dimension_numbers<[1], [0], [0], [1], [0, 0, 1, 1], [], []>} : vector<64x16xbf16>, vector<16x64xbf16>, vector<64x64xf32> -> vector<64x64xf32>
    %cst_42 = arith.constant 2.500000e-01 : f32
    %95 = vector.broadcast %cst_42 : f32 to vector<64x64xf32>
    %96 = arith.mulf %94, %95 : vector<64x64xf32>
    %c1 = arith.constant 1 : index
    %c0_43 = arith.constant 0 : index
    %c0_44 = arith.constant 0 : index
    %97 = vector.load %arg10[%c1, %c0_43, %c0_44] : memref<2x64x64xf32, #tpu.memory_space<vmem>>, vector<1x64x64xf32>
    %98 = vector.shape_cast %97 : vector<1x64x64xf32> to vector<64x64xf32>
    %99 = arith.addf %96, %98 : vector<64x64xf32>
    %cst_45 = arith.constant dense<0xFF800000> : vector<64xf32>
    %100 = vector.multi_reduction <maximumf>, %99, %cst_45 [1] : vector<64x64xf32> to vector<64xf32>
    %101 = vector.shape_cast %100 : vector<64xf32> to vector<64x1xf32>
    %102 = vector.broadcast %101 : vector<64x1xf32> to vector<64x64xf32>
    %103 = arith.subf %99, %102 : vector<64x64xf32>
    %104 = math.exp %103 : vector<64x64xf32>
    %cst_46 = arith.constant dense<0.000000e+00> : vector<64xf32>
    %105 = vector.multi_reduction <add>, %104, %cst_46 [1] : vector<64x64xf32> to vector<64xf32>
    %106 = vector.shape_cast %105 : vector<64xf32> to vector<64x1xf32>
    %107 = vector.broadcast %106 : vector<64x1xf32> to vector<64x64xf32>
    %108 = arith.divf %104, %107 : vector<64x64xf32>
    %109 = arith.truncf %108 : vector<64x64xf32> to vector<64x64xbf16>
    %cst_47 = arith.constant dense<0.000000e+00> : vector<64x16xf32>
    %110 = tpu.matmul %109, %92, %cst_47 {dimension_numbers = #tpu.dot_dimension_numbers<[1], [0], [0], [1], [0, 0, 1, 1], [], []>} : vector<64x64xbf16>, vector<64x16xbf16>, vector<64x16xf32> -> vector<64x16xf32>
    %111 = arith.truncf %110 : vector<64x16xf32> to vector<64x16xbf16>
    %112 = vector.extract_strided_slice %57 {offsets = [16, 0], sizes = [16, 32], strides = [1, 1]} : vector<32x32xbf16> to vector<16x32xbf16>
    %cst_48 = arith.constant dense<0.000000e+00> : vector<64x32xf32>
    %113 = tpu.matmul %111, %112, %cst_48 {dimension_numbers = #tpu.dot_dimension_numbers<[1], [0], [0], [1], [0, 0, 1, 1], [], []>} : vector<64x16xbf16>, vector<16x32xbf16>, vector<64x32xf32> -> vector<64x32xf32>
    %114 = arith.addf %86, %113 : vector<64x32xf32>
    %115 = arith.addf %28, %114 : vector<64x32xf32>
    %c0_49 = arith.constant 0 : index
    %c0_50 = arith.constant 0 : index
    %116 = vector.load %arg12[%c0_49, %c0_50] : memref<1x32xf32, #tpu.memory_space<vmem>>, vector<1x32xf32>
    %117 = vector.broadcast %116 : vector<1x32xf32> to vector<64x32xf32>
    %118 = arith.addf %115, %117 : vector<64x32xf32>
    %c0_51 = arith.constant 0 : index
    %c0_52 = arith.constant 0 : index
    %119 = vector.load %arg13[%c0_51, %c0_52] : memref<1x32xf32, #tpu.memory_space<vmem>>, vector<1x32xf32>
    %c0_53 = arith.constant 0 : index
    %c0_54 = arith.constant 0 : index
    %120 = vector.load %arg14[%c0_53, %c0_54] : memref<1x32xf32, #tpu.memory_space<vmem>>, vector<1x32xf32>
    %cst_55 = arith.constant dense<0.000000e+00> : vector<64xf32>
    %121 = vector.multi_reduction <add>, %118, %cst_55 [1] : vector<64x32xf32> to vector<64xf32>
    %122 = vector.shape_cast %121 : vector<64xf32> to vector<64x1xf32>
    %cst_56 = arith.constant 3.200000e+01 : f32
    %123 = vector.broadcast %cst_56 : f32 to vector<64x1xf32>
    %124 = arith.divf %122, %123 : vector<64x1xf32>
    %125 = vector.broadcast %124 : vector<64x1xf32> to vector<64x32xf32>
    %126 = arith.subf %118, %125 : vector<64x32xf32>
    %127 = arith.mulf %126, %126 : vector<64x32xf32>
    %cst_57 = arith.constant dense<0.000000e+00> : vector<64xf32>
    %128 = vector.multi_reduction <add>, %127, %cst_57 [1] : vector<64x32xf32> to vector<64xf32>
    %129 = vector.shape_cast %128 : vector<64xf32> to vector<64x1xf32>
    %cst_58 = arith.constant 3.200000e+01 : f32
    %130 = vector.broadcast %cst_58 : f32 to vector<64x1xf32>
    %131 = arith.divf %129, %130 : vector<64x1xf32>
    %cst_59 = arith.constant 9.99999974E-6 : f32
    %132 = vector.broadcast %cst_59 : f32 to vector<64x1xf32>
    %133 = arith.addf %131, %132 : vector<64x1xf32>
    %134 = math.rsqrt %133 : vector<64x1xf32>
    %135 = vector.broadcast %134 : vector<64x1xf32> to vector<64x32xf32>
    %136 = arith.mulf %126, %135 : vector<64x32xf32>
    %137 = vector.broadcast %119 : vector<1x32xf32> to vector<64x32xf32>
    %138 = arith.mulf %136, %137 : vector<64x32xf32>
    %139 = vector.broadcast %120 : vector<1x32xf32> to vector<64x32xf32>
    %140 = arith.addf %138, %139 : vector<64x32xf32>
    %141 = arith.truncf %140 : vector<64x32xf32> to vector<64x32xbf16>
    %c0_60 = arith.constant 0 : index
    %c0_61 = arith.constant 0 : index
    %142 = vector.load %arg15[%c0_60, %c0_61] : memref<32x128xbf16, #tpu.memory_space<vmem>>, vector<32x128xbf16>
    %cst_62 = arith.constant dense<0.000000e+00> : vector<64x128xf32>
    %143 = tpu.matmul %141, %142, %cst_62 {dimension_numbers = #tpu.dot_dimension_numbers<[1], [0], [0], [1], [0, 0, 1, 1], [], []>} : vector<64x32xbf16>, vector<32x128xbf16>, vector<64x128xf32> -> vector<64x128xf32>
    %c0_63 = arith.constant 0 : index
    %c0_64 = arith.constant 0 : index
    %144 = vector.load %arg16[%c0_63, %c0_64] : memref<1x128xf32, #tpu.memory_space<vmem>>, vector<1x128xf32>
    %145 = vector.broadcast %144 : vector<1x128xf32> to vector<64x128xf32>
    %146 = arith.addf %143, %145 : vector<64x128xf32>
    %cst_65 = arith.constant 5.000000e-01 : f32
    %147 = vector.broadcast %cst_65 : f32 to vector<64x128xf32>
    %148 = arith.mulf %147, %146 : vector<64x128xf32>
    %cst_66 = arith.constant 4.471500e-02 : f32
    %149 = vector.broadcast %cst_66 : f32 to vector<64x128xf32>
    %150 = arith.mulf %149, %146 : vector<64x128xf32>
    %151 = arith.mulf %150, %146 : vector<64x128xf32>
    %152 = arith.mulf %151, %146 : vector<64x128xf32>
    %153 = arith.addf %146, %152 : vector<64x128xf32>
    %cst_67 = arith.constant 0.797884583 : f32
    %154 = vector.broadcast %cst_67 : f32 to vector<64x128xf32>
    %155 = arith.mulf %154, %153 : vector<64x128xf32>
    %156 = math.tanh %155 : vector<64x128xf32>
    %cst_68 = arith.constant 1.000000e+00 : f32
    %157 = vector.broadcast %cst_68 : f32 to vector<64x128xf32>
    %158 = arith.addf %157, %156 : vector<64x128xf32>
    %159 = arith.mulf %148, %158 : vector<64x128xf32>
    %160 = arith.truncf %159 : vector<64x128xf32> to vector<64x128xbf16>
    %c0_69 = arith.constant 0 : index
    %c0_70 = arith.constant 0 : index
    %161 = vector.load %arg17[%c0_69, %c0_70] : memref<128x32xbf16, #tpu.memory_space<vmem>>, vector<128x32xbf16>
    %cst_71 = arith.constant dense<0.000000e+00> : vector<64x32xf32>
    %162 = tpu.matmul %160, %161, %cst_71 {dimension_numbers = #tpu.dot_dimension_numbers<[1], [0], [0], [1], [0, 0, 1, 1], [], []>} : vector<64x128xbf16>, vector<128x32xbf16>, vector<64x32xf32> -> vector<64x32xf32>
    %c0_72 = arith.constant 0 : index
    %c0_73 = arith.constant 0 : index
    %163 = vector.load %arg18[%c0_72, %c0_73] : memref<1x32xf32, #tpu.memory_space<vmem>>, vector<1x32xf32>
    %164 = vector.broadcast %163 : vector<1x32xf32> to vector<64x32xf32>
    %165 = arith.addf %162, %164 : vector<64x32xf32>
    %166 = arith.addf %118, %165 : vector<64x32xf32>
    %c0_74 = arith.constant 0 : index
    %c0_75 = arith.constant 0 : index
    %167 = vector.load %arg19[%c0_74, %c0_75] : memref<1x32xf32, #tpu.memory_space<vmem>>, vector<1x32xf32>
    %c0_76 = arith.constant 0 : index
    %c0_77 = arith.constant 0 : index
    %168 = vector.load %arg20[%c0_76, %c0_77] : memref<1x32xf32, #tpu.memory_space<vmem>>, vector<1x32xf32>
    %cst_78 = arith.constant dense<0.000000e+00> : vector<64xf32>
    %169 = vector.multi_reduction <add>, %166, %cst_78 [1] : vector<64x32xf32> to vector<64xf32>
    %170 = vector.shape_cast %169 : vector<64xf32> to vector<64x1xf32>
    %cst_79 = arith.constant 3.200000e+01 : f32
    %171 = vector.broadcast %cst_79 : f32 to vector<64x1xf32>
    %172 = arith.divf %170, %171 : vector<64x1xf32>
    %173 = vector.broadcast %172 : vector<64x1xf32> to vector<64x32xf32>
    %174 = arith.subf %166, %173 : vector<64x32xf32>
    %175 = arith.mulf %174, %174 : vector<64x32xf32>
    %cst_80 = arith.constant dense<0.000000e+00> : vector<64xf32>
    %176 = vector.multi_reduction <add>, %175, %cst_80 [1] : vector<64x32xf32> to vector<64xf32>
    %177 = vector.shape_cast %176 : vector<64xf32> to vector<64x1xf32>
    %cst_81 = arith.constant 3.200000e+01 : f32
    %178 = vector.broadcast %cst_81 : f32 to vector<64x1xf32>
    %179 = arith.divf %177, %178 : vector<64x1xf32>
    %cst_82 = arith.constant 9.99999974E-6 : f32
    %180 = vector.broadcast %cst_82 : f32 to vector<64x1xf32>
    %181 = arith.addf %179, %180 : vector<64x1xf32>
    %182 = math.rsqrt %181 : vector<64x1xf32>
    %183 = vector.broadcast %182 : vector<64x1xf32> to vector<64x32xf32>
    %184 = arith.mulf %174, %183 : vector<64x32xf32>
    %185 = vector.broadcast %167 : vector<1x32xf32> to vector<64x32xf32>
    %186 = arith.mulf %184, %185 : vector<64x32xf32>
    %187 = vector.broadcast %168 : vector<1x32xf32> to vector<64x32xf32>
    %188 = arith.addf %186, %187 : vector<64x32xf32>
    %189 = arith.truncf %188 : vector<64x32xf32> to vector<64x32xbf16>
    %c0_83 = arith.constant 0 : index
    %c0_84 = arith.constant 0 : index
    %190 = vector.load %arg21[%c0_83, %c0_84] : memref<32x96xbf16, #tpu.memory_space<vmem>>, vector<32x96xbf16>
    %cst_85 = arith.constant dense<0.000000e+00> : vector<64x96xf32>
    %191 = tpu.matmul %189, %190, %cst_85 {dimension_numbers = #tpu.dot_dimension_numbers<[1], [0], [0], [1], [0, 0, 1, 1], [], []>} : vector<64x32xbf16>, vector<32x96xbf16>, vector<64x96xf32> -> vector<64x96xf32>
    %c0_86 = arith.constant 0 : index
    %c0_87 = arith.constant 0 : index
    %192 = vector.load %arg22[%c0_86, %c0_87] : memref<1x96xf32, #tpu.memory_space<vmem>>, vector<1x96xf32>
    %193 = vector.broadcast %192 : vector<1x96xf32> to vector<64x96xf32>
    %194 = arith.addf %191, %193 : vector<64x96xf32>
    %c0_88 = arith.constant 0 : index
    %c0_89 = arith.constant 0 : index
    %195 = vector.load %arg24[%c0_88, %c0_89] : memref<32x32xbf16, #tpu.memory_space<vmem>>, vector<32x32xbf16>
    %cst_90 = arith.constant 0.000000e+00 : f32
    %196 = vector.broadcast %cst_90 : f32 to vector<64x32xf32>
    %197 = vector.extract_strided_slice %194 {offsets = [0, 0], sizes = [64, 16], strides = [1, 1]} : vector<64x96xf32> to vector<64x16xf32>
    %198 = arith.truncf %197 : vector<64x16xf32> to vector<64x16xbf16>
    %199 = vector.extract_strided_slice %194 {offsets = [0, 32], sizes = [64, 16], strides = [1, 1]} : vector<64x96xf32> to vector<64x16xf32>
    %200 = arith.truncf %199 : vector<64x16xf32> to vector<64x16xbf16>
    %201 = vector.extract_strided_slice %194 {offsets = [0, 64], sizes = [64, 16], strides = [1, 1]} : vector<64x96xf32> to vector<64x16xf32>
    %202 = arith.truncf %201 : vector<64x16xf32> to vector<64x16xbf16>
    %203 = tpu.transpose %200, [1, 0] : vector<64x16xbf16> -> vector<16x64xbf16>
    %cst_91 = arith.constant dense<0.000000e+00> : vector<64x64xf32>
    %204 = tpu.matmul %198, %203, %cst_91 {dimension_numbers = #tpu.dot_dimension_numbers<[1], [0], [0], [1], [0, 0, 1, 1], [], []>} : vector<64x16xbf16>, vector<16x64xbf16>, vector<64x64xf32> -> vector<64x64xf32>
    %cst_92 = arith.constant 2.500000e-01 : f32
    %205 = vector.broadcast %cst_92 : f32 to vector<64x64xf32>
    %206 = arith.mulf %204, %205 : vector<64x64xf32>
    %c0_93 = arith.constant 0 : index
    %c0_94 = arith.constant 0 : index
    %c0_95 = arith.constant 0 : index
    %207 = vector.load %arg23[%c0_93, %c0_94, %c0_95] : memref<2x64x64xf32, #tpu.memory_space<vmem>>, vector<1x64x64xf32>
    %208 = vector.shape_cast %207 : vector<1x64x64xf32> to vector<64x64xf32>
    %209 = arith.addf %206, %208 : vector<64x64xf32>
    %cst_96 = arith.constant dense<0xFF800000> : vector<64xf32>
    %210 = vector.multi_reduction <maximumf>, %209, %cst_96 [1] : vector<64x64xf32> to vector<64xf32>
    %211 = vector.shape_cast %210 : vector<64xf32> to vector<64x1xf32>
    %212 = vector.broadcast %211 : vector<64x1xf32> to vector<64x64xf32>
    %213 = arith.subf %209, %212 : vector<64x64xf32>
    %214 = math.exp %213 : vector<64x64xf32>
    %cst_97 = arith.constant dense<0.000000e+00> : vector<64xf32>
    %215 = vector.multi_reduction <add>, %214, %cst_97 [1] : vector<64x64xf32> to vector<64xf32>
    %216 = vector.shape_cast %215 : vector<64xf32> to vector<64x1xf32>
    %217 = vector.broadcast %216 : vector<64x1xf32> to vector<64x64xf32>
    %218 = arith.divf %214, %217 : vector<64x64xf32>
    %219 = arith.truncf %218 : vector<64x64xf32> to vector<64x64xbf16>
    %cst_98 = arith.constant dense<0.000000e+00> : vector<64x16xf32>
    %220 = tpu.matmul %219, %202, %cst_98 {dimension_numbers = #tpu.dot_dimension_numbers<[1], [0], [0], [1], [0, 0, 1, 1], [], []>} : vector<64x64xbf16>, vector<64x16xbf16>, vector<64x16xf32> -> vector<64x16xf32>
    %221 = arith.truncf %220 : vector<64x16xf32> to vector<64x16xbf16>
    %222 = vector.extract_strided_slice %195 {offsets = [0, 0], sizes = [16, 32], strides = [1, 1]} : vector<32x32xbf16> to vector<16x32xbf16>
    %cst_99 = arith.constant dense<0.000000e+00> : vector<64x32xf32>
    %223 = tpu.matmul %221, %222, %cst_99 {dimension_numbers = #tpu.dot_dimension_numbers<[1], [0], [0], [1], [0, 0, 1, 1], [], []>} : vector<64x16xbf16>, vector<16x32xbf16>, vector<64x32xf32> -> vector<64x32xf32>
    %224 = arith.addf %196, %223 : vector<64x32xf32>
    %225 = vector.extract_strided_slice %194 {offsets = [0, 16], sizes = [64, 16], strides = [1, 1]} : vector<64x96xf32> to vector<64x16xf32>
    %226 = arith.truncf %225 : vector<64x16xf32> to vector<64x16xbf16>
    %227 = vector.extract_strided_slice %194 {offsets = [0, 48], sizes = [64, 16], strides = [1, 1]} : vector<64x96xf32> to vector<64x16xf32>
    %228 = arith.truncf %227 : vector<64x16xf32> to vector<64x16xbf16>
    %229 = vector.extract_strided_slice %194 {offsets = [0, 80], sizes = [64, 16], strides = [1, 1]} : vector<64x96xf32> to vector<64x16xf32>
    %230 = arith.truncf %229 : vector<64x16xf32> to vector<64x16xbf16>
    %231 = tpu.transpose %228, [1, 0] : vector<64x16xbf16> -> vector<16x64xbf16>
    %cst_100 = arith.constant dense<0.000000e+00> : vector<64x64xf32>
    %232 = tpu.matmul %226, %231, %cst_100 {dimension_numbers = #tpu.dot_dimension_numbers<[1], [0], [0], [1], [0, 0, 1, 1], [], []>} : vector<64x16xbf16>, vector<16x64xbf16>, vector<64x64xf32> -> vector<64x64xf32>
    %cst_101 = arith.constant 2.500000e-01 : f32
    %233 = vector.broadcast %cst_101 : f32 to vector<64x64xf32>
    %234 = arith.mulf %232, %233 : vector<64x64xf32>
    %c1_102 = arith.constant 1 : index
    %c0_103 = arith.constant 0 : index
    %c0_104 = arith.constant 0 : index
    %235 = vector.load %arg23[%c1_102, %c0_103, %c0_104] : memref<2x64x64xf32, #tpu.memory_space<vmem>>, vector<1x64x64xf32>
    %236 = vector.shape_cast %235 : vector<1x64x64xf32> to vector<64x64xf32>
    %237 = arith.addf %234, %236 : vector<64x64xf32>
    %cst_105 = arith.constant dense<0xFF800000> : vector<64xf32>
    %238 = vector.multi_reduction <maximumf>, %237, %cst_105 [1] : vector<64x64xf32> to vector<64xf32>
    %239 = vector.shape_cast %238 : vector<64xf32> to vector<64x1xf32>
    %240 = vector.broadcast %239 : vector<64x1xf32> to vector<64x64xf32>
    %241 = arith.subf %237, %240 : vector<64x64xf32>
    %242 = math.exp %241 : vector<64x64xf32>
    %cst_106 = arith.constant dense<0.000000e+00> : vector<64xf32>
    %243 = vector.multi_reduction <add>, %242, %cst_106 [1] : vector<64x64xf32> to vector<64xf32>
    %244 = vector.shape_cast %243 : vector<64xf32> to vector<64x1xf32>
    %245 = vector.broadcast %244 : vector<64x1xf32> to vector<64x64xf32>
    %246 = arith.divf %242, %245 : vector<64x64xf32>
    %247 = arith.truncf %246 : vector<64x64xf32> to vector<64x64xbf16>
    %cst_107 = arith.constant dense<0.000000e+00> : vector<64x16xf32>
    %248 = tpu.matmul %247, %230, %cst_107 {dimension_numbers = #tpu.dot_dimension_numbers<[1], [0], [0], [1], [0, 0, 1, 1], [], []>} : vector<64x64xbf16>, vector<64x16xbf16>, vector<64x16xf32> -> vector<64x16xf32>
    %249 = arith.truncf %248 : vector<64x16xf32> to vector<64x16xbf16>
    %250 = vector.extract_strided_slice %195 {offsets = [16, 0], sizes = [16, 32], strides = [1, 1]} : vector<32x32xbf16> to vector<16x32xbf16>
    %cst_108 = arith.constant dense<0.000000e+00> : vector<64x32xf32>
    %251 = tpu.matmul %249, %250, %cst_108 {dimension_numbers = #tpu.dot_dimension_numbers<[1], [0], [0], [1], [0, 0, 1, 1], [], []>} : vector<64x16xbf16>, vector<16x32xbf16>, vector<64x32xf32> -> vector<64x32xf32>
    %252 = arith.addf %224, %251 : vector<64x32xf32>
    %253 = arith.addf %166, %252 : vector<64x32xf32>
    %c0_109 = arith.constant 0 : index
    %c0_110 = arith.constant 0 : index
    %254 = vector.load %arg25[%c0_109, %c0_110] : memref<1x32xf32, #tpu.memory_space<vmem>>, vector<1x32xf32>
    %255 = vector.broadcast %254 : vector<1x32xf32> to vector<64x32xf32>
    %256 = arith.addf %253, %255 : vector<64x32xf32>
    %c0_111 = arith.constant 0 : index
    %c0_112 = arith.constant 0 : index
    %257 = vector.load %arg26[%c0_111, %c0_112] : memref<1x32xf32, #tpu.memory_space<vmem>>, vector<1x32xf32>
    %c0_113 = arith.constant 0 : index
    %c0_114 = arith.constant 0 : index
    %258 = vector.load %arg27[%c0_113, %c0_114] : memref<1x32xf32, #tpu.memory_space<vmem>>, vector<1x32xf32>
    %cst_115 = arith.constant dense<0.000000e+00> : vector<64xf32>
    %259 = vector.multi_reduction <add>, %256, %cst_115 [1] : vector<64x32xf32> to vector<64xf32>
    %260 = vector.shape_cast %259 : vector<64xf32> to vector<64x1xf32>
    %cst_116 = arith.constant 3.200000e+01 : f32
    %261 = vector.broadcast %cst_116 : f32 to vector<64x1xf32>
    %262 = arith.divf %260, %261 : vector<64x1xf32>
    %263 = vector.broadcast %262 : vector<64x1xf32> to vector<64x32xf32>
    %264 = arith.subf %256, %263 : vector<64x32xf32>
    %265 = arith.mulf %264, %264 : vector<64x32xf32>
    %cst_117 = arith.constant dense<0.000000e+00> : vector<64xf32>
    %266 = vector.multi_reduction <add>, %265, %cst_117 [1] : vector<64x32xf32> to vector<64xf32>
    %267 = vector.shape_cast %266 : vector<64xf32> to vector<64x1xf32>
    %cst_118 = arith.constant 3.200000e+01 : f32
    %268 = vector.broadcast %cst_118 : f32 to vector<64x1xf32>
    %269 = arith.divf %267, %268 : vector<64x1xf32>
    %cst_119 = arith.constant 9.99999974E-6 : f32
    %270 = vector.broadcast %cst_119 : f32 to vector<64x1xf32>
    %271 = arith.addf %269, %270 : vector<64x1xf32>
    %272 = math.rsqrt %271 : vector<64x1xf32>
    %273 = vector.broadcast %272 : vector<64x1xf32> to vector<64x32xf32>
    %274 = arith.mulf %264, %273 : vector<64x32xf32>
    %275 = vector.broadcast %257 : vector<1x32xf32> to vector<64x32xf32>
    %276 = arith.mulf %274, %275 : vector<64x32xf32>
    %277 = vector.broadcast %258 : vector<1x32xf32> to vector<64x32xf32>
    %278 = arith.addf %276, %277 : vector<64x32xf32>
    %279 = arith.truncf %278 : vector<64x32xf32> to vector<64x32xbf16>
    %c0_120 = arith.constant 0 : index
    %c0_121 = arith.constant 0 : index
    %280 = vector.load %arg28[%c0_120, %c0_121] : memref<32x128xbf16, #tpu.memory_space<vmem>>, vector<32x128xbf16>
    %cst_122 = arith.constant dense<0.000000e+00> : vector<64x128xf32>
    %281 = tpu.matmul %279, %280, %cst_122 {dimension_numbers = #tpu.dot_dimension_numbers<[1], [0], [0], [1], [0, 0, 1, 1], [], []>} : vector<64x32xbf16>, vector<32x128xbf16>, vector<64x128xf32> -> vector<64x128xf32>
    %c0_123 = arith.constant 0 : index
    %c0_124 = arith.constant 0 : index
    %282 = vector.load %arg29[%c0_123, %c0_124] : memref<1x128xf32, #tpu.memory_space<vmem>>, vector<1x128xf32>
    %283 = vector.broadcast %282 : vector<1x128xf32> to vector<64x128xf32>
    %284 = arith.addf %281, %283 : vector<64x128xf32>
    %cst_125 = arith.constant 5.000000e-01 : f32
    %285 = vector.broadcast %cst_125 : f32 to vector<64x128xf32>
    %286 = arith.mulf %285, %284 : vector<64x128xf32>
    %cst_126 = arith.constant 4.471500e-02 : f32
    %287 = vector.broadcast %cst_126 : f32 to vector<64x128xf32>
    %288 = arith.mulf %287, %284 : vector<64x128xf32>
    %289 = arith.mulf %288, %284 : vector<64x128xf32>
    %290 = arith.mulf %289, %284 : vector<64x128xf32>
    %291 = arith.addf %284, %290 : vector<64x128xf32>
    %cst_127 = arith.constant 0.797884583 : f32
    %292 = vector.broadcast %cst_127 : f32 to vector<64x128xf32>
    %293 = arith.mulf %292, %291 : vector<64x128xf32>
    %294 = math.tanh %293 : vector<64x128xf32>
    %cst_128 = arith.constant 1.000000e+00 : f32
    %295 = vector.broadcast %cst_128 : f32 to vector<64x128xf32>
    %296 = arith.addf %295, %294 : vector<64x128xf32>
    %297 = arith.mulf %286, %296 : vector<64x128xf32>
    %298 = arith.truncf %297 : vector<64x128xf32> to vector<64x128xbf16>
    %c0_129 = arith.constant 0 : index
    %c0_130 = arith.constant 0 : index
    %299 = vector.load %arg30[%c0_129, %c0_130] : memref<128x32xbf16, #tpu.memory_space<vmem>>, vector<128x32xbf16>
    %cst_131 = arith.constant dense<0.000000e+00> : vector<64x32xf32>
    %300 = tpu.matmul %298, %299, %cst_131 {dimension_numbers = #tpu.dot_dimension_numbers<[1], [0], [0], [1], [0, 0, 1, 1], [], []>} : vector<64x128xbf16>, vector<128x32xbf16>, vector<64x32xf32> -> vector<64x32xf32>
    %c0_132 = arith.constant 0 : index
    %c0_133 = arith.constant 0 : index
    %301 = vector.load %arg31[%c0_132, %c0_133] : memref<1x32xf32, #tpu.memory_space<vmem>>, vector<1x32xf32>
    %302 = vector.broadcast %301 : vector<1x32xf32> to vector<64x32xf32>
    %303 = arith.addf %300, %302 : vector<64x32xf32>
    %304 = arith.addf %256, %303 : vector<64x32xf32>
    %c0_134 = arith.constant 0 : index
    %c0_135 = arith.constant 0 : index
    %c0_136 = arith.constant 0 : index
    %305 = vector.load %arg32[%c0_134, %c0_135, %c0_136] : memref<1x64x32xf32, #tpu.memory_space<vmem>>, vector<1x64x32xf32>
    %306 = vector.shape_cast %305 : vector<1x64x32xf32> to vector<64x32xf32>
    %307 = vector.shape_cast %304 : vector<64x32xf32> to vector<1x64x32xf32>
    tpu.vector_store %arg32[%c0_134, %c0_135, %c0_136], %307 {strides = array<i32>} : memref<1x64x32xf32, #tpu.memory_space<vmem>>, vector<1x64x32xf32>,
    return
  }
  func.func @transform_0(%arg0: i32) -> (i32, i32, i32) {
    %c0_i32 = arith.constant 0 : i32
    %c0_i32_0 = arith.constant 0 : i32
    %c0_i32_1 = arith.constant 0 : i32
    return %arg0, %c0_i32, %c0_i32_0 : i32, i32, i32
  }
  func.func @transform_1(%arg0: i32) -> (i32, i32) {
    %c0_i32 = arith.constant 0 : i32
    %c0_i32_0 = arith.constant 0 : i32
    %c0_i32_1 = arith.constant 0 : i32
    return %c0_i32, %c0_i32_0 : i32, i32
  }
  func.func @transform_2(%arg0: i32) -> (i32, i32) {
    %c0_i32 = arith.constant 0 : i32
    %c0_i32_0 = arith.constant 0 : i32
    %c0_i32_1 = arith.constant 0 : i32
    return %c0_i32, %c0_i32_0 : i32, i32
  }
  func.func @transform_3(%arg0: i32) -> (i32, i32) {
    %c0_i32 = arith.constant 0 : i32
    %c0_i32_0 = arith.constant 0 : i32
    %c0_i32_1 = arith.constant 0 : i32
    return %c0_i32, %c0_i32_0 : i32, i32
  }
  func.func @transform_4(%arg0: i32) -> (i32, i32) {
    %c0_i32 = arith.constant 0 : i32
    %c0_i32_0 = arith.constant 0 : i32
    %c0_i32_1 = arith.constant 0 : i32
    return %c0_i32, %c0_i32_0 : i32, i32
  }
  func.func @transform_5(%arg0: i32) -> (i32, i32) {
    %c0_i32 = arith.constant 0 : i32
    %c0_i32_0 = arith.constant 0 : i32
    %c0_i32_1 = arith.constant 0 : i32
    return %c0_i32, %c0_i32_0 : i32, i32
  }
  func.func @transform_6(%arg0: i32) -> (i32, i32) {
    %c0_i32 = arith.constant 0 : i32
    %c0_i32_0 = arith.constant 0 : i32
    %c0_i32_1 = arith.constant 0 : i32
    return %c0_i32, %c0_i32_0 : i32, i32
  }
  func.func @transform_7(%arg0: i32) -> (i32, i32) {
    %c0_i32 = arith.constant 0 : i32
    %c0_i32_0 = arith.constant 0 : i32
    %c0_i32_1 = arith.constant 0 : i32
    return %c0_i32, %c0_i32_0 : i32, i32
  }
  func.func @transform_8(%arg0: i32) -> (i32, i32) {
    %c0_i32 = arith.constant 0 : i32
    %c0_i32_0 = arith.constant 0 : i32
    %c0_i32_1 = arith.constant 0 : i32
    return %c0_i32, %c0_i32_0 : i32, i32
  }
  func.func @transform_9(%arg0: i32) -> (i32, i32, i32) {
    %c0_i32 = arith.constant 0 : i32
    %c0_i32_0 = arith.constant 0 : i32
    %c0_i32_1 = arith.constant 0 : i32
    %c0_i32_2 = arith.constant 0 : i32
    return %c0_i32, %c0_i32_0, %c0_i32_1 : i32, i32, i32
  }
  func.func @transform_10(%arg0: i32) -> (i32, i32) {
    %c0_i32 = arith.constant 0 : i32
    %c0_i32_0 = arith.constant 0 : i32
    %c0_i32_1 = arith.constant 0 : i32
    return %c0_i32, %c0_i32_0 : i32, i32
  }
  func.func @transform_11(%arg0: i32) -> (i32, i32) {
    %c0_i32 = arith.constant 0 : i32
    %c0_i32_0 = arith.constant 0 : i32
    %c0_i32_1 = arith.constant 0 : i32
    return %c0_i32, %c0_i32_0 : i32, i32
  }
  func.func @transform_12(%arg0: i32) -> (i32, i32) {
    %c0_i32 = arith.constant 0 : i32
    %c0_i32_0 = arith.constant 0 : i32
    %c0_i32_1 = arith.constant 0 : i32
    return %c0_i32, %c0_i32_0 : i32, i32
  }
  func.func @transform_13(%arg0: i32) -> (i32, i32) {
    %c0_i32 = arith.constant 0 : i32
    %c0_i32_0 = arith.constant 0 : i32
    %c0_i32_1 = arith.constant 0 : i32
    return %c0_i32, %c0_i32_0 : i32, i32
  }
  func.func @transform_14(%arg0: i32) -> (i32, i32) {
    %c0_i32 = arith.constant 0 : i32
    %c0_i32_0 = arith.constant 0 : i32
    %c0_i32_1 = arith.constant 0 : i32
    return %c0_i32, %c0_i32_0 : i32, i32
  }
  func.func @transform_15(%arg0: i32) -> (i32, i32) {
    %c0_i32 = arith.constant 0 : i32
    %c0_i32_0 = arith.constant 0 : i32
    %c0_i32_1 = arith.constant 0 : i32
    return %c0_i32, %c0_i32_0 : i32, i32
  }
  func.func @transform_16(%arg0: i32) -> (i32, i32) {
    %c0_i32 = arith.constant 0 : i32
    %c0_i32_0 = arith.constant 0 : i32
    %c0_i32_1 = arith.constant 0 : i32
    return %c0_i32, %c0_i32_0 : i32, i32
  }
  func.func @transform_17(%arg0: i32) -> (i32, i32) {
    %c0_i32 = arith.constant 0 : i32
    %c0_i32_0 = arith.constant 0 : i32
    %c0_i32_1 = arith.constant 0 : i32
    return %c0_i32, %c0_i32_0 : i32, i32
  }
  func.func @transform_18(%arg0: i32) -> (i32, i32) {
    %c0_i32 = arith.constant 0 : i32
    %c0_i32_0 = arith.constant 0 : i32
    %c0_i32_1 = arith.constant 0 : i32
    return %c0_i32, %c0_i32_0 : i32, i32
  }
  func.func @transform_19(%arg0: i32) -> (i32, i32) {
    %c0_i32 = arith.constant 0 : i32
    %c0_i32_0 = arith.constant 0 : i32
    %c0_i32_1 = arith.constant 0 : i32
    return %c0_i32, %c0_i32_0 : i32, i32
  }
  func.func @transform_20(%arg0: i32) -> (i32, i32) {
    %c0_i32 = arith.constant 0 : i32
    %c0_i32_0 = arith.constant 0 : i32
    %c0_i32_1 = arith.constant 0 : i32
    return %c0_i32, %c0_i32_0 : i32, i32
  }
  func.func @transform_21(%arg0: i32) -> (i32, i32) {
    %c0_i32 = arith.constant 0 : i32
    %c0_i32_0 = arith.constant 0 : i32
    %c0_i32_1 = arith.constant 0 : i32
    return %c0_i32, %c0_i32_0 : i32, i32
  }
  func.func @transform_22(%arg0: i32) -> (i32, i32, i32) {
    %c0_i32 = arith.constant 0 : i32
    %c0_i32_0 = arith.constant 0 : i32
    %c0_i32_1 = arith.constant 0 : i32
    %c0_i32_2 = arith.constant 0 : i32
    return %c0_i32, %c0_i32_0, %c0_i32_1 : i32, i32, i32
  }
  func.func @transform_23(%arg0: i32) -> (i32, i32) {
    %c0_i32 = arith.constant 0 : i32
    %c0_i32_0 = arith.constant 0 : i32
    %c0_i32_1 = arith.constant 0 : i32
    return %c0_i32, %c0_i32_0 : i32, i32
  }
  func.func @transform_24(%arg0: i32) -> (i32, i32) {
    %c0_i32 = arith.constant 0 : i32
    %c0_i32_0 = arith.constant 0 : i32
    %c0_i32_1 = arith.constant 0 : i32
    return %c0_i32, %c0_i32_0 : i32, i32
  }
  func.func @transform_25(%arg0: i32) -> (i32, i32) {
    %c0_i32 = arith.constant 0 : i32
    %c0_i32_0 = arith.constant 0 : i32
    %c0_i32_1 = arith.constant 0 : i32
    return %c0_i32, %c0_i32_0 : i32, i32
  }
  func.func @transform_26(%arg0: i32) -> (i32, i32) {
    %c0_i32 = arith.constant 0 : i32
    %c0_i32_0 = arith.constant 0 : i32
    %c0_i32_1 = arith.constant 0 : i32
    return %c0_i32, %c0_i32_0 : i32, i32
  }
  func.func @transform_27(%arg0: i32) -> (i32, i32) {
    %c0_i32 = arith.constant 0 : i32
    %c0_i32_0 = arith.constant 0 : i32
    %c0_i32_1 = arith.constant 0 : i32
    return %c0_i32, %c0_i32_0 : i32, i32
  }
  func.func @transform_28(%arg0: i32) -> (i32, i32) {
    %c0_i32 = arith.constant 0 : i32
    %c0_i32_0 = arith.constant 0 : i32
    %c0_i32_1 = arith.constant 0 : i32
    return %c0_i32, %c0_i32_0 : i32, i32
  }
  func.func @transform_29(%arg0: i32) -> (i32, i32) {
    %c0_i32 = arith.constant 0 : i32
    %c0_i32_0 = arith.constant 0 : i32
    %c0_i32_1 = arith.constant 0 : i32
    return %c0_i32, %c0_i32_0 : i32, i32
  }
  func.func @transform_30(%arg0: i32) -> (i32, i32) {
    %c0_i32 = arith.constant 0 : i32
    %c0_i32_0 = arith.constant 0 : i32
    %c0_i32_1 = arith.constant 0 : i32
    return %c0_i32, %c0_i32_0 : i32, i32
  }
  func.func @transform_31(%arg0: i32) -> (i32, i32, i32) {
    %c0_i32 = arith.constant 0 : i32
    %c0_i32_0 = arith.constant 0 : i32
    %c0_i32_1 = arith.constant 0 : i32
    return %arg0, %c0_i32, %c0_i32_0 : i32, i32, i32
  }
}

module attributes {stable_mosaic.version = 11 : i64} {
  func.func @_stage1_head_kernel(%arg0: i32, %arg1: memref<1x16x128xf32, #tpu.memory_space<vmem>>, %arg2: memref<1x128xf32, #tpu.memory_space<vmem>>, %arg3: memref<1x128xf32, #tpu.memory_space<vmem>>, %arg4: memref<128x64xbf16, #tpu.memory_space<vmem>>, %arg5: memref<1x64xf32, #tpu.memory_space<vmem>>, %arg6: memref<1x64xf32, #tpu.memory_space<vmem>>, %arg7: memref<64x192xbf16, #tpu.memory_space<vmem>>, %arg8: memref<1x192xf32, #tpu.memory_space<vmem>>, %arg9: memref<4x16x16xf32, #tpu.memory_space<vmem>>, %arg10: memref<64x64xbf16, #tpu.memory_space<vmem>>, %arg11: memref<1x64xf32, #tpu.memory_space<vmem>>, %arg12: memref<1x64xf32, #tpu.memory_space<vmem>>, %arg13: memref<1x64xf32, #tpu.memory_space<vmem>>, %arg14: memref<64x256xbf16, #tpu.memory_space<vmem>>, %arg15: memref<1x256xf32, #tpu.memory_space<vmem>>, %arg16: memref<256x64xbf16, #tpu.memory_space<vmem>>, %arg17: memref<1x64xf32, #tpu.memory_space<vmem>>, %arg18: memref<1x64xf32, #tpu.memory_space<vmem>>, %arg19: memref<1x64xf32, #tpu.memory_space<vmem>>, %arg20: memref<64x192xbf16, #tpu.memory_space<vmem>>, %arg21: memref<1x192xf32, #tpu.memory_space<vmem>>, %arg22: memref<4x16x16xf32, #tpu.memory_space<vmem>>, %arg23: memref<64x64xbf16, #tpu.memory_space<vmem>>, %arg24: memref<1x64xf32, #tpu.memory_space<vmem>>, %arg25: memref<1x64xf32, #tpu.memory_space<vmem>>, %arg26: memref<1x64xf32, #tpu.memory_space<vmem>>, %arg27: memref<64x256xbf16, #tpu.memory_space<vmem>>, %arg28: memref<1x256xf32, #tpu.memory_space<vmem>>, %arg29: memref<256x64xbf16, #tpu.memory_space<vmem>>, %arg30: memref<1x64xf32, #tpu.memory_space<vmem>>, %arg31: memref<1x64xf32, #tpu.memory_space<vmem>>, %arg32: memref<1x64xf32, #tpu.memory_space<vmem>>, %arg33: memref<64x3xf32, #tpu.memory_space<vmem>>, %arg34: memref<1x3xf32, #tpu.memory_space<vmem>>, %arg35: memref<1x1x3xf32, #tpu.memory_space<vmem>>) attributes {dimension_semantics = [#tpu.dimension_semantics<parallel>], iteration_bounds = array<i64: 2>, scalar_prefetch = 0 : i64, scratch_operands = 0 : i64, tpu.core_type = #tpu.core_type<tc>, window_params = [{transform_indices = @transform_0, window_bounds = array<i64: 1, 16, 128>}, {pipeline_mode = #tpu.pipeline_mode<synchronous>, transform_indices = @transform_1, window_bounds = array<i64: 1, 128>}, {pipeline_mode = #tpu.pipeline_mode<synchronous>, transform_indices = @transform_2, window_bounds = array<i64: 1, 128>}, {pipeline_mode = #tpu.pipeline_mode<synchronous>, transform_indices = @transform_3, window_bounds = array<i64: 128, 64>}, {pipeline_mode = #tpu.pipeline_mode<synchronous>, transform_indices = @transform_4, window_bounds = array<i64: 1, 64>}, {pipeline_mode = #tpu.pipeline_mode<synchronous>, transform_indices = @transform_5, window_bounds = array<i64: 1, 64>}, {pipeline_mode = #tpu.pipeline_mode<synchronous>, transform_indices = @transform_6, window_bounds = array<i64: 64, 192>}, {pipeline_mode = #tpu.pipeline_mode<synchronous>, transform_indices = @transform_7, window_bounds = array<i64: 1, 192>}, {pipeline_mode = #tpu.pipeline_mode<synchronous>, transform_indices = @transform_8, window_bounds = array<i64: 4, 16, 16>}, {pipeline_mode = #tpu.pipeline_mode<synchronous>, transform_indices = @transform_9, window_bounds = array<i64: 64, 64>}, {pipeline_mode = #tpu.pipeline_mode<synchronous>, transform_indices = @transform_10, window_bounds = array<i64: 1, 64>}, {pipeline_mode = #tpu.pipeline_mode<synchronous>, transform_indices = @transform_11, window_bounds = array<i64: 1, 64>}, {pipeline_mode = #tpu.pipeline_mode<synchronous>, transform_indices = @transform_12, window_bounds = array<i64: 1, 64>}, {pipeline_mode = #tpu.pipeline_mode<synchronous>, transform_indices = @transform_13, window_bounds = array<i64: 64, 256>}, {pipeline_mode = #tpu.pipeline_mode<synchronous>, transform_indices = @transform_14, window_bounds = array<i64: 1, 256>}, {pipeline_mode = #tpu.pipeline_mode<synchronous>, transform_indices = @transform_15, window_bounds = array<i64: 256, 64>}, {pipeline_mode = #tpu.pipeline_mode<synchronous>, transform_indices = @transform_16, window_bounds = array<i64: 1, 64>}, {pipeline_mode = #tpu.pipeline_mode<synchronous>, transform_indices = @transform_17, window_bounds = array<i64: 1, 64>}, {pipeline_mode = #tpu.pipeline_mode<synchronous>, transform_indices = @transform_18, window_bounds = array<i64: 1, 64>}, {pipeline_mode = #tpu.pipeline_mode<synchronous>, transform_indices = @transform_19, window_bounds = array<i64: 64, 192>}, {pipeline_mode = #tpu.pipeline_mode<synchronous>, transform_indices = @transform_20, window_bounds = array<i64: 1, 192>}, {pipeline_mode = #tpu.pipeline_mode<synchronous>, transform_indices = @transform_21, window_bounds = array<i64: 4, 16, 16>}, {pipeline_mode = #tpu.pipeline_mode<synchronous>, transform_indices = @transform_22, window_bounds = array<i64: 64, 64>}, {pipeline_mode = #tpu.pipeline_mode<synchronous>, transform_indices = @transform_23, window_bounds = array<i64: 1, 64>}, {pipeline_mode = #tpu.pipeline_mode<synchronous>, transform_indices = @transform_24, window_bounds = array<i64: 1, 64>}, {pipeline_mode = #tpu.pipeline_mode<synchronous>, transform_indices = @transform_25, window_bounds = array<i64: 1, 64>}, {pipeline_mode = #tpu.pipeline_mode<synchronous>, transform_indices = @transform_26, window_bounds = array<i64: 64, 256>}, {pipeline_mode = #tpu.pipeline_mode<synchronous>, transform_indices = @transform_27, window_bounds = array<i64: 1, 256>}, {pipeline_mode = #tpu.pipeline_mode<synchronous>, transform_indices = @transform_28, window_bounds = array<i64: 256, 64>}, {pipeline_mode = #tpu.pipeline_mode<synchronous>, transform_indices = @transform_29, window_bounds = array<i64: 1, 64>}, {pipeline_mode = #tpu.pipeline_mode<synchronous>, transform_indices = @transform_30, window_bounds = array<i64: 1, 64>}, {pipeline_mode = #tpu.pipeline_mode<synchronous>, transform_indices = @transform_31, window_bounds = array<i64: 1, 64>}, {pipeline_mode = #tpu.pipeline_mode<synchronous>, transform_indices = @transform_32, window_bounds = array<i64: 64, 3>}, {pipeline_mode = #tpu.pipeline_mode<synchronous>, transform_indices = @transform_33, window_bounds = array<i64: 1, 3>}, {transform_indices = @transform_34, window_bounds = array<i64: 1, 1, 3>}]} {
    %c0 = arith.constant 0 : index
    %c0_0 = arith.constant 0 : index
    %c0_1 = arith.constant 0 : index
    %0 = vector.load %arg1[%c0, %c0_0, %c0_1] : memref<1x16x128xf32, #tpu.memory_space<vmem>>, vector<1x16x128xf32>
    %1 = vector.shape_cast %0 : vector<1x16x128xf32> to vector<16x128xf32>
    %c0_2 = arith.constant 0 : index
    %c0_3 = arith.constant 0 : index
    %2 = vector.load %arg2[%c0_2, %c0_3] : memref<1x128xf32, #tpu.memory_space<vmem>>, vector<1x128xf32>
    %c0_4 = arith.constant 0 : index
    %c0_5 = arith.constant 0 : index
    %3 = vector.load %arg3[%c0_4, %c0_5] : memref<1x128xf32, #tpu.memory_space<vmem>>, vector<1x128xf32>
    %cst = arith.constant dense<0.000000e+00> : vector<16xf32>
    %4 = vector.multi_reduction <add>, %1, %cst [1] : vector<16x128xf32> to vector<16xf32>
    %5 = vector.shape_cast %4 : vector<16xf32> to vector<16x1xf32>
    %cst_6 = arith.constant 1.280000e+02 : f32
    %6 = vector.broadcast %cst_6 : f32 to vector<16x1xf32>
    %7 = arith.divf %5, %6 : vector<16x1xf32>
    %8 = vector.broadcast %7 : vector<16x1xf32> to vector<16x128xf32>
    %9 = arith.subf %1, %8 : vector<16x128xf32>
    %10 = arith.mulf %9, %9 : vector<16x128xf32>
    %cst_7 = arith.constant dense<0.000000e+00> : vector<16xf32>
    %11 = vector.multi_reduction <add>, %10, %cst_7 [1] : vector<16x128xf32> to vector<16xf32>
    %12 = vector.shape_cast %11 : vector<16xf32> to vector<16x1xf32>
    %cst_8 = arith.constant 1.280000e+02 : f32
    %13 = vector.broadcast %cst_8 : f32 to vector<16x1xf32>
    %14 = arith.divf %12, %13 : vector<16x1xf32>
    %cst_9 = arith.constant 9.99999974E-6 : f32
    %15 = vector.broadcast %cst_9 : f32 to vector<16x1xf32>
    %16 = arith.addf %14, %15 : vector<16x1xf32>
    %17 = math.rsqrt %16 : vector<16x1xf32>
    %18 = vector.broadcast %17 : vector<16x1xf32> to vector<16x128xf32>
    %19 = arith.mulf %9, %18 : vector<16x128xf32>
    %20 = vector.broadcast %2 : vector<1x128xf32> to vector<16x128xf32>
    %21 = arith.mulf %19, %20 : vector<16x128xf32>
    %22 = vector.broadcast %3 : vector<1x128xf32> to vector<16x128xf32>
    %23 = arith.addf %21, %22 : vector<16x128xf32>
    %24 = arith.truncf %23 : vector<16x128xf32> to vector<16x128xbf16>
    %c0_10 = arith.constant 0 : index
    %c0_11 = arith.constant 0 : index
    %25 = vector.load %arg4[%c0_10, %c0_11] : memref<128x64xbf16, #tpu.memory_space<vmem>>, vector<128x64xbf16>
    %cst_12 = arith.constant dense<0.000000e+00> : vector<16x64xf32>
    %26 = tpu.matmul %24, %25, %cst_12 {dimension_numbers = #tpu.dot_dimension_numbers<[1], [0], [0], [1], [0, 0, 1, 1], [], []>} : vector<16x128xbf16>, vector<128x64xbf16>, vector<16x64xf32> -> vector<16x64xf32>
    %c0_13 = arith.constant 0 : index
    %c0_14 = arith.constant 0 : index
    %27 = vector.load %arg5[%c0_13, %c0_14] : memref<1x64xf32, #tpu.memory_space<vmem>>, vector<1x64xf32>
    %c0_15 = arith.constant 0 : index
    %c0_16 = arith.constant 0 : index
    %28 = vector.load %arg6[%c0_15, %c0_16] : memref<1x64xf32, #tpu.memory_space<vmem>>, vector<1x64xf32>
    %cst_17 = arith.constant dense<0.000000e+00> : vector<16xf32>
    %29 = vector.multi_reduction <add>, %26, %cst_17 [1] : vector<16x64xf32> to vector<16xf32>
    %30 = vector.shape_cast %29 : vector<16xf32> to vector<16x1xf32>
    %cst_18 = arith.constant 6.400000e+01 : f32
    %31 = vector.broadcast %cst_18 : f32 to vector<16x1xf32>
    %32 = arith.divf %30, %31 : vector<16x1xf32>
    %33 = vector.broadcast %32 : vector<16x1xf32> to vector<16x64xf32>
    %34 = arith.subf %26, %33 : vector<16x64xf32>
    %35 = arith.mulf %34, %34 : vector<16x64xf32>
    %cst_19 = arith.constant dense<0.000000e+00> : vector<16xf32>
    %36 = vector.multi_reduction <add>, %35, %cst_19 [1] : vector<16x64xf32> to vector<16xf32>
    %37 = vector.shape_cast %36 : vector<16xf32> to vector<16x1xf32>
    %cst_20 = arith.constant 6.400000e+01 : f32
    %38 = vector.broadcast %cst_20 : f32 to vector<16x1xf32>
    %39 = arith.divf %37, %38 : vector<16x1xf32>
    %cst_21 = arith.constant 9.99999974E-6 : f32
    %40 = vector.broadcast %cst_21 : f32 to vector<16x1xf32>
    %41 = arith.addf %39, %40 : vector<16x1xf32>
    %42 = math.rsqrt %41 : vector<16x1xf32>
    %43 = vector.broadcast %42 : vector<16x1xf32> to vector<16x64xf32>
    %44 = arith.mulf %34, %43 : vector<16x64xf32>
    %45 = vector.broadcast %27 : vector<1x64xf32> to vector<16x64xf32>
    %46 = arith.mulf %44, %45 : vector<16x64xf32>
    %47 = vector.broadcast %28 : vector<1x64xf32> to vector<16x64xf32>
    %48 = arith.addf %46, %47 : vector<16x64xf32>
    %49 = arith.truncf %48 : vector<16x64xf32> to vector<16x64xbf16>
    %c0_22 = arith.constant 0 : index
    %c0_23 = arith.constant 0 : index
    %50 = vector.load %arg7[%c0_22, %c0_23] : memref<64x192xbf16, #tpu.memory_space<vmem>>, vector<64x192xbf16>
    %cst_24 = arith.constant dense<0.000000e+00> : vector<16x192xf32>
    %51 = tpu.matmul %49, %50, %cst_24 {dimension_numbers = #tpu.dot_dimension_numbers<[1], [0], [0], [1], [0, 0, 1, 1], [], []>} : vector<16x64xbf16>, vector<64x192xbf16>, vector<16x192xf32> -> vector<16x192xf32>
    %c0_25 = arith.constant 0 : index
    %c0_26 = arith.constant 0 : index
    %52 = vector.load %arg8[%c0_25, %c0_26] : memref<1x192xf32, #tpu.memory_space<vmem>>, vector<1x192xf32>
    %53 = vector.broadcast %52 : vector<1x192xf32> to vector<16x192xf32>
    %54 = arith.addf %51, %53 : vector<16x192xf32>
    %c0_27 = arith.constant 0 : index
    %c0_28 = arith.constant 0 : index
    %55 = vector.load %arg10[%c0_27, %c0_28] : memref<64x64xbf16, #tpu.memory_space<vmem>>, vector<64x64xbf16>
    %cst_29 = arith.constant 0.000000e+00 : f32
    %56 = vector.broadcast %cst_29 : f32 to vector<16x64xf32>
    %57 = vector.extract_strided_slice %54 {offsets = [0, 0], sizes = [16, 16], strides = [1, 1]} : vector<16x192xf32> to vector<16x16xf32>
    %58 = arith.truncf %57 : vector<16x16xf32> to vector<16x16xbf16>
    %59 = vector.extract_strided_slice %54 {offsets = [0, 64], sizes = [16, 16], strides = [1, 1]} : vector<16x192xf32> to vector<16x16xf32>
    %60 = arith.truncf %59 : vector<16x16xf32> to vector<16x16xbf16>
    %61 = vector.extract_strided_slice %54 {offsets = [0, 128], sizes = [16, 16], strides = [1, 1]} : vector<16x192xf32> to vector<16x16xf32>
    %62 = arith.truncf %61 : vector<16x16xf32> to vector<16x16xbf16>
    %63 = tpu.transpose %60, [1, 0] : vector<16x16xbf16> -> vector<16x16xbf16>
    %cst_30 = arith.constant dense<0.000000e+00> : vector<16x16xf32>
    %64 = tpu.matmul %58, %63, %cst_30 {dimension_numbers = #tpu.dot_dimension_numbers<[1], [0], [0], [1], [0, 0, 1, 1], [], []>} : vector<16x16xbf16>, vector<16x16xbf16>, vector<16x16xf32> -> vector<16x16xf32>
    %cst_31 = arith.constant 2.500000e-01 : f32
    %65 = vector.broadcast %cst_31 : f32 to vector<16x16xf32>
    %66 = arith.mulf %64, %65 : vector<16x16xf32>
    %c0_32 = arith.constant 0 : index
    %c0_33 = arith.constant 0 : index
    %c0_34 = arith.constant 0 : index
    %67 = vector.load %arg9[%c0_32, %c0_33, %c0_34] : memref<4x16x16xf32, #tpu.memory_space<vmem>>, vector<1x16x16xf32>
    %68 = vector.shape_cast %67 : vector<1x16x16xf32> to vector<16x16xf32>
    %69 = arith.addf %66, %68 : vector<16x16xf32>
    %cst_35 = arith.constant dense<0xFF800000> : vector<16xf32>
    %70 = vector.multi_reduction <maximumf>, %69, %cst_35 [1] : vector<16x16xf32> to vector<16xf32>
    %71 = vector.shape_cast %70 : vector<16xf32> to vector<16x1xf32>
    %72 = vector.broadcast %71 : vector<16x1xf32> to vector<16x16xf32>
    %73 = arith.subf %69, %72 : vector<16x16xf32>
    %74 = math.exp %73 : vector<16x16xf32>
    %cst_36 = arith.constant dense<0.000000e+00> : vector<16xf32>
    %75 = vector.multi_reduction <add>, %74, %cst_36 [1] : vector<16x16xf32> to vector<16xf32>
    %76 = vector.shape_cast %75 : vector<16xf32> to vector<16x1xf32>
    %77 = vector.broadcast %76 : vector<16x1xf32> to vector<16x16xf32>
    %78 = arith.divf %74, %77 : vector<16x16xf32>
    %79 = arith.truncf %78 : vector<16x16xf32> to vector<16x16xbf16>
    %cst_37 = arith.constant dense<0.000000e+00> : vector<16x16xf32>
    %80 = tpu.matmul %79, %62, %cst_37 {dimension_numbers = #tpu.dot_dimension_numbers<[1], [0], [0], [1], [0, 0, 1, 1], [], []>} : vector<16x16xbf16>, vector<16x16xbf16>, vector<16x16xf32> -> vector<16x16xf32>
    %81 = arith.truncf %80 : vector<16x16xf32> to vector<16x16xbf16>
    %82 = vector.extract_strided_slice %55 {offsets = [0, 0], sizes = [16, 64], strides = [1, 1]} : vector<64x64xbf16> to vector<16x64xbf16>
    %cst_38 = arith.constant dense<0.000000e+00> : vector<16x64xf32>
    %83 = tpu.matmul %81, %82, %cst_38 {dimension_numbers = #tpu.dot_dimension_numbers<[1], [0], [0], [1], [0, 0, 1, 1], [], []>} : vector<16x16xbf16>, vector<16x64xbf16>, vector<16x64xf32> -> vector<16x64xf32>
    %84 = arith.addf %56, %83 : vector<16x64xf32>
    %85 = vector.extract_strided_slice %54 {offsets = [0, 16], sizes = [16, 16], strides = [1, 1]} : vector<16x192xf32> to vector<16x16xf32>
    %86 = arith.truncf %85 : vector<16x16xf32> to vector<16x16xbf16>
    %87 = vector.extract_strided_slice %54 {offsets = [0, 80], sizes = [16, 16], strides = [1, 1]} : vector<16x192xf32> to vector<16x16xf32>
    %88 = arith.truncf %87 : vector<16x16xf32> to vector<16x16xbf16>
    %89 = vector.extract_strided_slice %54 {offsets = [0, 144], sizes = [16, 16], strides = [1, 1]} : vector<16x192xf32> to vector<16x16xf32>
    %90 = arith.truncf %89 : vector<16x16xf32> to vector<16x16xbf16>
    %91 = tpu.transpose %88, [1, 0] : vector<16x16xbf16> -> vector<16x16xbf16>
    %cst_39 = arith.constant dense<0.000000e+00> : vector<16x16xf32>
    %92 = tpu.matmul %86, %91, %cst_39 {dimension_numbers = #tpu.dot_dimension_numbers<[1], [0], [0], [1], [0, 0, 1, 1], [], []>} : vector<16x16xbf16>, vector<16x16xbf16>, vector<16x16xf32> -> vector<16x16xf32>
    %cst_40 = arith.constant 2.500000e-01 : f32
    %93 = vector.broadcast %cst_40 : f32 to vector<16x16xf32>
    %94 = arith.mulf %92, %93 : vector<16x16xf32>
    %c1 = arith.constant 1 : index
    %c0_41 = arith.constant 0 : index
    %c0_42 = arith.constant 0 : index
    %95 = vector.load %arg9[%c1, %c0_41, %c0_42] : memref<4x16x16xf32, #tpu.memory_space<vmem>>, vector<1x16x16xf32>
    %96 = vector.shape_cast %95 : vector<1x16x16xf32> to vector<16x16xf32>
    %97 = arith.addf %94, %96 : vector<16x16xf32>
    %cst_43 = arith.constant dense<0xFF800000> : vector<16xf32>
    %98 = vector.multi_reduction <maximumf>, %97, %cst_43 [1] : vector<16x16xf32> to vector<16xf32>
    %99 = vector.shape_cast %98 : vector<16xf32> to vector<16x1xf32>
    %100 = vector.broadcast %99 : vector<16x1xf32> to vector<16x16xf32>
    %101 = arith.subf %97, %100 : vector<16x16xf32>
    %102 = math.exp %101 : vector<16x16xf32>
    %cst_44 = arith.constant dense<0.000000e+00> : vector<16xf32>
    %103 = vector.multi_reduction <add>, %102, %cst_44 [1] : vector<16x16xf32> to vector<16xf32>
    %104 = vector.shape_cast %103 : vector<16xf32> to vector<16x1xf32>
    %105 = vector.broadcast %104 : vector<16x1xf32> to vector<16x16xf32>
    %106 = arith.divf %102, %105 : vector<16x16xf32>
    %107 = arith.truncf %106 : vector<16x16xf32> to vector<16x16xbf16>
    %cst_45 = arith.constant dense<0.000000e+00> : vector<16x16xf32>
    %108 = tpu.matmul %107, %90, %cst_45 {dimension_numbers = #tpu.dot_dimension_numbers<[1], [0], [0], [1], [0, 0, 1, 1], [], []>} : vector<16x16xbf16>, vector<16x16xbf16>, vector<16x16xf32> -> vector<16x16xf32>
    %109 = arith.truncf %108 : vector<16x16xf32> to vector<16x16xbf16>
    %110 = vector.extract_strided_slice %55 {offsets = [16, 0], sizes = [16, 64], strides = [1, 1]} : vector<64x64xbf16> to vector<16x64xbf16>
    %cst_46 = arith.constant dense<0.000000e+00> : vector<16x64xf32>
    %111 = tpu.matmul %109, %110, %cst_46 {dimension_numbers = #tpu.dot_dimension_numbers<[1], [0], [0], [1], [0, 0, 1, 1], [], []>} : vector<16x16xbf16>, vector<16x64xbf16>, vector<16x64xf32> -> vector<16x64xf32>
    %112 = arith.addf %84, %111 : vector<16x64xf32>
    %113 = vector.extract_strided_slice %54 {offsets = [0, 32], sizes = [16, 16], strides = [1, 1]} : vector<16x192xf32> to vector<16x16xf32>
    %114 = arith.truncf %113 : vector<16x16xf32> to vector<16x16xbf16>
    %115 = vector.extract_strided_slice %54 {offsets = [0, 96], sizes = [16, 16], strides = [1, 1]} : vector<16x192xf32> to vector<16x16xf32>
    %116 = arith.truncf %115 : vector<16x16xf32> to vector<16x16xbf16>
    %117 = vector.extract_strided_slice %54 {offsets = [0, 160], sizes = [16, 16], strides = [1, 1]} : vector<16x192xf32> to vector<16x16xf32>
    %118 = arith.truncf %117 : vector<16x16xf32> to vector<16x16xbf16>
    %119 = tpu.transpose %116, [1, 0] : vector<16x16xbf16> -> vector<16x16xbf16>
    %cst_47 = arith.constant dense<0.000000e+00> : vector<16x16xf32>
    %120 = tpu.matmul %114, %119, %cst_47 {dimension_numbers = #tpu.dot_dimension_numbers<[1], [0], [0], [1], [0, 0, 1, 1], [], []>} : vector<16x16xbf16>, vector<16x16xbf16>, vector<16x16xf32> -> vector<16x16xf32>
    %cst_48 = arith.constant 2.500000e-01 : f32
    %121 = vector.broadcast %cst_48 : f32 to vector<16x16xf32>
    %122 = arith.mulf %120, %121 : vector<16x16xf32>
    %c2 = arith.constant 2 : index
    %c0_49 = arith.constant 0 : index
    %c0_50 = arith.constant 0 : index
    %123 = vector.load %arg9[%c2, %c0_49, %c0_50] : memref<4x16x16xf32, #tpu.memory_space<vmem>>, vector<1x16x16xf32>
    %124 = vector.shape_cast %123 : vector<1x16x16xf32> to vector<16x16xf32>
    %125 = arith.addf %122, %124 : vector<16x16xf32>
    %cst_51 = arith.constant dense<0xFF800000> : vector<16xf32>
    %126 = vector.multi_reduction <maximumf>, %125, %cst_51 [1] : vector<16x16xf32> to vector<16xf32>
    %127 = vector.shape_cast %126 : vector<16xf32> to vector<16x1xf32>
    %128 = vector.broadcast %127 : vector<16x1xf32> to vector<16x16xf32>
    %129 = arith.subf %125, %128 : vector<16x16xf32>
    %130 = math.exp %129 : vector<16x16xf32>
    %cst_52 = arith.constant dense<0.000000e+00> : vector<16xf32>
    %131 = vector.multi_reduction <add>, %130, %cst_52 [1] : vector<16x16xf32> to vector<16xf32>
    %132 = vector.shape_cast %131 : vector<16xf32> to vector<16x1xf32>
    %133 = vector.broadcast %132 : vector<16x1xf32> to vector<16x16xf32>
    %134 = arith.divf %130, %133 : vector<16x16xf32>
    %135 = arith.truncf %134 : vector<16x16xf32> to vector<16x16xbf16>
    %cst_53 = arith.constant dense<0.000000e+00> : vector<16x16xf32>
    %136 = tpu.matmul %135, %118, %cst_53 {dimension_numbers = #tpu.dot_dimension_numbers<[1], [0], [0], [1], [0, 0, 1, 1], [], []>} : vector<16x16xbf16>, vector<16x16xbf16>, vector<16x16xf32> -> vector<16x16xf32>
    %137 = arith.truncf %136 : vector<16x16xf32> to vector<16x16xbf16>
    %138 = vector.extract_strided_slice %55 {offsets = [32, 0], sizes = [16, 64], strides = [1, 1]} : vector<64x64xbf16> to vector<16x64xbf16>
    %cst_54 = arith.constant dense<0.000000e+00> : vector<16x64xf32>
    %139 = tpu.matmul %137, %138, %cst_54 {dimension_numbers = #tpu.dot_dimension_numbers<[1], [0], [0], [1], [0, 0, 1, 1], [], []>} : vector<16x16xbf16>, vector<16x64xbf16>, vector<16x64xf32> -> vector<16x64xf32>
    %140 = arith.addf %112, %139 : vector<16x64xf32>
    %141 = vector.extract_strided_slice %54 {offsets = [0, 48], sizes = [16, 16], strides = [1, 1]} : vector<16x192xf32> to vector<16x16xf32>
    %142 = arith.truncf %141 : vector<16x16xf32> to vector<16x16xbf16>
    %143 = vector.extract_strided_slice %54 {offsets = [0, 112], sizes = [16, 16], strides = [1, 1]} : vector<16x192xf32> to vector<16x16xf32>
    %144 = arith.truncf %143 : vector<16x16xf32> to vector<16x16xbf16>
    %145 = vector.extract_strided_slice %54 {offsets = [0, 176], sizes = [16, 16], strides = [1, 1]} : vector<16x192xf32> to vector<16x16xf32>
    %146 = arith.truncf %145 : vector<16x16xf32> to vector<16x16xbf16>
    %147 = tpu.transpose %144, [1, 0] : vector<16x16xbf16> -> vector<16x16xbf16>
    %cst_55 = arith.constant dense<0.000000e+00> : vector<16x16xf32>
    %148 = tpu.matmul %142, %147, %cst_55 {dimension_numbers = #tpu.dot_dimension_numbers<[1], [0], [0], [1], [0, 0, 1, 1], [], []>} : vector<16x16xbf16>, vector<16x16xbf16>, vector<16x16xf32> -> vector<16x16xf32>
    %cst_56 = arith.constant 2.500000e-01 : f32
    %149 = vector.broadcast %cst_56 : f32 to vector<16x16xf32>
    %150 = arith.mulf %148, %149 : vector<16x16xf32>
    %c3 = arith.constant 3 : index
    %c0_57 = arith.constant 0 : index
    %c0_58 = arith.constant 0 : index
    %151 = vector.load %arg9[%c3, %c0_57, %c0_58] : memref<4x16x16xf32, #tpu.memory_space<vmem>>, vector<1x16x16xf32>
    %152 = vector.shape_cast %151 : vector<1x16x16xf32> to vector<16x16xf32>
    %153 = arith.addf %150, %152 : vector<16x16xf32>
    %cst_59 = arith.constant dense<0xFF800000> : vector<16xf32>
    %154 = vector.multi_reduction <maximumf>, %153, %cst_59 [1] : vector<16x16xf32> to vector<16xf32>
    %155 = vector.shape_cast %154 : vector<16xf32> to vector<16x1xf32>
    %156 = vector.broadcast %155 : vector<16x1xf32> to vector<16x16xf32>
    %157 = arith.subf %153, %156 : vector<16x16xf32>
    %158 = math.exp %157 : vector<16x16xf32>
    %cst_60 = arith.constant dense<0.000000e+00> : vector<16xf32>
    %159 = vector.multi_reduction <add>, %158, %cst_60 [1] : vector<16x16xf32> to vector<16xf32>
    %160 = vector.shape_cast %159 : vector<16xf32> to vector<16x1xf32>
    %161 = vector.broadcast %160 : vector<16x1xf32> to vector<16x16xf32>
    %162 = arith.divf %158, %161 : vector<16x16xf32>
    %163 = arith.truncf %162 : vector<16x16xf32> to vector<16x16xbf16>
    %cst_61 = arith.constant dense<0.000000e+00> : vector<16x16xf32>
    %164 = tpu.matmul %163, %146, %cst_61 {dimension_numbers = #tpu.dot_dimension_numbers<[1], [0], [0], [1], [0, 0, 1, 1], [], []>} : vector<16x16xbf16>, vector<16x16xbf16>, vector<16x16xf32> -> vector<16x16xf32>
    %165 = arith.truncf %164 : vector<16x16xf32> to vector<16x16xbf16>
    %166 = vector.extract_strided_slice %55 {offsets = [48, 0], sizes = [16, 64], strides = [1, 1]} : vector<64x64xbf16> to vector<16x64xbf16>
    %cst_62 = arith.constant dense<0.000000e+00> : vector<16x64xf32>
    %167 = tpu.matmul %165, %166, %cst_62 {dimension_numbers = #tpu.dot_dimension_numbers<[1], [0], [0], [1], [0, 0, 1, 1], [], []>} : vector<16x16xbf16>, vector<16x64xbf16>, vector<16x64xf32> -> vector<16x64xf32>
    %168 = arith.addf %140, %167 : vector<16x64xf32>
    %169 = arith.addf %26, %168 : vector<16x64xf32>
    %c0_63 = arith.constant 0 : index
    %c0_64 = arith.constant 0 : index
    %170 = vector.load %arg11[%c0_63, %c0_64] : memref<1x64xf32, #tpu.memory_space<vmem>>, vector<1x64xf32>
    %171 = vector.broadcast %170 : vector<1x64xf32> to vector<16x64xf32>
    %172 = arith.addf %169, %171 : vector<16x64xf32>
    %c0_65 = arith.constant 0 : index
    %c0_66 = arith.constant 0 : index
    %173 = vector.load %arg12[%c0_65, %c0_66] : memref<1x64xf32, #tpu.memory_space<vmem>>, vector<1x64xf32>
    %c0_67 = arith.constant 0 : index
    %c0_68 = arith.constant 0 : index
    %174 = vector.load %arg13[%c0_67, %c0_68] : memref<1x64xf32, #tpu.memory_space<vmem>>, vector<1x64xf32>
    %cst_69 = arith.constant dense<0.000000e+00> : vector<16xf32>
    %175 = vector.multi_reduction <add>, %172, %cst_69 [1] : vector<16x64xf32> to vector<16xf32>
    %176 = vector.shape_cast %175 : vector<16xf32> to vector<16x1xf32>
    %cst_70 = arith.constant 6.400000e+01 : f32
    %177 = vector.broadcast %cst_70 : f32 to vector<16x1xf32>
    %178 = arith.divf %176, %177 : vector<16x1xf32>
    %179 = vector.broadcast %178 : vector<16x1xf32> to vector<16x64xf32>
    %180 = arith.subf %172, %179 : vector<16x64xf32>
    %181 = arith.mulf %180, %180 : vector<16x64xf32>
    %cst_71 = arith.constant dense<0.000000e+00> : vector<16xf32>
    %182 = vector.multi_reduction <add>, %181, %cst_71 [1] : vector<16x64xf32> to vector<16xf32>
    %183 = vector.shape_cast %182 : vector<16xf32> to vector<16x1xf32>
    %cst_72 = arith.constant 6.400000e+01 : f32
    %184 = vector.broadcast %cst_72 : f32 to vector<16x1xf32>
    %185 = arith.divf %183, %184 : vector<16x1xf32>
    %cst_73 = arith.constant 9.99999974E-6 : f32
    %186 = vector.broadcast %cst_73 : f32 to vector<16x1xf32>
    %187 = arith.addf %185, %186 : vector<16x1xf32>
    %188 = math.rsqrt %187 : vector<16x1xf32>
    %189 = vector.broadcast %188 : vector<16x1xf32> to vector<16x64xf32>
    %190 = arith.mulf %180, %189 : vector<16x64xf32>
    %191 = vector.broadcast %173 : vector<1x64xf32> to vector<16x64xf32>
    %192 = arith.mulf %190, %191 : vector<16x64xf32>
    %193 = vector.broadcast %174 : vector<1x64xf32> to vector<16x64xf32>
    %194 = arith.addf %192, %193 : vector<16x64xf32>
    %195 = arith.truncf %194 : vector<16x64xf32> to vector<16x64xbf16>
    %c0_74 = arith.constant 0 : index
    %c0_75 = arith.constant 0 : index
    %196 = vector.load %arg14[%c0_74, %c0_75] : memref<64x256xbf16, #tpu.memory_space<vmem>>, vector<64x256xbf16>
    %cst_76 = arith.constant dense<0.000000e+00> : vector<16x256xf32>
    %197 = tpu.matmul %195, %196, %cst_76 {dimension_numbers = #tpu.dot_dimension_numbers<[1], [0], [0], [1], [0, 0, 1, 1], [], []>} : vector<16x64xbf16>, vector<64x256xbf16>, vector<16x256xf32> -> vector<16x256xf32>
    %c0_77 = arith.constant 0 : index
    %c0_78 = arith.constant 0 : index
    %198 = vector.load %arg15[%c0_77, %c0_78] : memref<1x256xf32, #tpu.memory_space<vmem>>, vector<1x256xf32>
    %199 = vector.broadcast %198 : vector<1x256xf32> to vector<16x256xf32>
    %200 = arith.addf %197, %199 : vector<16x256xf32>
    %cst_79 = arith.constant 5.000000e-01 : f32
    %201 = vector.broadcast %cst_79 : f32 to vector<16x256xf32>
    %202 = arith.mulf %201, %200 : vector<16x256xf32>
    %cst_80 = arith.constant 4.471500e-02 : f32
    %203 = vector.broadcast %cst_80 : f32 to vector<16x256xf32>
    %204 = arith.mulf %203, %200 : vector<16x256xf32>
    %205 = arith.mulf %204, %200 : vector<16x256xf32>
    %206 = arith.mulf %205, %200 : vector<16x256xf32>
    %207 = arith.addf %200, %206 : vector<16x256xf32>
    %cst_81 = arith.constant 0.797884583 : f32
    %208 = vector.broadcast %cst_81 : f32 to vector<16x256xf32>
    %209 = arith.mulf %208, %207 : vector<16x256xf32>
    %210 = math.tanh %209 : vector<16x256xf32>
    %cst_82 = arith.constant 1.000000e+00 : f32
    %211 = vector.broadcast %cst_82 : f32 to vector<16x256xf32>
    %212 = arith.addf %211, %210 : vector<16x256xf32>
    %213 = arith.mulf %202, %212 : vector<16x256xf32>
    %214 = arith.truncf %213 : vector<16x256xf32> to vector<16x256xbf16>
    %c0_83 = arith.constant 0 : index
    %c0_84 = arith.constant 0 : index
    %215 = vector.load %arg16[%c0_83, %c0_84] : memref<256x64xbf16, #tpu.memory_space<vmem>>, vector<256x64xbf16>
    %cst_85 = arith.constant dense<0.000000e+00> : vector<16x64xf32>
    %216 = tpu.matmul %214, %215, %cst_85 {dimension_numbers = #tpu.dot_dimension_numbers<[1], [0], [0], [1], [0, 0, 1, 1], [], []>} : vector<16x256xbf16>, vector<256x64xbf16>, vector<16x64xf32> -> vector<16x64xf32>
    %c0_86 = arith.constant 0 : index
    %c0_87 = arith.constant 0 : index
    %217 = vector.load %arg17[%c0_86, %c0_87] : memref<1x64xf32, #tpu.memory_space<vmem>>, vector<1x64xf32>
    %218 = vector.broadcast %217 : vector<1x64xf32> to vector<16x64xf32>
    %219 = arith.addf %216, %218 : vector<16x64xf32>
    %220 = arith.addf %172, %219 : vector<16x64xf32>
    %c0_88 = arith.constant 0 : index
    %c0_89 = arith.constant 0 : index
    %221 = vector.load %arg18[%c0_88, %c0_89] : memref<1x64xf32, #tpu.memory_space<vmem>>, vector<1x64xf32>
    %c0_90 = arith.constant 0 : index
    %c0_91 = arith.constant 0 : index
    %222 = vector.load %arg19[%c0_90, %c0_91] : memref<1x64xf32, #tpu.memory_space<vmem>>, vector<1x64xf32>
    %cst_92 = arith.constant dense<0.000000e+00> : vector<16xf32>
    %223 = vector.multi_reduction <add>, %220, %cst_92 [1] : vector<16x64xf32> to vector<16xf32>
    %224 = vector.shape_cast %223 : vector<16xf32> to vector<16x1xf32>
    %cst_93 = arith.constant 6.400000e+01 : f32
    %225 = vector.broadcast %cst_93 : f32 to vector<16x1xf32>
    %226 = arith.divf %224, %225 : vector<16x1xf32>
    %227 = vector.broadcast %226 : vector<16x1xf32> to vector<16x64xf32>
    %228 = arith.subf %220, %227 : vector<16x64xf32>
    %229 = arith.mulf %228, %228 : vector<16x64xf32>
    %cst_94 = arith.constant dense<0.000000e+00> : vector<16xf32>
    %230 = vector.multi_reduction <add>, %229, %cst_94 [1] : vector<16x64xf32> to vector<16xf32>
    %231 = vector.shape_cast %230 : vector<16xf32> to vector<16x1xf32>
    %cst_95 = arith.constant 6.400000e+01 : f32
    %232 = vector.broadcast %cst_95 : f32 to vector<16x1xf32>
    %233 = arith.divf %231, %232 : vector<16x1xf32>
    %cst_96 = arith.constant 9.99999974E-6 : f32
    %234 = vector.broadcast %cst_96 : f32 to vector<16x1xf32>
    %235 = arith.addf %233, %234 : vector<16x1xf32>
    %236 = math.rsqrt %235 : vector<16x1xf32>
    %237 = vector.broadcast %236 : vector<16x1xf32> to vector<16x64xf32>
    %238 = arith.mulf %228, %237 : vector<16x64xf32>
    %239 = vector.broadcast %221 : vector<1x64xf32> to vector<16x64xf32>
    %240 = arith.mulf %238, %239 : vector<16x64xf32>
    %241 = vector.broadcast %222 : vector<1x64xf32> to vector<16x64xf32>
    %242 = arith.addf %240, %241 : vector<16x64xf32>
    %243 = arith.truncf %242 : vector<16x64xf32> to vector<16x64xbf16>
    %c0_97 = arith.constant 0 : index
    %c0_98 = arith.constant 0 : index
    %244 = vector.load %arg20[%c0_97, %c0_98] : memref<64x192xbf16, #tpu.memory_space<vmem>>, vector<64x192xbf16>
    %cst_99 = arith.constant dense<0.000000e+00> : vector<16x192xf32>
    %245 = tpu.matmul %243, %244, %cst_99 {dimension_numbers = #tpu.dot_dimension_numbers<[1], [0], [0], [1], [0, 0, 1, 1], [], []>} : vector<16x64xbf16>, vector<64x192xbf16>, vector<16x192xf32> -> vector<16x192xf32>
    %c0_100 = arith.constant 0 : index
    %c0_101 = arith.constant 0 : index
    %246 = vector.load %arg21[%c0_100, %c0_101] : memref<1x192xf32, #tpu.memory_space<vmem>>, vector<1x192xf32>
    %247 = vector.broadcast %246 : vector<1x192xf32> to vector<16x192xf32>
    %248 = arith.addf %245, %247 : vector<16x192xf32>
    %c0_102 = arith.constant 0 : index
    %c0_103 = arith.constant 0 : index
    %249 = vector.load %arg23[%c0_102, %c0_103] : memref<64x64xbf16, #tpu.memory_space<vmem>>, vector<64x64xbf16>
    %cst_104 = arith.constant 0.000000e+00 : f32
    %250 = vector.broadcast %cst_104 : f32 to vector<16x64xf32>
    %251 = vector.extract_strided_slice %248 {offsets = [0, 0], sizes = [16, 16], strides = [1, 1]} : vector<16x192xf32> to vector<16x16xf32>
    %252 = arith.truncf %251 : vector<16x16xf32> to vector<16x16xbf16>
    %253 = vector.extract_strided_slice %248 {offsets = [0, 64], sizes = [16, 16], strides = [1, 1]} : vector<16x192xf32> to vector<16x16xf32>
    %254 = arith.truncf %253 : vector<16x16xf32> to vector<16x16xbf16>
    %255 = vector.extract_strided_slice %248 {offsets = [0, 128], sizes = [16, 16], strides = [1, 1]} : vector<16x192xf32> to vector<16x16xf32>
    %256 = arith.truncf %255 : vector<16x16xf32> to vector<16x16xbf16>
    %257 = tpu.transpose %254, [1, 0] : vector<16x16xbf16> -> vector<16x16xbf16>
    %cst_105 = arith.constant dense<0.000000e+00> : vector<16x16xf32>
    %258 = tpu.matmul %252, %257, %cst_105 {dimension_numbers = #tpu.dot_dimension_numbers<[1], [0], [0], [1], [0, 0, 1, 1], [], []>} : vector<16x16xbf16>, vector<16x16xbf16>, vector<16x16xf32> -> vector<16x16xf32>
    %cst_106 = arith.constant 2.500000e-01 : f32
    %259 = vector.broadcast %cst_106 : f32 to vector<16x16xf32>
    %260 = arith.mulf %258, %259 : vector<16x16xf32>
    %c0_107 = arith.constant 0 : index
    %c0_108 = arith.constant 0 : index
    %c0_109 = arith.constant 0 : index
    %261 = vector.load %arg22[%c0_107, %c0_108, %c0_109] : memref<4x16x16xf32, #tpu.memory_space<vmem>>, vector<1x16x16xf32>
    %262 = vector.shape_cast %261 : vector<1x16x16xf32> to vector<16x16xf32>
    %263 = arith.addf %260, %262 : vector<16x16xf32>
    %cst_110 = arith.constant dense<0xFF800000> : vector<16xf32>
    %264 = vector.multi_reduction <maximumf>, %263, %cst_110 [1] : vector<16x16xf32> to vector<16xf32>
    %265 = vector.shape_cast %264 : vector<16xf32> to vector<16x1xf32>
    %266 = vector.broadcast %265 : vector<16x1xf32> to vector<16x16xf32>
    %267 = arith.subf %263, %266 : vector<16x16xf32>
    %268 = math.exp %267 : vector<16x16xf32>
    %cst_111 = arith.constant dense<0.000000e+00> : vector<16xf32>
    %269 = vector.multi_reduction <add>, %268, %cst_111 [1] : vector<16x16xf32> to vector<16xf32>
    %270 = vector.shape_cast %269 : vector<16xf32> to vector<16x1xf32>
    %271 = vector.broadcast %270 : vector<16x1xf32> to vector<16x16xf32>
    %272 = arith.divf %268, %271 : vector<16x16xf32>
    %273 = arith.truncf %272 : vector<16x16xf32> to vector<16x16xbf16>
    %cst_112 = arith.constant dense<0.000000e+00> : vector<16x16xf32>
    %274 = tpu.matmul %273, %256, %cst_112 {dimension_numbers = #tpu.dot_dimension_numbers<[1], [0], [0], [1], [0, 0, 1, 1], [], []>} : vector<16x16xbf16>, vector<16x16xbf16>, vector<16x16xf32> -> vector<16x16xf32>
    %275 = arith.truncf %274 : vector<16x16xf32> to vector<16x16xbf16>
    %276 = vector.extract_strided_slice %249 {offsets = [0, 0], sizes = [16, 64], strides = [1, 1]} : vector<64x64xbf16> to vector<16x64xbf16>
    %cst_113 = arith.constant dense<0.000000e+00> : vector<16x64xf32>
    %277 = tpu.matmul %275, %276, %cst_113 {dimension_numbers = #tpu.dot_dimension_numbers<[1], [0], [0], [1], [0, 0, 1, 1], [], []>} : vector<16x16xbf16>, vector<16x64xbf16>, vector<16x64xf32> -> vector<16x64xf32>
    %278 = arith.addf %250, %277 : vector<16x64xf32>
    %279 = vector.extract_strided_slice %248 {offsets = [0, 16], sizes = [16, 16], strides = [1, 1]} : vector<16x192xf32> to vector<16x16xf32>
    %280 = arith.truncf %279 : vector<16x16xf32> to vector<16x16xbf16>
    %281 = vector.extract_strided_slice %248 {offsets = [0, 80], sizes = [16, 16], strides = [1, 1]} : vector<16x192xf32> to vector<16x16xf32>
    %282 = arith.truncf %281 : vector<16x16xf32> to vector<16x16xbf16>
    %283 = vector.extract_strided_slice %248 {offsets = [0, 144], sizes = [16, 16], strides = [1, 1]} : vector<16x192xf32> to vector<16x16xf32>
    %284 = arith.truncf %283 : vector<16x16xf32> to vector<16x16xbf16>
    %285 = tpu.transpose %282, [1, 0] : vector<16x16xbf16> -> vector<16x16xbf16>
    %cst_114 = arith.constant dense<0.000000e+00> : vector<16x16xf32>
    %286 = tpu.matmul %280, %285, %cst_114 {dimension_numbers = #tpu.dot_dimension_numbers<[1], [0], [0], [1], [0, 0, 1, 1], [], []>} : vector<16x16xbf16>, vector<16x16xbf16>, vector<16x16xf32> -> vector<16x16xf32>
    %cst_115 = arith.constant 2.500000e-01 : f32
    %287 = vector.broadcast %cst_115 : f32 to vector<16x16xf32>
    %288 = arith.mulf %286, %287 : vector<16x16xf32>
    %c1_116 = arith.constant 1 : index
    %c0_117 = arith.constant 0 : index
    %c0_118 = arith.constant 0 : index
    %289 = vector.load %arg22[%c1_116, %c0_117, %c0_118] : memref<4x16x16xf32, #tpu.memory_space<vmem>>, vector<1x16x16xf32>
    %290 = vector.shape_cast %289 : vector<1x16x16xf32> to vector<16x16xf32>
    %291 = arith.addf %288, %290 : vector<16x16xf32>
    %cst_119 = arith.constant dense<0xFF800000> : vector<16xf32>
    %292 = vector.multi_reduction <maximumf>, %291, %cst_119 [1] : vector<16x16xf32> to vector<16xf32>
    %293 = vector.shape_cast %292 : vector<16xf32> to vector<16x1xf32>
    %294 = vector.broadcast %293 : vector<16x1xf32> to vector<16x16xf32>
    %295 = arith.subf %291, %294 : vector<16x16xf32>
    %296 = math.exp %295 : vector<16x16xf32>
    %cst_120 = arith.constant dense<0.000000e+00> : vector<16xf32>
    %297 = vector.multi_reduction <add>, %296, %cst_120 [1] : vector<16x16xf32> to vector<16xf32>
    %298 = vector.shape_cast %297 : vector<16xf32> to vector<16x1xf32>
    %299 = vector.broadcast %298 : vector<16x1xf32> to vector<16x16xf32>
    %300 = arith.divf %296, %299 : vector<16x16xf32>
    %301 = arith.truncf %300 : vector<16x16xf32> to vector<16x16xbf16>
    %cst_121 = arith.constant dense<0.000000e+00> : vector<16x16xf32>
    %302 = tpu.matmul %301, %284, %cst_121 {dimension_numbers = #tpu.dot_dimension_numbers<[1], [0], [0], [1], [0, 0, 1, 1], [], []>} : vector<16x16xbf16>, vector<16x16xbf16>, vector<16x16xf32> -> vector<16x16xf32>
    %303 = arith.truncf %302 : vector<16x16xf32> to vector<16x16xbf16>
    %304 = vector.extract_strided_slice %249 {offsets = [16, 0], sizes = [16, 64], strides = [1, 1]} : vector<64x64xbf16> to vector<16x64xbf16>
    %cst_122 = arith.constant dense<0.000000e+00> : vector<16x64xf32>
    %305 = tpu.matmul %303, %304, %cst_122 {dimension_numbers = #tpu.dot_dimension_numbers<[1], [0], [0], [1], [0, 0, 1, 1], [], []>} : vector<16x16xbf16>, vector<16x64xbf16>, vector<16x64xf32> -> vector<16x64xf32>
    %306 = arith.addf %278, %305 : vector<16x64xf32>
    %307 = vector.extract_strided_slice %248 {offsets = [0, 32], sizes = [16, 16], strides = [1, 1]} : vector<16x192xf32> to vector<16x16xf32>
    %308 = arith.truncf %307 : vector<16x16xf32> to vector<16x16xbf16>
    %309 = vector.extract_strided_slice %248 {offsets = [0, 96], sizes = [16, 16], strides = [1, 1]} : vector<16x192xf32> to vector<16x16xf32>
    %310 = arith.truncf %309 : vector<16x16xf32> to vector<16x16xbf16>
    %311 = vector.extract_strided_slice %248 {offsets = [0, 160], sizes = [16, 16], strides = [1, 1]} : vector<16x192xf32> to vector<16x16xf32>
    %312 = arith.truncf %311 : vector<16x16xf32> to vector<16x16xbf16>
    %313 = tpu.transpose %310, [1, 0] : vector<16x16xbf16> -> vector<16x16xbf16>
    %cst_123 = arith.constant dense<0.000000e+00> : vector<16x16xf32>
    %314 = tpu.matmul %308, %313, %cst_123 {dimension_numbers = #tpu.dot_dimension_numbers<[1], [0], [0], [1], [0, 0, 1, 1], [], []>} : vector<16x16xbf16>, vector<16x16xbf16>, vector<16x16xf32> -> vector<16x16xf32>
    %cst_124 = arith.constant 2.500000e-01 : f32
    %315 = vector.broadcast %cst_124 : f32 to vector<16x16xf32>
    %316 = arith.mulf %314, %315 : vector<16x16xf32>
    %c2_125 = arith.constant 2 : index
    %c0_126 = arith.constant 0 : index
    %c0_127 = arith.constant 0 : index
    %317 = vector.load %arg22[%c2_125, %c0_126, %c0_127] : memref<4x16x16xf32, #tpu.memory_space<vmem>>, vector<1x16x16xf32>
    %318 = vector.shape_cast %317 : vector<1x16x16xf32> to vector<16x16xf32>
    %319 = arith.addf %316, %318 : vector<16x16xf32>
    %cst_128 = arith.constant dense<0xFF800000> : vector<16xf32>
    %320 = vector.multi_reduction <maximumf>, %319, %cst_128 [1] : vector<16x16xf32> to vector<16xf32>
    %321 = vector.shape_cast %320 : vector<16xf32> to vector<16x1xf32>
    %322 = vector.broadcast %321 : vector<16x1xf32> to vector<16x16xf32>
    %323 = arith.subf %319, %322 : vector<16x16xf32>
    %324 = math.exp %323 : vector<16x16xf32>
    %cst_129 = arith.constant dense<0.000000e+00> : vector<16xf32>
    %325 = vector.multi_reduction <add>, %324, %cst_129 [1] : vector<16x16xf32> to vector<16xf32>
    %326 = vector.shape_cast %325 : vector<16xf32> to vector<16x1xf32>
    %327 = vector.broadcast %326 : vector<16x1xf32> to vector<16x16xf32>
    %328 = arith.divf %324, %327 : vector<16x16xf32>
    %329 = arith.truncf %328 : vector<16x16xf32> to vector<16x16xbf16>
    %cst_130 = arith.constant dense<0.000000e+00> : vector<16x16xf32>
    %330 = tpu.matmul %329, %312, %cst_130 {dimension_numbers = #tpu.dot_dimension_numbers<[1], [0], [0], [1], [0, 0, 1, 1], [], []>} : vector<16x16xbf16>, vector<16x16xbf16>, vector<16x16xf32> -> vector<16x16xf32>
    %331 = arith.truncf %330 : vector<16x16xf32> to vector<16x16xbf16>
    %332 = vector.extract_strided_slice %249 {offsets = [32, 0], sizes = [16, 64], strides = [1, 1]} : vector<64x64xbf16> to vector<16x64xbf16>
    %cst_131 = arith.constant dense<0.000000e+00> : vector<16x64xf32>
    %333 = tpu.matmul %331, %332, %cst_131 {dimension_numbers = #tpu.dot_dimension_numbers<[1], [0], [0], [1], [0, 0, 1, 1], [], []>} : vector<16x16xbf16>, vector<16x64xbf16>, vector<16x64xf32> -> vector<16x64xf32>
    %334 = arith.addf %306, %333 : vector<16x64xf32>
    %335 = vector.extract_strided_slice %248 {offsets = [0, 48], sizes = [16, 16], strides = [1, 1]} : vector<16x192xf32> to vector<16x16xf32>
    %336 = arith.truncf %335 : vector<16x16xf32> to vector<16x16xbf16>
    %337 = vector.extract_strided_slice %248 {offsets = [0, 112], sizes = [16, 16], strides = [1, 1]} : vector<16x192xf32> to vector<16x16xf32>
    %338 = arith.truncf %337 : vector<16x16xf32> to vector<16x16xbf16>
    %339 = vector.extract_strided_slice %248 {offsets = [0, 176], sizes = [16, 16], strides = [1, 1]} : vector<16x192xf32> to vector<16x16xf32>
    %340 = arith.truncf %339 : vector<16x16xf32> to vector<16x16xbf16>
    %341 = tpu.transpose %338, [1, 0] : vector<16x16xbf16> -> vector<16x16xbf16>
    %cst_132 = arith.constant dense<0.000000e+00> : vector<16x16xf32>
    %342 = tpu.matmul %336, %341, %cst_132 {dimension_numbers = #tpu.dot_dimension_numbers<[1], [0], [0], [1], [0, 0, 1, 1], [], []>} : vector<16x16xbf16>, vector<16x16xbf16>, vector<16x16xf32> -> vector<16x16xf32>
    %cst_133 = arith.constant 2.500000e-01 : f32
    %343 = vector.broadcast %cst_133 : f32 to vector<16x16xf32>
    %344 = arith.mulf %342, %343 : vector<16x16xf32>
    %c3_134 = arith.constant 3 : index
    %c0_135 = arith.constant 0 : index
    %c0_136 = arith.constant 0 : index
    %345 = vector.load %arg22[%c3_134, %c0_135, %c0_136] : memref<4x16x16xf32, #tpu.memory_space<vmem>>, vector<1x16x16xf32>
    %346 = vector.shape_cast %345 : vector<1x16x16xf32> to vector<16x16xf32>
    %347 = arith.addf %344, %346 : vector<16x16xf32>
    %cst_137 = arith.constant dense<0xFF800000> : vector<16xf32>
    %348 = vector.multi_reduction <maximumf>, %347, %cst_137 [1] : vector<16x16xf32> to vector<16xf32>
    %349 = vector.shape_cast %348 : vector<16xf32> to vector<16x1xf32>
    %350 = vector.broadcast %349 : vector<16x1xf32> to vector<16x16xf32>
    %351 = arith.subf %347, %350 : vector<16x16xf32>
    %352 = math.exp %351 : vector<16x16xf32>
    %cst_138 = arith.constant dense<0.000000e+00> : vector<16xf32>
    %353 = vector.multi_reduction <add>, %352, %cst_138 [1] : vector<16x16xf32> to vector<16xf32>
    %354 = vector.shape_cast %353 : vector<16xf32> to vector<16x1xf32>
    %355 = vector.broadcast %354 : vector<16x1xf32> to vector<16x16xf32>
    %356 = arith.divf %352, %355 : vector<16x16xf32>
    %357 = arith.truncf %356 : vector<16x16xf32> to vector<16x16xbf16>
    %cst_139 = arith.constant dense<0.000000e+00> : vector<16x16xf32>
    %358 = tpu.matmul %357, %340, %cst_139 {dimension_numbers = #tpu.dot_dimension_numbers<[1], [0], [0], [1], [0, 0, 1, 1], [], []>} : vector<16x16xbf16>, vector<16x16xbf16>, vector<16x16xf32> -> vector<16x16xf32>
    %359 = arith.truncf %358 : vector<16x16xf32> to vector<16x16xbf16>
    %360 = vector.extract_strided_slice %249 {offsets = [48, 0], sizes = [16, 64], strides = [1, 1]} : vector<64x64xbf16> to vector<16x64xbf16>
    %cst_140 = arith.constant dense<0.000000e+00> : vector<16x64xf32>
    %361 = tpu.matmul %359, %360, %cst_140 {dimension_numbers = #tpu.dot_dimension_numbers<[1], [0], [0], [1], [0, 0, 1, 1], [], []>} : vector<16x16xbf16>, vector<16x64xbf16>, vector<16x64xf32> -> vector<16x64xf32>
    %362 = arith.addf %334, %361 : vector<16x64xf32>
    %363 = arith.addf %220, %362 : vector<16x64xf32>
    %c0_141 = arith.constant 0 : index
    %c0_142 = arith.constant 0 : index
    %364 = vector.load %arg24[%c0_141, %c0_142] : memref<1x64xf32, #tpu.memory_space<vmem>>, vector<1x64xf32>
    %365 = vector.broadcast %364 : vector<1x64xf32> to vector<16x64xf32>
    %366 = arith.addf %363, %365 : vector<16x64xf32>
    %c0_143 = arith.constant 0 : index
    %c0_144 = arith.constant 0 : index
    %367 = vector.load %arg25[%c0_143, %c0_144] : memref<1x64xf32, #tpu.memory_space<vmem>>, vector<1x64xf32>
    %c0_145 = arith.constant 0 : index
    %c0_146 = arith.constant 0 : index
    %368 = vector.load %arg26[%c0_145, %c0_146] : memref<1x64xf32, #tpu.memory_space<vmem>>, vector<1x64xf32>
    %cst_147 = arith.constant dense<0.000000e+00> : vector<16xf32>
    %369 = vector.multi_reduction <add>, %366, %cst_147 [1] : vector<16x64xf32> to vector<16xf32>
    %370 = vector.shape_cast %369 : vector<16xf32> to vector<16x1xf32>
    %cst_148 = arith.constant 6.400000e+01 : f32
    %371 = vector.broadcast %cst_148 : f32 to vector<16x1xf32>
    %372 = arith.divf %370, %371 : vector<16x1xf32>
    %373 = vector.broadcast %372 : vector<16x1xf32> to vector<16x64xf32>
    %374 = arith.subf %366, %373 : vector<16x64xf32>
    %375 = arith.mulf %374, %374 : vector<16x64xf32>
    %cst_149 = arith.constant dense<0.000000e+00> : vector<16xf32>
    %376 = vector.multi_reduction <add>, %375, %cst_149 [1] : vector<16x64xf32> to vector<16xf32>
    %377 = vector.shape_cast %376 : vector<16xf32> to vector<16x1xf32>
    %cst_150 = arith.constant 6.400000e+01 : f32
    %378 = vector.broadcast %cst_150 : f32 to vector<16x1xf32>
    %379 = arith.divf %377, %378 : vector<16x1xf32>
    %cst_151 = arith.constant 9.99999974E-6 : f32
    %380 = vector.broadcast %cst_151 : f32 to vector<16x1xf32>
    %381 = arith.addf %379, %380 : vector<16x1xf32>
    %382 = math.rsqrt %381 : vector<16x1xf32>
    %383 = vector.broadcast %382 : vector<16x1xf32> to vector<16x64xf32>
    %384 = arith.mulf %374, %383 : vector<16x64xf32>
    %385 = vector.broadcast %367 : vector<1x64xf32> to vector<16x64xf32>
    %386 = arith.mulf %384, %385 : vector<16x64xf32>
    %387 = vector.broadcast %368 : vector<1x64xf32> to vector<16x64xf32>
    %388 = arith.addf %386, %387 : vector<16x64xf32>
    %389 = arith.truncf %388 : vector<16x64xf32> to vector<16x64xbf16>
    %c0_152 = arith.constant 0 : index
    %c0_153 = arith.constant 0 : index
    %390 = vector.load %arg27[%c0_152, %c0_153] : memref<64x256xbf16, #tpu.memory_space<vmem>>, vector<64x256xbf16>
    %cst_154 = arith.constant dense<0.000000e+00> : vector<16x256xf32>
    %391 = tpu.matmul %389, %390, %cst_154 {dimension_numbers = #tpu.dot_dimension_numbers<[1], [0], [0], [1], [0, 0, 1, 1], [], []>} : vector<16x64xbf16>, vector<64x256xbf16>, vector<16x256xf32> -> vector<16x256xf32>
    %c0_155 = arith.constant 0 : index
    %c0_156 = arith.constant 0 : index
    %392 = vector.load %arg28[%c0_155, %c0_156] : memref<1x256xf32, #tpu.memory_space<vmem>>, vector<1x256xf32>
    %393 = vector.broadcast %392 : vector<1x256xf32> to vector<16x256xf32>
    %394 = arith.addf %391, %393 : vector<16x256xf32>
    %cst_157 = arith.constant 5.000000e-01 : f32
    %395 = vector.broadcast %cst_157 : f32 to vector<16x256xf32>
    %396 = arith.mulf %395, %394 : vector<16x256xf32>
    %cst_158 = arith.constant 4.471500e-02 : f32
    %397 = vector.broadcast %cst_158 : f32 to vector<16x256xf32>
    %398 = arith.mulf %397, %394 : vector<16x256xf32>
    %399 = arith.mulf %398, %394 : vector<16x256xf32>
    %400 = arith.mulf %399, %394 : vector<16x256xf32>
    %401 = arith.addf %394, %400 : vector<16x256xf32>
    %cst_159 = arith.constant 0.797884583 : f32
    %402 = vector.broadcast %cst_159 : f32 to vector<16x256xf32>
    %403 = arith.mulf %402, %401 : vector<16x256xf32>
    %404 = math.tanh %403 : vector<16x256xf32>
    %cst_160 = arith.constant 1.000000e+00 : f32
    %405 = vector.broadcast %cst_160 : f32 to vector<16x256xf32>
    %406 = arith.addf %405, %404 : vector<16x256xf32>
    %407 = arith.mulf %396, %406 : vector<16x256xf32>
    %408 = arith.truncf %407 : vector<16x256xf32> to vector<16x256xbf16>
    %c0_161 = arith.constant 0 : index
    %c0_162 = arith.constant 0 : index
    %409 = vector.load %arg29[%c0_161, %c0_162] : memref<256x64xbf16, #tpu.memory_space<vmem>>, vector<256x64xbf16>
    %cst_163 = arith.constant dense<0.000000e+00> : vector<16x64xf32>
    %410 = tpu.matmul %408, %409, %cst_163 {dimension_numbers = #tpu.dot_dimension_numbers<[1], [0], [0], [1], [0, 0, 1, 1], [], []>} : vector<16x256xbf16>, vector<256x64xbf16>, vector<16x64xf32> -> vector<16x64xf32>
    %c0_164 = arith.constant 0 : index
    %c0_165 = arith.constant 0 : index
    %411 = vector.load %arg30[%c0_164, %c0_165] : memref<1x64xf32, #tpu.memory_space<vmem>>, vector<1x64xf32>
    %412 = vector.broadcast %411 : vector<1x64xf32> to vector<16x64xf32>
    %413 = arith.addf %410, %412 : vector<16x64xf32>
    %414 = arith.addf %366, %413 : vector<16x64xf32>
    %c0_166 = arith.constant 0 : index
    %c0_167 = arith.constant 0 : index
    %415 = vector.load %arg31[%c0_166, %c0_167] : memref<1x64xf32, #tpu.memory_space<vmem>>, vector<1x64xf32>
    %c0_168 = arith.constant 0 : index
    %c0_169 = arith.constant 0 : index
    %416 = vector.load %arg32[%c0_168, %c0_169] : memref<1x64xf32, #tpu.memory_space<vmem>>, vector<1x64xf32>
    %cst_170 = arith.constant dense<0.000000e+00> : vector<16xf32>
    %417 = vector.multi_reduction <add>, %414, %cst_170 [1] : vector<16x64xf32> to vector<16xf32>
    %418 = vector.shape_cast %417 : vector<16xf32> to vector<16x1xf32>
    %cst_171 = arith.constant 6.400000e+01 : f32
    %419 = vector.broadcast %cst_171 : f32 to vector<16x1xf32>
    %420 = arith.divf %418, %419 : vector<16x1xf32>
    %421 = vector.broadcast %420 : vector<16x1xf32> to vector<16x64xf32>
    %422 = arith.subf %414, %421 : vector<16x64xf32>
    %423 = arith.mulf %422, %422 : vector<16x64xf32>
    %cst_172 = arith.constant dense<0.000000e+00> : vector<16xf32>
    %424 = vector.multi_reduction <add>, %423, %cst_172 [1] : vector<16x64xf32> to vector<16xf32>
    %425 = vector.shape_cast %424 : vector<16xf32> to vector<16x1xf32>
    %cst_173 = arith.constant 6.400000e+01 : f32
    %426 = vector.broadcast %cst_173 : f32 to vector<16x1xf32>
    %427 = arith.divf %425, %426 : vector<16x1xf32>
    %cst_174 = arith.constant 9.99999974E-6 : f32
    %428 = vector.broadcast %cst_174 : f32 to vector<16x1xf32>
    %429 = arith.addf %427, %428 : vector<16x1xf32>
    %430 = math.rsqrt %429 : vector<16x1xf32>
    %431 = vector.broadcast %430 : vector<16x1xf32> to vector<16x64xf32>
    %432 = arith.mulf %422, %431 : vector<16x64xf32>
    %433 = vector.broadcast %415 : vector<1x64xf32> to vector<16x64xf32>
    %434 = arith.mulf %432, %433 : vector<16x64xf32>
    %435 = vector.broadcast %416 : vector<1x64xf32> to vector<16x64xf32>
    %436 = arith.addf %434, %435 : vector<16x64xf32>
    %cst_175 = arith.constant dense<0.000000e+00> : vector<64xf32>
    %437 = vector.multi_reduction <add>, %436, %cst_175 [0] : vector<16x64xf32> to vector<64xf32>
    %438 = vector.shape_cast %437 : vector<64xf32> to vector<1x64xf32>
    %cst_176 = arith.constant 1.600000e+01 : f32
    %439 = vector.broadcast %cst_176 : f32 to vector<1x64xf32>
    %440 = arith.divf %438, %439 : vector<1x64xf32>
    %c0_177 = arith.constant 0 : index
    %c0_178 = arith.constant 0 : index
    %441 = vector.load %arg33[%c0_177, %c0_178] : memref<64x3xf32, #tpu.memory_space<vmem>>, vector<64x3xf32>
    %cst_179 = arith.constant dense<0.000000e+00> : vector<1x3xf32>
    %442 = tpu.matmul %440, %441, %cst_179 {dimension_numbers = #tpu.dot_dimension_numbers<[1], [0], [0], [1], [0, 0, 1, 1], [], []>} : vector<1x64xf32>, vector<64x3xf32>, vector<1x3xf32> -> vector<1x3xf32>
    %c0_180 = arith.constant 0 : index
    %c0_181 = arith.constant 0 : index
    %443 = vector.load %arg34[%c0_180, %c0_181] : memref<1x3xf32, #tpu.memory_space<vmem>>, vector<1x3xf32>
    %444 = arith.addf %442, %443 : vector<1x3xf32>
    %cst_182 = arith.constant dense<0xFF800000> : vector<1xf32>
    %445 = vector.multi_reduction <maximumf>, %444, %cst_182 [1] : vector<1x3xf32> to vector<1xf32>
    %446 = vector.shape_cast %445 : vector<1xf32> to vector<1x1xf32>
    %447 = vector.broadcast %446 : vector<1x1xf32> to vector<1x3xf32>
    %448 = arith.subf %444, %447 : vector<1x3xf32>
    %449 = math.exp %448 : vector<1x3xf32>
    %cst_183 = arith.constant dense<0.000000e+00> : vector<1xf32>
    %450 = vector.multi_reduction <add>, %449, %cst_183 [1] : vector<1x3xf32> to vector<1xf32>
    %451 = vector.shape_cast %450 : vector<1xf32> to vector<1x1xf32>
    %452 = vector.broadcast %451 : vector<1x1xf32> to vector<1x3xf32>
    %453 = arith.divf %449, %452 : vector<1x3xf32>
    %c0_184 = arith.constant 0 : index
    %c0_185 = arith.constant 0 : index
    %c0_186 = arith.constant 0 : index
    %454 = vector.load %arg35[%c0_184, %c0_185, %c0_186] : memref<1x1x3xf32, #tpu.memory_space<vmem>>, vector<1x1x3xf32>
    %455 = vector.shape_cast %454 : vector<1x1x3xf32> to vector<1x3xf32>
    %456 = vector.shape_cast %453 : vector<1x3xf32> to vector<1x1x3xf32>
    tpu.vector_store %arg35[%c0_184, %c0_185, %c0_186], %456 {strides = array<i32>} : memref<1x1x3xf32, #tpu.memory_space<vmem>>, vector<1x1x3xf32>,
    return
  }
  func.func @transform_0(%arg0: i32) -> (i32, i32, i32) {
    %c0_i32 = arith.constant 0 : i32
    %c0_i32_0 = arith.constant 0 : i32
    %c0_i32_1 = arith.constant 0 : i32
    return %arg0, %c0_i32, %c0_i32_0 : i32, i32, i32
  }
  func.func @transform_1(%arg0: i32) -> (i32, i32) {
    %c0_i32 = arith.constant 0 : i32
    %c0_i32_0 = arith.constant 0 : i32
    %c0_i32_1 = arith.constant 0 : i32
    return %c0_i32, %c0_i32_0 : i32, i32
  }
  func.func @transform_2(%arg0: i32) -> (i32, i32) {
    %c0_i32 = arith.constant 0 : i32
    %c0_i32_0 = arith.constant 0 : i32
    %c0_i32_1 = arith.constant 0 : i32
    return %c0_i32, %c0_i32_0 : i32, i32
  }
  func.func @transform_3(%arg0: i32) -> (i32, i32) {
    %c0_i32 = arith.constant 0 : i32
    %c0_i32_0 = arith.constant 0 : i32
    %c0_i32_1 = arith.constant 0 : i32
    return %c0_i32, %c0_i32_0 : i32, i32
  }
  func.func @transform_4(%arg0: i32) -> (i32, i32) {
    %c0_i32 = arith.constant 0 : i32
    %c0_i32_0 = arith.constant 0 : i32
    %c0_i32_1 = arith.constant 0 : i32
    return %c0_i32, %c0_i32_0 : i32, i32
  }
  func.func @transform_5(%arg0: i32) -> (i32, i32) {
    %c0_i32 = arith.constant 0 : i32
    %c0_i32_0 = arith.constant 0 : i32
    %c0_i32_1 = arith.constant 0 : i32
    return %c0_i32, %c0_i32_0 : i32, i32
  }
  func.func @transform_6(%arg0: i32) -> (i32, i32) {
    %c0_i32 = arith.constant 0 : i32
    %c0_i32_0 = arith.constant 0 : i32
    %c0_i32_1 = arith.constant 0 : i32
    return %c0_i32, %c0_i32_0 : i32, i32
  }
  func.func @transform_7(%arg0: i32) -> (i32, i32) {
    %c0_i32 = arith.constant 0 : i32
    %c0_i32_0 = arith.constant 0 : i32
    %c0_i32_1 = arith.constant 0 : i32
    return %c0_i32, %c0_i32_0 : i32, i32
  }
  func.func @transform_8(%arg0: i32) -> (i32, i32, i32) {
    %c0_i32 = arith.constant 0 : i32
    %c0_i32_0 = arith.constant 0 : i32
    %c0_i32_1 = arith.constant 0 : i32
    %c0_i32_2 = arith.constant 0 : i32
    return %c0_i32, %c0_i32_0, %c0_i32_1 : i32, i32, i32
  }
  func.func @transform_9(%arg0: i32) -> (i32, i32) {
    %c0_i32 = arith.constant 0 : i32
    %c0_i32_0 = arith.constant 0 : i32
    %c0_i32_1 = arith.constant 0 : i32
    return %c0_i32, %c0_i32_0 : i32, i32
  }
  func.func @transform_10(%arg0: i32) -> (i32, i32) {
    %c0_i32 = arith.constant 0 : i32
    %c0_i32_0 = arith.constant 0 : i32
    %c0_i32_1 = arith.constant 0 : i32
    return %c0_i32, %c0_i32_0 : i32, i32
  }
  func.func @transform_11(%arg0: i32) -> (i32, i32) {
    %c0_i32 = arith.constant 0 : i32
    %c0_i32_0 = arith.constant 0 : i32
    %c0_i32_1 = arith.constant 0 : i32
    return %c0_i32, %c0_i32_0 : i32, i32
  }
  func.func @transform_12(%arg0: i32) -> (i32, i32) {
    %c0_i32 = arith.constant 0 : i32
    %c0_i32_0 = arith.constant 0 : i32
    %c0_i32_1 = arith.constant 0 : i32
    return %c0_i32, %c0_i32_0 : i32, i32
  }
  func.func @transform_13(%arg0: i32) -> (i32, i32) {
    %c0_i32 = arith.constant 0 : i32
    %c0_i32_0 = arith.constant 0 : i32
    %c0_i32_1 = arith.constant 0 : i32
    return %c0_i32, %c0_i32_0 : i32, i32
  }
  func.func @transform_14(%arg0: i32) -> (i32, i32) {
    %c0_i32 = arith.constant 0 : i32
    %c0_i32_0 = arith.constant 0 : i32
    %c0_i32_1 = arith.constant 0 : i32
    return %c0_i32, %c0_i32_0 : i32, i32
  }
  func.func @transform_15(%arg0: i32) -> (i32, i32) {
    %c0_i32 = arith.constant 0 : i32
    %c0_i32_0 = arith.constant 0 : i32
    %c0_i32_1 = arith.constant 0 : i32
    return %c0_i32, %c0_i32_0 : i32, i32
  }
  func.func @transform_16(%arg0: i32) -> (i32, i32) {
    %c0_i32 = arith.constant 0 : i32
    %c0_i32_0 = arith.constant 0 : i32
    %c0_i32_1 = arith.constant 0 : i32
    return %c0_i32, %c0_i32_0 : i32, i32
  }
  func.func @transform_17(%arg0: i32) -> (i32, i32) {
    %c0_i32 = arith.constant 0 : i32
    %c0_i32_0 = arith.constant 0 : i32
    %c0_i32_1 = arith.constant 0 : i32
    return %c0_i32, %c0_i32_0 : i32, i32
  }
  func.func @transform_18(%arg0: i32) -> (i32, i32) {
    %c0_i32 = arith.constant 0 : i32
    %c0_i32_0 = arith.constant 0 : i32
    %c0_i32_1 = arith.constant 0 : i32
    return %c0_i32, %c0_i32_0 : i32, i32
  }
  func.func @transform_19(%arg0: i32) -> (i32, i32) {
    %c0_i32 = arith.constant 0 : i32
    %c0_i32_0 = arith.constant 0 : i32
    %c0_i32_1 = arith.constant 0 : i32
    return %c0_i32, %c0_i32_0 : i32, i32
  }
  func.func @transform_20(%arg0: i32) -> (i32, i32) {
    %c0_i32 = arith.constant 0 : i32
    %c0_i32_0 = arith.constant 0 : i32
    %c0_i32_1 = arith.constant 0 : i32
    return %c0_i32, %c0_i32_0 : i32, i32
  }
  func.func @transform_21(%arg0: i32) -> (i32, i32, i32) {
    %c0_i32 = arith.constant 0 : i32
    %c0_i32_0 = arith.constant 0 : i32
    %c0_i32_1 = arith.constant 0 : i32
    %c0_i32_2 = arith.constant 0 : i32
    return %c0_i32, %c0_i32_0, %c0_i32_1 : i32, i32, i32
  }
  func.func @transform_22(%arg0: i32) -> (i32, i32) {
    %c0_i32 = arith.constant 0 : i32
    %c0_i32_0 = arith.constant 0 : i32
    %c0_i32_1 = arith.constant 0 : i32
    return %c0_i32, %c0_i32_0 : i32, i32
  }
  func.func @transform_23(%arg0: i32) -> (i32, i32) {
    %c0_i32 = arith.constant 0 : i32
    %c0_i32_0 = arith.constant 0 : i32
    %c0_i32_1 = arith.constant 0 : i32
    return %c0_i32, %c0_i32_0 : i32, i32
  }
  func.func @transform_24(%arg0: i32) -> (i32, i32) {
    %c0_i32 = arith.constant 0 : i32
    %c0_i32_0 = arith.constant 0 : i32
    %c0_i32_1 = arith.constant 0 : i32
    return %c0_i32, %c0_i32_0 : i32, i32
  }
  func.func @transform_25(%arg0: i32) -> (i32, i32) {
    %c0_i32 = arith.constant 0 : i32
    %c0_i32_0 = arith.constant 0 : i32
    %c0_i32_1 = arith.constant 0 : i32
    return %c0_i32, %c0_i32_0 : i32, i32
  }
  func.func @transform_26(%arg0: i32) -> (i32, i32) {
    %c0_i32 = arith.constant 0 : i32
    %c0_i32_0 = arith.constant 0 : i32
    %c0_i32_1 = arith.constant 0 : i32
    return %c0_i32, %c0_i32_0 : i32, i32
  }
  func.func @transform_27(%arg0: i32) -> (i32, i32) {
    %c0_i32 = arith.constant 0 : i32
    %c0_i32_0 = arith.constant 0 : i32
    %c0_i32_1 = arith.constant 0 : i32
    return %c0_i32, %c0_i32_0 : i32, i32
  }
  func.func @transform_28(%arg0: i32) -> (i32, i32) {
    %c0_i32 = arith.constant 0 : i32
    %c0_i32_0 = arith.constant 0 : i32
    %c0_i32_1 = arith.constant 0 : i32
    return %c0_i32, %c0_i32_0 : i32, i32
  }
  func.func @transform_29(%arg0: i32) -> (i32, i32) {
    %c0_i32 = arith.constant 0 : i32
    %c0_i32_0 = arith.constant 0 : i32
    %c0_i32_1 = arith.constant 0 : i32
    return %c0_i32, %c0_i32_0 : i32, i32
  }
  func.func @transform_30(%arg0: i32) -> (i32, i32) {
    %c0_i32 = arith.constant 0 : i32
    %c0_i32_0 = arith.constant 0 : i32
    %c0_i32_1 = arith.constant 0 : i32
    return %c0_i32, %c0_i32_0 : i32, i32
  }
  func.func @transform_31(%arg0: i32) -> (i32, i32) {
    %c0_i32 = arith.constant 0 : i32
    %c0_i32_0 = arith.constant 0 : i32
    %c0_i32_1 = arith.constant 0 : i32
    return %c0_i32, %c0_i32_0 : i32, i32
  }
  func.func @transform_32(%arg0: i32) -> (i32, i32) {
    %c0_i32 = arith.constant 0 : i32
    %c0_i32_0 = arith.constant 0 : i32
    %c0_i32_1 = arith.constant 0 : i32
    return %c0_i32, %c0_i32_0 : i32, i32
  }
  func.func @transform_33(%arg0: i32) -> (i32, i32) {
    %c0_i32 = arith.constant 0 : i32
    %c0_i32_0 = arith.constant 0 : i32
    %c0_i32_1 = arith.constant 0 : i32
    return %c0_i32, %c0_i32_0 : i32, i32
  }
  func.func @transform_34(%arg0: i32) -> (i32, i32, i32) {
    %c0_i32 = arith.constant 0 : i32
    %c0_i32_0 = arith.constant 0 : i32
    %c0_i32_1 = arith.constant 0 : i32
    return %arg0, %c0_i32, %c0_i32_0 : i32, i32, i32
  }
}

</mosaic_0001>

<llo_original>
// kernel: forward.2
$region0: #{forward.2}
  #allocation0 [shape = 'u32[]', space=smem, size = 0x4, offset = 0x4, fixed_abs, tag = 'smem constant byte address 0x4 - core index']
  #allocation1 [shape = 'u32[72,128]{1,0:T(1,128)}', space=vmem, size = 0x9000, scoped, tag = 'internal scratch']
  %s0 = inlined_call_operand.smem [shape: u32[32], index: -1, kind: input, shape index: {}]
  %s1 = sld [smem:[%s0]]
  %s2 = scalar_lea.smem %s0, 1
  %s3 = sld [smem:[%s2]]
  %s4 = scalar_lea.smem %s0, 2
  %s5 = sld [smem:[%s4]]
  %s6 = scalar_lea.smem %s0, 3
  %s7 = sld [smem:[%s6]]
  %s8 = scalar_lea.smem %s0, 4
  %s9 = sld [smem:[%s8]]
  %s10 = scalar_lea.smem %s0, 5
  %s11 = sld [smem:[%s10]]
  %s12 = scalar_lea.smem %s0, 6
  %s13 = sld [smem:[%s12]]
  %s14 = scalar_lea.smem %s0, 7
  %s15 = sld [smem:[%s14]]
  %s16 = scalar_lea.smem %s0, 8
  %s17 = sld [smem:[%s16]]
  %s18 = scalar_lea.smem %s0, 9
  %s19 = sld [smem:[%s18]]
  %s20 = scalar_lea.smem %s0, 10
  %s21 = sld [smem:[%s20]]
  %s22 = scalar_lea.smem %s0, 11
  %s23 = sld [smem:[%s22]]
  %s24 = scalar_lea.smem %s0, 12
  %s25 = sld [smem:[%s24]]
  %s26 = scalar_lea.smem %s0, 13
  %s27 = sld [smem:[%s26]]
  %s28 = scalar_lea.smem %s0, 14
  %s29 = sld [smem:[%s28]]
  %s30 = scalar_lea.smem %s0, 15
  %s31 = sld [smem:[%s30]]
  %s32 = scalar_lea.smem %s0, 16
  %s33 = sld [smem:[%s32]]
  %s34 = scalar_lea.smem %s0, 17
  %s35 = sld [smem:[%s34]]
  %s36 = scalar_lea.smem %s0, 18
  %s37 = sld [smem:[%s36]]
  %s38 = scalar_lea.smem %s0, 19
  %s39 = sld [smem:[%s38]]
  %s40 = scalar_lea.smem %s0, 20
  %s41 = sld [smem:[%s40]]
  %s42 = scalar_lea.smem %s0, 21
  %s43 = sld [smem:[%s42]]
  %s44 = scalar_lea.smem %s0, 22
  %s45 = sld [smem:[%s44]]
  %s46 = scalar_lea.smem %s0, 23
  %s47 = sld [smem:[%s46]]
  %s48 = scalar_lea.smem %s0, 24
  %s49 = sld [smem:[%s48]]
  %s50 = scalar_lea.smem %s0, 25
  %s51 = sld [smem:[%s50]]
  %s52 = scalar_lea.smem %s0, 26
  %s53 = sld [smem:[%s52]]
  %s54 = scalar_lea.smem %s0, 27
  %s55 = sld [smem:[%s54]]
  %s56 = scalar_lea.smem %s0, 28
  %s57 = sld [smem:[%s56]]
  %s58 = scalar_lea.smem %s0, 29
  %s59 = sld [smem:[%s58]]
  %s60 = scalar_lea.smem %s0, 30
  %s61 = sld [smem:[%s60]]
  %s62 = scalar_lea.smem %s0, 31
  %s63 = sld [smem:[%s62]]
  %s64 = sld [smem:[#allocation0]]
  $region157: #{forward.2} parent=0
    _
  %s66 = ssub.s32 1, %s64
  %s67 = scalar_select 0, %s66, %s64
  loop: start=0, step=1, limit=4
  $region2: #{forward.2} parent=0 // loop_pre_header
    _
  $region3: #{forward.2} parent=0 // loop_header
    %s69 = sphi 0, %s73
    %p70 = scmp.ge.s32.totalorder %s69, 4
    %s79 = sphi 0, %s81
    %s82 = sphi 0, %s79
    %s83 = sphi 0, %s82
    %s99 = sphi 0, %s83
    %s103 = sphi 0, %s103
    %s105 = sphi 0, %s103
    %s106 = sphi 0, %s105
    %s120 = sphi 0, %s106
    %s124 = sphi 0, %s124
    %s126 = sphi 0, %s124
    %s127 = sphi 0, %s126
    %s141 = sphi 0, %s127
    %s145 = sphi 0, %s145
    %s147 = sphi 0, %s145
    %s148 = sphi 0, %s147
    %s162 = sphi 0, %s148
    %s166 = sphi 0, %s166
    %s168 = sphi 0, %s166
    %s169 = sphi 0, %s168
    %s183 = sphi 0, %s169
    %s187 = sphi 0, %s187
    %s189 = sphi 0, %s187
    %s190 = sphi 0, %s189
    %s204 = sphi 0, %s190
    %s208 = sphi 0, %s208
    %s210 = sphi 0, %s208
    %s211 = sphi 0, %s210
    %s225 = sphi 0, %s211
    %s229 = sphi 0, %s229
    %s231 = sphi 0, %s229
    %s232 = sphi 0, %s231
    %s246 = sphi 0, %s232
    %s250 = sphi 0, %s250
    %s252 = sphi 0, %s250
    %s253 = sphi 0, %s252
    %s267 = sphi 0, %s253
    %s271 = sphi 0, %s271
    %s273 = sphi 0, %s271
    %s274 = sphi 0, %s273
    %s288 = sphi 0, %s274
    %s292 = sphi 0, %s292
    %s294 = sphi 0, %s292
    %s295 = sphi 0, %s294
    %s309 = sphi 0, %s295
    %s313 = sphi 0, %s313
    %s315 = sphi 0, %s313
    %s316 = sphi 0, %s315
    %s330 = sphi 0, %s316
    %s334 = sphi 0, %s334
    %s336 = sphi 0, %s334
    %s337 = sphi 0, %s336
    %s351 = sphi 0, %s337
    %s355 = sphi 0, %s355
    %s357 = sphi 0, %s355
    %s358 = sphi 0, %s357
    %s372 = sphi 0, %s358
    %s376 = sphi 0, %s376
    %s378 = sphi 0, %s376
    %s379 = sphi 0, %s378
    %s393 = sphi 0, %s379
    %s397 = sphi 0, %s397
    %s399 = sphi 0, %s397
    %s400 = sphi 0, %s399
    %s414 = sphi 0, %s400
    %s418 = sphi 0, %s418
    %s420 = sphi 0, %s418
    %s421 = sphi 0, %s420
    %s435 = sphi 0, %s421
    %s439 = sphi 0, %s439
    %s441 = sphi 0, %s439
    %s442 = sphi 0, %s441
    %s456 = sphi 0, %s442
    %s460 = sphi 0, %s460
    %s462 = sphi 0, %s460
    %s463 = sphi 0, %s462
    %s477 = sphi 0, %s463
    %s481 = sphi 0, %s481
    %s483 = sphi 0, %s481
    %s484 = sphi 0, %s483
    %s498 = sphi 0, %s484
    %s502 = sphi 0, %s502
    %s504 = sphi 0, %s502
    %s505 = sphi 0, %s504
    %s519 = sphi 0, %s505
    %s523 = sphi 0, %s523
    %s525 = sphi 0, %s523
    %s526 = sphi 0, %s525
    %s540 = sphi 0, %s526
    %s544 = sphi 0, %s544
    %s546 = sphi 0, %s544
    %s547 = sphi 0, %s546
    %s561 = sphi 0, %s547
    %s565 = sphi 0, %s565
    %s567 = sphi 0, %s565
    %s568 = sphi 0, %s567
    %s582 = sphi 0, %s568
    %s586 = sphi 0, %s586
    %s588 = sphi 0, %s586
    %s589 = sphi 0, %s588
    %s603 = sphi 0, %s589
    %s607 = sphi 0, %s607
    %s609 = sphi 0, %s607
    %s610 = sphi 0, %s609
    %s624 = sphi 0, %s610
    %s628 = sphi 0, %s628
    %s630 = sphi 0, %s628
    %s631 = sphi 0, %s630
    %s645 = sphi 0, %s631
    %s649 = sphi 0, %s649
    %s651 = sphi 0, %s649
    %s652 = sphi 0, %s651
    %s666 = sphi 0, %s652
    %s670 = sphi 0, %s670
    %s672 = sphi 0, %s670
    %s673 = sphi 0, %s672
    %s687 = sphi 0, %s673
    %s691 = sphi 0, %s691
    %s693 = sphi 0, %s691
    %s694 = sphi 0, %s693
    %s708 = sphi 0, %s694
    %s712 = sphi 0, %s712
    %s714 = sphi 0, %s712
    %s715 = sphi 0, %s714
    %s729 = sphi 0, %s715
    %s735 = sphi 0, %s737
    %s738 = sphi 0, %s735
    %s739 = sphi 0, %s738
    %s755 = sphi 0, %s739
  $region4: #{forward.2} parent=0 // loop_header_branch
    %72 = sbr.rel (%p70) target = $region8
  $region5: #{forward.2} parent=0 // loop_body
    %s74 = ssub.s32 %s69, 1
    %s75 = ssub.s32 %s69, 2
    %s76 = sadd.s32 %s69, 1
    %s77 = ssub.s32 %s69, %s76
    %p78 = scmp.eq.s32.totalorder %s77, 0
    %s80 = sadd.s32 %s79, 1
    %s81 = scalar_select %p78, %s79, %s80
    %p84 = pneg %p78
    %p85 = scmp.eq.s32.totalorder %s69, 1
    %p86 = por %p84, %p85
    %p87 = scmp.ne.s32.totalorder %s79, %s82
    %p88 = scmp.eq.s32.totalorder %s69, 0
    %p89 = por %p87, %p88
    %p90 = scmp.ne.s32.totalorder %s79, %s82
    %p91 = scmp.eq.s32.totalorder %s74, 1
    %p92 = por %p90, %p91
    %p93 = scmp.ne.s32.totalorder %s82, %s83
    %p94 = scmp.eq.s32.totalorder %s74, 0
    %p95 = por %p93, %p94
    %p96 = scmp.ne.s32.totalorder %s82, %s83
    %p97 = scmp.eq.s32.totalorder %s75, 1
    %p98 = por %p96, %p97
    %p100 = scmp.ne.s32.totalorder %s83, %s99
    %p101 = scmp.eq.s32.totalorder %s75, 0
    %p102 = por %p100, %p101
    %s104 = sadd.s32 %s103, 1
    %p107 = scmp.eq.s32.totalorder %s69, 1
    %p108 = scmp.ne.s32.totalorder %s103, %s105
    %p109 = scmp.eq.s32.totalorder %s69, 0
    %p110 = por %p108, %p109
    %p111 = scmp.ne.s32.totalorder %s103, %s105
    %p112 = scmp.eq.s32.totalorder %s74, 1
    %p113 = por %p111, %p112
    %p114 = scmp.ne.s32.totalorder %s105, %s106
    %p115 = scmp.eq.s32.totalorder %s74, 0
    %p116 = por %p114, %p115
    %p117 = scmp.ne.s32.totalorder %s105, %s106
    %p118 = scmp.eq.s32.totalorder %s75, 1
    %p119 = por %p117, %p118
    %p121 = scmp.ne.s32.totalorder %s106, %s120
    %p122 = scmp.eq.s32.totalorder %s75, 0
    %p123 = por %p121, %p122
    %s125 = sadd.s32 %s124, 1
    %p128 = scmp.eq.s32.totalorder %s69, 1
    %p129 = scmp.ne.s32.totalorder %s124, %s126
    %p130 = scmp.eq.s32.totalorder %s69, 0
    %p131 = por %p129, %p130
    %p132 = scmp.ne.s32.totalorder %s124, %s126
    %p133 = scmp.eq.s32.totalorder %s74, 1
    %p134 = por %p132, %p133
    %p135 = scmp.ne.s32.totalorder %s126, %s127
    %p136 = scmp.eq.s32.totalorder %s74, 0
    %p137 = por %p135, %p136
    %p138 = scmp.ne.s32.totalorder %s126, %s127
    %p139 = scmp.eq.s32.totalorder %s75, 1
    %p140 = por %p138, %p139
    %p142 = scmp.ne.s32.totalorder %s127, %s141
    %p143 = scmp.eq.s32.totalorder %s75, 0
    %p144 = por %p142, %p143
    %s146 = sadd.s32 %s145, 1
    %p149 = scmp.eq.s32.totalorder %s69, 1
    %p150 = scmp.ne.s32.totalorder %s145, %s147
    %p151 = scmp.eq.s32.totalorder %s69, 0
    %p152 = por %p150, %p151
    %p153 = scmp.ne.s32.totalorder %s145, %s147
    %p154 = scmp.eq.s32.totalorder %s74, 1
    %p155 = por %p153, %p154
    %p156 = scmp.ne.s32.totalorder %s147, %s148
    %p157 = scmp.eq.s32.totalorder %s74, 0
    %p158 = por %p156, %p157
    %p159 = scmp.ne.s32.totalorder %s147, %s148
    %p160 = scmp.eq.s32.totalorder %s75, 1
    %p161 = por %p159, %p160
    %p163 = scmp.ne.s32.totalorder %s148, %s162
    %p164 = scmp.eq.s32.totalorder %s75, 0
    %p165 = por %p163, %p164
    %s167 = sadd.s32 %s166, 1
    %p170 = scmp.eq.s32.totalorder %s69, 1
    %p171 = scmp.ne.s32.totalorder %s166, %s168
    %p172 = scmp.eq.s32.totalorder %s69, 0
    %p173 = por %p171, %p172
    %p174 = scmp.ne.s32.totalorder %s166, %s168
    %p175 = scmp.eq.s32.totalorder %s74, 1
    %p176 = por %p174, %p175
    %p177 = scmp.ne.s32.totalorder %s168, %s169
    %p178 = scmp.eq.s32.totalorder %s74, 0
    %p179 = por %p177, %p178
    %p180 = scmp.ne.s32.totalorder %s168, %s169
    %p181 = scmp.eq.s32.totalorder %s75, 1
    %p182 = por %p180, %p181
    %p184 = scmp.ne.s32.totalorder %s169, %s183
    %p185 = scmp.eq.s32.totalorder %s75, 0
    %p186 = por %p184, %p185
    %s188 = sadd.s32 %s187, 1
    %p191 = scmp.eq.s32.totalorder %s69, 1
    %p192 = scmp.ne.s32.totalorder %s187, %s189
    %p193 = scmp.eq.s32.totalorder %s69, 0
    %p194 = por %p192, %p193
    %p195 = scmp.ne.s32.totalorder %s187, %s189
    %p196 = scmp.eq.s32.totalorder %s74, 1
    %p197 = por %p195, %p196
    %p198 = scmp.ne.s32.totalorder %s189, %s190
    %p199 = scmp.eq.s32.totalorder %s74, 0
    %p200 = por %p198, %p199
    %p201 = scmp.ne.s32.totalorder %s189, %s190
    %p202 = scmp.eq.s32.totalorder %s75, 1
    %p203 = por %p201, %p202
    %p205 = scmp.ne.s32.totalorder %s190, %s204
    %p206 = scmp.eq.s32.totalorder %s75, 0
    %p207 = por %p205, %p206
    %s209 = sadd.s32 %s208, 1
    %p212 = scmp.eq.s32.totalorder %s69, 1
    %p213 = scmp.ne.s32.totalorder %s208, %s210
    %p214 = scmp.eq.s32.totalorder %s69, 0
    %p215 = por %p213, %p214
    %p216 = scmp.ne.s32.totalorder %s208, %s210
    %p217 = scmp.eq.s32.totalorder %s74, 1
    %p218 = por %p216, %p217
    %p219 = scmp.ne.s32.totalorder %s210, %s211
    %p220 = scmp.eq.s32.totalorder %s74, 0
    %p221 = por %p219, %p220
    %p222 = scmp.ne.s32.totalorder %s210, %s211
    %p223 = scmp.eq.s32.totalorder %s75, 1
    %p224 = por %p222, %p223
    %p226 = scmp.ne.s32.totalorder %s211, %s225
    %p227 = scmp.eq.s32.totalorder %s75, 0
    %p228 = por %p226, %p227
    %s230 = sadd.s32 %s229, 1
    %p233 = scmp.eq.s32.totalorder %s69, 1
    %p234 = scmp.ne.s32.totalorder %s229, %s231
    %p235 = scmp.eq.s32.totalorder %s69, 0
    %p236 = por %p234, %p235
    %p237 = scmp.ne.s32.totalorder %s229, %s231
    %p238 = scmp.eq.s32.totalorder %s74, 1
    %p239 = por %p237, %p238
    %p240 = scmp.ne.s32.totalorder %s231, %s232
    %p241 = scmp.eq.s32.totalorder %s74, 0
    %p242 = por %p240, %p241
    %p243 = scmp.ne.s32.totalorder %s231, %s232
    %p244 = scmp.eq.s32.totalorder %s75, 1
    %p245 = por %p243, %p244
    %p247 = scmp.ne.s32.totalorder %s232, %s246
    %p248 = scmp.eq.s32.totalorder %s75, 0
    %p249 = por %p247, %p248
    %s251 = sadd.s32 %s250, 1
    %p254 = scmp.eq.s32.totalorder %s69, 1
    %p255 = scmp.ne.s32.totalorder %s250, %s252
    %p256 = scmp.eq.s32.totalorder %s69, 0
    %p257 = por %p255, %p256
    %p258 = scmp.ne.s32.totalorder %s250, %s252
    %p259 = scmp.eq.s32.totalorder %s74, 1
    %p260 = por %p258, %p259
    %p261 = scmp.ne.s32.totalorder %s252, %s253
    %p262 = scmp.eq.s32.totalorder %s74, 0
    %p263 = por %p261, %p262
    %p264 = scmp.ne.s32.totalorder %s252, %s253
    %p265 = scmp.eq.s32.totalorder %s75, 1
    %p266 = por %p264, %p265
    %p268 = scmp.ne.s32.totalorder %s253, %s267
    %p269 = scmp.eq.s32.totalorder %s75, 0
    %p270 = por %p268, %p269
    %s272 = sadd.s32 %s271, 1
    %p275 = scmp.eq.s32.totalorder %s69, 1
    %p276 = scmp.ne.s32.totalorder %s271, %s273
    %p277 = scmp.eq.s32.totalorder %s69, 0
    %p278 = por %p276, %p277
    %p279 = scmp.ne.s32.totalorder %s271, %s273
    %p280 = scmp.eq.s32.totalorder %s74, 1
    %p281 = por %p279, %p280
    %p282 = scmp.ne.s32.totalorder %s273, %s274
    %p283 = scmp.eq.s32.totalorder %s74, 0
    %p284 = por %p282, %p283
    %p285 = scmp.ne.s32.totalorder %s273, %s274
    %p286 = scmp.eq.s32.totalorder %s75, 1
    %p287 = por %p285, %p286
    %p289 = scmp.ne.s32.totalorder %s274, %s288
    %p290 = scmp.eq.s32.totalorder %s75, 0
    %p291 = por %p289, %p290
    %s293 = sadd.s32 %s292, 1
    %p296 = scmp.eq.s32.totalorder %s69, 1
    %p297 = scmp.ne.s32.totalorder %s292, %s294
    %p298 = scmp.eq.s32.totalorder %s69, 0
    %p299 = por %p297, %p298
    %p300 = scmp.ne.s32.totalorder %s292, %s294
    %p301 = scmp.eq.s32.totalorder %s74, 1
    %p302 = por %p300, %p301
    %p303 = scmp.ne.s32.totalorder %s294, %s295
    %p304 = scmp.eq.s32.totalorder %s74, 0
    %p305 = por %p303, %p304
    %p306 = scmp.ne.s32.totalorder %s294, %s295
    %p307 = scmp.eq.s32.totalorder %s75, 1
    %p308 = por %p306, %p307
    %p310 = scmp.ne.s32.totalorder %s295, %s309
    %p311 = scmp.eq.s32.totalorder %s75, 0
    %p312 = por %p310, %p311
    %s314 = sadd.s32 %s313, 1
    %p317 = scmp.eq.s32.totalorder %s69, 1
    %p318 = scmp.ne.s32.totalorder %s313, %s315
    %p319 = scmp.eq.s32.totalorder %s69, 0
    %p320 = por %p318, %p319
    %p321 = scmp.ne.s32.totalorder %s313, %s315
    %p322 = scmp.eq.s32.totalorder %s74, 1
    %p323 = por %p321, %p322
    %p324 = scmp.ne.s32.totalorder %s315, %s316
    %p325 = scmp.eq.s32.totalorder %s74, 0
    %p326 = por %p324, %p325
    %p327 = scmp.ne.s32.totalorder %s315, %s316
    %p328 = scmp.eq.s32.totalorder %s75, 1
    %p329 = por %p327, %p328
    %p331 = scmp.ne.s32.totalorder %s316, %s330
    %p332 = scmp.eq.s32.totalorder %s75, 0
    %p333 = por %p331, %p332
    %s335 = sadd.s32 %s334, 1
    %p338 = scmp.eq.s32.totalorder %s69, 1
    %p339 = scmp.ne.s32.totalorder %s334, %s336
    %p340 = scmp.eq.s32.totalorder %s69, 0
    %p341 = por %p339, %p340
    %p342 = scmp.ne.s32.totalorder %s334, %s336
    %p343 = scmp.eq.s32.totalorder %s74, 1
    %p344 = por %p342, %p343
    %p345 = scmp.ne.s32.totalorder %s336, %s337
    %p346 = scmp.eq.s32.totalorder %s74, 0
    %p347 = por %p345, %p346
    %p348 = scmp.ne.s32.totalorder %s336, %s337
    %p349 = scmp.eq.s32.totalorder %s75, 1
    %p350 = por %p348, %p349
    %p352 = scmp.ne.s32.totalorder %s337, %s351
    %p353 = scmp.eq.s32.totalorder %s75, 0
    %p354 = por %p352, %p353
    %s356 = sadd.s32 %s355, 1
    %p359 = scmp.eq.s32.totalorder %s69, 1
    %p360 = scmp.ne.s32.totalorder %s355, %s357
    %p361 = scmp.eq.s32.totalorder %s69, 0
    %p362 = por %p360, %p361
    %p363 = scmp.ne.s32.totalorder %s355, %s357
    %p364 = scmp.eq.s32.totalorder %s74, 1
    %p365 = por %p363, %p364
    %p366 = scmp.ne.s32.totalorder %s357, %s358
    %p367 = scmp.eq.s32.totalorder %s74, 0
    %p368 = por %p366, %p367
    %p369 = scmp.ne.s32.totalorder %s357, %s358
    %p370 = scmp.eq.s32.totalorder %s75, 1
    %p371 = por %p369, %p370
    %p373 = scmp.ne.s32.totalorder %s358, %s372
    %p374 = scmp.eq.s32.totalorder %s75, 0
    %p375 = por %p373, %p374
    %s377 = sadd.s32 %s376, 1
    %p380 = scmp.eq.s32.totalorder %s69, 1
    %p381 = scmp.ne.s32.totalorder %s376, %s378
    %p382 = scmp.eq.s32.totalorder %s69, 0
    %p383 = por %p381, %p382
    %p384 = scmp.ne.s32.totalorder %s376, %s378
    %p385 = scmp.eq.s32.totalorder %s74, 1
    %p386 = por %p384, %p385
    %p387 = scmp.ne.s32.totalorder %s378, %s379
    %p388 = scmp.eq.s32.totalorder %s74, 0
    %p389 = por %p387, %p388
    %p390 = scmp.ne.s32.totalorder %s378, %s379
    %p391 = scmp.eq.s32.totalorder %s75, 1
    %p392 = por %p390, %p391
    %p394 = scmp.ne.s32.totalorder %s379, %s393
    %p395 = scmp.eq.s32.totalorder %s75, 0
    %p396 = por %p394, %p395
    %s398 = sadd.s32 %s397, 1
    %p401 = scmp.eq.s32.totalorder %s69, 1
    %p402 = scmp.ne.s32.totalorder %s397, %s399
    %p403 = scmp.eq.s32.totalorder %s69, 0
    %p404 = por %p402, %p403
    %p405 = scmp.ne.s32.totalorder %s397, %s399
    %p406 = scmp.eq.s32.totalorder %s74, 1
    %p407 = por %p405, %p406
    %p408 = scmp.ne.s32.totalorder %s399, %s400
    %p409 = scmp.eq.s32.totalorder %s74, 0
    %p410 = por %p408, %p409
    %p411 = scmp.ne.s32.totalorder %s399, %s400
    %p412 = scmp.eq.s32.totalorder %s75, 1
    %p413 = por %p411, %p412
    %p415 = scmp.ne.s32.totalorder %s400, %s414
    %p416 = scmp.eq.s32.totalorder %s75, 0
    %p417 = por %p415, %p416
    %s419 = sadd.s32 %s418, 1
    %p422 = scmp.eq.s32.totalorder %s69, 1
    %p423 = scmp.ne.s32.totalorder %s418, %s420
    %p424 = scmp.eq.s32.totalorder %s69, 0
    %p425 = por %p423, %p424
    %p426 = scmp.ne.s32.totalorder %s418, %s420
    %p427 = scmp.eq.s32.totalorder %s74, 1
    %p428 = por %p426, %p427
    %p429 = scmp.ne.s32.totalorder %s420, %s421
    %p430 = scmp.eq.s32.totalorder %s74, 0
    %p431 = por %p429, %p430
    %p432 = scmp.ne.s32.totalorder %s420, %s421
    %p433 = scmp.eq.s32.totalorder %s75, 1
    %p434 = por %p432, %p433
    %p436 = scmp.ne.s32.totalorder %s421, %s435
    %p437 = scmp.eq.s32.totalorder %s75, 0
    %p438 = por %p436, %p437
    %s440 = sadd.s32 %s439, 1
    %p443 = scmp.eq.s32.totalorder %s69, 1
    %p444 = scmp.ne.s32.totalorder %s439, %s441
    %p445 = scmp.eq.s32.totalorder %s69, 0
    %p446 = por %p444, %p445
    %p447 = scmp.ne.s32.totalorder %s439, %s441
    %p448 = scmp.eq.s32.totalorder %s74, 1
    %p449 = por %p447, %p448
    %p450 = scmp.ne.s32.totalorder %s441, %s442
    %p451 = scmp.eq.s32.totalorder %s74, 0
    %p452 = por %p450, %p451
    %p453 = scmp.ne.s32.totalorder %s441, %s442
    %p454 = scmp.eq.s32.totalorder %s75, 1
    %p455 = por %p453, %p454
    %p457 = scmp.ne.s32.totalorder %s442, %s456
    %p458 = scmp.eq.s32.totalorder %s75, 0
    %p459 = por %p457, %p458
    %s461 = sadd.s32 %s460, 1
    %p464 = scmp.eq.s32.totalorder %s69, 1
    %p465 = scmp.ne.s32.totalorder %s460, %s462
    %p466 = scmp.eq.s32.totalorder %s69, 0
    %p467 = por %p465, %p466
    %p468 = scmp.ne.s32.totalorder %s460, %s462
    %p469 = scmp.eq.s32.totalorder %s74, 1
    %p470 = por %p468, %p469
    %p471 = scmp.ne.s32.totalorder %s462, %s463
    %p472 = scmp.eq.s32.totalorder %s74, 0
    %p473 = por %p471, %p472
    %p474 = scmp.ne.s32.totalorder %s462, %s463
    %p475 = scmp.eq.s32.totalorder %s75, 1
    %p476 = por %p474, %p475
    %p478 = scmp.ne.s32.totalorder %s463, %s477
    %p479 = scmp.eq.s32.totalorder %s75, 0
    %p480 = por %p478, %p479
    %s482 = sadd.s32 %s481, 1
    %p485 = scmp.eq.s32.totalorder %s69, 1
    %p486 = scmp.ne.s32.totalorder %s481, %s483
    %p487 = scmp.eq.s32.totalorder %s69, 0
    %p488 = por %p486, %p487
    %p489 = scmp.ne.s32.totalorder %s481, %s483
    %p490 = scmp.eq.s32.totalorder %s74, 1
    %p491 = por %p489, %p490
    %p492 = scmp.ne.s32.totalorder %s483, %s484
    %p493 = scmp.eq.s32.totalorder %s74, 0
    %p494 = por %p492, %p493
    %p495 = scmp.ne.s32.totalorder %s483, %s484
    %p496 = scmp.eq.s32.totalorder %s75, 1
    %p497 = por %p495, %p496
    %p499 = scmp.ne.s32.totalorder %s484, %s498
    %p500 = scmp.eq.s32.totalorder %s75, 0
    %p501 = por %p499, %p500
    %s503 = sadd.s32 %s502, 1
    %p506 = scmp.eq.s32.totalorder %s69, 1
    %p507 = scmp.ne.s32.totalorder %s502, %s504
    %p508 = scmp.eq.s32.totalorder %s69, 0
    %p509 = por %p507, %p508
    %p510 = scmp.ne.s32.totalorder %s502, %s504
    %p511 = scmp.eq.s32.totalorder %s74, 1
    %p512 = por %p510, %p511
    %p513 = scmp.ne.s32.totalorder %s504, %s505
    %p514 = scmp.eq.s32.totalorder %s74, 0
    %p515 = por %p513, %p514
    %p516 = scmp.ne.s32.totalorder %s504, %s505
    %p517 = scmp.eq.s32.totalorder %s75, 1
    %p518 = por %p516, %p517
    %p520 = scmp.ne.s32.totalorder %s505, %s519
    %p521 = scmp.eq.s32.totalorder %s75, 0
    %p522 = por %p520, %p521
    %s524 = sadd.s32 %s523, 1
    %p527 = scmp.eq.s32.totalorder %s69, 1
    %p528 = scmp.ne.s32.totalorder %s523, %s525
    %p529 = scmp.eq.s32.totalorder %s69, 0
    %p530 = por %p528, %p529
    %p531 = scmp.ne.s32.totalorder %s523, %s525
    %p532 = scmp.eq.s32.totalorder %s74, 1
    %p533 = por %p531, %p532
    %p534 = scmp.ne.s32.totalorder %s525, %s526
    %p535 = scmp.eq.s32.totalorder %s74, 0
    %p536 = por %p534, %p535
    %p537 = scmp.ne.s32.totalorder %s525, %s526
    %p538 = scmp.eq.s32.totalorder %s75, 1
    %p539 = por %p537, %p538
    %p541 = scmp.ne.s32.totalorder %s526, %s540
    %p542 = scmp.eq.s32.totalorder %s75, 0
    %p543 = por %p541, %p542
    %s545 = sadd.s32 %s544, 1
    %p548 = scmp.eq.s32.totalorder %s69, 1
    %p549 = scmp.ne.s32.totalorder %s544, %s546
    %p550 = scmp.eq.s32.totalorder %s69, 0
    %p551 = por %p549, %p550
    %p552 = scmp.ne.s32.totalorder %s544, %s546
    %p553 = scmp.eq.s32.totalorder %s74, 1
    %p554 = por %p552, %p553
    %p555 = scmp.ne.s32.totalorder %s546, %s547
    %p556 = scmp.eq.s32.totalorder %s74, 0
    %p557 = por %p555, %p556
    %p558 = scmp.ne.s32.totalorder %s546, %s547
    %p559 = scmp.eq.s32.totalorder %s75, 1
    %p560 = por %p558, %p559
    %p562 = scmp.ne.s32.totalorder %s547, %s561
    %p563 = scmp.eq.s32.totalorder %s75, 0
    %p564 = por %p562, %p563
    %s566 = sadd.s32 %s565, 1
    %p569 = scmp.eq.s32.totalorder %s69, 1
    %p570 = scmp.ne.s32.totalorder %s565, %s567
    %p571 = scmp.eq.s32.totalorder %s69, 0
    %p572 = por %p570, %p571
    %p573 = scmp.ne.s32.totalorder %s565, %s567
    %p574 = scmp.eq.s32.totalorder %s74, 1
    %p575 = por %p573, %p574
    %p576 = scmp.ne.s32.totalorder %s567, %s568
    %p577 = scmp.eq.s32.totalorder %s74, 0
    %p578 = por %p576, %p577
    %p579 = scmp.ne.s32.totalorder %s567, %s568
    %p580 = scmp.eq.s32.totalorder %s75, 1
    %p581 = por %p579, %p580
    %p583 = scmp.ne.s32.totalorder %s568, %s582
    %p584 = scmp.eq.s32.totalorder %s75, 0
    %p585 = por %p583, %p584
    %s587 = sadd.s32 %s586, 1
    %p590 = scmp.eq.s32.totalorder %s69, 1
    %p591 = scmp.ne.s32.totalorder %s586, %s588
    %p592 = scmp.eq.s32.totalorder %s69, 0
    %p593 = por %p591, %p592
    %p594 = scmp.ne.s32.totalorder %s586, %s588
    %p595 = scmp.eq.s32.totalorder %s74, 1
    %p596 = por %p594, %p595
    %p597 = scmp.ne.s32.totalorder %s588, %s589
    %p598 = scmp.eq.s32.totalorder %s74, 0
    %p599 = por %p597, %p598
    %p600 = scmp.ne.s32.totalorder %s588, %s589
    %p601 = scmp.eq.s32.totalorder %s75, 1
    %p602 = por %p600, %p601
    %p604 = scmp.ne.s32.totalorder %s589, %s603
    %p605 = scmp.eq.s32.totalorder %s75, 0
    %p606 = por %p604, %p605
    %s608 = sadd.s32 %s607, 1
    %p611 = scmp.eq.s32.totalorder %s69, 1
    %p612 = scmp.ne.s32.totalorder %s607, %s609
    %p613 = scmp.eq.s32.totalorder %s69, 0
    %p614 = por %p612, %p613
    %p615 = scmp.ne.s32.totalorder %s607, %s609
    %p616 = scmp.eq.s32.totalorder %s74, 1
    %p617 = por %p615, %p616
    %p618 = scmp.ne.s32.totalorder %s609, %s610
    %p619 = scmp.eq.s32.totalorder %s74, 0
    %p620 = por %p618, %p619
    %p621 = scmp.ne.s32.totalorder %s609, %s610
    %p622 = scmp.eq.s32.totalorder %s75, 1
    %p623 = por %p621, %p622
    %p625 = scmp.ne.s32.totalorder %s610, %s624
    %p626 = scmp.eq.s32.totalorder %s75, 0
    %p627 = por %p625, %p626
    %s629 = sadd.s32 %s628, 1
    %p632 = scmp.eq.s32.totalorder %s69, 1
    %p633 = scmp.ne.s32.totalorder %s628, %s630
    %p634 = scmp.eq.s32.totalorder %s69, 0
    %p635 = por %p633, %p634
    %p636 = scmp.ne.s32.totalorder %s628, %s630
    %p637 = scmp.eq.s32.totalorder %s74, 1
    %p638 = por %p636, %p637
    %p639 = scmp.ne.s32.totalorder %s630, %s631
    %p640 = scmp.eq.s32.totalorder %s74, 0
    %p641 = por %p639, %p640
    %p642 = scmp.ne.s32.totalorder %s630, %s631
    %p643 = scmp.eq.s32.totalorder %s75, 1
    %p644 = por %p642, %p643
    %p646 = scmp.ne.s32.totalorder %s631, %s645
    %p647 = scmp.eq.s32.totalorder %s75, 0
    %p648 = por %p646, %p647
    %s650 = sadd.s32 %s649, 1
    %p653 = scmp.eq.s32.totalorder %s69, 1
    %p654 = scmp.ne.s32.totalorder %s649, %s651
    %p655 = scmp.eq.s32.totalorder %s69, 0
    %p656 = por %p654, %p655
    %p657 = scmp.ne.s32.totalorder %s649, %s651
    %p658 = scmp.eq.s32.totalorder %s74, 1
    %p659 = por %p657, %p658
    %p660 = scmp.ne.s32.totalorder %s651, %s652
    %p661 = scmp.eq.s32.totalorder %s74, 0
    %p662 = por %p660, %p661
    %p663 = scmp.ne.s32.totalorder %s651, %s652
    %p664 = scmp.eq.s32.totalorder %s75, 1
    %p665 = por %p663, %p664
    %p667 = scmp.ne.s32.totalorder %s652, %s666
    %p668 = scmp.eq.s32.totalorder %s75, 0
    %p669 = por %p667, %p668
    %s671 = sadd.s32 %s670, 1
    %p674 = scmp.eq.s32.totalorder %s69, 1
    %p675 = scmp.ne.s32.totalorder %s670, %s672
    %p676 = scmp.eq.s32.totalorder %s69, 0
    %p677 = por %p675, %p676
    %p678 = scmp.ne.s32.totalorder %s670, %s672
    %p679 = scmp.eq.s32.totalorder %s74, 1
    %p680 = por %p678, %p679
    %p681 = scmp.ne.s32.totalorder %s672, %s673
    %p682 = scmp.eq.s32.totalorder %s74, 0
    %p683 = por %p681, %p682
    %p684 = scmp.ne.s32.totalorder %s672, %s673
    %p685 = scmp.eq.s32.totalorder %s75, 1
    %p686 = por %p684, %p685
    %p688 = scmp.ne.s32.totalorder %s673, %s687
    %p689 = scmp.eq.s32.totalorder %s75, 0
    %p690 = por %p688, %p689
    %s692 = sadd.s32 %s691, 1
    %p695 = scmp.eq.s32.totalorder %s69, 1
    %p696 = scmp.ne.s32.totalorder %s691, %s693
    %p697 = scmp.eq.s32.totalorder %s69, 0
    %p698 = por %p696, %p697
    %p699 = scmp.ne.s32.totalorder %s691, %s693
    %p700 = scmp.eq.s32.totalorder %s74, 1
    %p701 = por %p699, %p700
    %p702 = scmp.ne.s32.totalorder %s693, %s694
    %p703 = scmp.eq.s32.totalorder %s74, 0
    %p704 = por %p702, %p703
    %p705 = scmp.ne.s32.totalorder %s693, %s694
    %p706 = scmp.eq.s32.totalorder %s75, 1
    %p707 = por %p705, %p706
    %p709 = scmp.ne.s32.totalorder %s694, %s708
    %p710 = scmp.eq.s32.totalorder %s75, 0
    %p711 = por %p709, %p710
    %s713 = sadd.s32 %s712, 1
    %p716 = scmp.eq.s32.totalorder %s69, 1
    %p717 = scmp.ne.s32.totalorder %s712, %s714
    %p718 = scmp.eq.s32.totalorder %s69, 0
    %p719 = por %p717, %p718
    %p720 = scmp.ne.s32.totalorder %s712, %s714
    %p721 = scmp.eq.s32.totalorder %s74, 1
    %p722 = por %p720, %p721
    %p723 = scmp.ne.s32.totalorder %s714, %s715
    %p724 = scmp.eq.s32.totalorder %s74, 0
    %p725 = por %p723, %p724
    %p726 = scmp.ne.s32.totalorder %s714, %s715
    %p727 = scmp.eq.s32.totalorder %s75, 1
    %p728 = por %p726, %p727
    %p730 = scmp.ne.s32.totalorder %s715, %s729
    %p731 = scmp.eq.s32.totalorder %s75, 0
    %p732 = por %p730, %p731
    %s733 = ssub.s32 %s69, %s76
    %p734 = scmp.eq.s32.totalorder %s733, 0
    %s736 = sadd.s32 %s735, 1
    %s737 = scalar_select %p734, %s735, %s736
    %p740 = pneg %p734
    %p741 = scmp.eq.s32.totalorder %s69, 1
    %p742 = por %p740, %p741
    %p743 = scmp.ne.s32.totalorder %s735, %s738
    %p744 = scmp.eq.s32.totalorder %s69, 0
    %p745 = por %p743, %p744
    %p746 = scmp.ne.s32.totalorder %s735, %s738
    %p747 = scmp.eq.s32.totalorder %s74, 1
    %p748 = por %p746, %p747
    %p749 = scmp.ne.s32.totalorder %s738, %s739
    %p750 = scmp.eq.s32.totalorder %s74, 0
    %p751 = por %p749, %p750
    %p752 = scmp.ne.s32.totalorder %s738, %s739
    %p753 = scmp.eq.s32.totalorder %s75, 1
    %p754 = por %p752, %p753
    %p756 = scmp.ne.s32.totalorder %s739, %s755
    %p757 = scmp.eq.s32.totalorder %s75, 0
    %p758 = por %p756, %p757
    %p759 = scmp.le.s32.totalorder 1, %s69
    %p760 = scmp.lt.s32.totalorder %s69, 3
    %p761 = pnand %p759, %p760
    %p762 = pneg %p761
    // Predicated region
    $region9: #{forward.2} parent=5 // pred_check
      _
    $region10: #{forward.2} parent=5 // pred_check_branch
      %764 = sbr.rel (%p761) target = $region12
    $region11: #{forward.2} parent=5 // pred_region
      %s765 = ssub.s32 %s69, 1
      // Predicated region
      $region13: #{forward.2} parent=11 // pred_check
        %p766 = pneg %p116
      $region14: #{forward.2} parent=11 // pred_check_branch
        %768 = sbr.rel (%p766) target = $region16
      $region15: #{forward.2} parent=11 // pred_region
        _
      $region16: #{forward.2} parent=11 // pred_fallthru
        _
      // Predicated region
      $region17: #{forward.2} parent=11 // pred_check
        %p769 = pneg %p137
      $region18: #{forward.2} parent=11 // pred_check_branch
        %771 = sbr.rel (%p769) target = $region20
      $region19: #{forward.2} parent=11 // pred_region
        _
      $region20: #{forward.2} parent=11 // pred_fallthru
        _
      // Predicated region
      $region21: #{forward.2} parent=11 // pred_check
        %p772 = pneg %p158
      $region22: #{forward.2} parent=11 // pred_check_branch
        %774 = sbr.rel (%p772) target = $region24
      $region23: #{forward.2} parent=11 // pred_region
        _
      $region24: #{forward.2} parent=11 // pred_fallthru
        _
      // Predicated region
      $region25: #{forward.2} parent=11 // pred_check
        %p775 = pneg %p179
      $region26: #{forward.2} parent=11 // pred_check_branch
        %777 = sbr.rel (%p775) target = $region28
      $region27: #{forward.2} parent=11 // pred_region
        _
      $region28: #{forward.2} parent=11 // pred_fallthru
        _
      // Predicated region
      $region29: #{forward.2} parent=11 // pred_check
        %p778 = pneg %p200
      $region30: #{forward.2} parent=11 // pred_check_branch
        %780 = sbr.rel (%p778) target = $region32
      $region31: #{forward.2} parent=11 // pred_region
        _
      $region32: #{forward.2} parent=11 // pred_fallthru
        _
      // Predicated region
      $region33: #{forward.2} parent=11 // pred_check
        %p781 = pneg %p221
      $region34: #{forward.2} parent=11 // pred_check_branch
        %783 = sbr.rel (%p781) target = $region36
      $region35: #{forward.2} parent=11 // pred_region
        _
      $region36: #{forward.2} parent=11 // pred_fallthru
        _
      // Predicated region
      $region37: #{forward.2} parent=11 // pred_check
        %p784 = pneg %p242
      $region38: #{forward.2} parent=11 // pred_check_branch
        %786 = sbr.rel (%p784) target = $region40
      $region39: #{forward.2} parent=11 // pred_region
        _
      $region40: #{forward.2} parent=11 // pred_fallthru
        _
      // Predicated region
      $region41: #{forward.2} parent=11 // pred_check
        %p787 = pneg %p263
      $region42: #{forward.2} parent=11 // pred_check_branch
        %789 = sbr.rel (%p787) target = $region44
      $region43: #{forward.2} parent=11 // pred_region
        _
      $region44: #{forward.2} parent=11 // pred_fallthru
        _
      // Predicated region
      $region45: #{forward.2} parent=11 // pred_check
        %p790 = pneg %p284
      $region46: #{forward.2} parent=11 // pred_check_branch
        %792 = sbr.rel (%p790) target = $region48
      $region47: #{forward.2} parent=11 // pred_region
        _
      $region48: #{forward.2} parent=11 // pred_fallthru
        _
      // Predicated region
      $region49: #{forward.2} parent=11 // pred_check
        %p793 = pneg %p305
      $region50: #{forward.2} parent=11 // pred_check_branch
        %795 = sbr.rel (%p793) target = $region52
      $region51: #{forward.2} parent=11 // pred_region
        _
      $region52: #{forward.2} parent=11 // pred_fallthru
        _
      // Predicated region
      $region53: #{forward.2} parent=11 // pred_check
        %p796 = pneg %p326
      $region54: #{forward.2} parent=11 // pred_check_branch
        %798 = sbr.rel (%p796) target = $region56
      $region55: #{forward.2} parent=11 // pred_region
        _
      $region56: #{forward.2} parent=11 // pred_fallthru
        _
      // Predicated region
      $region57: #{forward.2} parent=11 // pred_check
        %p799 = pneg %p347
      $region58: #{forward.2} parent=11 // pred_check_branch
        %801 = sbr.rel (%p799) target = $region60
      $region59: #{forward.2} parent=11 // pred_region
        _
      $region60: #{forward.2} parent=11 // pred_fallthru
        _
      // Predicated region
      $region61: #{forward.2} parent=11 // pred_check
        %p802 = pneg %p368
      $region62: #{forward.2} parent=11 // pred_check_branch
        %804 = sbr.rel (%p802) target = $region64
      $region63: #{forward.2} parent=11 // pred_region
        _
      $region64: #{forward.2} parent=11 // pred_fallthru
        _
      // Predicated region
      $region65: #{forward.2} parent=11 // pred_check
        %p805 = pneg %p389
      $region66: #{forward.2} parent=11 // pred_check_branch
        %807 = sbr.rel (%p805) target = $region68
      $region67: #{forward.2} parent=11 // pred_region
        _
      $region68: #{forward.2} parent=11 // pred_fallthru
        _
      // Predicated region
      $region69: #{forward.2} parent=11 // pred_check
        %p808 = pneg %p410
      $region70: #{forward.2} parent=11 // pred_check_branch
        %810 = sbr.rel (%p808) target = $region72
      $region71: #{forward.2} parent=11 // pred_region
        _
      $region72: #{forward.2} parent=11 // pred_fallthru
        _
      // Predicated region
      $region73: #{forward.2} parent=11 // pred_check
        %p811 = pneg %p431
      $region74: #{forward.2} parent=11 // pred_check_branch
        %813 = sbr.rel (%p811) target = $region76
      $region75: #{forward.2} parent=11 // pred_region
        _
      $region76: #{forward.2} parent=11 // pred_fallthru
        _
      // Predicated region
      $region77: #{forward.2} parent=11 // pred_check
        %p814 = pneg %p452
      $region78: #{forward.2} parent=11 // pred_check_branch
        %816 = sbr.rel (%p814) target = $region80
      $region79: #{forward.2} parent=11 // pred_region
        _
      $region80: #{forward.2} parent=11 // pred_fallthru
        _
      // Predicated region
      $region81: #{forward.2} parent=11 // pred_check
        %p817 = pneg %p473
      $region82: #{forward.2} parent=11 // pred_check_branch
        %819 = sbr.rel (%p817) target = $region84
      $region83: #{forward.2} parent=11 // pred_region
        _
      $region84: #{forward.2} parent=11 // pred_fallthru
        _
      // Predicated region
      $region85: #{forward.2} parent=11 // pred_check
        %p820 = pneg %p494
      $region86: #{forward.2} parent=11 // pred_check_branch
        %822 = sbr.rel (%p820) target = $region88
      $region87: #{forward.2} parent=11 // pred_region
        _
      $region88: #{forward.2} parent=11 // pred_fallthru
        _
      // Predicated region
      $region89: #{forward.2} parent=11 // pred_check
        %p823 = pneg %p515
      $region90: #{forward.2} parent=11 // pred_check_branch
        %825 = sbr.rel (%p823) target = $region92
      $region91: #{forward.2} parent=11 // pred_region
        _
      $region92: #{forward.2} parent=11 // pred_fallthru
        _
      // Predicated region
      $region93: #{forward.2} parent=11 // pred_check
        %p826 = pneg %p536
      $region94: #{forward.2} parent=11 // pred_check_branch
        %828 = sbr.rel (%p826) target = $region96
      $region95: #{forward.2} parent=11 // pred_region
        _
      $region96: #{forward.2} parent=11 // pred_fallthru
        _
      // Predicated region
      $region97: #{forward.2} parent=11 // pred_check
        %p829 = pneg %p557
      $region98: #{forward.2} parent=11 // pred_check_branch
        %831 = sbr.rel (%p829) target = $region100
      $region99: #{forward.2} parent=11 // pred_region
        _
      $region100: #{forward.2} parent=11 // pred_fallthru
        _
      // Predicated region
      $region101: #{forward.2} parent=11 // pred_check
        %p832 = pneg %p578
      $region102: #{forward.2} parent=11 // pred_check_branch
        %834 = sbr.rel (%p832) target = $region104
      $region103: #{forward.2} parent=11 // pred_region
        _
      $region104: #{forward.2} parent=11 // pred_fallthru
        _
      // Predicated region
      $region105: #{forward.2} parent=11 // pred_check
        %p835 = pneg %p599
      $region106: #{forward.2} parent=11 // pred_check_branch
        %837 = sbr.rel (%p835) target = $region108
      $region107: #{forward.2} parent=11 // pred_region
        _
      $region108: #{forward.2} parent=11 // pred_fallthru
        _
      // Predicated region
      $region109: #{forward.2} parent=11 // pred_check
        %p838 = pneg %p620
      $region110: #{forward.2} parent=11 // pred_check_branch
        %840 = sbr.rel (%p838) target = $region112
      $region111: #{forward.2} parent=11 // pred_region
        _
      $region112: #{forward.2} parent=11 // pred_fallthru
        _
      // Predicated region
      $region113: #{forward.2} parent=11 // pred_check
        %p841 = pneg %p641
      $region114: #{forward.2} parent=11 // pred_check_branch
        %843 = sbr.rel (%p841) target = $region116
      $region115: #{forward.2} parent=11 // pred_region
        _
      $region116: #{forward.2} parent=11 // pred_fallthru
        _
      // Predicated region
      $region117: #{forward.2} parent=11 // pred_check
        %p844 = pneg %p662
      $region118: #{forward.2} parent=11 // pred_check_branch
        %846 = sbr.rel (%p844) target = $region120
      $region119: #{forward.2} parent=11 // pred_region
        _
      $region120: #{forward.2} parent=11 // pred_fallthru
        _
      // Predicated region
      $region121: #{forward.2} parent=11 // pred_check
        %p847 = pneg %p683
      $region122: #{forward.2} parent=11 // pred_check_branch
        %849 = sbr.rel (%p847) target = $region124
      $region123: #{forward.2} parent=11 // pred_region
        _
      $region124: #{forward.2} parent=11 // pred_fallthru
        _
      // Predicated region
      $region125: #{forward.2} parent=11 // pred_check
        %p850 = pneg %p704
      $region126: #{forward.2} parent=11 // pred_check_branch
        %852 = sbr.rel (%p850) target = $region128
      $region127: #{forward.2} parent=11 // pred_region
        _
      $region128: #{forward.2} parent=11 // pred_fallthru
        _
      // Predicated region
      $region129: #{forward.2} parent=11 // pred_check
        %p853 = pneg %p725
      $region130: #{forward.2} parent=11 // pred_check_branch
        %855 = sbr.rel (%p853) target = $region132
      $region131: #{forward.2} parent=11 // pred_region
        _
      $region132: #{forward.2} parent=11 // pred_fallthru
        _
    $region12: #{forward.2} parent=5 // pred_fallthru
      _
    %p856 = scmp.lt.s32.totalorder %s69, 2
    // Predicated region
    $region133: #{forward.2} parent=5 // pred_check
      %p857 = pneg %p856
    $region134: #{forward.2} parent=5 // pred_check_branch
      %859 = sbr.rel (%p857) target = $region136
    $region135: #{forward.2} parent=5 // pred_region
      // Predicated region
      $region137: #{forward.2} parent=135 // pred_check
        %p860 = pneg %p89
      $region138: #{forward.2} parent=135 // pred_check_branch
        %862 = sbr.rel (%p860) target = $region140
      $region139: #{forward.2} parent=135 // pred_region
        %p863 = scmp.lt.s32.totalorder %s69, 1
        %s864 = scalar_select %p863, %s69, 1
        %s865 = smul.addr %s864, 8
        %s866 = smul.addr %s865, 4
        %s867 = scalar_lea.vmem %s1, %s866
      $region140: #{forward.2} parent=135 // pred_fallthru
        _
    $region136: #{forward.2} parent=5 // pred_fallthru
      _
    %p868 = scmp.le.s32.totalorder 1, %s69
    %p869 = scmp.lt.s32.totalorder %s69, 3
    %p870 = pnand %p868, %p869
    %p871 = pneg %p870
    // Predicated region
    $region141: #{forward.2} parent=5 // pred_check
      _
    $region142: #{forward.2} parent=5 // pred_check_branch
      %873 = sbr.rel (%p870) target = $region144
    $region143: #{forward.2} parent=5 // pred_region
      %s874 = ssub.s32 %s69, 1
      %p875 = scmp.lt.s32.totalorder %s74, 1
      %s876 = scalar_select %p875, %s74, 1
      %s877 = smul.addr %s876, 8
      %s878 = smul.addr %s877, 4
      %s879 = scalar_lea.vmem %s1, %s878
      %p880 = pneg %p95
      %p881 = pneg %p92
      %p882 = pneg %p116
      %p883 = pneg %p113
      %p884 = pneg %p137
      %p885 = pneg %p134
      %p886 = pneg %p158
      %p887 = pneg %p155
      %p888 = pneg %p179
      %p889 = pneg %p176
      %p890 = pneg %p200
      %p891 = pneg %p197
      %p892 = pneg %p221
      %p893 = pneg %p218
      %p894 = pneg %p242
      %p895 = pneg %p239
      %p896 = pneg %p263
      %p897 = pneg %p260
      %p898 = pneg %p284
      %p899 = pneg %p281
      %p900 = pneg %p305
      %p901 = pneg %p302
      %p902 = pneg %p326
      %p903 = pneg %p323
      %p904 = pneg %p347
      %p905 = pneg %p344
      %p906 = pneg %p368
      %p907 = pneg %p365
      %p908 = pneg %p389
      %p909 = pneg %p386
      %p910 = pneg %p410
      %p911 = pneg %p407
      %p912 = pneg %p431
      %p913 = pneg %p428
      %p914 = pneg %p452
      %p915 = pneg %p449
      %p916 = pneg %p473
      %p917 = pneg %p470
      %p918 = pneg %p494
      %p919 = pneg %p491
      %p920 = pneg %p515
      %p921 = pneg %p512
      %p922 = pneg %p536
      %p923 = pneg %p533
      %p924 = pneg %p557
      %p925 = pneg %p554
      %p926 = pneg %p578
      %p927 = pneg %p575
      %p928 = pneg %p599
      %p929 = pneg %p596
      %p930 = pneg %p620
      %p931 = pneg %p617
      %p932 = pneg %p641
      %p933 = pneg %p638
      %p934 = pneg %p662
      %p935 = pneg %p659
      %p936 = pneg %p683
      %p937 = pneg %p680
      %p938 = pneg %p704
      %p939 = pneg %p701
      %p940 = pneg %p725
      %p941 = pneg %p722
      %p942 = pneg %p751
      %p943 = pneg %p748
      %p944 = scmp.lt.s32.totalorder %s74, 1
      %s945 = scalar_select %p944, %s74, 1
      %s946 = smul.addr %s945, 8
      %s947 = smul.addr %s946, 8
      %s948 = scalar_lea.vmem %s63, %s947
      %p949 = scmp.lt.s32.totalorder %s74, 1
      %s950 = scalar_select %p949, %s74, 1
      %s951 = smul.addr %s950, 8
      %s952 = smul.addr %s951, 4
      %s953 = scalar_lea.vmem %s1, %s952
      %p954 = scmp.lt.s32.totalorder %s74, 1
      %s955 = scalar_select %p954, %s74, 1
      %s956 = smul.addr %s955, 8
      %s957 = smul.addr %s956, 8
      %s958 = scalar_lea.vmem %s63, %s957
      %v960 = vld [vmem:[%s953] sm:$0xf]
      %v961 = vld [vmem:[%s953 + $0x4] sm:$0xf]
      %v962 = vld [vmem:[%s953 + $0x8] sm:$0xf]
      %v963 = vld [vmem:[%s953 + $0xc] sm:$0xf]
      %v964 = vld [vmem:[%s953 + $0x10] sm:$0xf]
      %v965 = vld [vmem:[%s953 + $0x14] sm:$0xf]
      %v966 = vld [vmem:[%s953 + $0x18] sm:$0xf]
      %v967 = vld [vmem:[%s953 + $0x1c] sm:$0xf]
      %v968 = vld [vmem:[%s3] sm:$0xf]
      %v969 = vld [vmem:[%s3 + $0x4] sm:$0xf]
      %v970 = vld [vmem:[%s3 + $0x8] sm:$0xf]
      %v971 = vld [vmem:[%s3 + $0xc] sm:$0xf]
      %v972 = vld [vmem:[%s3 + $0x10] sm:$0xf]
      %v973 = vld [vmem:[%s3 + $0x14] sm:$0xf]
      %v974 = vld [vmem:[%s5] sm:$0x1]
      %v976 = vperm.slane %v974, 0
      %v986 = vunpack.c.l.b16 %v960
      %v987 = vunpack.c.l.b16 %v961
      %v988 = vunpack.c.l.b16 %v962
      %v989 = vunpack.c.l.b16 %v963
      %v990 = vunpack.c.l.b16 %v964
      %v991 = vunpack.c.l.b16 %v965
      %v992 = vunpack.c.l.b16 %v966
      %v993 = vunpack.c.l.b16 %v967
      %v994 = vpack.c.b16 %v987, %v986
      %v995 = vpack.c.b16 %v989, %v988
      %v996 = vpack.c.b16 %v991, %v990
      %v997 = vpack.c.b16 %v993, %v992
      %v1004 = vunpack.c.l.b16 %v968
      %v1005 = vunpack.c.l.b16 %v969
      %v1006 = vunpack.c.l.b16 %v970
      %v1007 = vunpack.c.l.b16 %v971
      %v1008 = vunpack.c.l.b16 %v972
      %v1009 = vunpack.c.l.b16 %v973
      %v1010 = vpack.c.b16 %v1005, %v1004
      %v1011 = vpack.c.b16 %v1007, %v1006
      %v1012 = vpack.c.b16 %v1009, %v1008
      %vm1016 = vcmask 392192
      %v1018 = vsel %vm1016, %v994, 0
      %v1021 = vsel %vm1016, %v995, 0
      %v1024 = vsel %vm1016, %v996, 0
      %v1027 = vsel %vm1016, %v997, 0
      %1029 = vmatpush.bf16.msra.mxu0 0
      %1030 = vmatpush.bf16.msra.mxu0 0
      %1031 = vmatpush.bf16.msra.mxu0 0
      %1032 = vmatpush.bf16.msra.mxu0 0
      %1033 = vmatpush.bf16.msra.mxu0 0
      %1034 = vmatpush.bf16.msra.mxu0 %v1012
      %1035 = vmatpush.bf16.msra.mxu0 %v1011
      %1036 = vmatpush.bf16.msra.mxu0 %v1010
      %1037 = vmatmul.bf16.gmra.mxu0 %v1018
      %v1038 = vpop.f32.mrf.mxu0
      %v1039 = vadd.f32 %v976, %v1038
      %v1040 = vpop.f32.mrf.mxu0
      %v1041 = vadd.f32 %v976, %v1040
      %1042 = vmatmul.bf16.gmra.mxu0 %v1021
      %v1043 = vpop.f32.mrf.mxu0
      %v1044 = vadd.f32 %v976, %v1043
      %v1045 = vpop.f32.mrf.mxu0
      %v1046 = vadd.f32 %v976, %v1045
      %1047 = vmatmul.bf16.gmra.mxu0 %v1024
      %v1048 = vpop.f32.mrf.mxu0
      %v1049 = vadd.f32 %v976, %v1048
      %v1050 = vpop.f32.mrf.mxu0
      %v1051 = vadd.f32 %v976, %v1050
      %1052 = vmatmul.bf16.gmra.mxu0 %v1027
      %v1053 = vpop.f32.mrf.mxu0
      %v1054 = vadd.f32 %v976, %v1053
      %v1055 = vpop.f32.mrf.mxu0
      %v1056 = vadd.f32 %v976, %v1055
      %1057 = vdwg.mxu0
      %v1058 = vld [vmem:[%s7] sm:$0x1]
      %v1059 = vld [vmem:[%s9] sm:$0x1]
      %vm1060 = vcmask 261120
      %v1061 = vsel %vm1060, %v1039, 0.0
      %1062 = vadd.xlane.f32.xlu0 %v1061
      %v1063 = vpop.xlane.xlu0 %1062
      %v1064 = vsel %vm1060, %v1041, 0.0
      %1065 = vadd.xlane.f32.xlu0 %v1064
      %v1066 = vpop.xlane.xlu0 %1065
      %v1067 = vsel %vm1060, %v1044, 0.0
      %1068 = vadd.xlane.f32.xlu0 %v1067
      %v1069 = vpop.xlane.xlu0 %1068
      %v1070 = vsel %vm1060, %v1046, 0.0
      %1071 = vadd.xlane.f32.xlu0 %v1070
      %v1072 = vpop.xlane.xlu0 %1071
      %v1073 = vsel %vm1060, %v1049, 0.0
      %1074 = vadd.xlane.f32.xlu0 %v1073
      %v1075 = vpop.xlane.xlu0 %1074
      %v1076 = vsel %vm1060, %v1051, 0.0
      %1077 = vadd.xlane.f32.xlu0 %v1076
      %v1078 = vpop.xlane.xlu0 %1077
      %v1079 = vsel %vm1060, %v1054, 0.0
      %1080 = vadd.xlane.f32.xlu0 %v1079
      %v1081 = vpop.xlane.xlu0 %1080
      %v1082 = vsel %vm1060, %v1056, 0.0
      %1083 = vadd.xlane.f32.xlu0 %v1082
      %v1084 = vpop.xlane.xlu0 %1083
      %v1085 = vrcp.pop 32.0
      %v1086 = vmul.f32 32.0, %v1085
      %v1087 = vsub.f32 1.0, %v1086
      %v1088 = vmul.f32 %v1085, %v1087
      %v1089 = vadd.f32 %v1085, %v1088
      %vm1090 = vweird.f32 %v1085
      %v1091 = vsel %vm1090, %v1085, %v1089
      %v1092 = vmul.f32 %v1063, %v1091
      %v1093 = vmul.f32 %v1066, %v1091
      %v1094 = vmul.f32 %v1069, %v1091
      %v1095 = vmul.f32 %v1072, %v1091
      %v1096 = vmul.f32 %v1075, %v1091
      %v1097 = vmul.f32 %v1078, %v1091
      %v1098 = vmul.f32 %v1081, %v1091
      %v1099 = vmul.f32 %v1084, %v1091
      %v1100 = vsub.f32 %v1039, %v1092
      %v1101 = vsub.f32 %v1041, %v1093
      %v1102 = vsub.f32 %v1044, %v1094
      %v1103 = vsub.f32 %v1046, %v1095
      %v1104 = vsub.f32 %v1049, %v1096
      %v1105 = vsub.f32 %v1051, %v1097
      %v1106 = vsub.f32 %v1054, %v1098
      %v1107 = vsub.f32 %v1056, %v1099
      %v1108 = vmul.f32 %v1100, %v1100
      %v1109 = vmul.f32 %v1101, %v1101
      %v1110 = vmul.f32 %v1102, %v1102
      %v1111 = vmul.f32 %v1103, %v1103
      %v1112 = vmul.f32 %v1104, %v1104
      %v1113 = vmul.f32 %v1105, %v1105
      %v1114 = vmul.f32 %v1106, %v1106
      %v1115 = vmul.f32 %v1107, %v1107
      %v1116 = vsel %vm1060, %v1108, 0.0
      %1117 = vadd.xlane.f32.xlu0 %v1116
      %v1118 = vpop.xlane.xlu0 %1117
      %v1119 = vsel %vm1060, %v1109, 0.0
      %1120 = vadd.xlane.f32.xlu0 %v1119
      %v1121 = vpop.xlane.xlu0 %1120
      %v1122 = vsel %vm1060, %v1110, 0.0
      %1123 = vadd.xlane.f32.xlu0 %v1122
      %v1124 = vpop.xlane.xlu0 %1123
      %v1125 = vsel %vm1060, %v1111, 0.0
      %1126 = vadd.xlane.f32.xlu0 %v1125
      %v1127 = vpop.xlane.xlu0 %1126
      %v1128 = vsel %vm1060, %v1112, 0.0
      %1129 = vadd.xlane.f32.xlu0 %v1128
      %v1130 = vpop.xlane.xlu0 %1129
      %v1131 = vsel %vm1060, %v1113, 0.0
      %1132 = vadd.xlane.f32.xlu0 %v1131
      %v1133 = vpop.xlane.xlu0 %1132
      %v1134 = vsel %vm1060, %v1114, 0.0
      %1135 = vadd.xlane.f32.xlu0 %v1134
      %v1136 = vpop.xlane.xlu0 %1135
      %v1137 = vsel %vm1060, %v1115, 0.0
      %1138 = vadd.xlane.f32.xlu0 %v1137
      %v1139 = vpop.xlane.xlu0 %1138
      %v1140 = vmul.f32 %v1118, %v1091
      %v1141 = vmul.f32 %v1121, %v1091
      %v1142 = vmul.f32 %v1124, %v1091
      %v1143 = vmul.f32 %v1127, %v1091
      %v1144 = vmul.f32 %v1130, %v1091
      %v1145 = vmul.f32 %v1133, %v1091
      %v1146 = vmul.f32 %v1136, %v1091
      %v1147 = vmul.f32 %v1139, %v1091
      %v1148 = vadd.f32 %v1140, 1e-05
      %v1149 = vadd.f32 %v1141, 1e-05
      %v1150 = vadd.f32 %v1142, 1e-05
      %v1151 = vadd.f32 %v1143, 1e-05
      %v1152 = vadd.f32 %v1144, 1e-05
      %v1153 = vadd.f32 %v1145, 1e-05
      %v1154 = vadd.f32 %v1146, 1e-05
      %v1155 = vadd.f32 %v1147, 1e-05
      %v1156 = vrsqrt.pop %v1148
      %v1157 = vmul.f32 %v1156, %v1148
      %v1158 = vmul.f32 %v1157, %v1156
      %v1159 = vmul.f32 0.5, %v1158
      %v1160 = vsub.f32 1.5, %v1159
      %v1161 = vmul.f32 %v1156, %v1160
      %vm1162 = vweird.f32 %v1148
      %vm1163 = vweird.f32 %v1156
      %vm1164 = vmor %vm1162, %vm1163
      %v1165 = vsel %vm1164, %v1156, %v1161
      %v1166 = vrsqrt.pop %v1149
      %v1167 = vmul.f32 %v1166, %v1149
      %v1168 = vmul.f32 %v1167, %v1166
      %v1169 = vmul.f32 0.5, %v1168
      %v1170 = vsub.f32 1.5, %v1169
      %v1171 = vmul.f32 %v1166, %v1170
      %vm1172 = vweird.f32 %v1149
      %vm1173 = vweird.f32 %v1166
      %vm1174 = vmor %vm1172, %vm1173
      %v1175 = vsel %vm1174, %v1166, %v1171
      %v1176 = vrsqrt.pop %v1150
      %v1177 = vmul.f32 %v1176, %v1150
      %v1178 = vmul.f32 %v1177, %v1176
      %v1179 = vmul.f32 0.5, %v1178
      %v1180 = vsub.f32 1.5, %v1179
      %v1181 = vmul.f32 %v1176, %v1180
      %vm1182 = vweird.f32 %v1150
      %vm1183 = vweird.f32 %v1176
      %vm1184 = vmor %vm1182, %vm1183
      %v1185 = vsel %vm1184, %v1176, %v1181
      %v1186 = vrsqrt.pop %v1151
      %v1187 = vmul.f32 %v1186, %v1151
      %v1188 = vmul.f32 %v1187, %v1186
      %v1189 = vmul.f32 0.5, %v1188
      %v1190 = vsub.f32 1.5, %v1189
      %v1191 = vmul.f32 %v1186, %v1190
      %vm1192 = vweird.f32 %v1151
      %vm1193 = vweird.f32 %v1186
      %vm1194 = vmor %vm1192, %vm1193
      %v1195 = vsel %vm1194, %v1186, %v1191
      %v1196 = vrsqrt.pop %v1152
      %v1197 = vmul.f32 %v1196, %v1152
      %v1198 = vmul.f32 %v1197, %v1196
      %v1199 = vmul.f32 0.5, %v1198
      %v1200 = vsub.f32 1.5, %v1199
      %v1201 = vmul.f32 %v1196, %v1200
      %vm1202 = vweird.f32 %v1152
      %vm1203 = vweird.f32 %v1196
      %vm1204 = vmor %vm1202, %vm1203
      %v1205 = vsel %vm1204, %v1196, %v1201
      %v1206 = vrsqrt.pop %v1153
      %v1207 = vmul.f32 %v1206, %v1153
      %v1208 = vmul.f32 %v1207, %v1206
      %v1209 = vmul.f32 0.5, %v1208
      %v1210 = vsub.f32 1.5, %v1209
      %v1211 = vmul.f32 %v1206, %v1210
      %vm1212 = vweird.f32 %v1153
      %vm1213 = vweird.f32 %v1206
      %vm1214 = vmor %vm1212, %vm1213
      %v1215 = vsel %vm1214, %v1206, %v1211
      %v1216 = vrsqrt.pop %v1154
      %v1217 = vmul.f32 %v1216, %v1154
      %v1218 = vmul.f32 %v1217, %v1216
      %v1219 = vmul.f32 0.5, %v1218
      %v1220 = vsub.f32 1.5, %v1219
      %v1221 = vmul.f32 %v1216, %v1220
      %vm1222 = vweird.f32 %v1154
      %vm1223 = vweird.f32 %v1216
      %vm1224 = vmor %vm1222, %vm1223
      %v1225 = vsel %vm1224, %v1216, %v1221
      %v1226 = vrsqrt.pop %v1155
      %v1227 = vmul.f32 %v1226, %v1155
      %v1228 = vmul.f32 %v1227, %v1226
      %v1229 = vmul.f32 0.5, %v1228
      %v1230 = vsub.f32 1.5, %v1229
      %v1231 = vmul.f32 %v1226, %v1230
      %vm1232 = vweird.f32 %v1155
      %vm1233 = vweird.f32 %v1226
      %vm1234 = vmor %vm1232, %vm1233
      %v1235 = vsel %vm1234, %v1226, %v1231
      %v1236 = vmul.f32 %v1100, %v1165
      %v1237 = vmul.f32 %v1101, %v1175
      %v1238 = vmul.f32 %v1102, %v1185
      %v1239 = vmul.f32 %v1103, %v1195
      %v1240 = vmul.f32 %v1104, %v1205
      %v1241 = vmul.f32 %v1105, %v1215
      %v1242 = vmul.f32 %v1106, %v1225
      %v1243 = vmul.f32 %v1107, %v1235
      %v1245 = vperm.slane %v1058, 0
      %v1247 = vmul.f32 %v1236, %v1245
      %v1248 = vmul.f32 %v1237, %v1245
      %v1249 = vmul.f32 %v1238, %v1245
      %v1250 = vmul.f32 %v1239, %v1245
      %v1251 = vmul.f32 %v1240, %v1245
      %v1252 = vmul.f32 %v1241, %v1245
      %v1253 = vmul.f32 %v1242, %v1245
      %v1254 = vmul.f32 %v1243, %v1245
      %v1256 = vperm.slane %v1059, 0
      %v1258 = vadd.f32 %v1247, %v1256
      %v1259 = vadd.f32 %v1248, %v1256
      %v1260 = vadd.f32 %v1249, %v1256
      %v1261 = vadd.f32 %v1250, %v1256
      %v1262 = vadd.f32 %v1251, %v1256
      %v1263 = vadd.f32 %v1252, %v1256
      %v1264 = vadd.f32 %v1253, %v1256
      %v1265 = vadd.f32 %v1254, %v1256
      %v1266 = vld [vmem:[%s11] sm:$0x1]
      %v1267 = vld [vmem:[%s13] sm:$0x1]
      %v1268 = vsel %vm1060, %v1258, 0.0
      %1269 = vadd.xlane.f32.xlu0 %v1268
      %v1270 = vpop.xlane.xlu0 %1269
      %v1271 = vsel %vm1060, %v1259, 0.0
      %1272 = vadd.xlane.f32.xlu0 %v1271
      %v1273 = vpop.xlane.xlu0 %1272
      %v1274 = vsel %vm1060, %v1260, 0.0
      %1275 = vadd.xlane.f32.xlu0 %v1274
      %v1276 = vpop.xlane.xlu0 %1275
      %v1277 = vsel %vm1060, %v1261, 0.0
      %1278 = vadd.xlane.f32.xlu0 %v1277
      %v1279 = vpop.xlane.xlu0 %1278
      %v1280 = vsel %vm1060, %v1262, 0.0
      %1281 = vadd.xlane.f32.xlu0 %v1280
      %v1282 = vpop.xlane.xlu0 %1281
      %v1283 = vsel %vm1060, %v1263, 0.0
      %1284 = vadd.xlane.f32.xlu0 %v1283
      %v1285 = vpop.xlane.xlu0 %1284
      %v1286 = vsel %vm1060, %v1264, 0.0
      %1287 = vadd.xlane.f32.xlu0 %v1286
      %v1288 = vpop.xlane.xlu0 %1287
      %v1289 = vsel %vm1060, %v1265, 0.0
      %1290 = vadd.xlane.f32.xlu0 %v1289
      %v1291 = vpop.xlane.xlu0 %1290
      %v1292 = vmul.f32 %v1270, %v1091
      %v1293 = vmul.f32 %v1273, %v1091
      %v1294 = vmul.f32 %v1276, %v1091
      %v1295 = vmul.f32 %v1279, %v1091
      %v1296 = vmul.f32 %v1282, %v1091
      %v1297 = vmul.f32 %v1285, %v1091
      %v1298 = vmul.f32 %v1288, %v1091
      %v1299 = vmul.f32 %v1291, %v1091
      %v1300 = vsub.f32 %v1258, %v1292
      %v1301 = vsub.f32 %v1259, %v1293
      %v1302 = vsub.f32 %v1260, %v1294
      %v1303 = vsub.f32 %v1261, %v1295
      %v1304 = vsub.f32 %v1262, %v1296
      %v1305 = vsub.f32 %v1263, %v1297
      %v1306 = vsub.f32 %v1264, %v1298
      %v1307 = vsub.f32 %v1265, %v1299
      %v1308 = vmul.f32 %v1300, %v1300
      %v1309 = vmul.f32 %v1301, %v1301
      %v1310 = vmul.f32 %v1302, %v1302
      %v1311 = vmul.f32 %v1303, %v1303
      %v1312 = vmul.f32 %v1304, %v1304
      %v1313 = vmul.f32 %v1305, %v1305
      %v1314 = vmul.f32 %v1306, %v1306
      %v1315 = vmul.f32 %v1307, %v1307
      %v1316 = vsel %vm1060, %v1308, 0.0
      %1317 = vadd.xlane.f32.xlu0 %v1316
      %v1318 = vpop.xlane.xlu0 %1317
      %v1319 = vsel %vm1060, %v1309, 0.0
      %1320 = vadd.xlane.f32.xlu0 %v1319
      %v1321 = vpop.xlane.xlu0 %1320
      %v1322 = vsel %vm1060, %v1310, 0.0
      %1323 = vadd.xlane.f32.xlu0 %v1322
      %v1324 = vpop.xlane.xlu0 %1323
      %v1325 = vsel %vm1060, %v1311, 0.0
      %1326 = vadd.xlane.f32.xlu0 %v1325
      %v1327 = vpop.xlane.xlu0 %1326
      %v1328 = vsel %vm1060, %v1312, 0.0
      %1329 = vadd.xlane.f32.xlu0 %v1328
      %v1330 = vpop.xlane.xlu0 %1329
      %v1331 = vsel %vm1060, %v1313, 0.0
      %1332 = vadd.xlane.f32.xlu0 %v1331
      %v1333 = vpop.xlane.xlu0 %1332
      %v1334 = vsel %vm1060, %v1314, 0.0
      %1335 = vadd.xlane.f32.xlu0 %v1334
      %v1336 = vpop.xlane.xlu0 %1335
      %v1337 = vsel %vm1060, %v1315, 0.0
      %1338 = vadd.xlane.f32.xlu0 %v1337
      %v1339 = vpop.xlane.xlu0 %1338
      %v1340 = vmul.f32 %v1318, %v1091
      %v1341 = vmul.f32 %v1321, %v1091
      %v1342 = vmul.f32 %v1324, %v1091
      %v1343 = vmul.f32 %v1327, %v1091
      %v1344 = vmul.f32 %v1330, %v1091
      %v1345 = vmul.f32 %v1333, %v1091
      %v1346 = vmul.f32 %v1336, %v1091
      %v1347 = vmul.f32 %v1339, %v1091
      %v1348 = vadd.f32 %v1340, 1e-05
      %v1349 = vadd.f32 %v1341, 1e-05
      %v1350 = vadd.f32 %v1342, 1e-05
      %v1351 = vadd.f32 %v1343, 1e-05
      %v1352 = vadd.f32 %v1344, 1e-05
      %v1353 = vadd.f32 %v1345, 1e-05
      %v1354 = vadd.f32 %v1346, 1e-05
      %v1355 = vadd.f32 %v1347, 1e-05
      %v1356 = vrsqrt.pop %v1348
      %v1357 = vmul.f32 %v1356, %v1348
      %v1358 = vmul.f32 %v1357, %v1356
      %v1359 = vmul.f32 0.5, %v1358
      %v1360 = vsub.f32 1.5, %v1359
      %v1361 = vmul.f32 %v1356, %v1360
      %vm1362 = vweird.f32 %v1348
      %vm1363 = vweird.f32 %v1356
      %vm1364 = vmor %vm1362, %vm1363
      %v1365 = vsel %vm1364, %v1356, %v1361
      %v1366 = vrsqrt.pop %v1349
      %v1367 = vmul.f32 %v1366, %v1349
      %v1368 = vmul.f32 %v1367, %v1366
      %v1369 = vmul.f32 0.5, %v1368
      %v1370 = vsub.f32 1.5, %v1369
      %v1371 = vmul.f32 %v1366, %v1370
      %vm1372 = vweird.f32 %v1349
      %vm1373 = vweird.f32 %v1366
      %vm1374 = vmor %vm1372, %vm1373
      %v1375 = vsel %vm1374, %v1366, %v1371
      %v1376 = vrsqrt.pop %v1350
      %v1377 = vmul.f32 %v1376, %v1350
      %v1378 = vmul.f32 %v1377, %v1376
      %v1379 = vmul.f32 0.5, %v1378
      %v1380 = vsub.f32 1.5, %v1379
      %v1381 = vmul.f32 %v1376, %v1380
      %vm1382 = vweird.f32 %v1350
      %vm1383 = vweird.f32 %v1376
      %vm1384 = vmor %vm1382, %vm1383
      %v1385 = vsel %vm1384, %v1376, %v1381
      %v1386 = vrsqrt.pop %v1351
      %v1387 = vmul.f32 %v1386, %v1351
      %v1388 = vmul.f32 %v1387, %v1386
      %v1389 = vmul.f32 0.5, %v1388
      %v1390 = vsub.f32 1.5, %v1389
      %v1391 = vmul.f32 %v1386, %v1390
      %vm1392 = vweird.f32 %v1351
      %vm1393 = vweird.f32 %v1386
      %vm1394 = vmor %vm1392, %vm1393
      %v1395 = vsel %vm1394, %v1386, %v1391
      %v1396 = vrsqrt.pop %v1352
      %v1397 = vmul.f32 %v1396, %v1352
      %v1398 = vmul.f32 %v1397, %v1396
      %v1399 = vmul.f32 0.5, %v1398
      %v1400 = vsub.f32 1.5, %v1399
      %v1401 = vmul.f32 %v1396, %v1400
      %vm1402 = vweird.f32 %v1352
      %vm1403 = vweird.f32 %v1396
      %vm1404 = vmor %vm1402, %vm1403
      %v1405 = vsel %vm1404, %v1396, %v1401
      %v1406 = vrsqrt.pop %v1353
      %v1407 = vmul.f32 %v1406, %v1353
      %v1408 = vmul.f32 %v1407, %v1406
      %v1409 = vmul.f32 0.5, %v1408
      %v1410 = vsub.f32 1.5, %v1409
      %v1411 = vmul.f32 %v1406, %v1410
      %vm1412 = vweird.f32 %v1353
      %vm1413 = vweird.f32 %v1406
      %vm1414 = vmor %vm1412, %vm1413
      %v1415 = vsel %vm1414, %v1406, %v1411
      %v1416 = vrsqrt.pop %v1354
      %v1417 = vmul.f32 %v1416, %v1354
      %v1418 = vmul.f32 %v1417, %v1416
      %v1419 = vmul.f32 0.5, %v1418
      %v1420 = vsub.f32 1.5, %v1419
      %v1421 = vmul.f32 %v1416, %v1420
      %vm1422 = vweird.f32 %v1354
      %vm1423 = vweird.f32 %v1416
      %vm1424 = vmor %vm1422, %vm1423
      %v1425 = vsel %vm1424, %v1416, %v1421
      %v1426 = vrsqrt.pop %v1355
      %v1427 = vmul.f32 %v1426, %v1355
      %v1428 = vmul.f32 %v1427, %v1426
      %v1429 = vmul.f32 0.5, %v1428
      %v1430 = vsub.f32 1.5, %v1429
      %v1431 = vmul.f32 %v1426, %v1430
      %vm1432 = vweird.f32 %v1355
      %vm1433 = vweird.f32 %v1426
      %vm1434 = vmor %vm1432, %vm1433
      %v1435 = vsel %vm1434, %v1426, %v1431
      %v1436 = vmul.f32 %v1300, %v1365
      %v1437 = vmul.f32 %v1301, %v1375
      %v1438 = vmul.f32 %v1302, %v1385
      %v1439 = vmul.f32 %v1303, %v1395
      %v1440 = vmul.f32 %v1304, %v1405
      %v1441 = vmul.f32 %v1305, %v1415
      %v1442 = vmul.f32 %v1306, %v1425
      %v1443 = vmul.f32 %v1307, %v1435
      %v1445 = vperm.slane %v1266, 0
      %v1447 = vmul.f32 %v1436, %v1445
      %v1448 = vmul.f32 %v1437, %v1445
      %v1449 = vmul.f32 %v1438, %v1445
      %v1450 = vmul.f32 %v1439, %v1445
      %v1451 = vmul.f32 %v1440, %v1445
      %v1452 = vmul.f32 %v1441, %v1445
      %v1453 = vmul.f32 %v1442, %v1445
      %v1454 = vmul.f32 %v1443, %v1445
      %v1456 = vperm.slane %v1267, 0
      %v1458 = vadd.f32 %v1447, %v1456
      %v1459 = vadd.f32 %v1448, %v1456
      %v1460 = vadd.f32 %v1449, %v1456
      %v1461 = vadd.f32 %v1450, %v1456
      %v1462 = vadd.f32 %v1451, %v1456
      %v1463 = vadd.f32 %v1452, %v1456
      %v1464 = vadd.f32 %v1453, %v1456
      %v1465 = vadd.f32 %v1454, %v1456
      %v1466 = vpack.c.bf16 %v1459, %v1458
      %v1467 = vpack.c.bf16 %v1461, %v1460
      %v1468 = vpack.c.bf16 %v1463, %v1462
      %v1469 = vpack.c.bf16 %v1465, %v1464
      %v1470 = vld [vmem:[%s15] sm:$0xf]
      %v1471 = vld [vmem:[%s15 + $0x4] sm:$0xf]
      %v1472 = vld [vmem:[%s15 + $0x8] sm:$0xf]
      %v1473 = vld [vmem:[%s15 + $0xc] sm:$0xf]
      %v1474 = vld [vmem:[%s17] sm:$0x1]
      %v1476 = vperm.slane %v1474, 0
      %v1482 = vunpack.c.l.b16 %v1470
      %v1483 = vunpack.c.l.b16 %v1471
      %v1484 = vunpack.c.l.b16 %v1472
      %v1485 = vunpack.c.l.b16 %v1473
      %v1486 = vpack.c.b16 %v1483, %v1482
      %v1487 = vpack.c.b16 %v1485, %v1484
      %v1491 = vsel %vm1060, %v1466, 0
      %v1494 = vsel %vm1060, %v1467, 0
      %v1497 = vsel %vm1060, %v1468, 0
      %v1500 = vsel %vm1060, %v1469, 0
      %1502 = vmatpush.bf16.msra.mxu0 0
      %1503 = vmatpush.bf16.msra.mxu0 0
      %1504 = vmatpush.bf16.msra.mxu0 0
      %1505 = vmatpush.bf16.msra.mxu0 0
      %1506 = vmatpush.bf16.msra.mxu0 0
      %1507 = vmatpush.bf16.msra.mxu0 0
      %1508 = vmatpush.bf16.msra.mxu0 %v1487
      %1509 = vmatpush.bf16.msra.mxu0 %v1486
      %1510 = vmatmul.bf16.gmra.mxu0 %v1491
      %v1511 = vpop.f32.mrf.mxu0
      %v1512 = vadd.f32 %v1476, %v1511
      %v1513 = vpop.f32.mrf.mxu0
      %v1514 = vadd.f32 %v1476, %v1513
      %1515 = vmatmul.bf16.gmra.mxu0 %v1494
      %v1516 = vpop.f32.mrf.mxu0
      %v1517 = vadd.f32 %v1476, %v1516
      %v1518 = vpop.f32.mrf.mxu0
      %v1519 = vadd.f32 %v1476, %v1518
      %1520 = vmatmul.bf16.gmra.mxu0 %v1497
      %v1521 = vpop.f32.mrf.mxu0
      %v1522 = vadd.f32 %v1476, %v1521
      %v1523 = vpop.f32.mrf.mxu0
      %v1524 = vadd.f32 %v1476, %v1523
      %1525 = vmatmul.bf16.gmra.mxu0 %v1500
      %v1526 = vpop.f32.mrf.mxu0
      %v1527 = vadd.f32 %v1476, %v1526
      %v1528 = vpop.f32.mrf.mxu0
      %v1529 = vadd.f32 %v1476, %v1528
      %1530 = vdwg.mxu0
      %v1531 = vld [vmem:[%s21] sm:$0xf]
      %v1532 = vld [vmem:[%s21 + $0x4] sm:$0xf]
      %v1533 = vld [vmem:[%s21 + $0x8] sm:$0xf]
      %v1534 = vld [vmem:[%s21 + $0xc] sm:$0xf]
      %v1535 = vpack.c.bf16 %v1514, %v1512
      %v1536 = vpack.c.bf16 %v1519, %v1517
      %v1537 = vpack.c.bf16 %v1524, %v1522
      %v1538 = vpack.c.bf16 %v1529, %v1527
      %1543 = vrot.lane.b32.xlu0 %v1535, 96
      %v1544 = vpop.permute.xlu0 %1543
      %1545 = vrot.lane.b32.xlu0 %v1536, 96
      %v1546 = vpop.permute.xlu0 %1545
      %1547 = vrot.lane.b32.xlu0 %v1537, 96
      %v1548 = vpop.permute.xlu0 %1547
      %1549 = vrot.lane.b32.xlu0 %v1538, 96
      %v1550 = vpop.permute.xlu0 %1549
      %vm1551 = vcmask 130048
      %v1553 = vsel %vm1551, %v1535, 0
      %v1556 = vsel %vm1551, %v1536, 0
      %v1559 = vsel %vm1551, %v1537, 0
      %v1562 = vsel %vm1551, %v1538, 0
      %v1565 = vsel %vm1551, %v1544, 0
      %v1568 = vsel %vm1551, %v1546, 0
      %v1571 = vsel %vm1551, %v1548, 0
      %v1574 = vsel %vm1551, %v1550, 0
      %1576 = vmatpush.bf16.xpose.msra.mxu0 0
      %1577 = vmatpush.bf16.xpose.msra.mxu0 0
      %1578 = vmatpush.bf16.xpose.msra.mxu0 0
      %1579 = vmatpush.bf16.xpose.msra.mxu0 0
      %1580 = vmatpush.bf16.xpose.msra.mxu0 %v1574
      %1581 = vmatpush.bf16.xpose.msra.mxu0 %v1571
      %1582 = vmatpush.bf16.xpose.msra.mxu0 %v1568
      %1583 = vmatpush.bf16.xpose.msra.mxu0 %v1565
      %1584 = vmatmul.bf16.gmra.mxu0 %v1553
      %v1585 = vpop.f32.mrf.mxu0
      %v1586 = vadd.f32 0.0, %v1585
      %v1587 = vpop.f32.mrf.mxu0
      %v1588 = vadd.f32 0.0, %v1587
      %1589 = vmatmul.bf16.gmra.mxu0 %v1556
      %v1590 = vpop.f32.mrf.mxu0
      %v1591 = vadd.f32 0.0, %v1590
      %v1592 = vpop.f32.mrf.mxu0
      %v1593 = vadd.f32 0.0, %v1592
      %1594 = vmatmul.bf16.gmra.mxu0 %v1559
      %v1595 = vpop.f32.mrf.mxu0
      %v1596 = vadd.f32 0.0, %v1595
      %v1597 = vpop.f32.mrf.mxu0
      %v1598 = vadd.f32 0.0, %v1597
      %1599 = vmatmul.bf16.gmra.mxu0 %v1562
      %v1600 = vpop.f32.mrf.mxu0
      %v1601 = vadd.f32 0.0, %v1600
      %v1602 = vpop.f32.mrf.mxu0
      %v1603 = vadd.f32 0.0, %v1602
      %1604 = vdwg.mxu0
      %v1605 = vmul.f32 %v1586, 0.25
      %v1606 = vmul.f32 %v1588, 0.25
      %v1607 = vmul.f32 %v1591, 0.25
      %v1608 = vmul.f32 %v1593, 0.25
      %v1609 = vmul.f32 %v1596, 0.25
      %v1610 = vmul.f32 %v1598, 0.25
      %v1611 = vmul.f32 %v1601, 0.25
      %v1612 = vmul.f32 %v1603, 0.25
      %v1613 = vld [vmem:[%s19] sm:$0xff]
      %v1614 = vld [vmem:[%s19 + $0x8] sm:$0xff]
      %v1615 = vld [vmem:[%s19 + $0x10] sm:$0xff]
      %v1616 = vld [vmem:[%s19 + $0x18] sm:$0xff]
      %v1617 = vld [vmem:[%s19 + $0x20] sm:$0xff]
      %v1618 = vld [vmem:[%s19 + $0x28] sm:$0xff]
      %v1619 = vld [vmem:[%s19 + $0x30] sm:$0xff]
      %v1620 = vld [vmem:[%s19 + $0x38] sm:$0xff]
      %v1621 = vadd.f32 %v1605, %v1613
      %v1622 = vadd.f32 %v1606, %v1614
      %v1623 = vadd.f32 %v1607, %v1615
      %v1624 = vadd.f32 %v1608, %v1616
      %v1625 = vadd.f32 %v1609, %v1617
      %v1626 = vadd.f32 %v1610, %v1618
      %v1627 = vadd.f32 %v1611, %v1619
      %v1628 = vadd.f32 %v1612, %v1620
      %vm1629 = vcmask 523264
      %v1630 = vsel %vm1629, %v1621, -inf
      %1631 = vmax.xlane.f32.xlu0 %v1630
      %v1632 = vpop.xlane.xlu0 %1631
      %v1633 = vsel %vm1629, %v1622, -inf
      %1634 = vmax.xlane.f32.xlu0 %v1633
      %v1635 = vpop.xlane.xlu0 %1634
      %v1636 = vsel %vm1629, %v1623, -inf
      %1637 = vmax.xlane.f32.xlu0 %v1636
      %v1638 = vpop.xlane.xlu0 %1637
      %v1639 = vsel %vm1629, %v1624, -inf
      %1640 = vmax.xlane.f32.xlu0 %v1639
      %v1641 = vpop.xlane.xlu0 %1640
      %v1642 = vsel %vm1629, %v1625, -inf
      %1643 = vmax.xlane.f32.xlu0 %v1642
      %v1644 = vpop.xlane.xlu0 %1643
      %v1645 = vsel %vm1629, %v1626, -inf
      %1646 = vmax.xlane.f32.xlu0 %v1645
      %v1647 = vpop.xlane.xlu0 %1646
      %v1648 = vsel %vm1629, %v1627, -inf
      %1649 = vmax.xlane.f32.xlu0 %v1648
      %v1650 = vpop.xlane.xlu0 %1649
      %v1651 = vsel %vm1629, %v1628, -inf
      %1652 = vmax.xlane.f32.xlu0 %v1651
      %v1653 = vpop.xlane.xlu0 %1652
      %v1654 = vsub.f32 %v1621, %v1632
      %v1655 = vsub.f32 %v1622, %v1635
      %v1656 = vsub.f32 %v1623, %v1638
      %v1657 = vsub.f32 %v1624, %v1641
      %v1658 = vsub.f32 %v1625, %v1644
      %v1659 = vsub.f32 %v1626, %v1647
      %v1660 = vsub.f32 %v1627, %v1650
      %v1661 = vsub.f32 %v1628, %v1653
      %v1662 = vmul.f32 %v1654, 1.442695
      %v1663 = vpow.pop %v1662
      %v1664 = vmul.f32 %v1655, 1.442695
      %v1665 = vpow.pop %v1664
      %v1666 = vmul.f32 %v1656, 1.442695
      %v1667 = vpow.pop %v1666
      %v1668 = vmul.f32 %v1657, 1.442695
      %v1669 = vpow.pop %v1668
      %v1670 = vmul.f32 %v1658, 1.442695
      %v1671 = vpow.pop %v1670
      %v1672 = vmul.f32 %v1659, 1.442695
      %v1673 = vpow.pop %v1672
      %v1674 = vmul.f32 %v1660, 1.442695
      %v1675 = vpow.pop %v1674
      %v1676 = vmul.f32 %v1661, 1.442695
      %v1677 = vpow.pop %v1676
      %v1678 = vsel %vm1629, %v1663, 0.0
      %1679 = vadd.xlane.f32.xlu0 %v1678
      %v1680 = vpop.xlane.xlu0 %1679
      %v1681 = vsel %vm1629, %v1665, 0.0
      %1682 = vadd.xlane.f32.xlu0 %v1681
      %v1683 = vpop.xlane.xlu0 %1682
      %v1684 = vsel %vm1629, %v1667, 0.0
      %1685 = vadd.xlane.f32.xlu0 %v1684
      %v1686 = vpop.xlane.xlu0 %1685
      %v1687 = vsel %vm1629, %v1669, 0.0
      %1688 = vadd.xlane.f32.xlu0 %v1687
      %v1689 = vpop.xlane.xlu0 %1688
      %v1690 = vsel %vm1629, %v1671, 0.0
      %1691 = vadd.xlane.f32.xlu0 %v1690
      %v1692 = vpop.xlane.xlu0 %1691
      %v1693 = vsel %vm1629, %v1673, 0.0
      %1694 = vadd.xlane.f32.xlu0 %v1693
      %v1695 = vpop.xlane.xlu0 %1694
      %v1696 = vsel %vm1629, %v1675, 0.0
      %1697 = vadd.xlane.f32.xlu0 %v1696
      %v1698 = vpop.xlane.xlu0 %1697
      %v1699 = vsel %vm1629, %v1677, 0.0
      %1700 = vadd.xlane.f32.xlu0 %v1699
      %v1701 = vpop.xlane.xlu0 %1700
      %v1702 = vrcp.pop %v1680
      %v1703 = vmul.f32 %v1680, %v1702
      %v1704 = vsub.f32 1.0, %v1703
      %v1705 = vmul.f32 %v1702, %v1704
      %v1706 = vadd.f32 %v1702, %v1705
      %vm1707 = vweird.f32 %v1680
      %vm1708 = vweird.f32 %v1702
      %vm1709 = vmor %vm1707, %vm1708
      %v1710 = vsel %vm1709, %v1702, %v1706
      %v1711 = vand.u32 2147483647, %v1680
      %vm1712 = vcmp.eq.f32.partialorder %v1711, 8.507059e+37
      %v1713 = vand.u32 %v1680, 2147483648
      %v1714 = vor.u32 1.1754944e-38, %v1713
      %v1715 = vsel %vm1712, %v1714, %v1710
      %v1716 = vmul.f32 %v1663, %v1715
      %v1717 = vrcp.pop %v1683
      %v1718 = vmul.f32 %v1683, %v1717
      %v1719 = vsub.f32 1.0, %v1718
      %v1720 = vmul.f32 %v1717, %v1719
      %v1721 = vadd.f32 %v1717, %v1720
      %vm1722 = vweird.f32 %v1683
      %vm1723 = vweird.f32 %v1717
      %vm1724 = vmor %vm1722, %vm1723
      %v1725 = vsel %vm1724, %v1717, %v1721
      %v1726 = vand.u32 2147483647, %v1683
      %vm1727 = vcmp.eq.f32.partialorder %v1726, 8.507059e+37
      %v1728 = vand.u32 %v1683, 2147483648
      %v1729 = vor.u32 1.1754944e-38, %v1728
      %v1730 = vsel %vm1727, %v1729, %v1725
      %v1731 = vmul.f32 %v1665, %v1730
      %v1732 = vrcp.pop %v1686
      %v1733 = vmul.f32 %v1686, %v1732
      %v1734 = vsub.f32 1.0, %v1733
      %v1735 = vmul.f32 %v1732, %v1734
      %v1736 = vadd.f32 %v1732, %v1735
      %vm1737 = vweird.f32 %v1686
      %vm1738 = vweird.f32 %v1732
      %vm1739 = vmor %vm1737, %vm1738
      %v1740 = vsel %vm1739, %v1732, %v1736
      %v1741 = vand.u32 2147483647, %v1686
      %vm1742 = vcmp.eq.f32.partialorder %v1741, 8.507059e+37
      %v1743 = vand.u32 %v1686, 2147483648
      %v1744 = vor.u32 1.1754944e-38, %v1743
      %v1745 = vsel %vm1742, %v1744, %v1740
      %v1746 = vmul.f32 %v1667, %v1745
      %v1747 = vrcp.pop %v1689
      %v1748 = vmul.f32 %v1689, %v1747
      %v1749 = vsub.f32 1.0, %v1748
      %v1750 = vmul.f32 %v1747, %v1749
      %v1751 = vadd.f32 %v1747, %v1750
      %vm1752 = vweird.f32 %v1689
      %vm1753 = vweird.f32 %v1747
      %vm1754 = vmor %vm1752, %vm1753
      %v1755 = vsel %vm1754, %v1747, %v1751
      %v1756 = vand.u32 2147483647, %v1689
      %vm1757 = vcmp.eq.f32.partialorder %v1756, 8.507059e+37
      %v1758 = vand.u32 %v1689, 2147483648
      %v1759 = vor.u32 1.1754944e-38, %v1758
      %v1760 = vsel %vm1757, %v1759, %v1755
      %v1761 = vmul.f32 %v1669, %v1760
      %v1762 = vrcp.pop %v1692
      %v1763 = vmul.f32 %v1692, %v1762
      %v1764 = vsub.f32 1.0, %v1763
      %v1765 = vmul.f32 %v1762, %v1764
      %v1766 = vadd.f32 %v1762, %v1765
      %vm1767 = vweird.f32 %v1692
      %vm1768 = vweird.f32 %v1762
      %vm1769 = vmor %vm1767, %vm1768
      %v1770 = vsel %vm1769, %v1762, %v1766
      %v1771 = vand.u32 2147483647, %v1692
      %vm1772 = vcmp.eq.f32.partialorder %v1771, 8.507059e+37
      %v1773 = vand.u32 %v1692, 2147483648
      %v1774 = vor.u32 1.1754944e-38, %v1773
      %v1775 = vsel %vm1772, %v1774, %v1770
      %v1776 = vmul.f32 %v1671, %v1775
      %v1777 = vrcp.pop %v1695
      %v1778 = vmul.f32 %v1695, %v1777
      %v1779 = vsub.f32 1.0, %v1778
      %v1780 = vmul.f32 %v1777, %v1779
      %v1781 = vadd.f32 %v1777, %v1780
      %vm1782 = vweird.f32 %v1695
      %vm1783 = vweird.f32 %v1777
      %vm1784 = vmor %vm1782, %vm1783
      %v1785 = vsel %vm1784, %v1777, %v1781
      %v1786 = vand.u32 2147483647, %v1695
      %vm1787 = vcmp.eq.f32.partialorder %v1786, 8.507059e+37
      %v1788 = vand.u32 %v1695, 2147483648
      %v1789 = vor.u32 1.1754944e-38, %v1788
      %v1790 = vsel %vm1787, %v1789, %v1785
      %v1791 = vmul.f32 %v1673, %v1790
      %v1792 = vrcp.pop %v1698
      %v1793 = vmul.f32 %v1698, %v1792
      %v1794 = vsub.f32 1.0, %v1793
      %v1795 = vmul.f32 %v1792, %v1794
      %v1796 = vadd.f32 %v1792, %v1795
      %vm1797 = vweird.f32 %v1698
      %vm1798 = vweird.f32 %v1792
      %vm1799 = vmor %vm1797, %vm1798
      %v1800 = vsel %vm1799, %v1792, %v1796
      %v1801 = vand.u32 2147483647, %v1698
      %vm1802 = vcmp.eq.f32.partialorder %v1801, 8.507059e+37
      %v1803 = vand.u32 %v1698, 2147483648
      %v1804 = vor.u32 1.1754944e-38, %v1803
      %v1805 = vsel %vm1802, %v1804, %v1800
      %v1806 = vmul.f32 %v1675, %v1805
      %v1807 = vrcp.pop %v1701
      %v1808 = vmul.f32 %v1701, %v1807
      %v1809 = vsub.f32 1.0, %v1808
      %v1810 = vmul.f32 %v1807, %v1809
      %v1811 = vadd.f32 %v1807, %v1810
      %vm1812 = vweird.f32 %v1701
      %vm1813 = vweird.f32 %v1807
      %vm1814 = vmor %vm1812, %vm1813
      %v1815 = vsel %vm1814, %v1807, %v1811
      %v1816 = vand.u32 2147483647, %v1701
      %vm1817 = vcmp.eq.f32.partialorder %v1816, 8.507059e+37
      %v1818 = vand.u32 %v1701, 2147483648
      %v1819 = vor.u32 1.1754944e-38, %v1818
      %v1820 = vsel %vm1817, %v1819, %v1815
      %v1821 = vmul.f32 %v1677, %v1820
      %v1822 = vpack.c.bf16 %v1731, %v1716
      %v1823 = vpack.c.bf16 %v1761, %v1746
      %v1824 = vpack.c.bf16 %v1791, %v1776
      %v1825 = vpack.c.bf16 %v1821, %v1806
      %1826 = vrot.lane.b32.xlu0 %v1535, 64
      %v1827 = vpop.permute.xlu0 %1826
      %1828 = vrot.lane.b32.xlu0 %v1536, 64
      %v1829 = vpop.permute.xlu0 %1828
      %1830 = vrot.lane.b32.xlu0 %v1537, 64
      %v1831 = vpop.permute.xlu0 %1830
      %1832 = vrot.lane.b32.xlu0 %v1538, 64
      %v1833 = vpop.permute.xlu0 %1832
      %v1839 = vsel %vm1629, %v1822, 0
      %v1842 = vsel %vm1629, %v1823, 0
      %v1845 = vsel %vm1629, %v1824, 0
      %v1848 = vsel %vm1629, %v1825, 0
      %1850 = vmatpush.bf16.msra.mxu0 0
      %1851 = vmatpush.bf16.msra.mxu0 0
      %1852 = vmatpush.bf16.msra.mxu0 0
      %1853 = vmatpush.bf16.msra.mxu0 0
      %1854 = vmatpush.bf16.msra.mxu0 %v1833
      %1855 = vmatpush.bf16.msra.mxu0 %v1831
      %1856 = vmatpush.bf16.msra.mxu0 %v1829
      %1857 = vmatpush.bf16.msra.mxu0 %v1827
      %1858 = vmatmul.bf16.gmra.mxu0 %v1839
      %v1859 = vpop.f32.mrf.mxu0
      %v1860 = vadd.f32 0.0, %v1859
      %v1861 = vpop.f32.mrf.mxu0
      %v1862 = vadd.f32 0.0, %v1861
      %1863 = vmatmul.bf16.gmra.mxu0 %v1842
      %v1864 = vpop.f32.mrf.mxu0
      %v1865 = vadd.f32 0.0, %v1864
      %v1866 = vpop.f32.mrf.mxu0
      %v1867 = vadd.f32 0.0, %v1866
      %1868 = vmatmul.bf16.gmra.mxu0 %v1845
      %v1869 = vpop.f32.mrf.mxu0
      %v1870 = vadd.f32 0.0, %v1869
      %v1871 = vpop.f32.mrf.mxu0
      %v1872 = vadd.f32 0.0, %v1871
      %1873 = vmatmul.bf16.gmra.mxu0 %v1848
      %v1874 = vpop.f32.mrf.mxu0
      %v1875 = vadd.f32 0.0, %v1874
      %v1876 = vpop.f32.mrf.mxu0
      %v1877 = vadd.f32 0.0, %v1876
      %1878 = vdwg.mxu0
      %v1879 = vpack.c.bf16 %v1862, %v1860
      %v1880 = vpack.c.bf16 %v1867, %v1865
      %v1881 = vpack.c.bf16 %v1872, %v1870
      %v1882 = vpack.c.bf16 %v1877, %v1875
      %1883 = vrot.lane.b32.xlu0 %v1535, 112
      %v1884 = vpop.permute.xlu0 %1883
      %1885 = vrot.lane.b32.xlu0 %v1536, 112
      %v1886 = vpop.permute.xlu0 %1885
      %1887 = vrot.lane.b32.xlu0 %v1537, 112
      %v1888 = vpop.permute.xlu0 %1887
      %1889 = vrot.lane.b32.xlu0 %v1538, 112
      %v1890 = vpop.permute.xlu0 %1889
      %1891 = vrot.lane.b32.xlu0 %v1535, 80
      %v1892 = vpop.permute.xlu0 %1891
      %1893 = vrot.lane.b32.xlu0 %v1536, 80
      %v1894 = vpop.permute.xlu0 %1893
      %1895 = vrot.lane.b32.xlu0 %v1537, 80
      %v1896 = vpop.permute.xlu0 %1895
      %1897 = vrot.lane.b32.xlu0 %v1538, 80
      %v1898 = vpop.permute.xlu0 %1897
      %v1900 = vsel %vm1551, %v1884, 0
      %v1903 = vsel %vm1551, %v1886, 0
      %v1906 = vsel %vm1551, %v1888, 0
      %v1909 = vsel %vm1551, %v1890, 0
      %v1912 = vsel %vm1551, %v1892, 0
      %v1915 = vsel %vm1551, %v1894, 0
      %v1918 = vsel %vm1551, %v1896, 0
      %v1921 = vsel %vm1551, %v1898, 0
      %1923 = vmatpush.bf16.xpose.msra.mxu0 0
      %1924 = vmatpush.bf16.xpose.msra.mxu0 0
      %1925 = vmatpush.bf16.xpose.msra.mxu0 0
      %1926 = vmatpush.bf16.xpose.msra.mxu0 0
      %1927 = vmatpush.bf16.xpose.msra.mxu0 %v1921
      %1928 = vmatpush.bf16.xpose.msra.mxu0 %v1918
      %1929 = vmatpush.bf16.xpose.msra.mxu0 %v1915
      %1930 = vmatpush.bf16.xpose.msra.mxu0 %v1912
      %1931 = vmatmul.bf16.gmra.mxu0 %v1900
      %v1932 = vpop.f32.mrf.mxu0
      %v1933 = vadd.f32 0.0, %v1932
      %v1934 = vpop.f32.mrf.mxu0
      %v1935 = vadd.f32 0.0, %v1934
      %1936 = vmatmul.bf16.gmra.mxu0 %v1903
      %v1937 = vpop.f32.mrf.mxu0
      %v1938 = vadd.f32 0.0, %v1937
      %v1939 = vpop.f32.mrf.mxu0
      %v1940 = vadd.f32 0.0, %v1939
      %1941 = vmatmul.bf16.gmra.mxu0 %v1906
      %v1942 = vpop.f32.mrf.mxu0
      %v1943 = vadd.f32 0.0, %v1942
      %v1944 = vpop.f32.mrf.mxu0
      %v1945 = vadd.f32 0.0, %v1944
      %1946 = vmatmul.bf16.gmra.mxu0 %v1909
      %v1947 = vpop.f32.mrf.mxu0
      %v1948 = vadd.f32 0.0, %v1947
      %v1949 = vpop.f32.mrf.mxu0
      %v1950 = vadd.f32 0.0, %v1949
      %1951 = vdwg.mxu0
      %v1952 = vmul.f32 %v1933, 0.25
      %v1953 = vmul.f32 %v1935, 0.25
      %v1954 = vmul.f32 %v1938, 0.25
      %v1955 = vmul.f32 %v1940, 0.25
      %v1956 = vmul.f32 %v1943, 0.25
      %v1957 = vmul.f32 %v1945, 0.25
      %v1958 = vmul.f32 %v1948, 0.25
      %v1959 = vmul.f32 %v1950, 0.25
      %s1960 = scalar_lea.vmem %s19, 64
      %v1961 = vld [vmem:[%s1960] sm:$0xff]
      %v1962 = vld [vmem:[%s1960 + $0x8] sm:$0xff]
      %v1963 = vld [vmem:[%s1960 + $0x10] sm:$0xff]
      %v1964 = vld [vmem:[%s1960 + $0x18] sm:$0xff]
      %v1965 = vld [vmem:[%s1960 + $0x20] sm:$0xff]
      %v1966 = vld [vmem:[%s1960 + $0x28] sm:$0xff]
      %v1967 = vld [vmem:[%s1960 + $0x30] sm:$0xff]
      %v1968 = vld [vmem:[%s1960 + $0x38] sm:$0xff]
      %v1969 = vadd.f32 %v1952, %v1961
      %v1970 = vadd.f32 %v1953, %v1962
      %v1971 = vadd.f32 %v1954, %v1963
      %v1972 = vadd.f32 %v1955, %v1964
      %v1973 = vadd.f32 %v1956, %v1965
      %v1974 = vadd.f32 %v1957, %v1966
      %v1975 = vadd.f32 %v1958, %v1967
      %v1976 = vadd.f32 %v1959, %v1968
      %v1977 = vsel %vm1629, %v1969, -inf
      %1978 = vmax.xlane.f32.xlu0 %v1977
      %v1979 = vpop.xlane.xlu0 %1978
      %v1980 = vsel %vm1629, %v1970, -inf
      %1981 = vmax.xlane.f32.xlu0 %v1980
      %v1982 = vpop.xlane.xlu0 %1981
      %v1983 = vsel %vm1629, %v1971, -inf
      %1984 = vmax.xlane.f32.xlu0 %v1983
      %v1985 = vpop.xlane.xlu0 %1984
      %v1986 = vsel %vm1629, %v1972, -inf
      %1987 = vmax.xlane.f32.xlu0 %v1986
      %v1988 = vpop.xlane.xlu0 %1987
      %v1989 = vsel %vm1629, %v1973, -inf
      %1990 = vmax.xlane.f32.xlu0 %v1989
      %v1991 = vpop.xlane.xlu0 %1990
      %v1992 = vsel %vm1629, %v1974, -inf
      %1993 = vmax.xlane.f32.xlu0 %v1992
      %v1994 = vpop.xlane.xlu0 %1993
      %v1995 = vsel %vm1629, %v1975, -inf
      %1996 = vmax.xlane.f32.xlu0 %v1995
      %v1997 = vpop.xlane.xlu0 %1996
      %v1998 = vsel %vm1629, %v1976, -inf
      %1999 = vmax.xlane.f32.xlu0 %v1998
      %v2000 = vpop.xlane.xlu0 %1999
      %v2001 = vsub.f32 %v1969, %v1979
      %v2002 = vsub.f32 %v1970, %v1982
      %v2003 = vsub.f32 %v1971, %v1985
      %v2004 = vsub.f32 %v1972, %v1988
      %v2005 = vsub.f32 %v1973, %v1991
      %v2006 = vsub.f32 %v1974, %v1994
      %v2007 = vsub.f32 %v1975, %v1997
      %v2008 = vsub.f32 %v1976, %v2000
      %v2009 = vmul.f32 %v2001, 1.442695
      %v2010 = vpow.pop %v2009
      %v2011 = vmul.f32 %v2002, 1.442695
      %v2012 = vpow.pop %v2011
      %v2013 = vmul.f32 %v2003, 1.442695
      %v2014 = vpow.pop %v2013
      %v2015 = vmul.f32 %v2004, 1.442695
      %v2016 = vpow.pop %v2015
      %v2017 = vmul.f32 %v2005, 1.442695
      %v2018 = vpow.pop %v2017
      %v2019 = vmul.f32 %v2006, 1.442695
      %v2020 = vpow.pop %v2019
      %v2021 = vmul.f32 %v2007, 1.442695
      %v2022 = vpow.pop %v2021
      %v2023 = vmul.f32 %v2008, 1.442695
      %v2024 = vpow.pop %v2023
      %v2025 = vsel %vm1629, %v2010, 0.0
      %2026 = vadd.xlane.f32.xlu0 %v2025
      %v2027 = vpop.xlane.xlu0 %2026
      %v2028 = vsel %vm1629, %v2012, 0.0
      %2029 = vadd.xlane.f32.xlu0 %v2028
      %v2030 = vpop.xlane.xlu0 %2029
      %v2031 = vsel %vm1629, %v2014, 0.0
      %2032 = vadd.xlane.f32.xlu0 %v2031
      %v2033 = vpop.xlane.xlu0 %2032
      %v2034 = vsel %vm1629, %v2016, 0.0
      %2035 = vadd.xlane.f32.xlu0 %v2034
      %v2036 = vpop.xlane.xlu0 %2035
      %v2037 = vsel %vm1629, %v2018, 0.0
      %2038 = vadd.xlane.f32.xlu0 %v2037
      %v2039 = vpop.xlane.xlu0 %2038
      %v2040 = vsel %vm1629, %v2020, 0.0
      %2041 = vadd.xlane.f32.xlu0 %v2040
      %v2042 = vpop.xlane.xlu0 %2041
      %v2043 = vsel %vm1629, %v2022, 0.0
      %2044 = vadd.xlane.f32.xlu0 %v2043
      %v2045 = vpop.xlane.xlu0 %2044
      %v2046 = vsel %vm1629, %v2024, 0.0
      %2047 = vadd.xlane.f32.xlu0 %v2046
      %v2048 = vpop.xlane.xlu0 %2047
      %v2049 = vrcp.pop %v2027
      %v2050 = vmul.f32 %v2027, %v2049
      %v2051 = vsub.f32 1.0, %v2050
      %v2052 = vmul.f32 %v2049, %v2051
      %v2053 = vadd.f32 %v2049, %v2052
      %vm2054 = vweird.f32 %v2027
      %vm2055 = vweird.f32 %v2049
      %vm2056 = vmor %vm2054, %vm2055
      %v2057 = vsel %vm2056, %v2049, %v2053
      %v2058 = vand.u32 2147483647, %v2027
      %vm2059 = vcmp.eq.f32.partialorder %v2058, 8.507059e+37
      %v2060 = vand.u32 %v2027, 2147483648
      %v2061 = vor.u32 1.1754944e-38, %v2060
      %v2062 = vsel %vm2059, %v2061, %v2057
      %v2063 = vmul.f32 %v2010, %v2062
      %v2064 = vrcp.pop %v2030
      %v2065 = vmul.f32 %v2030, %v2064
      %v2066 = vsub.f32 1.0, %v2065
      %v2067 = vmul.f32 %v2064, %v2066
      %v2068 = vadd.f32 %v2064, %v2067
      %vm2069 = vweird.f32 %v2030
      %vm2070 = vweird.f32 %v2064
      %vm2071 = vmor %vm2069, %vm2070
      %v2072 = vsel %vm2071, %v2064, %v2068
      %v2073 = vand.u32 2147483647, %v2030
      %vm2074 = vcmp.eq.f32.partialorder %v2073, 8.507059e+37
      %v2075 = vand.u32 %v2030, 2147483648
      %v2076 = vor.u32 1.1754944e-38, %v2075
      %v2077 = vsel %vm2074, %v2076, %v2072
      %v2078 = vmul.f32 %v2012, %v2077
      %v2079 = vrcp.pop %v2033
      %v2080 = vmul.f32 %v2033, %v2079
      %v2081 = vsub.f32 1.0, %v2080
      %v2082 = vmul.f32 %v2079, %v2081
      %v2083 = vadd.f32 %v2079, %v2082
      %vm2084 = vweird.f32 %v2033
      %vm2085 = vweird.f32 %v2079
      %vm2086 = vmor %vm2084, %vm2085
      %v2087 = vsel %vm2086, %v2079, %v2083
      %v2088 = vand.u32 2147483647, %v2033
      %vm2089 = vcmp.eq.f32.partialorder %v2088, 8.507059e+37
      %v2090 = vand.u32 %v2033, 2147483648
      %v2091 = vor.u32 1.1754944e-38, %v2090
      %v2092 = vsel %vm2089, %v2091, %v2087
      %v2093 = vmul.f32 %v2014, %v2092
      %v2094 = vrcp.pop %v2036
      %v2095 = vmul.f32 %v2036, %v2094
      %v2096 = vsub.f32 1.0, %v2095
      %v2097 = vmul.f32 %v2094, %v2096
      %v2098 = vadd.f32 %v2094, %v2097
      %vm2099 = vweird.f32 %v2036
      %vm2100 = vweird.f32 %v2094
      %vm2101 = vmor %vm2099, %vm2100
      %v2102 = vsel %vm2101, %v2094, %v2098
      %v2103 = vand.u32 2147483647, %v2036
      %vm2104 = vcmp.eq.f32.partialorder %v2103, 8.507059e+37
      %v2105 = vand.u32 %v2036, 2147483648
      %v2106 = vor.u32 1.1754944e-38, %v2105
      %v2107 = vsel %vm2104, %v2106, %v2102
      %v2108 = vmul.f32 %v2016, %v2107
      %v2109 = vrcp.pop %v2039
      %v2110 = vmul.f32 %v2039, %v2109
      %v2111 = vsub.f32 1.0, %v2110
      %v2112 = vmul.f32 %v2109, %v2111
      %v2113 = vadd.f32 %v2109, %v2112
      %vm2114 = vweird.f32 %v2039
      %vm2115 = vweird.f32 %v2109
      %vm2116 = vmor %vm2114, %vm2115
      %v2117 = vsel %vm2116, %v2109, %v2113
      %v2118 = vand.u32 2147483647, %v2039
      %vm2119 = vcmp.eq.f32.partialorder %v2118, 8.507059e+37
      %v2120 = vand.u32 %v2039, 2147483648
      %v2121 = vor.u32 1.1754944e-38, %v2120
      %v2122 = vsel %vm2119, %v2121, %v2117
      %v2123 = vmul.f32 %v2018, %v2122
      %v2124 = vrcp.pop %v2042
      %v2125 = vmul.f32 %v2042, %v2124
      %v2126 = vsub.f32 1.0, %v2125
      %v2127 = vmul.f32 %v2124, %v2126
      %v2128 = vadd.f32 %v2124, %v2127
      %vm2129 = vweird.f32 %v2042
      %vm2130 = vweird.f32 %v2124
      %vm2131 = vmor %vm2129, %vm2130
      %v2132 = vsel %vm2131, %v2124, %v2128
      %v2133 = vand.u32 2147483647, %v2042
      %vm2134 = vcmp.eq.f32.partialorder %v2133, 8.507059e+37
      %v2135 = vand.u32 %v2042, 2147483648
      %v2136 = vor.u32 1.1754944e-38, %v2135
      %v2137 = vsel %vm2134, %v2136, %v2132
      %v2138 = vmul.f32 %v2020, %v2137
      %v2139 = vrcp.pop %v2045
      %v2140 = vmul.f32 %v2045, %v2139
      %v2141 = vsub.f32 1.0, %v2140
      %v2142 = vmul.f32 %v2139, %v2141
      %v2143 = vadd.f32 %v2139, %v2142
      %vm2144 = vweird.f32 %v2045
      %vm2145 = vweird.f32 %v2139
      %vm2146 = vmor %vm2144, %vm2145
      %v2147 = vsel %vm2146, %v2139, %v2143
      %v2148 = vand.u32 2147483647, %v2045
      %vm2149 = vcmp.eq.f32.partialorder %v2148, 8.507059e+37
      %v2150 = vand.u32 %v2045, 2147483648
      %v2151 = vor.u32 1.1754944e-38, %v2150
      %v2152 = vsel %vm2149, %v2151, %v2147
      %v2153 = vmul.f32 %v2022, %v2152
      %v2154 = vrcp.pop %v2048
      %v2155 = vmul.f32 %v2048, %v2154
      %v2156 = vsub.f32 1.0, %v2155
      %v2157 = vmul.f32 %v2154, %v2156
      %v2158 = vadd.f32 %v2154, %v2157
      %vm2159 = vweird.f32 %v2048
      %vm2160 = vweird.f32 %v2154
      %vm2161 = vmor %vm2159, %vm2160
      %v2162 = vsel %vm2161, %v2154, %v2158
      %v2163 = vand.u32 2147483647, %v2048
      %vm2164 = vcmp.eq.f32.partialorder %v2163, 8.507059e+37
      %v2165 = vand.u32 %v2048, 2147483648
      %v2166 = vor.u32 1.1754944e-38, %v2165
      %v2167 = vsel %vm2164, %v2166, %v2162
      %v2168 = vmul.f32 %v2024, %v2167
      %v2169 = vpack.c.bf16 %v2078, %v2063
      %v2170 = vpack.c.bf16 %v2108, %v2093
      %v2171 = vpack.c.bf16 %v2138, %v2123
      %v2172 = vpack.c.bf16 %v2168, %v2153
      %2173 = vrot.lane.b32.xlu0 %v1535, 48
      %v2174 = vpop.permute.xlu0 %2173
      %2175 = vrot.lane.b32.xlu0 %v1536, 48
      %v2176 = vpop.permute.xlu0 %2175
      %2177 = vrot.lane.b32.xlu0 %v1537, 48
      %v2178 = vpop.permute.xlu0 %2177
      %2179 = vrot.lane.b32.xlu0 %v1538, 48
      %v2180 = vpop.permute.xlu0 %2179
      %v2186 = vsel %vm1629, %v2169, 0
      %v2189 = vsel %vm1629, %v2170, 0
      %v2192 = vsel %vm1629, %v2171, 0
      %v2195 = vsel %vm1629, %v2172, 0
      %2197 = vmatpush.bf16.msra.mxu0 0
      %2198 = vmatpush.bf16.msra.mxu0 0
      %2199 = vmatpush.bf16.msra.mxu0 0
      %2200 = vmatpush.bf16.msra.mxu0 0
      %2201 = vmatpush.bf16.msra.mxu0 %v2180
      %2202 = vmatpush.bf16.msra.mxu0 %v2178
      %2203 = vmatpush.bf16.msra.mxu0 %v2176
      %2204 = vmatpush.bf16.msra.mxu0 %v2174
      %2205 = vmatmul.bf16.gmra.mxu0 %v2186
      %v2206 = vpop.f32.mrf.mxu0
      %v2207 = vadd.f32 0.0, %v2206
      %v2208 = vpop.f32.mrf.mxu0
      %v2209 = vadd.f32 0.0, %v2208
      %2210 = vmatmul.bf16.gmra.mxu0 %v2189
      %v2211 = vpop.f32.mrf.mxu0
      %v2212 = vadd.f32 0.0, %v2211
      %v2213 = vpop.f32.mrf.mxu0
      %v2214 = vadd.f32 0.0, %v2213
      %2215 = vmatmul.bf16.gmra.mxu0 %v2192
      %v2216 = vpop.f32.mrf.mxu0
      %v2217 = vadd.f32 0.0, %v2216
      %v2218 = vpop.f32.mrf.mxu0
      %v2219 = vadd.f32 0.0, %v2218
      %2220 = vmatmul.bf16.gmra.mxu0 %v2195
      %v2221 = vpop.f32.mrf.mxu0
      %v2222 = vadd.f32 0.0, %v2221
      %v2223 = vpop.f32.mrf.mxu0
      %v2224 = vadd.f32 0.0, %v2223
      %2225 = vdwg.mxu0
      %v2226 = vpack.c.bf16 %v2209, %v2207
      %v2227 = vpack.c.bf16 %v2214, %v2212
      %v2228 = vpack.c.bf16 %v2219, %v2217
      %v2229 = vpack.c.bf16 %v2224, %v2222
      %v2232 = vunpack.c.l.b16 %v1533
      %v2233 = vunpack.c.l.b16 %v1534
      %v2234 = vpack.c.b16 %v2233, %v2232
      %v2237 = vsel %vm1551, %v2226, 0
      %v2240 = vsel %vm1551, %v2227, 0
      %v2243 = vsel %vm1551, %v2228, 0
      %v2246 = vsel %vm1551, %v2229, 0
      %2248 = vmatpush.bf16.msra.mxu0 0
      %2249 = vmatpush.bf16.msra.mxu0 0
      %2250 = vmatpush.bf16.msra.mxu0 0
      %2251 = vmatpush.bf16.msra.mxu0 0
      %2252 = vmatpush.bf16.msra.mxu0 0
      %2253 = vmatpush.bf16.msra.mxu0 0
      %2254 = vmatpush.bf16.msra.mxu0 0
      %2255 = vmatpush.bf16.msra.mxu0 %v2234
      %2256 = vmatmul.bf16.gmra.mxu0 %v2237
      %v2257 = vpop.f32.mrf.mxu0
      %v2258 = vadd.f32 0.0, %v2257
      %v2259 = vpop.f32.mrf.mxu0
      %v2260 = vadd.f32 0.0, %v2259
      %2261 = vmatmul.bf16.gmra.mxu0 %v2240
      %v2262 = vpop.f32.mrf.mxu0
      %v2263 = vadd.f32 0.0, %v2262
      %v2264 = vpop.f32.mrf.mxu0
      %v2265 = vadd.f32 0.0, %v2264
      %2266 = vmatmul.bf16.gmra.mxu0 %v2243
      %v2267 = vpop.f32.mrf.mxu0
      %v2268 = vadd.f32 0.0, %v2267
      %v2269 = vpop.f32.mrf.mxu0
      %v2270 = vadd.f32 0.0, %v2269
      %2271 = vmatmul.bf16.gmra.mxu0 %v2246
      %v2272 = vpop.f32.mrf.mxu0
      %v2273 = vadd.f32 0.0, %v2272
      %v2274 = vpop.f32.mrf.mxu0
      %v2275 = vadd.f32 0.0, %v2274
      %2276 = vdwg.mxu0
      %v2279 = vunpack.c.l.b16 %v1531
      %v2280 = vunpack.c.l.b16 %v1532
      %v2281 = vpack.c.b16 %v2280, %v2279
      %v2284 = vsel %vm1551, %v1879, 0
      %v2287 = vsel %vm1551, %v1880, 0
      %v2290 = vsel %vm1551, %v1881, 0
      %v2293 = vsel %vm1551, %v1882, 0
      %2295 = vmatpush.bf16.msra.mxu0 0
      %2296 = vmatpush.bf16.msra.mxu0 0
      %2297 = vmatpush.bf16.msra.mxu0 0
      %2298 = vmatpush.bf16.msra.mxu0 0
      %2299 = vmatpush.bf16.msra.mxu0 0
      %2300 = vmatpush.bf16.msra.mxu0 0
      %2301 = vmatpush.bf16.msra.mxu0 0
      %2302 = vmatpush.bf16.msra.mxu0 %v2281
      %2303 = vmatmul.bf16.gmra.mxu0 %v2284
      %v2304 = vpop.f32.mrf.mxu0
      %v2305 = vadd.f32 %v2258, %v2304
      %v2306 = vpop.f32.mrf.mxu0
      %v2307 = vadd.f32 %v2260, %v2306
      %2308 = vmatmul.bf16.gmra.mxu0 %v2287
      %v2309 = vpop.f32.mrf.mxu0
      %v2310 = vadd.f32 %v2263, %v2309
      %v2311 = vpop.f32.mrf.mxu0
      %v2312 = vadd.f32 %v2265, %v2311
      %2313 = vmatmul.bf16.gmra.mxu0 %v2290
      %v2314 = vpop.f32.mrf.mxu0
      %v2315 = vadd.f32 %v2268, %v2314
      %v2316 = vpop.f32.mrf.mxu0
      %v2317 = vadd.f32 %v2270, %v2316
      %2318 = vmatmul.bf16.gmra.mxu0 %v2293
      %v2319 = vpop.f32.mrf.mxu0
      %v2320 = vadd.f32 %v2273, %v2319
      %v2321 = vpop.f32.mrf.mxu0
      %v2322 = vadd.f32 %v2275, %v2321
      %2323 = vdwg.mxu0
      %v2324 = vadd.f32 %v1258, %v2305
      %v2325 = vadd.f32 %v1259, %v2307
      %v2326 = vadd.f32 %v1260, %v2310
      %v2327 = vadd.f32 %v1261, %v2312
      %v2328 = vadd.f32 %v1262, %v2315
      %v2329 = vadd.f32 %v1263, %v2317
      %v2330 = vadd.f32 %v1264, %v2320
      %v2331 = vadd.f32 %v1265, %v2322
      %v2332 = vld [vmem:[%s23] sm:$0x1]
      %v2334 = vperm.slane %v2332, 0
      %v2336 = vadd.f32 %v2324, %v2334
      %v2337 = vadd.f32 %v2325, %v2334
      %v2338 = vadd.f32 %v2326, %v2334
      %v2339 = vadd.f32 %v2327, %v2334
      %v2340 = vadd.f32 %v2328, %v2334
      %v2341 = vadd.f32 %v2329, %v2334
      %v2342 = vadd.f32 %v2330, %v2334
      %v2343 = vadd.f32 %v2331, %v2334
      %v2344 = vld [vmem:[%s25] sm:$0x1]
      %v2345 = vld [vmem:[%s27] sm:$0x1]
      %v2346 = vsel %vm1060, %v2336, 0.0
      %2347 = vadd.xlane.f32.xlu0 %v2346
      %v2348 = vpop.xlane.xlu0 %2347
      %v2349 = vsel %vm1060, %v2337, 0.0
      %2350 = vadd.xlane.f32.xlu0 %v2349
      %v2351 = vpop.xlane.xlu0 %2350
      %v2352 = vsel %vm1060, %v2338, 0.0
      %2353 = vadd.xlane.f32.xlu0 %v2352
      %v2354 = vpop.xlane.xlu0 %2353
      %v2355 = vsel %vm1060, %v2339, 0.0
      %2356 = vadd.xlane.f32.xlu0 %v2355
      %v2357 = vpop.xlane.xlu0 %2356
      %v2358 = vsel %vm1060, %v2340, 0.0
      %2359 = vadd.xlane.f32.xlu0 %v2358
      %v2360 = vpop.xlane.xlu0 %2359
      %v2361 = vsel %vm1060, %v2341, 0.0
      %2362 = vadd.xlane.f32.xlu0 %v2361
      %v2363 = vpop.xlane.xlu0 %2362
      %v2364 = vsel %vm1060, %v2342, 0.0
      %2365 = vadd.xlane.f32.xlu0 %v2364
      %v2366 = vpop.xlane.xlu0 %2365
      %v2367 = vsel %vm1060, %v2343, 0.0
      %2368 = vadd.xlane.f32.xlu0 %v2367
      %v2369 = vpop.xlane.xlu0 %2368
      %v2370 = vmul.f32 %v2348, %v1091
      %v2371 = vmul.f32 %v2351, %v1091
      %v2372 = vmul.f32 %v2354, %v1091
      %v2373 = vmul.f32 %v2357, %v1091
      %v2374 = vmul.f32 %v2360, %v1091
      %v2375 = vmul.f32 %v2363, %v1091
      %v2376 = vmul.f32 %v2366, %v1091
      %v2377 = vmul.f32 %v2369, %v1091
      %v2378 = vsub.f32 %v2336, %v2370
      %v2379 = vsub.f32 %v2337, %v2371
      %v2380 = vsub.f32 %v2338, %v2372
      %v2381 = vsub.f32 %v2339, %v2373
      %v2382 = vsub.f32 %v2340, %v2374
      %v2383 = vsub.f32 %v2341, %v2375
      %v2384 = vsub.f32 %v2342, %v2376
      %v2385 = vsub.f32 %v2343, %v2377
      %v2386 = vmul.f32 %v2378, %v2378
      %v2387 = vmul.f32 %v2379, %v2379
      %v2388 = vmul.f32 %v2380, %v2380
      %v2389 = vmul.f32 %v2381, %v2381
      %v2390 = vmul.f32 %v2382, %v2382
      %v2391 = vmul.f32 %v2383, %v2383
      %v2392 = vmul.f32 %v2384, %v2384
      %v2393 = vmul.f32 %v2385, %v2385
      %v2394 = vsel %vm1060, %v2386, 0.0
      %2395 = vadd.xlane.f32.xlu0 %v2394
      %v2396 = vpop.xlane.xlu0 %2395
      %v2397 = vsel %vm1060, %v2387, 0.0
      %2398 = vadd.xlane.f32.xlu0 %v2397
      %v2399 = vpop.xlane.xlu0 %2398
      %v2400 = vsel %vm1060, %v2388, 0.0
      %2401 = vadd.xlane.f32.xlu0 %v2400
      %v2402 = vpop.xlane.xlu0 %2401
      %v2403 = vsel %vm1060, %v2389, 0.0
      %2404 = vadd.xlane.f32.xlu0 %v2403
      %v2405 = vpop.xlane.xlu0 %2404
      %v2406 = vsel %vm1060, %v2390, 0.0
      %2407 = vadd.xlane.f32.xlu0 %v2406
      %v2408 = vpop.xlane.xlu0 %2407
      %v2409 = vsel %vm1060, %v2391, 0.0
      %2410 = vadd.xlane.f32.xlu0 %v2409
      %v2411 = vpop.xlane.xlu0 %2410
      %v2412 = vsel %vm1060, %v2392, 0.0
      %2413 = vadd.xlane.f32.xlu0 %v2412
      %v2414 = vpop.xlane.xlu0 %2413
      %v2415 = vsel %vm1060, %v2393, 0.0
      %2416 = vadd.xlane.f32.xlu0 %v2415
      %v2417 = vpop.xlane.xlu0 %2416
      %v2418 = vmul.f32 %v2396, %v1091
      %v2419 = vmul.f32 %v2399, %v1091
      %v2420 = vmul.f32 %v2402, %v1091
      %v2421 = vmul.f32 %v2405, %v1091
      %v2422 = vmul.f32 %v2408, %v1091
      %v2423 = vmul.f32 %v2411, %v1091
      %v2424 = vmul.f32 %v2414, %v1091
      %v2425 = vmul.f32 %v2417, %v1091
      %v2426 = vadd.f32 %v2418, 1e-05
      %v2427 = vadd.f32 %v2419, 1e-05
      %v2428 = vadd.f32 %v2420, 1e-05
      %v2429 = vadd.f32 %v2421, 1e-05
      %v2430 = vadd.f32 %v2422, 1e-05
      %v2431 = vadd.f32 %v2423, 1e-05
      %v2432 = vadd.f32 %v2424, 1e-05
      %v2433 = vadd.f32 %v2425, 1e-05
      %v2434 = vrsqrt.pop %v2426
      %v2435 = vmul.f32 %v2434, %v2426
      %v2436 = vmul.f32 %v2435, %v2434
      %v2437 = vmul.f32 0.5, %v2436
      %v2438 = vsub.f32 1.5, %v2437
      %v2439 = vmul.f32 %v2434, %v2438
      %vm2440 = vweird.f32 %v2426
      %vm2441 = vweird.f32 %v2434
      %vm2442 = vmor %vm2440, %vm2441
      %v2443 = vsel %vm2442, %v2434, %v2439
      %v2444 = vrsqrt.pop %v2427
      %v2445 = vmul.f32 %v2444, %v2427
      %v2446 = vmul.f32 %v2445, %v2444
      %v2447 = vmul.f32 0.5, %v2446
      %v2448 = vsub.f32 1.5, %v2447
      %v2449 = vmul.f32 %v2444, %v2448
      %vm2450 = vweird.f32 %v2427
      %vm2451 = vweird.f32 %v2444
      %vm2452 = vmor %vm2450, %vm2451
      %v2453 = vsel %vm2452, %v2444, %v2449
      %v2454 = vrsqrt.pop %v2428
      %v2455 = vmul.f32 %v2454, %v2428
      %v2456 = vmul.f32 %v2455, %v2454
      %v2457 = vmul.f32 0.5, %v2456
      %v2458 = vsub.f32 1.5, %v2457
      %v2459 = vmul.f32 %v2454, %v2458
      %vm2460 = vweird.f32 %v2428
      %vm2461 = vweird.f32 %v2454
      %vm2462 = vmor %vm2460, %vm2461
      %v2463 = vsel %vm2462, %v2454, %v2459
      %v2464 = vrsqrt.pop %v2429
      %v2465 = vmul.f32 %v2464, %v2429
      %v2466 = vmul.f32 %v2465, %v2464
      %v2467 = vmul.f32 0.5, %v2466
      %v2468 = vsub.f32 1.5, %v2467
      %v2469 = vmul.f32 %v2464, %v2468
      %vm2470 = vweird.f32 %v2429
      %vm2471 = vweird.f32 %v2464
      %vm2472 = vmor %vm2470, %vm2471
      %v2473 = vsel %vm2472, %v2464, %v2469
      %v2474 = vrsqrt.pop %v2430
      %v2475 = vmul.f32 %v2474, %v2430
      %v2476 = vmul.f32 %v2475, %v2474
      %v2477 = vmul.f32 0.5, %v2476
      %v2478 = vsub.f32 1.5, %v2477
      %v2479 = vmul.f32 %v2474, %v2478
      %vm2480 = vweird.f32 %v2430
      %vm2481 = vweird.f32 %v2474
      %vm2482 = vmor %vm2480, %vm2481
      %v2483 = vsel %vm2482, %v2474, %v2479
      %v2484 = vrsqrt.pop %v2431
      %v2485 = vmul.f32 %v2484, %v2431
      %v2486 = vmul.f32 %v2485, %v2484
      %v2487 = vmul.f32 0.5, %v2486
      %v2488 = vsub.f32 1.5, %v2487
      %v2489 = vmul.f32 %v2484, %v2488
      %vm2490 = vweird.f32 %v2431
      %vm2491 = vweird.f32 %v2484
      %vm2492 = vmor %vm2490, %vm2491
      %v2493 = vsel %vm2492, %v2484, %v2489
      %v2494 = vrsqrt.pop %v2432
      %v2495 = vmul.f32 %v2494, %v2432
      %v2496 = vmul.f32 %v2495, %v2494
      %v2497 = vmul.f32 0.5, %v2496
      %v2498 = vsub.f32 1.5, %v2497
      %v2499 = vmul.f32 %v2494, %v2498
      %vm2500 = vweird.f32 %v2432
      %vm2501 = vweird.f32 %v2494
      %vm2502 = vmor %vm2500, %vm2501
      %v2503 = vsel %vm2502, %v2494, %v2499
      %v2504 = vrsqrt.pop %v2433
      %v2505 = vmul.f32 %v2504, %v2433
      %v2506 = vmul.f32 %v2505, %v2504
      %v2507 = vmul.f32 0.5, %v2506
      %v2508 = vsub.f32 1.5, %v2507
      %v2509 = vmul.f32 %v2504, %v2508
      %vm2510 = vweird.f32 %v2433
      %vm2511 = vweird.f32 %v2504
      %vm2512 = vmor %vm2510, %vm2511
      %v2513 = vsel %vm2512, %v2504, %v2509
      %v2514 = vmul.f32 %v2378, %v2443
      %v2515 = vmul.f32 %v2379, %v2453
      %v2516 = vmul.f32 %v2380, %v2463
      %v2517 = vmul.f32 %v2381, %v2473
      %v2518 = vmul.f32 %v2382, %v2483
      %v2519 = vmul.f32 %v2383, %v2493
      %v2520 = vmul.f32 %v2384, %v2503
      %v2521 = vmul.f32 %v2385, %v2513
      %v2523 = vperm.slane %v2344, 0
      %v2525 = vmul.f32 %v2514, %v2523
      %v2526 = vmul.f32 %v2515, %v2523
      %v2527 = vmul.f32 %v2516, %v2523
      %v2528 = vmul.f32 %v2517, %v2523
      %v2529 = vmul.f32 %v2518, %v2523
      %v2530 = vmul.f32 %v2519, %v2523
      %v2531 = vmul.f32 %v2520, %v2523
      %v2532 = vmul.f32 %v2521, %v2523
      %v2534 = vperm.slane %v2345, 0
      %v2536 = vadd.f32 %v2525, %v2534
      %v2537 = vadd.f32 %v2526, %v2534
      %v2538 = vadd.f32 %v2527, %v2534
      %v2539 = vadd.f32 %v2528, %v2534
      %v2540 = vadd.f32 %v2529, %v2534
      %v2541 = vadd.f32 %v2530, %v2534
      %v2542 = vadd.f32 %v2531, %v2534
      %v2543 = vadd.f32 %v2532, %v2534
      %v2544 = vpack.c.bf16 %v2537, %v2536
      %v2545 = vpack.c.bf16 %v2539, %v2538
      %v2546 = vpack.c.bf16 %v2541, %v2540
      %v2547 = vpack.c.bf16 %v2543, %v2542
      %v2548 = vld [vmem:[%s29] sm:$0xf]
      %v2549 = vld [vmem:[%s29 + $0x4] sm:$0xf]
      %v2550 = vld [vmem:[%s29 + $0x8] sm:$0xf]
      %v2551 = vld [vmem:[%s29 + $0xc] sm:$0xf]
      %v2552 = vld [vmem:[%s31] sm:$0x1]
      %v2554 = vperm.slane %v2552, 0
      %v2560 = vunpack.c.l.b16 %v2548
      %v2561 = vunpack.c.l.b16 %v2549
      %v2562 = vunpack.c.l.b16 %v2550
      %v2563 = vunpack.c.l.b16 %v2551
      %v2564 = vpack.c.b16 %v2561, %v2560
      %v2565 = vpack.c.b16 %v2563, %v2562
      %v2569 = vsel %vm1060, %v2544, 0
      %v2572 = vsel %vm1060, %v2545, 0
      %v2575 = vsel %vm1060, %v2546, 0
      %v2578 = vsel %vm1060, %v2547, 0
      %2580 = vmatpush.bf16.msra.mxu0 0
      %2581 = vmatpush.bf16.msra.mxu0 0
      %2582 = vmatpush.bf16.msra.mxu0 0
      %2583 = vmatpush.bf16.msra.mxu0 0
      %2584 = vmatpush.bf16.msra.mxu0 0
      %2585 = vmatpush.bf16.msra.mxu0 0
      %2586 = vmatpush.bf16.msra.mxu0 %v2565
      %2587 = vmatpush.bf16.msra.mxu0 %v2564
      %2588 = vmatmul.bf16.gmra.mxu0 %v2569
      %v2589 = vpop.f32.mrf.mxu0
      %v2590 = vadd.f32 %v2554, %v2589
      %v2591 = vpop.f32.mrf.mxu0
      %v2592 = vadd.f32 %v2554, %v2591
      %2593 = vmatmul.bf16.gmra.mxu0 %v2572
      %v2594 = vpop.f32.mrf.mxu0
      %v2595 = vadd.f32 %v2554, %v2594
      %v2596 = vpop.f32.mrf.mxu0
      %v2597 = vadd.f32 %v2554, %v2596
      %2598 = vmatmul.bf16.gmra.mxu0 %v2575
      %v2599 = vpop.f32.mrf.mxu0
      %v2600 = vadd.f32 %v2554, %v2599
      %v2601 = vpop.f32.mrf.mxu0
      %v2602 = vadd.f32 %v2554, %v2601
      %2603 = vmatmul.bf16.gmra.mxu0 %v2578
      %v2604 = vpop.f32.mrf.mxu0
      %v2605 = vadd.f32 %v2554, %v2604
      %v2606 = vpop.f32.mrf.mxu0
      %v2607 = vadd.f32 %v2554, %v2606
      %2608 = vdwg.mxu0
      %v2609 = vmul.f32 %v2590, 0.5
      %v2610 = vmul.f32 %v2592, 0.5
      %v2611 = vmul.f32 %v2595, 0.5
      %v2612 = vmul.f32 %v2597, 0.5
      %v2613 = vmul.f32 %v2600, 0.5
      %v2614 = vmul.f32 %v2602, 0.5
      %v2615 = vmul.f32 %v2605, 0.5
      %v2616 = vmul.f32 %v2607, 0.5
      %v2617 = vmul.f32 %v2590, 0.044715
      %v2618 = vmul.f32 %v2592, 0.044715
      %v2619 = vmul.f32 %v2595, 0.044715
      %v2620 = vmul.f32 %v2597, 0.044715
      %v2621 = vmul.f32 %v2600, 0.044715
      %v2622 = vmul.f32 %v2602, 0.044715
      %v2623 = vmul.f32 %v2605, 0.044715
      %v2624 = vmul.f32 %v2607, 0.044715
      %v2625 = vmul.f32 %v2617, %v2590
      %v2626 = vmul.f32 %v2618, %v2592
      %v2627 = vmul.f32 %v2619, %v2595
      %v2628 = vmul.f32 %v2620, %v2597
      %v2629 = vmul.f32 %v2621, %v2600
      %v2630 = vmul.f32 %v2622, %v2602
      %v2631 = vmul.f32 %v2623, %v2605
      %v2632 = vmul.f32 %v2624, %v2607
      %v2633 = vmul.f32 %v2625, %v2590
      %v2634 = vmul.f32 %v2626, %v2592
      %v2635 = vmul.f32 %v2627, %v2595
      %v2636 = vmul.f32 %v2628, %v2597
      %v2637 = vmul.f32 %v2629, %v2600
      %v2638 = vmul.f32 %v2630, %v2602
      %v2639 = vmul.f32 %v2631, %v2605
      %v2640 = vmul.f32 %v2632, %v2607
      %v2641 = vadd.f32 %v2590, %v2633
      %v2642 = vadd.f32 %v2592, %v2634
      %v2643 = vadd.f32 %v2595, %v2635
      %v2644 = vadd.f32 %v2597, %v2636
      %v2645 = vadd.f32 %v2600, %v2637
      %v2646 = vadd.f32 %v2602, %v2638
      %v2647 = vadd.f32 %v2605, %v2639
      %v2648 = vadd.f32 %v2607, %v2640
      %v2649 = vmul.f32 %v2641, 0.7978846
      %v2650 = vmul.f32 %v2642, 0.7978846
      %v2651 = vmul.f32 %v2643, 0.7978846
      %v2652 = vmul.f32 %v2644, 0.7978846
      %v2653 = vmul.f32 %v2645, 0.7978846
      %v2654 = vmul.f32 %v2646, 0.7978846
      %v2655 = vmul.f32 %v2647, 0.7978846
      %v2656 = vmul.f32 %v2648, 0.7978846
      %v2657 = vtanh.pop %v2649
      %v2658 = vtanh.pop %v2650
      %v2659 = vtanh.pop %v2651
      %v2660 = vtanh.pop %v2652
      %v2661 = vtanh.pop %v2653
      %v2662 = vtanh.pop %v2654
      %v2663 = vtanh.pop %v2655
      %v2664 = vtanh.pop %v2656
      %v2665 = vadd.f32 %v2657, 1.0
      %v2666 = vadd.f32 %v2658, 1.0
      %v2667 = vadd.f32 %v2659, 1.0
      %v2668 = vadd.f32 %v2660, 1.0
      %v2669 = vadd.f32 %v2661, 1.0
      %v2670 = vadd.f32 %v2662, 1.0
      %v2671 = vadd.f32 %v2663, 1.0
      %v2672 = vadd.f32 %v2664, 1.0
      %v2673 = vmul.f32 %v2609, %v2665
      %v2674 = vmul.f32 %v2610, %v2666
      %v2675 = vmul.f32 %v2611, %v2667
      %v2676 = vmul.f32 %v2612, %v2668
      %v2677 = vmul.f32 %v2613, %v2669
      %v2678 = vmul.f32 %v2614, %v2670
      %v2679 = vmul.f32 %v2615, %v2671
      %v2680 = vmul.f32 %v2616, %v2672
      %v2681 = vpack.c.bf16 %v2674, %v2673
      %v2682 = vpack.c.bf16 %v2676, %v2675
      %v2683 = vpack.c.bf16 %v2678, %v2677
      %v2684 = vpack.c.bf16 %v2680, %v2679
      %v2685 = vld [vmem:[%s33] sm:$0xf]
      %v2686 = vld [vmem:[%s33 + $0x4] sm:$0xf]
      %v2687 = vld [vmem:[%s33 + $0x8] sm:$0xf]
      %v2688 = vld [vmem:[%s33 + $0xc] sm:$0xf]
      %v2689 = vld [vmem:[%s33 + $0x10] sm:$0xf]
      %v2690 = vld [vmem:[%s33 + $0x14] sm:$0xf]
      %v2691 = vld [vmem:[%s33 + $0x18] sm:$0xf]
      %v2692 = vld [vmem:[%s33 + $0x1c] sm:$0xf]
      %v2693 = vld [vmem:[%s33 + $0x20] sm:$0xf]
      %v2694 = vld [vmem:[%s33 + $0x24] sm:$0xf]
      %v2695 = vld [vmem:[%s33 + $0x28] sm:$0xf]
      %v2696 = vld [vmem:[%s33 + $0x2c] sm:$0xf]
      %v2697 = vld [vmem:[%s33 + $0x30] sm:$0xf]
      %v2698 = vld [vmem:[%s33 + $0x34] sm:$0xf]
      %v2699 = vld [vmem:[%s33 + $0x38] sm:$0xf]
      %v2700 = vld [vmem:[%s33 + $0x3c] sm:$0xf]
      %v2701 = vld [vmem:[%s35] sm:$0x1]
      %v2703 = vperm.slane %v2701, 0
      %v2721 = vunpack.c.l.b16 %v2685
      %v2722 = vunpack.c.l.b16 %v2686
      %v2723 = vunpack.c.l.b16 %v2687
      %v2724 = vunpack.c.l.b16 %v2688
      %v2725 = vunpack.c.l.b16 %v2689
      %v2726 = vunpack.c.l.b16 %v2690
      %v2727 = vunpack.c.l.b16 %v2691
      %v2728 = vunpack.c.l.b16 %v2692
      %v2729 = vunpack.c.l.b16 %v2693
      %v2730 = vunpack.c.l.b16 %v2694
      %v2731 = vunpack.c.l.b16 %v2695
      %v2732 = vunpack.c.l.b16 %v2696
      %v2733 = vunpack.c.l.b16 %v2697
      %v2734 = vunpack.c.l.b16 %v2698
      %v2735 = vunpack.c.l.b16 %v2699
      %v2736 = vunpack.c.l.b16 %v2700
      %v2737 = vpack.c.b16 %v2722, %v2721
      %v2738 = vpack.c.b16 %v2724, %v2723
      %v2739 = vpack.c.b16 %v2726, %v2725
      %v2740 = vpack.c.b16 %v2728, %v2727
      %v2741 = vpack.c.b16 %v2730, %v2729
      %v2742 = vpack.c.b16 %v2732, %v2731
      %v2743 = vpack.c.b16 %v2734, %v2733
      %v2744 = vpack.c.b16 %v2736, %v2735
      %2753 = vmatpush.bf16.msra.mxu0 %v2744
      %2754 = vmatpush.bf16.msra.mxu0 %v2743
      %2755 = vmatpush.bf16.msra.mxu0 %v2742
      %2756 = vmatpush.bf16.msra.mxu0 %v2741
      %2757 = vmatpush.bf16.msra.mxu0 %v2740
      %2758 = vmatpush.bf16.msra.mxu0 %v2739
      %2759 = vmatpush.bf16.msra.mxu0 %v2738
      %2760 = vmatpush.bf16.msra.mxu0 %v2737
      %2761 = vmatmul.bf16.gmra.mxu0 %v2681
      %v2762 = vpop.f32.mrf.mxu0
      %v2763 = vadd.f32 %v2703, %v2762
      %v2764 = vpop.f32.mrf.mxu0
      %v2765 = vadd.f32 %v2703, %v2764
      %2766 = vmatmul.bf16.gmra.mxu0 %v2682
      %v2767 = vpop.f32.mrf.mxu0
      %v2768 = vadd.f32 %v2703, %v2767
      %v2769 = vpop.f32.mrf.mxu0
      %v2770 = vadd.f32 %v2703, %v2769
      %2771 = vmatmul.bf16.gmra.mxu0 %v2683
      %v2772 = vpop.f32.mrf.mxu0
      %v2773 = vadd.f32 %v2703, %v2772
      %v2774 = vpop.f32.mrf.mxu0
      %v2775 = vadd.f32 %v2703, %v2774
      %2776 = vmatmul.bf16.gmra.mxu0 %v2684
      %v2777 = vpop.f32.mrf.mxu0
      %v2778 = vadd.f32 %v2703, %v2777
      %v2779 = vpop.f32.mrf.mxu0
      %v2780 = vadd.f32 %v2703, %v2779
      %2781 = vdwg.mxu0
      %v2782 = vadd.f32 %v2336, %v2763
      %v2783 = vadd.f32 %v2337, %v2765
      %v2784 = vadd.f32 %v2338, %v2768
      %v2785 = vadd.f32 %v2339, %v2770
      %v2786 = vadd.f32 %v2340, %v2773
      %v2787 = vadd.f32 %v2341, %v2775
      %v2788 = vadd.f32 %v2342, %v2778
      %v2789 = vadd.f32 %v2343, %v2780
      %v2790 = vld [vmem:[%s37] sm:$0x1]
      %v2791 = vld [vmem:[%s39] sm:$0x1]
      %v2792 = vsel %vm1060, %v2782, 0.0
      %2793 = vadd.xlane.f32.xlu0 %v2792
      %v2794 = vpop.xlane.xlu0 %2793
      %v2795 = vsel %vm1060, %v2783, 0.0
      %2796 = vadd.xlane.f32.xlu0 %v2795
      %v2797 = vpop.xlane.xlu0 %2796
      %v2798 = vsel %vm1060, %v2784, 0.0
      %2799 = vadd.xlane.f32.xlu0 %v2798
      %v2800 = vpop.xlane.xlu0 %2799
      %v2801 = vsel %vm1060, %v2785, 0.0
      %2802 = vadd.xlane.f32.xlu0 %v2801
      %v2803 = vpop.xlane.xlu0 %2802
      %v2804 = vsel %vm1060, %v2786, 0.0
      %2805 = vadd.xlane.f32.xlu0 %v2804
      %v2806 = vpop.xlane.xlu0 %2805
      %v2807 = vsel %vm1060, %v2787, 0.0
      %2808 = vadd.xlane.f32.xlu0 %v2807
      %v2809 = vpop.xlane.xlu0 %2808
      %v2810 = vsel %vm1060, %v2788, 0.0
      %2811 = vadd.xlane.f32.xlu0 %v2810
      %v2812 = vpop.xlane.xlu0 %2811
      %v2813 = vsel %vm1060, %v2789, 0.0
      %2814 = vadd.xlane.f32.xlu0 %v2813
      %v2815 = vpop.xlane.xlu0 %2814
      %v2816 = vmul.f32 %v2794, %v1091
      %v2817 = vmul.f32 %v2797, %v1091
      %v2818 = vmul.f32 %v2800, %v1091
      %v2819 = vmul.f32 %v2803, %v1091
      %v2820 = vmul.f32 %v2806, %v1091
      %v2821 = vmul.f32 %v2809, %v1091
      %v2822 = vmul.f32 %v2812, %v1091
      %v2823 = vmul.f32 %v2815, %v1091
      %v2824 = vsub.f32 %v2782, %v2816
      %v2825 = vsub.f32 %v2783, %v2817
      %v2826 = vsub.f32 %v2784, %v2818
      %v2827 = vsub.f32 %v2785, %v2819
      %v2828 = vsub.f32 %v2786, %v2820
      %v2829 = vsub.f32 %v2787, %v2821
      %v2830 = vsub.f32 %v2788, %v2822
      %v2831 = vsub.f32 %v2789, %v2823
      %v2832 = vmul.f32 %v2824, %v2824
      %v2833 = vmul.f32 %v2825, %v2825
      %v2834 = vmul.f32 %v2826, %v2826
      %v2835 = vmul.f32 %v2827, %v2827
      %v2836 = vmul.f32 %v2828, %v2828
      %v2837 = vmul.f32 %v2829, %v2829
      %v2838 = vmul.f32 %v2830, %v2830
      %v2839 = vmul.f32 %v2831, %v2831
      %v2840 = vsel %vm1060, %v2832, 0.0
      %2841 = vadd.xlane.f32.xlu0 %v2840
      %v2842 = vpop.xlane.xlu0 %2841
      %v2843 = vsel %vm1060, %v2833, 0.0
      %2844 = vadd.xlane.f32.xlu0 %v2843
      %v2845 = vpop.xlane.xlu0 %2844
      %v2846 = vsel %vm1060, %v2834, 0.0
      %2847 = vadd.xlane.f32.xlu0 %v2846
      %v2848 = vpop.xlane.xlu0 %2847
      %v2849 = vsel %vm1060, %v2835, 0.0
      %2850 = vadd.xlane.f32.xlu0 %v2849
      %v2851 = vpop.xlane.xlu0 %2850
      %v2852 = vsel %vm1060, %v2836, 0.0
      %2853 = vadd.xlane.f32.xlu0 %v2852
      %v2854 = vpop.xlane.xlu0 %2853
      %v2855 = vsel %vm1060, %v2837, 0.0
      %2856 = vadd.xlane.f32.xlu0 %v2855
      %v2857 = vpop.xlane.xlu0 %2856
      %v2858 = vsel %vm1060, %v2838, 0.0
      %2859 = vadd.xlane.f32.xlu0 %v2858
      %v2860 = vpop.xlane.xlu0 %2859
      %v2861 = vsel %vm1060, %v2839, 0.0
      %2862 = vadd.xlane.f32.xlu0 %v2861
      %v2863 = vpop.xlane.xlu0 %2862
      %v2864 = vmul.f32 %v2842, %v1091
      %v2865 = vmul.f32 %v2845, %v1091
      %v2866 = vmul.f32 %v2848, %v1091
      %v2867 = vmul.f32 %v2851, %v1091
      %v2868 = vmul.f32 %v2854, %v1091
      %v2869 = vmul.f32 %v2857, %v1091
      %v2870 = vmul.f32 %v2860, %v1091
      %v2871 = vmul.f32 %v2863, %v1091
      %v2872 = vadd.f32 %v2864, 1e-05
      %v2873 = vadd.f32 %v2865, 1e-05
      %v2874 = vadd.f32 %v2866, 1e-05
      %v2875 = vadd.f32 %v2867, 1e-05
      %v2876 = vadd.f32 %v2868, 1e-05
      %v2877 = vadd.f32 %v2869, 1e-05
      %v2878 = vadd.f32 %v2870, 1e-05
      %v2879 = vadd.f32 %v2871, 1e-05
      %v2880 = vrsqrt.pop %v2872
      %v2881 = vmul.f32 %v2880, %v2872
      %v2882 = vmul.f32 %v2881, %v2880
      %v2883 = vmul.f32 0.5, %v2882
      %v2884 = vsub.f32 1.5, %v2883
      %v2885 = vmul.f32 %v2880, %v2884
      %vm2886 = vweird.f32 %v2872
      %vm2887 = vweird.f32 %v2880
      %vm2888 = vmor %vm2886, %vm2887
      %v2889 = vsel %vm2888, %v2880, %v2885
      %v2890 = vrsqrt.pop %v2873
      %v2891 = vmul.f32 %v2890, %v2873
      %v2892 = vmul.f32 %v2891, %v2890
      %v2893 = vmul.f32 0.5, %v2892
      %v2894 = vsub.f32 1.5, %v2893
      %v2895 = vmul.f32 %v2890, %v2894
      %vm2896 = vweird.f32 %v2873
      %vm2897 = vweird.f32 %v2890
      %vm2898 = vmor %vm2896, %vm2897
      %v2899 = vsel %vm2898, %v2890, %v2895
      %v2900 = vrsqrt.pop %v2874
      %v2901 = vmul.f32 %v2900, %v2874
      %v2902 = vmul.f32 %v2901, %v2900
      %v2903 = vmul.f32 0.5, %v2902
      %v2904 = vsub.f32 1.5, %v2903
      %v2905 = vmul.f32 %v2900, %v2904
      %vm2906 = vweird.f32 %v2874
      %vm2907 = vweird.f32 %v2900
      %vm2908 = vmor %vm2906, %vm2907
      %v2909 = vsel %vm2908, %v2900, %v2905
      %v2910 = vrsqrt.pop %v2875
      %v2911 = vmul.f32 %v2910, %v2875
      %v2912 = vmul.f32 %v2911, %v2910
      %v2913 = vmul.f32 0.5, %v2912
      %v2914 = vsub.f32 1.5, %v2913
      %v2915 = vmul.f32 %v2910, %v2914
      %vm2916 = vweird.f32 %v2875
      %vm2917 = vweird.f32 %v2910
      %vm2918 = vmor %vm2916, %vm2917
      %v2919 = vsel %vm2918, %v2910, %v2915
      %v2920 = vrsqrt.pop %v2876
      %v2921 = vmul.f32 %v2920, %v2876
      %v2922 = vmul.f32 %v2921, %v2920
      %v2923 = vmul.f32 0.5, %v2922
      %v2924 = vsub.f32 1.5, %v2923
      %v2925 = vmul.f32 %v2920, %v2924
      %vm2926 = vweird.f32 %v2876
      %vm2927 = vweird.f32 %v2920
      %vm2928 = vmor %vm2926, %vm2927
      %v2929 = vsel %vm2928, %v2920, %v2925
      %v2930 = vrsqrt.pop %v2877
      %v2931 = vmul.f32 %v2930, %v2877
      %v2932 = vmul.f32 %v2931, %v2930
      %v2933 = vmul.f32 0.5, %v2932
      %v2934 = vsub.f32 1.5, %v2933
      %v2935 = vmul.f32 %v2930, %v2934
      %vm2936 = vweird.f32 %v2877
      %vm2937 = vweird.f32 %v2930
      %vm2938 = vmor %vm2936, %vm2937
      %v2939 = vsel %vm2938, %v2930, %v2935
      %v2940 = vrsqrt.pop %v2878
      %v2941 = vmul.f32 %v2940, %v2878
      %v2942 = vmul.f32 %v2941, %v2940
      %v2943 = vmul.f32 0.5, %v2942
      %v2944 = vsub.f32 1.5, %v2943
      %v2945 = vmul.f32 %v2940, %v2944
      %vm2946 = vweird.f32 %v2878
      %vm2947 = vweird.f32 %v2940
      %vm2948 = vmor %vm2946, %vm2947
      %v2949 = vsel %vm2948, %v2940, %v2945
      %v2950 = vrsqrt.pop %v2879
      %v2951 = vmul.f32 %v2950, %v2879
      %v2952 = vmul.f32 %v2951, %v2950
      %v2953 = vmul.f32 0.5, %v2952
      %v2954 = vsub.f32 1.5, %v2953
      %v2955 = vmul.f32 %v2950, %v2954
      %vm2956 = vweird.f32 %v2879
      %vm2957 = vweird.f32 %v2950
      %vm2958 = vmor %vm2956, %vm2957
      %v2959 = vsel %vm2958, %v2950, %v2955
      %v2960 = vmul.f32 %v2824, %v2889
      %v2961 = vmul.f32 %v2825, %v2899
      %v2962 = vmul.f32 %v2826, %v2909
      %v2963 = vmul.f32 %v2827, %v2919
      %v2964 = vmul.f32 %v2828, %v2929
      %v2965 = vmul.f32 %v2829, %v2939
      %v2966 = vmul.f32 %v2830, %v2949
      %v2967 = vmul.f32 %v2831, %v2959
      %v2969 = vperm.slane %v2790, 0
      %v2971 = vmul.f32 %v2960, %v2969
      %v2972 = vmul.f32 %v2961, %v2969
      %v2973 = vmul.f32 %v2962, %v2969
      %v2974 = vmul.f32 %v2963, %v2969
      %v2975 = vmul.f32 %v2964, %v2969
      %v2976 = vmul.f32 %v2965, %v2969
      %v2977 = vmul.f32 %v2966, %v2969
      %v2978 = vmul.f32 %v2967, %v2969
      %v2980 = vperm.slane %v2791, 0
      %v2982 = vadd.f32 %v2971, %v2980
      %v2983 = vadd.f32 %v2972, %v2980
      %v2984 = vadd.f32 %v2973, %v2980
      %v2985 = vadd.f32 %v2974, %v2980
      %v2986 = vadd.f32 %v2975, %v2980
      %v2987 = vadd.f32 %v2976, %v2980
      %v2988 = vadd.f32 %v2977, %v2980
      %v2989 = vadd.f32 %v2978, %v2980
      %v2990 = vpack.c.bf16 %v2983, %v2982
      %v2991 = vpack.c.bf16 %v2985, %v2984
      %v2992 = vpack.c.bf16 %v2987, %v2986
      %v2993 = vpack.c.bf16 %v2989, %v2988
      %v2994 = vld [vmem:[%s41] sm:$0xf]
      %v2995 = vld [vmem:[%s41 + $0x4] sm:$0xf]
      %v2996 = vld [vmem:[%s41 + $0x8] sm:$0xf]
      %v2997 = vld [vmem:[%s41 + $0xc] sm:$0xf]
      %v2998 = vld [vmem:[%s43] sm:$0x1]
      %v3000 = vperm.slane %v2998, 0
      %v3006 = vunpack.c.l.b16 %v2994
      %v3007 = vunpack.c.l.b16 %v2995
      %v3008 = vunpack.c.l.b16 %v2996
      %v3009 = vunpack.c.l.b16 %v2997
      %v3010 = vpack.c.b16 %v3007, %v3006
      %v3011 = vpack.c.b16 %v3009, %v3008
      %v3015 = vsel %vm1060, %v2990, 0
      %v3018 = vsel %vm1060, %v2991, 0
      %v3021 = vsel %vm1060, %v2992, 0
      %v3024 = vsel %vm1060, %v2993, 0
      %3026 = vmatpush.bf16.msra.mxu0 0
      %3027 = vmatpush.bf16.msra.mxu0 0
      %3028 = vmatpush.bf16.msra.mxu0 0
      %3029 = vmatpush.bf16.msra.mxu0 0
      %3030 = vmatpush.bf16.msra.mxu0 0
      %3031 = vmatpush.bf16.msra.mxu0 0
      %3032 = vmatpush.bf16.msra.mxu0 %v3011
      %3033 = vmatpush.bf16.msra.mxu0 %v3010
      %3034 = vmatmul.bf16.gmra.mxu0 %v3015
      %v3035 = vpop.f32.mrf.mxu0
      %v3036 = vadd.f32 %v3000, %v3035
      %v3037 = vpop.f32.mrf.mxu0
      %v3038 = vadd.f32 %v3000, %v3037
      %3039 = vmatmul.bf16.gmra.mxu0 %v3018
      %v3040 = vpop.f32.mrf.mxu0
      %v3041 = vadd.f32 %v3000, %v3040
      %v3042 = vpop.f32.mrf.mxu0
      %v3043 = vadd.f32 %v3000, %v3042
      %3044 = vmatmul.bf16.gmra.mxu0 %v3021
      %v3045 = vpop.f32.mrf.mxu0
      %v3046 = vadd.f32 %v3000, %v3045
      %v3047 = vpop.f32.mrf.mxu0
      %v3048 = vadd.f32 %v3000, %v3047
      %3049 = vmatmul.bf16.gmra.mxu0 %v3024
      %v3050 = vpop.f32.mrf.mxu0
      %v3051 = vadd.f32 %v3000, %v3050
      %v3052 = vpop.f32.mrf.mxu0
      %v3053 = vadd.f32 %v3000, %v3052
      %3054 = vdwg.mxu0
      %v3055 = vld [vmem:[%s47] sm:$0xf]
      %v3056 = vld [vmem:[%s47 + $0x4] sm:$0xf]
      %v3057 = vld [vmem:[%s47 + $0x8] sm:$0xf]
      %v3058 = vld [vmem:[%s47 + $0xc] sm:$0xf]
      %v3059 = vpack.c.bf16 %v3038, %v3036
      %v3060 = vpack.c.bf16 %v3043, %v3041
      %v3061 = vpack.c.bf16 %v3048, %v3046
      %v3062 = vpack.c.bf16 %v3053, %v3051
      %3067 = vrot.lane.b32.xlu0 %v3059, 96
      %v3068 = vpop.permute.xlu0 %3067
      %3069 = vrot.lane.b32.xlu0 %v3060, 96
      %v3070 = vpop.permute.xlu0 %3069
      %3071 = vrot.lane.b32.xlu0 %v3061, 96
      %v3072 = vpop.permute.xlu0 %3071
      %3073 = vrot.lane.b32.xlu0 %v3062, 96
      %v3074 = vpop.permute.xlu0 %3073
      %v3076 = vsel %vm1551, %v3059, 0
      %v3079 = vsel %vm1551, %v3060, 0
      %v3082 = vsel %vm1551, %v3061, 0
      %v3085 = vsel %vm1551, %v3062, 0
      %v3088 = vsel %vm1551, %v3068, 0
      %v3091 = vsel %vm1551, %v3070, 0
      %v3094 = vsel %vm1551, %v3072, 0
      %v3097 = vsel %vm1551, %v3074, 0
      %3099 = vmatpush.bf16.xpose.msra.mxu0 0
      %3100 = vmatpush.bf16.xpose.msra.mxu0 0
      %3101 = vmatpush.bf16.xpose.msra.mxu0 0
      %3102 = vmatpush.bf16.xpose.msra.mxu0 0
      %3103 = vmatpush.bf16.xpose.msra.mxu0 %v3097
      %3104 = vmatpush.bf16.xpose.msra.mxu0 %v3094
      %3105 = vmatpush.bf16.xpose.msra.mxu0 %v3091
      %3106 = vmatpush.bf16.xpose.msra.mxu0 %v3088
      %3107 = vmatmul.bf16.gmra.mxu0 %v3076
      %v3108 = vpop.f32.mrf.mxu0
      %v3109 = vadd.f32 0.0, %v3108
      %v3110 = vpop.f32.mrf.mxu0
      %v3111 = vadd.f32 0.0, %v3110
      %3112 = vmatmul.bf16.gmra.mxu0 %v3079
      %v3113 = vpop.f32.mrf.mxu0
      %v3114 = vadd.f32 0.0, %v3113
      %v3115 = vpop.f32.mrf.mxu0
      %v3116 = vadd.f32 0.0, %v3115
      %3117 = vmatmul.bf16.gmra.mxu0 %v3082
      %v3118 = vpop.f32.mrf.mxu0
      %v3119 = vadd.f32 0.0, %v3118
      %v3120 = vpop.f32.mrf.mxu0
      %v3121 = vadd.f32 0.0, %v3120
      %3122 = vmatmul.bf16.gmra.mxu0 %v3085
      %v3123 = vpop.f32.mrf.mxu0
      %v3124 = vadd.f32 0.0, %v3123
      %v3125 = vpop.f32.mrf.mxu0
      %v3126 = vadd.f32 0.0, %v3125
      %3127 = vdwg.mxu0
      %v3128 = vmul.f32 %v3109, 0.25
      %v3129 = vmul.f32 %v3111, 0.25
      %v3130 = vmul.f32 %v3114, 0.25
      %v3131 = vmul.f32 %v3116, 0.25
      %v3132 = vmul.f32 %v3119, 0.25
      %v3133 = vmul.f32 %v3121, 0.25
      %v3134 = vmul.f32 %v3124, 0.25
      %v3135 = vmul.f32 %v3126, 0.25
      %v3136 = vld [vmem:[%s45] sm:$0xff]
      %v3137 = vld [vmem:[%s45 + $0x8] sm:$0xff]
      %v3138 = vld [vmem:[%s45 + $0x10] sm:$0xff]
      %v3139 = vld [vmem:[%s45 + $0x18] sm:$0xff]
      %v3140 = vld [vmem:[%s45 + $0x20] sm:$0xff]
      %v3141 = vld [vmem:[%s45 + $0x28] sm:$0xff]
      %v3142 = vld [vmem:[%s45 + $0x30] sm:$0xff]
      %v3143 = vld [vmem:[%s45 + $0x38] sm:$0xff]
      %v3144 = vadd.f32 %v3128, %v3136
      %v3145 = vadd.f32 %v3129, %v3137
      %v3146 = vadd.f32 %v3130, %v3138
      %v3147 = vadd.f32 %v3131, %v3139
      %v3148 = vadd.f32 %v3132, %v3140
      %v3149 = vadd.f32 %v3133, %v3141
      %v3150 = vadd.f32 %v3134, %v3142
      %v3151 = vadd.f32 %v3135, %v3143
      %v3152 = vsel %vm1629, %v3144, -inf
      %3153 = vmax.xlane.f32.xlu0 %v3152
      %v3154 = vpop.xlane.xlu0 %3153
      %v3155 = vsel %vm1629, %v3145, -inf
      %3156 = vmax.xlane.f32.xlu0 %v3155
      %v3157 = vpop.xlane.xlu0 %3156
      %v3158 = vsel %vm1629, %v3146, -inf
      %3159 = vmax.xlane.f32.xlu0 %v3158
      %v3160 = vpop.xlane.xlu0 %3159
      %v3161 = vsel %vm1629, %v3147, -inf
      %3162 = vmax.xlane.f32.xlu0 %v3161
      %v3163 = vpop.xlane.xlu0 %3162
      %v3164 = vsel %vm1629, %v3148, -inf
      %3165 = vmax.xlane.f32.xlu0 %v3164
      %v3166 = vpop.xlane.xlu0 %3165
      %v3167 = vsel %vm1629, %v3149, -inf
      %3168 = vmax.xlane.f32.xlu0 %v3167
      %v3169 = vpop.xlane.xlu0 %3168
      %v3170 = vsel %vm1629, %v3150, -inf
      %3171 = vmax.xlane.f32.xlu0 %v3170
      %v3172 = vpop.xlane.xlu0 %3171
      %v3173 = vsel %vm1629, %v3151, -inf
      %3174 = vmax.xlane.f32.xlu0 %v3173
      %v3175 = vpop.xlane.xlu0 %3174
      %v3176 = vsub.f32 %v3144, %v3154
      %v3177 = vsub.f32 %v3145, %v3157
      %v3178 = vsub.f32 %v3146, %v3160
      %v3179 = vsub.f32 %v3147, %v3163
      %v3180 = vsub.f32 %v3148, %v3166
      %v3181 = vsub.f32 %v3149, %v3169
      %v3182 = vsub.f32 %v3150, %v3172
      %v3183 = vsub.f32 %v3151, %v3175
      %v3184 = vmul.f32 %v3176, 1.442695
      %v3185 = vpow.pop %v3184
      %v3186 = vmul.f32 %v3177, 1.442695
      %v3187 = vpow.pop %v3186
      %v3188 = vmul.f32 %v3178, 1.442695
      %v3189 = vpow.pop %v3188
      %v3190 = vmul.f32 %v3179, 1.442695
      %v3191 = vpow.pop %v3190
      %v3192 = vmul.f32 %v3180, 1.442695
      %v3193 = vpow.pop %v3192
      %v3194 = vmul.f32 %v3181, 1.442695
      %v3195 = vpow.pop %v3194
      %v3196 = vmul.f32 %v3182, 1.442695
      %v3197 = vpow.pop %v3196
      %v3198 = vmul.f32 %v3183, 1.442695
      %v3199 = vpow.pop %v3198
      %v3200 = vsel %vm1629, %v3185, 0.0
      %3201 = vadd.xlane.f32.xlu0 %v3200
      %v3202 = vpop.xlane.xlu0 %3201
      %v3203 = vsel %vm1629, %v3187, 0.0
      %3204 = vadd.xlane.f32.xlu0 %v3203
      %v3205 = vpop.xlane.xlu0 %3204
      %v3206 = vsel %vm1629, %v3189, 0.0
      %3207 = vadd.xlane.f32.xlu0 %v3206
      %v3208 = vpop.xlane.xlu0 %3207
      %v3209 = vsel %vm1629, %v3191, 0.0
      %3210 = vadd.xlane.f32.xlu0 %v3209
      %v3211 = vpop.xlane.xlu0 %3210
      %v3212 = vsel %vm1629, %v3193, 0.0
      %3213 = vadd.xlane.f32.xlu0 %v3212
      %v3214 = vpop.xlane.xlu0 %3213
      %v3215 = vsel %vm1629, %v3195, 0.0
      %3216 = vadd.xlane.f32.xlu0 %v3215
      %v3217 = vpop.xlane.xlu0 %3216
      %v3218 = vsel %vm1629, %v3197, 0.0
      %3219 = vadd.xlane.f32.xlu0 %v3218
      %v3220 = vpop.xlane.xlu0 %3219
      %v3221 = vsel %vm1629, %v3199, 0.0
      %3222 = vadd.xlane.f32.xlu0 %v3221
      %v3223 = vpop.xlane.xlu0 %3222
      %v3224 = vrcp.pop %v3202
      %v3225 = vmul.f32 %v3202, %v3224
      %v3226 = vsub.f32 1.0, %v3225
      %v3227 = vmul.f32 %v3224, %v3226
      %v3228 = vadd.f32 %v3224, %v3227
      %vm3229 = vweird.f32 %v3202
      %vm3230 = vweird.f32 %v3224
      %vm3231 = vmor %vm3229, %vm3230
      %v3232 = vsel %vm3231, %v3224, %v3228
      %v3233 = vand.u32 2147483647, %v3202
      %vm3234 = vcmp.eq.f32.partialorder %v3233, 8.507059e+37
      %v3235 = vand.u32 %v3202, 2147483648
      %v3236 = vor.u32 1.1754944e-38, %v3235
      %v3237 = vsel %vm3234, %v3236, %v3232
      %v3238 = vmul.f32 %v3185, %v3237
      %v3239 = vrcp.pop %v3205
      %v3240 = vmul.f32 %v3205, %v3239
      %v3241 = vsub.f32 1.0, %v3240
      %v3242 = vmul.f32 %v3239, %v3241
      %v3243 = vadd.f32 %v3239, %v3242
      %vm3244 = vweird.f32 %v3205
      %vm3245 = vweird.f32 %v3239
      %vm3246 = vmor %vm3244, %vm3245
      %v3247 = vsel %vm3246, %v3239, %v3243
      %v3248 = vand.u32 2147483647, %v3205
      %vm3249 = vcmp.eq.f32.partialorder %v3248, 8.507059e+37
      %v3250 = vand.u32 %v3205, 2147483648
      %v3251 = vor.u32 1.1754944e-38, %v3250
      %v3252 = vsel %vm3249, %v3251, %v3247
      %v3253 = vmul.f32 %v3187, %v3252
      %v3254 = vrcp.pop %v3208
      %v3255 = vmul.f32 %v3208, %v3254
      %v3256 = vsub.f32 1.0, %v3255
      %v3257 = vmul.f32 %v3254, %v3256
      %v3258 = vadd.f32 %v3254, %v3257
      %vm3259 = vweird.f32 %v3208
      %vm3260 = vweird.f32 %v3254
      %vm3261 = vmor %vm3259, %vm3260
      %v3262 = vsel %vm3261, %v3254, %v3258
      %v3263 = vand.u32 2147483647, %v3208
      %vm3264 = vcmp.eq.f32.partialorder %v3263, 8.507059e+37
      %v3265 = vand.u32 %v3208, 2147483648
      %v3266 = vor.u32 1.1754944e-38, %v3265
      %v3267 = vsel %vm3264, %v3266, %v3262
      %v3268 = vmul.f32 %v3189, %v3267
      %v3269 = vrcp.pop %v3211
      %v3270 = vmul.f32 %v3211, %v3269
      %v3271 = vsub.f32 1.0, %v3270
      %v3272 = vmul.f32 %v3269, %v3271
      %v3273 = vadd.f32 %v3269, %v3272
      %vm3274 = vweird.f32 %v3211
      %vm3275 = vweird.f32 %v3269
      %vm3276 = vmor %vm3274, %vm3275
      %v3277 = vsel %vm3276, %v3269, %v3273
      %v3278 = vand.u32 2147483647, %v3211
      %vm3279 = vcmp.eq.f32.partialorder %v3278, 8.507059e+37
      %v3280 = vand.u32 %v3211, 2147483648
      %v3281 = vor.u32 1.1754944e-38, %v3280
      %v3282 = vsel %vm3279, %v3281, %v3277
      %v3283 = vmul.f32 %v3191, %v3282
      %v3284 = vrcp.pop %v3214
      %v3285 = vmul.f32 %v3214, %v3284
      %v3286 = vsub.f32 1.0, %v3285
      %v3287 = vmul.f32 %v3284, %v3286
      %v3288 = vadd.f32 %v3284, %v3287
      %vm3289 = vweird.f32 %v3214
      %vm3290 = vweird.f32 %v3284
      %vm3291 = vmor %vm3289, %vm3290
      %v3292 = vsel %vm3291, %v3284, %v3288
      %v3293 = vand.u32 2147483647, %v3214
      %vm3294 = vcmp.eq.f32.partialorder %v3293, 8.507059e+37
      %v3295 = vand.u32 %v3214, 2147483648
      %v3296 = vor.u32 1.1754944e-38, %v3295
      %v3297 = vsel %vm3294, %v3296, %v3292
      %v3298 = vmul.f32 %v3193, %v3297
      %v3299 = vrcp.pop %v3217
      %v3300 = vmul.f32 %v3217, %v3299
      %v3301 = vsub.f32 1.0, %v3300
      %v3302 = vmul.f32 %v3299, %v3301
      %v3303 = vadd.f32 %v3299, %v3302
      %vm3304 = vweird.f32 %v3217
      %vm3305 = vweird.f32 %v3299
      %vm3306 = vmor %vm3304, %vm3305
      %v3307 = vsel %vm3306, %v3299, %v3303
      %v3308 = vand.u32 2147483647, %v3217
      %vm3309 = vcmp.eq.f32.partialorder %v3308, 8.507059e+37
      %v3310 = vand.u32 %v3217, 2147483648
      %v3311 = vor.u32 1.1754944e-38, %v3310
      %v3312 = vsel %vm3309, %v3311, %v3307
      %v3313 = vmul.f32 %v3195, %v3312
      %v3314 = vrcp.pop %v3220
      %v3315 = vmul.f32 %v3220, %v3314
      %v3316 = vsub.f32 1.0, %v3315
      %v3317 = vmul.f32 %v3314, %v3316
      %v3318 = vadd.f32 %v3314, %v3317
      %vm3319 = vweird.f32 %v3220
      %vm3320 = vweird.f32 %v3314
      %vm3321 = vmor %vm3319, %vm3320
      %v3322 = vsel %vm3321, %v3314, %v3318
      %v3323 = vand.u32 2147483647, %v3220
      %vm3324 = vcmp.eq.f32.partialorder %v3323, 8.507059e+37
      %v3325 = vand.u32 %v3220, 2147483648
      %v3326 = vor.u32 1.1754944e-38, %v3325
      %v3327 = vsel %vm3324, %v3326, %v3322
      %v3328 = vmul.f32 %v3197, %v3327
      %v3329 = vrcp.pop %v3223
      %v3330 = vmul.f32 %v3223, %v3329
      %v3331 = vsub.f32 1.0, %v3330
      %v3332 = vmul.f32 %v3329, %v3331
      %v3333 = vadd.f32 %v3329, %v3332
      %vm3334 = vweird.f32 %v3223
      %vm3335 = vweird.f32 %v3329
      %vm3336 = vmor %vm3334, %vm3335
      %v3337 = vsel %vm3336, %v3329, %v3333
      %v3338 = vand.u32 2147483647, %v3223
      %vm3339 = vcmp.eq.f32.partialorder %v3338, 8.507059e+37
      %v3340 = vand.u32 %v3223, 2147483648
      %v3341 = vor.u32 1.1754944e-38, %v3340
      %v3342 = vsel %vm3339, %v3341, %v3337
      %v3343 = vmul.f32 %v3199, %v3342
      %v3344 = vpack.c.bf16 %v3253, %v3238
      %v3345 = vpack.c.bf16 %v3283, %v3268
      %v3346 = vpack.c.bf16 %v3313, %v3298
      %v3347 = vpack.c.bf16 %v3343, %v3328
      %3348 = vrot.lane.b32.xlu0 %v3059, 64
      %v3349 = vpop.permute.xlu0 %3348
      %3350 = vrot.lane.b32.xlu0 %v3060, 64
      %v3351 = vpop.permute.xlu0 %3350
      %3352 = vrot.lane.b32.xlu0 %v3061, 64
      %v3353 = vpop.permute.xlu0 %3352
      %3354 = vrot.lane.b32.xlu0 %v3062, 64
      %v3355 = vpop.permute.xlu0 %3354
      %v3361 = vsel %vm1629, %v3344, 0
      %v3364 = vsel %vm1629, %v3345, 0
      %v3367 = vsel %vm1629, %v3346, 0
      %v3370 = vsel %vm1629, %v3347, 0
      %3372 = vmatpush.bf16.msra.mxu0 0
      %3373 = vmatpush.bf16.msra.mxu0 0
      %3374 = vmatpush.bf16.msra.mxu0 0
      %3375 = vmatpush.bf16.msra.mxu0 0
      %3376 = vmatpush.bf16.msra.mxu0 %v3355
      %3377 = vmatpush.bf16.msra.mxu0 %v3353
      %3378 = vmatpush.bf16.msra.mxu0 %v3351
      %3379 = vmatpush.bf16.msra.mxu0 %v3349
      %3380 = vmatmul.bf16.gmra.mxu0 %v3361
      %v3381 = vpop.f32.mrf.mxu0
      %v3382 = vadd.f32 0.0, %v3381
      %v3383 = vpop.f32.mrf.mxu0
      %v3384 = vadd.f32 0.0, %v3383
      %3385 = vmatmul.bf16.gmra.mxu0 %v3364
      %v3386 = vpop.f32.mrf.mxu0
      %v3387 = vadd.f32 0.0, %v3386
      %v3388 = vpop.f32.mrf.mxu0
      %v3389 = vadd.f32 0.0, %v3388
      %3390 = vmatmul.bf16.gmra.mxu0 %v3367
      %v3391 = vpop.f32.mrf.mxu0
      %v3392 = vadd.f32 0.0, %v3391
      %v3393 = vpop.f32.mrf.mxu0
      %v3394 = vadd.f32 0.0, %v3393
      %3395 = vmatmul.bf16.gmra.mxu0 %v3370
      %v3396 = vpop.f32.mrf.mxu0
      %v3397 = vadd.f32 0.0, %v3396
      %v3398 = vpop.f32.mrf.mxu0
      %v3399 = vadd.f32 0.0, %v3398
      %3400 = vdwg.mxu0
      %v3401 = vpack.c.bf16 %v3384, %v3382
      %v3402 = vpack.c.bf16 %v3389, %v3387
      %v3403 = vpack.c.bf16 %v3394, %v3392
      %v3404 = vpack.c.bf16 %v3399, %v3397
      %3405 = vrot.lane.b32.xlu0 %v3059, 112
      %v3406 = vpop.permute.xlu0 %3405
      %3407 = vrot.lane.b32.xlu0 %v3060, 112
      %v3408 = vpop.permute.xlu0 %3407
      %3409 = vrot.lane.b32.xlu0 %v3061, 112
      %v3410 = vpop.permute.xlu0 %3409
      %3411 = vrot.lane.b32.xlu0 %v3062, 112
      %v3412 = vpop.permute.xlu0 %3411
      %3413 = vrot.lane.b32.xlu0 %v3059, 80
      %v3414 = vpop.permute.xlu0 %3413
      %3415 = vrot.lane.b32.xlu0 %v3060, 80
      %v3416 = vpop.permute.xlu0 %3415
      %3417 = vrot.lane.b32.xlu0 %v3061, 80
      %v3418 = vpop.permute.xlu0 %3417
      %3419 = vrot.lane.b32.xlu0 %v3062, 80
      %v3420 = vpop.permute.xlu0 %3419
      %v3422 = vsel %vm1551, %v3406, 0
      %v3425 = vsel %vm1551, %v3408, 0
      %v3428 = vsel %vm1551, %v3410, 0
      %v3431 = vsel %vm1551, %v3412, 0
      %v3434 = vsel %vm1551, %v3414, 0
      %v3437 = vsel %vm1551, %v3416, 0
      %v3440 = vsel %vm1551, %v3418, 0
      %v3443 = vsel %vm1551, %v3420, 0
      %3445 = vmatpush.bf16.xpose.msra.mxu0 0
      %3446 = vmatpush.bf16.xpose.msra.mxu0 0
      %3447 = vmatpush.bf16.xpose.msra.mxu0 0
      %3448 = vmatpush.bf16.xpose.msra.mxu0 0
      %3449 = vmatpush.bf16.xpose.msra.mxu0 %v3443
      %3450 = vmatpush.bf16.xpose.msra.mxu0 %v3440
      %3451 = vmatpush.bf16.xpose.msra.mxu0 %v3437
      %3452 = vmatpush.bf16.xpose.msra.mxu0 %v3434
      %3453 = vmatmul.bf16.gmra.mxu0 %v3422
      %v3454 = vpop.f32.mrf.mxu0
      %v3455 = vadd.f32 0.0, %v3454
      %v3456 = vpop.f32.mrf.mxu0
      %v3457 = vadd.f32 0.0, %v3456
      %3458 = vmatmul.bf16.gmra.mxu0 %v3425
      %v3459 = vpop.f32.mrf.mxu0
      %v3460 = vadd.f32 0.0, %v3459
      %v3461 = vpop.f32.mrf.mxu0
      %v3462 = vadd.f32 0.0, %v3461
      %3463 = vmatmul.bf16.gmra.mxu0 %v3428
      %v3464 = vpop.f32.mrf.mxu0
      %v3465 = vadd.f32 0.0, %v3464
      %v3466 = vpop.f32.mrf.mxu0
      %v3467 = vadd.f32 0.0, %v3466
      %3468 = vmatmul.bf16.gmra.mxu0 %v3431
      %v3469 = vpop.f32.mrf.mxu0
      %v3470 = vadd.f32 0.0, %v3469
      %v3471 = vpop.f32.mrf.mxu0
      %v3472 = vadd.f32 0.0, %v3471
      %3473 = vdwg.mxu0
      %v3474 = vmul.f32 %v3455, 0.25
      %v3475 = vmul.f32 %v3457, 0.25
      %v3476 = vmul.f32 %v3460, 0.25
      %v3477 = vmul.f32 %v3462, 0.25
      %v3478 = vmul.f32 %v3465, 0.25
      %v3479 = vmul.f32 %v3467, 0.25
      %v3480 = vmul.f32 %v3470, 0.25
      %v3481 = vmul.f32 %v3472, 0.25
      %s3482 = scalar_lea.vmem %s45, 64
      %v3483 = vld [vmem:[%s3482] sm:$0xff]
      %v3484 = vld [vmem:[%s3482 + $0x8] sm:$0xff]
      %v3485 = vld [vmem:[%s3482 + $0x10] sm:$0xff]
      %v3486 = vld [vmem:[%s3482 + $0x18] sm:$0xff]
      %v3487 = vld [vmem:[%s3482 + $0x20] sm:$0xff]
      %v3488 = vld [vmem:[%s3482 + $0x28] sm:$0xff]
      %v3489 = vld [vmem:[%s3482 + $0x30] sm:$0xff]
      %v3490 = vld [vmem:[%s3482 + $0x38] sm:$0xff]
      %v3491 = vadd.f32 %v3474, %v3483
      %v3492 = vadd.f32 %v3475, %v3484
      %v3493 = vadd.f32 %v3476, %v3485
      %v3494 = vadd.f32 %v3477, %v3486
      %v3495 = vadd.f32 %v3478, %v3487
      %v3496 = vadd.f32 %v3479, %v3488
      %v3497 = vadd.f32 %v3480, %v3489
      %v3498 = vadd.f32 %v3481, %v3490
      %v3499 = vsel %vm1629, %v3491, -inf
      %3500 = vmax.xlane.f32.xlu0 %v3499
      %v3501 = vpop.xlane.xlu0 %3500
      %v3502 = vsel %vm1629, %v3492, -inf
      %3503 = vmax.xlane.f32.xlu0 %v3502
      %v3504 = vpop.xlane.xlu0 %3503
      %v3505 = vsel %vm1629, %v3493, -inf
      %3506 = vmax.xlane.f32.xlu0 %v3505
      %v3507 = vpop.xlane.xlu0 %3506
      %v3508 = vsel %vm1629, %v3494, -inf
      %3509 = vmax.xlane.f32.xlu0 %v3508
      %v3510 = vpop.xlane.xlu0 %3509
      %v3511 = vsel %vm1629, %v3495, -inf
      %3512 = vmax.xlane.f32.xlu0 %v3511
      %v3513 = vpop.xlane.xlu0 %3512
      %v3514 = vsel %vm1629, %v3496, -inf
      %3515 = vmax.xlane.f32.xlu0 %v3514
      %v3516 = vpop.xlane.xlu0 %3515
      %v3517 = vsel %vm1629, %v3497, -inf
      %3518 = vmax.xlane.f32.xlu0 %v3517
      %v3519 = vpop.xlane.xlu0 %3518
      %v3520 = vsel %vm1629, %v3498, -inf
      %3521 = vmax.xlane.f32.xlu0 %v3520
      %v3522 = vpop.xlane.xlu0 %3521
      %v3523 = vsub.f32 %v3491, %v3501
      %v3524 = vsub.f32 %v3492, %v3504
      %v3525 = vsub.f32 %v3493, %v3507
      %v3526 = vsub.f32 %v3494, %v3510
      %v3527 = vsub.f32 %v3495, %v3513
      %v3528 = vsub.f32 %v3496, %v3516
      %v3529 = vsub.f32 %v3497, %v3519
      %v3530 = vsub.f32 %v3498, %v3522
      %v3531 = vmul.f32 %v3523, 1.442695
      %v3532 = vpow.pop %v3531
      %v3533 = vmul.f32 %v3524, 1.442695
      %v3534 = vpow.pop %v3533
      %v3535 = vmul.f32 %v3525, 1.442695
      %v3536 = vpow.pop %v3535
      %v3537 = vmul.f32 %v3526, 1.442695
      %v3538 = vpow.pop %v3537
      %v3539 = vmul.f32 %v3527, 1.442695
      %v3540 = vpow.pop %v3539
      %v3541 = vmul.f32 %v3528, 1.442695
      %v3542 = vpow.pop %v3541
      %v3543 = vmul.f32 %v3529, 1.442695
      %v3544 = vpow.pop %v3543
      %v3545 = vmul.f32 %v3530, 1.442695
      %v3546 = vpow.pop %v3545
      %v3547 = vsel %vm1629, %v3532, 0.0
      %3548 = vadd.xlane.f32.xlu0 %v3547
      %v3549 = vpop.xlane.xlu0 %3548
      %v3550 = vsel %vm1629, %v3534, 0.0
      %3551 = vadd.xlane.f32.xlu0 %v3550
      %v3552 = vpop.xlane.xlu0 %3551
      %v3553 = vsel %vm1629, %v3536, 0.0
      %3554 = vadd.xlane.f32.xlu0 %v3553
      %v3555 = vpop.xlane.xlu0 %3554
      %v3556 = vsel %vm1629, %v3538, 0.0
      %3557 = vadd.xlane.f32.xlu0 %v3556
      %v3558 = vpop.xlane.xlu0 %3557
      %v3559 = vsel %vm1629, %v3540, 0.0
      %3560 = vadd.xlane.f32.xlu0 %v3559
      %v3561 = vpop.xlane.xlu0 %3560
      %v3562 = vsel %vm1629, %v3542, 0.0
      %3563 = vadd.xlane.f32.xlu0 %v3562
      %v3564 = vpop.xlane.xlu0 %3563
      %v3565 = vsel %vm1629, %v3544, 0.0
      %3566 = vadd.xlane.f32.xlu0 %v3565
      %v3567 = vpop.xlane.xlu0 %3566
      %v3568 = vsel %vm1629, %v3546, 0.0
      %3569 = vadd.xlane.f32.xlu0 %v3568
      %v3570 = vpop.xlane.xlu0 %3569
      %v3571 = vrcp.pop %v3549
      %v3572 = vmul.f32 %v3549, %v3571
      %v3573 = vsub.f32 1.0, %v3572
      %v3574 = vmul.f32 %v3571, %v3573
      %v3575 = vadd.f32 %v3571, %v3574
      %vm3576 = vweird.f32 %v3549
      %vm3577 = vweird.f32 %v3571
      %vm3578 = vmor %vm3576, %vm3577
      %v3579 = vsel %vm3578, %v3571, %v3575
      %v3580 = vand.u32 2147483647, %v3549
      %vm3581 = vcmp.eq.f32.partialorder %v3580, 8.507059e+37
      %v3582 = vand.u32 %v3549, 2147483648
      %v3583 = vor.u32 1.1754944e-38, %v3582
      %v3584 = vsel %vm3581, %v3583, %v3579
      %v3585 = vmul.f32 %v3532, %v3584
      %v3586 = vrcp.pop %v3552
      %v3587 = vmul.f32 %v3552, %v3586
      %v3588 = vsub.f32 1.0, %v3587
      %v3589 = vmul.f32 %v3586, %v3588
      %v3590 = vadd.f32 %v3586, %v3589
      %vm3591 = vweird.f32 %v3552
      %vm3592 = vweird.f32 %v3586
      %vm3593 = vmor %vm3591, %vm3592
      %v3594 = vsel %vm3593, %v3586, %v3590
      %v3595 = vand.u32 2147483647, %v3552
      %vm3596 = vcmp.eq.f32.partialorder %v3595, 8.507059e+37
      %v3597 = vand.u32 %v3552, 2147483648
      %v3598 = vor.u32 1.1754944e-38, %v3597
      %v3599 = vsel %vm3596, %v3598, %v3594
      %v3600 = vmul.f32 %v3534, %v3599
      %v3601 = vrcp.pop %v3555
      %v3602 = vmul.f32 %v3555, %v3601
      %v3603 = vsub.f32 1.0, %v3602
      %v3604 = vmul.f32 %v3601, %v3603
      %v3605 = vadd.f32 %v3601, %v3604
      %vm3606 = vweird.f32 %v3555
      %vm3607 = vweird.f32 %v3601
      %vm3608 = vmor %vm3606, %vm3607
      %v3609 = vsel %vm3608, %v3601, %v3605
      %v3610 = vand.u32 2147483647, %v3555
      %vm3611 = vcmp.eq.f32.partialorder %v3610, 8.507059e+37
      %v3612 = vand.u32 %v3555, 2147483648
      %v3613 = vor.u32 1.1754944e-38, %v3612
      %v3614 = vsel %vm3611, %v3613, %v3609
      %v3615 = vmul.f32 %v3536, %v3614
      %v3616 = vrcp.pop %v3558
      %v3617 = vmul.f32 %v3558, %v3616
      %v3618 = vsub.f32 1.0, %v3617
      %v3619 = vmul.f32 %v3616, %v3618
      %v3620 = vadd.f32 %v3616, %v3619
      %vm3621 = vweird.f32 %v3558
      %vm3622 = vweird.f32 %v3616
      %vm3623 = vmor %vm3621, %vm3622
      %v3624 = vsel %vm3623, %v3616, %v3620
      %v3625 = vand.u32 2147483647, %v3558
      %vm3626 = vcmp.eq.f32.partialorder %v3625, 8.507059e+37
      %v3627 = vand.u32 %v3558, 2147483648
      %v3628 = vor.u32 1.1754944e-38, %v3627
      %v3629 = vsel %vm3626, %v3628, %v3624
      %v3630 = vmul.f32 %v3538, %v3629
      %v3631 = vrcp.pop %v3561
      %v3632 = vmul.f32 %v3561, %v3631
      %v3633 = vsub.f32 1.0, %v3632
      %v3634 = vmul.f32 %v3631, %v3633
      %v3635 = vadd.f32 %v3631, %v3634
      %vm3636 = vweird.f32 %v3561
      %vm3637 = vweird.f32 %v3631
      %vm3638 = vmor %vm3636, %vm3637
      %v3639 = vsel %vm3638, %v3631, %v3635
      %v3640 = vand.u32 2147483647, %v3561
      %vm3641 = vcmp.eq.f32.partialorder %v3640, 8.507059e+37
      %v3642 = vand.u32 %v3561, 2147483648
      %v3643 = vor.u32 1.1754944e-38, %v3642
      %v3644 = vsel %vm3641, %v3643, %v3639
      %v3645 = vmul.f32 %v3540, %v3644
      %v3646 = vrcp.pop %v3564
      %v3647 = vmul.f32 %v3564, %v3646
      %v3648 = vsub.f32 1.0, %v3647
      %v3649 = vmul.f32 %v3646, %v3648
      %v3650 = vadd.f32 %v3646, %v3649
      %vm3651 = vweird.f32 %v3564
      %vm3652 = vweird.f32 %v3646
      %vm3653 = vmor %vm3651, %vm3652
      %v3654 = vsel %vm3653, %v3646, %v3650
      %v3655 = vand.u32 2147483647, %v3564
      %vm3656 = vcmp.eq.f32.partialorder %v3655, 8.507059e+37
      %v3657 = vand.u32 %v3564, 2147483648
      %v3658 = vor.u32 1.1754944e-38, %v3657
      %v3659 = vsel %vm3656, %v3658, %v3654
      %v3660 = vmul.f32 %v3542, %v3659
      %v3661 = vrcp.pop %v3567
      %v3662 = vmul.f32 %v3567, %v3661
      %v3663 = vsub.f32 1.0, %v3662
      %v3664 = vmul.f32 %v3661, %v3663
      %v3665 = vadd.f32 %v3661, %v3664
      %vm3666 = vweird.f32 %v3567
      %vm3667 = vweird.f32 %v3661
      %vm3668 = vmor %vm3666, %vm3667
      %v3669 = vsel %vm3668, %v3661, %v3665
      %v3670 = vand.u32 2147483647, %v3567
      %vm3671 = vcmp.eq.f32.partialorder %v3670, 8.507059e+37
      %v3672 = vand.u32 %v3567, 2147483648
      %v3673 = vor.u32 1.1754944e-38, %v3672
      %v3674 = vsel %vm3671, %v3673, %v3669
      %v3675 = vmul.f32 %v3544, %v3674
      %v3676 = vrcp.pop %v3570
      %v3677 = vmul.f32 %v3570, %v3676
      %v3678 = vsub.f32 1.0, %v3677
      %v3679 = vmul.f32 %v3676, %v3678
      %v3680 = vadd.f32 %v3676, %v3679
      %vm3681 = vweird.f32 %v3570
      %vm3682 = vweird.f32 %v3676
      %vm3683 = vmor %vm3681, %vm3682
      %v3684 = vsel %vm3683, %v3676, %v3680
      %v3685 = vand.u32 2147483647, %v3570
      %vm3686 = vcmp.eq.f32.partialorder %v3685, 8.507059e+37
      %v3687 = vand.u32 %v3570, 2147483648
      %v3688 = vor.u32 1.1754944e-38, %v3687
      %v3689 = vsel %vm3686, %v3688, %v3684
      %v3690 = vmul.f32 %v3546, %v3689
      %v3691 = vpack.c.bf16 %v3600, %v3585
      %v3692 = vpack.c.bf16 %v3630, %v3615
      %v3693 = vpack.c.bf16 %v3660, %v3645
      %v3694 = vpack.c.bf16 %v3690, %v3675
      %3695 = vrot.lane.b32.xlu0 %v3059, 48
      %v3696 = vpop.permute.xlu0 %3695
      %3697 = vrot.lane.b32.xlu0 %v3060, 48
      %v3698 = vpop.permute.xlu0 %3697
      %3699 = vrot.lane.b32.xlu0 %v3061, 48
      %v3700 = vpop.permute.xlu0 %3699
      %3701 = vrot.lane.b32.xlu0 %v3062, 48
      %v3702 = vpop.permute.xlu0 %3701
      %v3708 = vsel %vm1629, %v3691, 0
      %v3711 = vsel %vm1629, %v3692, 0
      %v3714 = vsel %vm1629, %v3693, 0
      %v3717 = vsel %vm1629, %v3694, 0
      %3719 = vmatpush.bf16.msra.mxu0 0
      %3720 = vmatpush.bf16.msra.mxu0 0
      %3721 = vmatpush.bf16.msra.mxu0 0
      %3722 = vmatpush.bf16.msra.mxu0 0
      %3723 = vmatpush.bf16.msra.mxu0 %v3702
      %3724 = vmatpush.bf16.msra.mxu0 %v3700
      %3725 = vmatpush.bf16.msra.mxu0 %v3698
      %3726 = vmatpush.bf16.msra.mxu0 %v3696
      %3727 = vmatmul.bf16.gmra.mxu0 %v3708
      %v3728 = vpop.f32.mrf.mxu0
      %v3729 = vadd.f32 0.0, %v3728
      %v3730 = vpop.f32.mrf.mxu0
      %v3731 = vadd.f32 0.0, %v3730
      %3732 = vmatmul.bf16.gmra.mxu0 %v3711
      %v3733 = vpop.f32.mrf.mxu0
      %v3734 = vadd.f32 0.0, %v3733
      %v3735 = vpop.f32.mrf.mxu0
      %v3736 = vadd.f32 0.0, %v3735
      %3737 = vmatmul.bf16.gmra.mxu0 %v3714
      %v3738 = vpop.f32.mrf.mxu0
      %v3739 = vadd.f32 0.0, %v3738
      %v3740 = vpop.f32.mrf.mxu0
      %v3741 = vadd.f32 0.0, %v3740
      %3742 = vmatmul.bf16.gmra.mxu0 %v3717
      %v3743 = vpop.f32.mrf.mxu0
      %v3744 = vadd.f32 0.0, %v3743
      %v3745 = vpop.f32.mrf.mxu0
      %v3746 = vadd.f32 0.0, %v3745
      %3747 = vdwg.mxu0
      %v3748 = vpack.c.bf16 %v3731, %v3729
      %v3749 = vpack.c.bf16 %v3736, %v3734
      %v3750 = vpack.c.bf16 %v3741, %v3739
      %v3751 = vpack.c.bf16 %v3746, %v3744
      %v3754 = vunpack.c.l.b16 %v3057
      %v3755 = vunpack.c.l.b16 %v3058
      %v3756 = vpack.c.b16 %v3755, %v3754
      %v3759 = vsel %vm1551, %v3748, 0
      %v3762 = vsel %vm1551, %v3749, 0
      %v3765 = vsel %vm1551, %v3750, 0
      %v3768 = vsel %vm1551, %v3751, 0
      %3770 = vmatpush.bf16.msra.mxu0 0
      %3771 = vmatpush.bf16.msra.mxu0 0
      %3772 = vmatpush.bf16.msra.mxu0 0
      %3773 = vmatpush.bf16.msra.mxu0 0
      %3774 = vmatpush.bf16.msra.mxu0 0
      %3775 = vmatpush.bf16.msra.mxu0 0
      %3776 = vmatpush.bf16.msra.mxu0 0
      %3777 = vmatpush.bf16.msra.mxu0 %v3756
      %3778 = vmatmul.bf16.gmra.mxu0 %v3759
      %v3779 = vpop.f32.mrf.mxu0
      %v3780 = vadd.f32 0.0, %v3779
      %v3781 = vpop.f32.mrf.mxu0
      %v3782 = vadd.f32 0.0, %v3781
      %3783 = vmatmul.bf16.gmra.mxu0 %v3762
      %v3784 = vpop.f32.mrf.mxu0
      %v3785 = vadd.f32 0.0, %v3784
      %v3786 = vpop.f32.mrf.mxu0
      %v3787 = vadd.f32 0.0, %v3786
      %3788 = vmatmul.bf16.gmra.mxu0 %v3765
      %v3789 = vpop.f32.mrf.mxu0
      %v3790 = vadd.f32 0.0, %v3789
      %v3791 = vpop.f32.mrf.mxu0
      %v3792 = vadd.f32 0.0, %v3791
      %3793 = vmatmul.bf16.gmra.mxu0 %v3768
      %v3794 = vpop.f32.mrf.mxu0
      %v3795 = vadd.f32 0.0, %v3794
      %v3796 = vpop.f32.mrf.mxu0
      %v3797 = vadd.f32 0.0, %v3796
      %3798 = vdwg.mxu0
      %v3801 = vunpack.c.l.b16 %v3055
      %v3802 = vunpack.c.l.b16 %v3056
      %v3803 = vpack.c.b16 %v3802, %v3801
      %v3806 = vsel %vm1551, %v3401, 0
      %v3809 = vsel %vm1551, %v3402, 0
      %v3812 = vsel %vm1551, %v3403, 0
      %v3815 = vsel %vm1551, %v3404, 0
      %3817 = vmatpush.bf16.msra.mxu0 0
      %3818 = vmatpush.bf16.msra.mxu0 0
      %3819 = vmatpush.bf16.msra.mxu0 0
      %3820 = vmatpush.bf16.msra.mxu0 0
      %3821 = vmatpush.bf16.msra.mxu0 0
      %3822 = vmatpush.bf16.msra.mxu0 0
      %3823 = vmatpush.bf16.msra.mxu0 0
      %3824 = vmatpush.bf16.msra.mxu0 %v3803
      %3825 = vmatmul.bf16.gmra.mxu0 %v3806
      %v3826 = vpop.f32.mrf.mxu0
      %v3827 = vadd.f32 %v3780, %v3826
      %v3828 = vpop.f32.mrf.mxu0
      %v3829 = vadd.f32 %v3782, %v3828
      %3830 = vmatmul.bf16.gmra.mxu0 %v3809
      %v3831 = vpop.f32.mrf.mxu0
      %v3832 = vadd.f32 %v3785, %v3831
      %v3833 = vpop.f32.mrf.mxu0
      %v3834 = vadd.f32 %v3787, %v3833
      %3835 = vmatmul.bf16.gmra.mxu0 %v3812
      %v3836 = vpop.f32.mrf.mxu0
      %v3837 = vadd.f32 %v3790, %v3836
      %v3838 = vpop.f32.mrf.mxu0
      %v3839 = vadd.f32 %v3792, %v3838
      %3840 = vmatmul.bf16.gmra.mxu0 %v3815
      %v3841 = vpop.f32.mrf.mxu0
      %v3842 = vadd.f32 %v3795, %v3841
      %v3843 = vpop.f32.mrf.mxu0
      %v3844 = vadd.f32 %v3797, %v3843
      %3845 = vdwg.mxu0
      %v3846 = vadd.f32 %v2782, %v3827
      %v3847 = vadd.f32 %v2783, %v3829
      %v3848 = vadd.f32 %v2784, %v3832
      %v3849 = vadd.f32 %v2785, %v3834
      %v3850 = vadd.f32 %v2786, %v3837
      %v3851 = vadd.f32 %v2787, %v3839
      %v3852 = vadd.f32 %v2788, %v3842
      %v3853 = vadd.f32 %v2789, %v3844
      %v3854 = vld [vmem:[%s49] sm:$0x1]
      %v3856 = vperm.slane %v3854, 0
      %v3858 = vadd.f32 %v3846, %v3856
      %v3859 = vadd.f32 %v3847, %v3856
      %v3860 = vadd.f32 %v3848, %v3856
      %v3861 = vadd.f32 %v3849, %v3856
      %v3862 = vadd.f32 %v3850, %v3856
      %v3863 = vadd.f32 %v3851, %v3856
      %v3864 = vadd.f32 %v3852, %v3856
      %v3865 = vadd.f32 %v3853, %v3856
      %v3866 = vld [vmem:[%s51] sm:$0x1]
      %v3867 = vld [vmem:[%s53] sm:$0x1]
      %v3868 = vsel %vm1060, %v3858, 0.0
      %3869 = vadd.xlane.f32.xlu0 %v3868
      %v3870 = vpop.xlane.xlu0 %3869
      %v3871 = vsel %vm1060, %v3859, 0.0
      %3872 = vadd.xlane.f32.xlu0 %v3871
      %v3873 = vpop.xlane.xlu0 %3872
      %v3874 = vsel %vm1060, %v3860, 0.0
      %3875 = vadd.xlane.f32.xlu0 %v3874
      %v3876 = vpop.xlane.xlu0 %3875
      %v3877 = vsel %vm1060, %v3861, 0.0
      %3878 = vadd.xlane.f32.xlu0 %v3877
      %v3879 = vpop.xlane.xlu0 %3878
      %v3880 = vsel %vm1060, %v3862, 0.0
      %3881 = vadd.xlane.f32.xlu0 %v3880
      %v3882 = vpop.xlane.xlu0 %3881
      %v3883 = vsel %vm1060, %v3863, 0.0
      %3884 = vadd.xlane.f32.xlu0 %v3883
      %v3885 = vpop.xlane.xlu0 %3884
      %v3886 = vsel %vm1060, %v3864, 0.0
      %3887 = vadd.xlane.f32.xlu0 %v3886
      %v3888 = vpop.xlane.xlu0 %3887
      %v3889 = vsel %vm1060, %v3865, 0.0
      %3890 = vadd.xlane.f32.xlu0 %v3889
      %v3891 = vpop.xlane.xlu0 %3890
      %v3892 = vmul.f32 %v3870, %v1091
      %v3893 = vmul.f32 %v3873, %v1091
      %v3894 = vmul.f32 %v3876, %v1091
      %v3895 = vmul.f32 %v3879, %v1091
      %v3896 = vmul.f32 %v3882, %v1091
      %v3897 = vmul.f32 %v3885, %v1091
      %v3898 = vmul.f32 %v3888, %v1091
      %v3899 = vmul.f32 %v3891, %v1091
      %v3900 = vsub.f32 %v3858, %v3892
      %v3901 = vsub.f32 %v3859, %v3893
      %v3902 = vsub.f32 %v3860, %v3894
      %v3903 = vsub.f32 %v3861, %v3895
      %v3904 = vsub.f32 %v3862, %v3896
      %v3905 = vsub.f32 %v3863, %v3897
      %v3906 = vsub.f32 %v3864, %v3898
      %v3907 = vsub.f32 %v3865, %v3899
      %v3908 = vmul.f32 %v3900, %v3900
      %v3909 = vmul.f32 %v3901, %v3901
      %v3910 = vmul.f32 %v3902, %v3902
      %v3911 = vmul.f32 %v3903, %v3903
      %v3912 = vmul.f32 %v3904, %v3904
      %v3913 = vmul.f32 %v3905, %v3905
      %v3914 = vmul.f32 %v3906, %v3906
      %v3915 = vmul.f32 %v3907, %v3907
      %v3916 = vsel %vm1060, %v3908, 0.0
      %3917 = vadd.xlane.f32.xlu0 %v3916
      %v3918 = vpop.xlane.xlu0 %3917
      %v3919 = vsel %vm1060, %v3909, 0.0
      %3920 = vadd.xlane.f32.xlu0 %v3919
      %v3921 = vpop.xlane.xlu0 %3920
      %v3922 = vsel %vm1060, %v3910, 0.0
      %3923 = vadd.xlane.f32.xlu0 %v3922
      %v3924 = vpop.xlane.xlu0 %3923
      %v3925 = vsel %vm1060, %v3911, 0.0
      %3926 = vadd.xlane.f32.xlu0 %v3925
      %v3927 = vpop.xlane.xlu0 %3926
      %v3928 = vsel %vm1060, %v3912, 0.0
      %3929 = vadd.xlane.f32.xlu0 %v3928
      %v3930 = vpop.xlane.xlu0 %3929
      %v3931 = vsel %vm1060, %v3913, 0.0
      %3932 = vadd.xlane.f32.xlu0 %v3931
      %v3933 = vpop.xlane.xlu0 %3932
      %v3934 = vsel %vm1060, %v3914, 0.0
      %3935 = vadd.xlane.f32.xlu0 %v3934
      %v3936 = vpop.xlane.xlu0 %3935
      %v3937 = vsel %vm1060, %v3915, 0.0
      %3938 = vadd.xlane.f32.xlu0 %v3937
      %v3939 = vpop.xlane.xlu0 %3938
      %v3940 = vmul.f32 %v3918, %v1091
      %v3941 = vmul.f32 %v3921, %v1091
      %v3942 = vmul.f32 %v3924, %v1091
      %v3943 = vmul.f32 %v3927, %v1091
      %v3944 = vmul.f32 %v3930, %v1091
      %v3945 = vmul.f32 %v3933, %v1091
      %v3946 = vmul.f32 %v3936, %v1091
      %v3947 = vmul.f32 %v3939, %v1091
      %v3948 = vadd.f32 %v3940, 1e-05
      %v3949 = vadd.f32 %v3941, 1e-05
      %v3950 = vadd.f32 %v3942, 1e-05
      %v3951 = vadd.f32 %v3943, 1e-05
      %v3952 = vadd.f32 %v3944, 1e-05
      %v3953 = vadd.f32 %v3945, 1e-05
      %v3954 = vadd.f32 %v3946, 1e-05
      %v3955 = vadd.f32 %v3947, 1e-05
      %v3956 = vrsqrt.pop %v3948
      %v3957 = vmul.f32 %v3956, %v3948
      %v3958 = vmul.f32 %v3957, %v3956
      %v3959 = vmul.f32 0.5, %v3958
      %v3960 = vsub.f32 1.5, %v3959
      %v3961 = vmul.f32 %v3956, %v3960
      %vm3962 = vweird.f32 %v3948
      %vm3963 = vweird.f32 %v3956
      %vm3964 = vmor %vm3962, %vm3963
      %v3965 = vsel %vm3964, %v3956, %v3961
      %v3966 = vrsqrt.pop %v3949
      %v3967 = vmul.f32 %v3966, %v3949
      %v3968 = vmul.f32 %v3967, %v3966
      %v3969 = vmul.f32 0.5, %v3968
      %v3970 = vsub.f32 1.5, %v3969
      %v3971 = vmul.f32 %v3966, %v3970
      %vm3972 = vweird.f32 %v3949
      %vm3973 = vweird.f32 %v3966
      %vm3974 = vmor %vm3972, %vm3973
      %v3975 = vsel %vm3974, %v3966, %v3971
      %v3976 = vrsqrt.pop %v3950
      %v3977 = vmul.f32 %v3976, %v3950
      %v3978 = vmul.f32 %v3977, %v3976
      %v3979 = vmul.f32 0.5, %v3978
      %v3980 = vsub.f32 1.5, %v3979
      %v3981 = vmul.f32 %v3976, %v3980
      %vm3982 = vweird.f32 %v3950
      %vm3983 = vweird.f32 %v3976
      %vm3984 = vmor %vm3982, %vm3983
      %v3985 = vsel %vm3984, %v3976, %v3981
      %v3986 = vrsqrt.pop %v3951
      %v3987 = vmul.f32 %v3986, %v3951
      %v3988 = vmul.f32 %v3987, %v3986
      %v3989 = vmul.f32 0.5, %v3988
      %v3990 = vsub.f32 1.5, %v3989
      %v3991 = vmul.f32 %v3986, %v3990
      %vm3992 = vweird.f32 %v3951
      %vm3993 = vweird.f32 %v3986
      %vm3994 = vmor %vm3992, %vm3993
      %v3995 = vsel %vm3994, %v3986, %v3991
      %v3996 = vrsqrt.pop %v3952
      %v3997 = vmul.f32 %v3996, %v3952
      %v3998 = vmul.f32 %v3997, %v3996
      %v3999 = vmul.f32 0.5, %v3998
      %v4000 = vsub.f32 1.5, %v3999
      %v4001 = vmul.f32 %v3996, %v4000
      %vm4002 = vweird.f32 %v3952
      %vm4003 = vweird.f32 %v3996
      %vm4004 = vmor %vm4002, %vm4003
      %v4005 = vsel %vm4004, %v3996, %v4001
      %v4006 = vrsqrt.pop %v3953
      %v4007 = vmul.f32 %v4006, %v3953
      %v4008 = vmul.f32 %v4007, %v4006
      %v4009 = vmul.f32 0.5, %v4008
      %v4010 = vsub.f32 1.5, %v4009
      %v4011 = vmul.f32 %v4006, %v4010
      %vm4012 = vweird.f32 %v3953
      %vm4013 = vweird.f32 %v4006
      %vm4014 = vmor %vm4012, %vm4013
      %v4015 = vsel %vm4014, %v4006, %v4011
      %v4016 = vrsqrt.pop %v3954
      %v4017 = vmul.f32 %v4016, %v3954
      %v4018 = vmul.f32 %v4017, %v4016
      %v4019 = vmul.f32 0.5, %v4018
      %v4020 = vsub.f32 1.5, %v4019
      %v4021 = vmul.f32 %v4016, %v4020
      %vm4022 = vweird.f32 %v3954
      %vm4023 = vweird.f32 %v4016
      %vm4024 = vmor %vm4022, %vm4023
      %v4025 = vsel %vm4024, %v4016, %v4021
      %v4026 = vrsqrt.pop %v3955
      %v4027 = vmul.f32 %v4026, %v3955
      %v4028 = vmul.f32 %v4027, %v4026
      %v4029 = vmul.f32 0.5, %v4028
      %v4030 = vsub.f32 1.5, %v4029
      %v4031 = vmul.f32 %v4026, %v4030
      %vm4032 = vweird.f32 %v3955
      %vm4033 = vweird.f32 %v4026
      %vm4034 = vmor %vm4032, %vm4033
      %v4035 = vsel %vm4034, %v4026, %v4031
      %v4036 = vmul.f32 %v3900, %v3965
      %v4037 = vmul.f32 %v3901, %v3975
      %v4038 = vmul.f32 %v3902, %v3985
      %v4039 = vmul.f32 %v3903, %v3995
      %v4040 = vmul.f32 %v3904, %v4005
      %v4041 = vmul.f32 %v3905, %v4015
      %v4042 = vmul.f32 %v3906, %v4025
      %v4043 = vmul.f32 %v3907, %v4035
      %v4045 = vperm.slane %v3866, 0
      %v4047 = vmul.f32 %v4036, %v4045
      %v4048 = vmul.f32 %v4037, %v4045
      %v4049 = vmul.f32 %v4038, %v4045
      %v4050 = vmul.f32 %v4039, %v4045
      %v4051 = vmul.f32 %v4040, %v4045
      %v4052 = vmul.f32 %v4041, %v4045
      %v4053 = vmul.f32 %v4042, %v4045
      %v4054 = vmul.f32 %v4043, %v4045
      %v4056 = vperm.slane %v3867, 0
      %v4058 = vadd.f32 %v4047, %v4056
      %v4059 = vadd.f32 %v4048, %v4056
      %v4060 = vadd.f32 %v4049, %v4056
      %v4061 = vadd.f32 %v4050, %v4056
      %v4062 = vadd.f32 %v4051, %v4056
      %v4063 = vadd.f32 %v4052, %v4056
      %v4064 = vadd.f32 %v4053, %v4056
      %v4065 = vadd.f32 %v4054, %v4056
      %v4066 = vpack.c.bf16 %v4059, %v4058
      %v4067 = vpack.c.bf16 %v4061, %v4060
      %v4068 = vpack.c.bf16 %v4063, %v4062
      %v4069 = vpack.c.bf16 %v4065, %v4064
      %v4070 = vld [vmem:[%s55] sm:$0xf]
      %v4071 = vld [vmem:[%s55 + $0x4] sm:$0xf]
      %v4072 = vld [vmem:[%s55 + $0x8] sm:$0xf]
      %v4073 = vld [vmem:[%s55 + $0xc] sm:$0xf]
      %v4074 = vld [vmem:[%s57] sm:$0x1]
      %v4076 = vperm.slane %v4074, 0
      %v4082 = vunpack.c.l.b16 %v4070
      %v4083 = vunpack.c.l.b16 %v4071
      %v4084 = vunpack.c.l.b16 %v4072
      %v4085 = vunpack.c.l.b16 %v4073
      %v4086 = vpack.c.b16 %v4083, %v4082
      %v4087 = vpack.c.b16 %v4085, %v4084
      %v4091 = vsel %vm1060, %v4066, 0
      %v4094 = vsel %vm1060, %v4067, 0
      %v4097 = vsel %vm1060, %v4068, 0
      %v4100 = vsel %vm1060, %v4069, 0
      %4102 = vmatpush.bf16.msra.mxu0 0
      %4103 = vmatpush.bf16.msra.mxu0 0
      %4104 = vmatpush.bf16.msra.mxu0 0
      %4105 = vmatpush.bf16.msra.mxu0 0
      %4106 = vmatpush.bf16.msra.mxu0 0
      %4107 = vmatpush.bf16.msra.mxu0 0
      %4108 = vmatpush.bf16.msra.mxu0 %v4087
      %4109 = vmatpush.bf16.msra.mxu0 %v4086
      %4110 = vmatmul.bf16.gmra.mxu0 %v4091
      %v4111 = vpop.f32.mrf.mxu0
      %v4112 = vadd.f32 %v4076, %v4111
      %v4113 = vpop.f32.mrf.mxu0
      %v4114 = vadd.f32 %v4076, %v4113
      %4115 = vmatmul.bf16.gmra.mxu0 %v4094
      %v4116 = vpop.f32.mrf.mxu0
      %v4117 = vadd.f32 %v4076, %v4116
      %v4118 = vpop.f32.mrf.mxu0
      %v4119 = vadd.f32 %v4076, %v4118
      %4120 = vmatmul.bf16.gmra.mxu0 %v4097
      %v4121 = vpop.f32.mrf.mxu0
      %v4122 = vadd.f32 %v4076, %v4121
      %v4123 = vpop.f32.mrf.mxu0
      %v4124 = vadd.f32 %v4076, %v4123
      %4125 = vmatmul.bf16.gmra.mxu0 %v4100
      %v4126 = vpop.f32.mrf.mxu0
      %v4127 = vadd.f32 %v4076, %v4126
      %v4128 = vpop.f32.mrf.mxu0
      %v4129 = vadd.f32 %v4076, %v4128
      %4130 = vdwg.mxu0
      %v4131 = vmul.f32 %v4112, 0.5
      %v4132 = vmul.f32 %v4114, 0.5
      %v4133 = vmul.f32 %v4117, 0.5
      %v4134 = vmul.f32 %v4119, 0.5
      %v4135 = vmul.f32 %v4122, 0.5
      %v4136 = vmul.f32 %v4124, 0.5
      %v4137 = vmul.f32 %v4127, 0.5
      %v4138 = vmul.f32 %v4129, 0.5
      %v4139 = vmul.f32 %v4112, 0.044715
      %v4140 = vmul.f32 %v4114, 0.044715
      %v4141 = vmul.f32 %v4117, 0.044715
      %v4142 = vmul.f32 %v4119, 0.044715
      %v4143 = vmul.f32 %v4122, 0.044715
      %v4144 = vmul.f32 %v4124, 0.044715
      %v4145 = vmul.f32 %v4127, 0.044715
      %v4146 = vmul.f32 %v4129, 0.044715
      %v4147 = vmul.f32 %v4139, %v4112
      %v4148 = vmul.f32 %v4140, %v4114
      %v4149 = vmul.f32 %v4141, %v4117
      %v4150 = vmul.f32 %v4142, %v4119
      %v4151 = vmul.f32 %v4143, %v4122
      %v4152 = vmul.f32 %v4144, %v4124
      %v4153 = vmul.f32 %v4145, %v4127
      %v4154 = vmul.f32 %v4146, %v4129
      %v4155 = vmul.f32 %v4147, %v4112
      %v4156 = vmul.f32 %v4148, %v4114
      %v4157 = vmul.f32 %v4149, %v4117
      %v4158 = vmul.f32 %v4150, %v4119
      %v4159 = vmul.f32 %v4151, %v4122
      %v4160 = vmul.f32 %v4152, %v4124
      %v4161 = vmul.f32 %v4153, %v4127
      %v4162 = vmul.f32 %v4154, %v4129
      %v4163 = vadd.f32 %v4112, %v4155
      %v4164 = vadd.f32 %v4114, %v4156
      %v4165 = vadd.f32 %v4117, %v4157
      %v4166 = vadd.f32 %v4119, %v4158
      %v4167 = vadd.f32 %v4122, %v4159
      %v4168 = vadd.f32 %v4124, %v4160
      %v4169 = vadd.f32 %v4127, %v4161
      %v4170 = vadd.f32 %v4129, %v4162
      %v4171 = vmul.f32 %v4163, 0.7978846
      %v4172 = vmul.f32 %v4164, 0.7978846
      %v4173 = vmul.f32 %v4165, 0.7978846
      %v4174 = vmul.f32 %v4166, 0.7978846
      %v4175 = vmul.f32 %v4167, 0.7978846
      %v4176 = vmul.f32 %v4168, 0.7978846
      %v4177 = vmul.f32 %v4169, 0.7978846
      %v4178 = vmul.f32 %v4170, 0.7978846
      %v4179 = vtanh.pop %v4171
      %v4180 = vtanh.pop %v4172
      %v4181 = vtanh.pop %v4173
      %v4182 = vtanh.pop %v4174
      %v4183 = vtanh.pop %v4175
      %v4184 = vtanh.pop %v4176
      %v4185 = vtanh.pop %v4177
      %v4186 = vtanh.pop %v4178
      %v4187 = vadd.f32 %v4179, 1.0
      %v4188 = vadd.f32 %v4180, 1.0
      %v4189 = vadd.f32 %v4181, 1.0
      %v4190 = vadd.f32 %v4182, 1.0
      %v4191 = vadd.f32 %v4183, 1.0
      %v4192 = vadd.f32 %v4184, 1.0
      %v4193 = vadd.f32 %v4185, 1.0
      %v4194 = vadd.f32 %v4186, 1.0
      %v4195 = vmul.f32 %v4131, %v4187
      %v4196 = vmul.f32 %v4132, %v4188
      %v4197 = vmul.f32 %v4133, %v4189
      %v4198 = vmul.f32 %v4134, %v4190
      %v4199 = vmul.f32 %v4135, %v4191
      %v4200 = vmul.f32 %v4136, %v4192
      %v4201 = vmul.f32 %v4137, %v4193
      %v4202 = vmul.f32 %v4138, %v4194
      %v4203 = vpack.c.bf16 %v4196, %v4195
      %v4204 = vpack.c.bf16 %v4198, %v4197
      %v4205 = vpack.c.bf16 %v4200, %v4199
      %v4206 = vpack.c.bf16 %v4202, %v4201
      %v4207 = vld [vmem:[%s59] sm:$0xf]
      %v4208 = vld [vmem:[%s59 + $0x4] sm:$0xf]
      %v4209 = vld [vmem:[%s59 + $0x8] sm:$0xf]
      %v4210 = vld [vmem:[%s59 + $0xc] sm:$0xf]
      %v4211 = vld [vmem:[%s59 + $0x10] sm:$0xf]
      %v4212 = vld [vmem:[%s59 + $0x14] sm:$0xf]
      %v4213 = vld [vmem:[%s59 + $0x18] sm:$0xf]
      %v4214 = vld [vmem:[%s59 + $0x1c] sm:$0xf]
      %v4215 = vld [vmem:[%s59 + $0x20] sm:$0xf]
      %v4216 = vld [vmem:[%s59 + $0x24] sm:$0xf]
      %v4217 = vld [vmem:[%s59 + $0x28] sm:$0xf]
      %v4218 = vld [vmem:[%s59 + $0x2c] sm:$0xf]
      %v4219 = vld [vmem:[%s59 + $0x30] sm:$0xf]
      %v4220 = vld [vmem:[%s59 + $0x34] sm:$0xf]
      %v4221 = vld [vmem:[%s59 + $0x38] sm:$0xf]
      %v4222 = vld [vmem:[%s59 + $0x3c] sm:$0xf]
      %v4223 = vld [vmem:[%s61] sm:$0x1]
      %v4225 = vperm.slane %v4223, 0
      %v4243 = vunpack.c.l.b16 %v4207
      %v4244 = vunpack.c.l.b16 %v4208
      %v4245 = vunpack.c.l.b16 %v4209
      %v4246 = vunpack.c.l.b16 %v4210
      %v4247 = vunpack.c.l.b16 %v4211
      %v4248 = vunpack.c.l.b16 %v4212
      %v4249 = vunpack.c.l.b16 %v4213
      %v4250 = vunpack.c.l.b16 %v4214
      %v4251 = vunpack.c.l.b16 %v4215
      %v4252 = vunpack.c.l.b16 %v4216
      %v4253 = vunpack.c.l.b16 %v4217
      %v4254 = vunpack.c.l.b16 %v4218
      %v4255 = vunpack.c.l.b16 %v4219
      %v4256 = vunpack.c.l.b16 %v4220
      %v4257 = vunpack.c.l.b16 %v4221
      %v4258 = vunpack.c.l.b16 %v4222
      %v4259 = vpack.c.b16 %v4244, %v4243
      %v4260 = vpack.c.b16 %v4246, %v4245
      %v4261 = vpack.c.b16 %v4248, %v4247
      %v4262 = vpack.c.b16 %v4250, %v4249
      %v4263 = vpack.c.b16 %v4252, %v4251
      %v4264 = vpack.c.b16 %v4254, %v4253
      %v4265 = vpack.c.b16 %v4256, %v4255
      %v4266 = vpack.c.b16 %v4258, %v4257
      %4275 = vmatpush.bf16.msra.mxu0 %v4266
      %4276 = vmatpush.bf16.msra.mxu0 %v4265
      %4277 = vmatpush.bf16.msra.mxu0 %v4264
      %4278 = vmatpush.bf16.msra.mxu0 %v4263
      %4279 = vmatpush.bf16.msra.mxu0 %v4262
      %4280 = vmatpush.bf16.msra.mxu0 %v4261
      %4281 = vmatpush.bf16.msra.mxu0 %v4260
      %4282 = vmatpush.bf16.msra.mxu0 %v4259
      %4283 = vmatmul.bf16.gmra.mxu0 %v4203
      %v4284 = vpop.f32.mrf.mxu0
      %v4285 = vadd.f32 %v4225, %v4284
      %v4286 = vpop.f32.mrf.mxu0
      %v4287 = vadd.f32 %v4225, %v4286
      %4288 = vmatmul.bf16.gmra.mxu0 %v4204
      %v4289 = vpop.f32.mrf.mxu0
      %v4290 = vadd.f32 %v4225, %v4289
      %v4291 = vpop.f32.mrf.mxu0
      %v4292 = vadd.f32 %v4225, %v4291
      %4293 = vmatmul.bf16.gmra.mxu0 %v4205
      %v4294 = vpop.f32.mrf.mxu0
      %v4295 = vadd.f32 %v4225, %v4294
      %v4296 = vpop.f32.mrf.mxu0
      %v4297 = vadd.f32 %v4225, %v4296
      %4298 = vmatmul.bf16.gmra.mxu0 %v4206
      %v4299 = vpop.f32.mrf.mxu0
      %v4300 = vadd.f32 %v4225, %v4299
      %v4301 = vpop.f32.mrf.mxu0
      %v4302 = vadd.f32 %v4225, %v4301
      %4303 = vdwg.mxu0
      %v4304 = vadd.f32 %v3858, %v4285
      %v4305 = vadd.f32 %v3859, %v4287
      %v4306 = vadd.f32 %v3860, %v4290
      %v4307 = vadd.f32 %v3861, %v4292
      %v4308 = vadd.f32 %v3862, %v4295
      %v4309 = vadd.f32 %v3863, %v4297
      %v4310 = vadd.f32 %v3864, %v4300
      %v4311 = vadd.f32 %v3865, %v4302
      %4312 = vst.msk [vmem:[%s958] sm:$0xff] %vm1060, %v4304
      %4313 = vst.msk [vmem:[%s958 + $0x8] sm:$0xff] %vm1060, %v4305
      %4314 = vst.msk [vmem:[%s958 + $0x10] sm:$0xff] %vm1060, %v4306
      %4315 = vst.msk [vmem:[%s958 + $0x18] sm:$0xff] %vm1060, %v4307
      %4316 = vst.msk [vmem:[%s958 + $0x20] sm:$0xff] %vm1060, %v4308
      %4317 = vst.msk [vmem:[%s958 + $0x28] sm:$0xff] %vm1060, %v4309
      %4318 = vst.msk [vmem:[%s958 + $0x30] sm:$0xff] %vm1060, %v4310
      %4319 = vst.msk [vmem:[%s958 + $0x38] sm:$0xff] %vm1060, %v4311
      %p4320 = scmp.lt.s32.totalorder %s74, 1
      %s4321 = scalar_select %p4320, %s74, 1
      %s4322 = smul.addr %s4321, 8
      %s4323 = smul.addr %s4322, 8
      %s4324 = scalar_lea.vmem %s63, %s4323
      // Predicated region
      $region145: #{forward.2} parent=143 // pred_check
        %p4325 = pneg %p748
      $region146: #{forward.2} parent=143 // pred_check_branch
        %4327 = sbr.rel (%p4325) target = $region148
      $region147: #{forward.2} parent=143 // pred_region
        _
      $region148: #{forward.2} parent=143 // pred_fallthru
        _
    $region144: #{forward.2} parent=5 // pred_fallthru
      _
    %p4328 = scmp.le.s32.totalorder 2, %s69
    // Predicated region
    $region149: #{forward.2} parent=5 // pred_check
      %p4329 = pneg %p4328
    $region150: #{forward.2} parent=5 // pred_check_branch
      %4331 = sbr.rel (%p4329) target = $region152
    $region151: #{forward.2} parent=5 // pred_region
      %s4332 = ssub.s32 %s69, 2
      // Predicated region
      $region153: #{forward.2} parent=151 // pred_check
        %p4333 = pneg %p754
      $region154: #{forward.2} parent=151 // pred_check_branch
        %4335 = sbr.rel (%p4333) target = $region156
      $region155: #{forward.2} parent=151 // pred_region
        %p4336 = scmp.lt.s32.totalorder %s75, 1
        %s4337 = scalar_select %p4336, %s75, 1
        %s4338 = smul.addr %s4337, 8
        %s4339 = smul.addr %s4338, 8
        %s4340 = scalar_lea.vmem %s63, %s4339
      $region156: #{forward.2} parent=151 // pred_fallthru
        _
    $region152: #{forward.2} parent=5 // pred_fallthru
      _
  $region6: #{forward.2} parent=0 // loop_footer
    %s73 = sadd.s32 1, %s69
  $region7: #{forward.2} parent=0 // loop_footer_branch
    %68 = sbr.rel target = $region3
  $region8: #{forward.2} parent=0 // loop_exit
    _

// kernel: forward.3
$region0: #{forward.3}
  #allocation0 [shape = 'u32[]', space=smem, size = 0x4, offset = 0x4, fixed_abs, tag = 'smem constant byte address 0x4 - core index']
  #allocation1 [shape = 'u32[72,128]{1,0:T(1,128)}', space=vmem, size = 0x9000, scoped, tag = 'internal scratch']
  %s0 = inlined_call_operand.smem [shape: u32[35], index: -1, kind: input, shape index: {}]
  %s1 = sld [smem:[%s0]]
  %s2 = scalar_lea.smem %s0, 1
  %s3 = sld [smem:[%s2]]
  %s4 = scalar_lea.smem %s0, 2
  %s5 = sld [smem:[%s4]]
  %s6 = scalar_lea.smem %s0, 3
  %s7 = sld [smem:[%s6]]
  %s8 = scalar_lea.smem %s0, 4
  %s9 = sld [smem:[%s8]]
  %s10 = scalar_lea.smem %s0, 5
  %s11 = sld [smem:[%s10]]
  %s12 = scalar_lea.smem %s0, 6
  %s13 = sld [smem:[%s12]]
  %s14 = scalar_lea.smem %s0, 7
  %s15 = sld [smem:[%s14]]
  %s16 = scalar_lea.smem %s0, 8
  %s17 = sld [smem:[%s16]]
  %s18 = scalar_lea.smem %s0, 9
  %s19 = sld [smem:[%s18]]
  %s20 = scalar_lea.smem %s0, 10
  %s21 = sld [smem:[%s20]]
  %s22 = scalar_lea.smem %s0, 11
  %s23 = sld [smem:[%s22]]
  %s24 = scalar_lea.smem %s0, 12
  %s25 = sld [smem:[%s24]]
  %s26 = scalar_lea.smem %s0, 13
  %s27 = sld [smem:[%s26]]
  %s28 = scalar_lea.smem %s0, 14
  %s29 = sld [smem:[%s28]]
  %s30 = scalar_lea.smem %s0, 15
  %s31 = sld [smem:[%s30]]
  %s32 = scalar_lea.smem %s0, 16
  %s33 = sld [smem:[%s32]]
  %s34 = scalar_lea.smem %s0, 17
  %s35 = sld [smem:[%s34]]
  %s36 = scalar_lea.smem %s0, 18
  %s37 = sld [smem:[%s36]]
  %s38 = scalar_lea.smem %s0, 19
  %s39 = sld [smem:[%s38]]
  %s40 = scalar_lea.smem %s0, 20
  %s41 = sld [smem:[%s40]]
  %s42 = scalar_lea.smem %s0, 21
  %s43 = sld [smem:[%s42]]
  %s44 = scalar_lea.smem %s0, 22
  %s45 = sld [smem:[%s44]]
  %s46 = scalar_lea.smem %s0, 23
  %s47 = sld [smem:[%s46]]
  %s48 = scalar_lea.smem %s0, 24
  %s49 = sld [smem:[%s48]]
  %s50 = scalar_lea.smem %s0, 25
  %s51 = sld [smem:[%s50]]
  %s52 = scalar_lea.smem %s0, 26
  %s53 = sld [smem:[%s52]]
  %s54 = scalar_lea.smem %s0, 27
  %s55 = sld [smem:[%s54]]
  %s56 = scalar_lea.smem %s0, 28
  %s57 = sld [smem:[%s56]]
  %s58 = scalar_lea.smem %s0, 29
  %s59 = sld [smem:[%s58]]
  %s60 = scalar_lea.smem %s0, 30
  %s61 = sld [smem:[%s60]]
  %s62 = scalar_lea.smem %s0, 31
  %s63 = sld [smem:[%s62]]
  %s64 = scalar_lea.smem %s0, 32
  %s65 = sld [smem:[%s64]]
  %s66 = scalar_lea.smem %s0, 33
  %s67 = sld [smem:[%s66]]
  %s68 = scalar_lea.smem %s0, 34
  %s69 = sld [smem:[%s68]]
  %s70 = sld [smem:[#allocation0]]
  $region169: #{forward.3} parent=0
    _
  %s72 = ssub.s32 1, %s70
  %s73 = scalar_select 0, %s72, %s70
  $region1: #{forward.3} parent=0
    #allocation2 [shape = 'u8[1024]{0}', space=vmem, size = 0x400, scoped, tag = 'output window, operand 0']
    #allocation3 [shape = 's32[2]{0}', space=sflag, size = 0x8, scoped, tag = 'scoped memory for forward.3']
    %74 = vsyncpa [#allocation3], 0
    %s75 = scalar_lea.sflag [#allocation3], 1
    %76 = vsyncpa %s75, 0
    loop: start=0, step=1, limit=4
    $region2: #{forward.3} parent=1 // loop_pre_header
      _
    $region3: #{forward.3} parent=1 // loop_header
      %s78 = sphi 0, %s82
      %p79 = scmp.ge.s32.totalorder %s78, 4
      %s88 = sphi 0, %s90
      %s91 = sphi 0, %s88
      %s92 = sphi 0, %s91
      %s108 = sphi 0, %s92
      %s112 = sphi 0, %s112
      %s114 = sphi 0, %s112
      %s115 = sphi 0, %s114
      %s129 = sphi 0, %s115
      %s133 = sphi 0, %s133
      %s135 = sphi 0, %s133
      %s136 = sphi 0, %s135
      %s150 = sphi 0, %s136
      %s154 = sphi 0, %s154
      %s156 = sphi 0, %s154
      %s157 = sphi 0, %s156
      %s171 = sphi 0, %s157
      %s175 = sphi 0, %s175
      %s177 = sphi 0, %s175
      %s178 = sphi 0, %s177
      %s192 = sphi 0, %s178
      %s196 = sphi 0, %s196
      %s198 = sphi 0, %s196
      %s199 = sphi 0, %s198
      %s213 = sphi 0, %s199
      %s217 = sphi 0, %s217
      %s219 = sphi 0, %s217
      %s220 = sphi 0, %s219
      %s234 = sphi 0, %s220
      %s238 = sphi 0, %s238
      %s240 = sphi 0, %s238
      %s241 = sphi 0, %s240
      %s255 = sphi 0, %s241
      %s259 = sphi 0, %s259
      %s261 = sphi 0, %s259
      %s262 = sphi 0, %s261
      %s276 = sphi 0, %s262
      %s280 = sphi 0, %s280
      %s282 = sphi 0, %s280
      %s283 = sphi 0, %s282
      %s297 = sphi 0, %s283
      %s301 = sphi 0, %s301
      %s303 = sphi 0, %s301
      %s304 = sphi 0, %s303
      %s318 = sphi 0, %s304
      %s322 = sphi 0, %s322
      %s324 = sphi 0, %s322
      %s325 = sphi 0, %s324
      %s339 = sphi 0, %s325
      %s343 = sphi 0, %s343
      %s345 = sphi 0, %s343
      %s346 = sphi 0, %s345
      %s360 = sphi 0, %s346
      %s364 = sphi 0, %s364
      %s366 = sphi 0, %s364
      %s367 = sphi 0, %s366
      %s381 = sphi 0, %s367
      %s385 = sphi 0, %s385
      %s387 = sphi 0, %s385
      %s388 = sphi 0, %s387
      %s402 = sphi 0, %s388
      %s406 = sphi 0, %s406
      %s408 = sphi 0, %s406
      %s409 = sphi 0, %s408
      %s423 = sphi 0, %s409
      %s427 = sphi 0, %s427
      %s429 = sphi 0, %s427
      %s430 = sphi 0, %s429
      %s444 = sphi 0, %s430
      %s448 = sphi 0, %s448
      %s450 = sphi 0, %s448
      %s451 = sphi 0, %s450
      %s465 = sphi 0, %s451
      %s469 = sphi 0, %s469
      %s471 = sphi 0, %s469
      %s472 = sphi 0, %s471
      %s486 = sphi 0, %s472
      %s490 = sphi 0, %s490
      %s492 = sphi 0, %s490
      %s493 = sphi 0, %s492
      %s507 = sphi 0, %s493
      %s511 = sphi 0, %s511
      %s513 = sphi 0, %s511
      %s514 = sphi 0, %s513
      %s528 = sphi 0, %s514
      %s532 = sphi 0, %s532
      %s534 = sphi 0, %s532
      %s535 = sphi 0, %s534
      %s549 = sphi 0, %s535
      %s553 = sphi 0, %s553
      %s555 = sphi 0, %s553
      %s556 = sphi 0, %s555
      %s570 = sphi 0, %s556
      %s574 = sphi 0, %s574
      %s576 = sphi 0, %s574
      %s577 = sphi 0, %s576
      %s591 = sphi 0, %s577
      %s595 = sphi 0, %s595
      %s597 = sphi 0, %s595
      %s598 = sphi 0, %s597
      %s612 = sphi 0, %s598
      %s616 = sphi 0, %s616
      %s618 = sphi 0, %s616
      %s619 = sphi 0, %s618
      %s633 = sphi 0, %s619
      %s637 = sphi 0, %s637
      %s639 = sphi 0, %s637
      %s640 = sphi 0, %s639
      %s654 = sphi 0, %s640
      %s658 = sphi 0, %s658
      %s660 = sphi 0, %s658
      %s661 = sphi 0, %s660
      %s675 = sphi 0, %s661
      %s679 = sphi 0, %s679
      %s681 = sphi 0, %s679
      %s682 = sphi 0, %s681
      %s696 = sphi 0, %s682
      %s700 = sphi 0, %s700
      %s702 = sphi 0, %s700
      %s703 = sphi 0, %s702
      %s717 = sphi 0, %s703
      %s721 = sphi 0, %s721
      %s723 = sphi 0, %s721
      %s724 = sphi 0, %s723
      %s738 = sphi 0, %s724
      %s742 = sphi 0, %s742
      %s744 = sphi 0, %s742
      %s745 = sphi 0, %s744
      %s759 = sphi 0, %s745
      %s763 = sphi 0, %s763
      %s765 = sphi 0, %s763
      %s766 = sphi 0, %s765
      %s780 = sphi 0, %s766
      %s784 = sphi 0, %s784
      %s786 = sphi 0, %s784
      %s787 = sphi 0, %s786
      %s801 = sphi 0, %s787
      %s807 = sphi 0, %s809
      %s810 = sphi 0, %s807
      %s811 = sphi 0, %s810
      %s827 = sphi 0, %s811
    $region4: #{forward.3} parent=1 // loop_header_branch
      %81 = sbr.rel (%p79) target = $region8
    $region5: #{forward.3} parent=1 // loop_body
      %s83 = ssub.s32 %s78, 1
      %s84 = ssub.s32 %s78, 2
      %s85 = sadd.s32 %s78, 1
      %s86 = ssub.s32 %s78, %s85
      %p87 = scmp.eq.s32.totalorder %s86, 0
      %s89 = sadd.s32 %s88, 1
      %s90 = scalar_select %p87, %s88, %s89
      %p93 = pneg %p87
      %p94 = scmp.eq.s32.totalorder %s78, 1
      %p95 = por %p93, %p94
      %p96 = scmp.ne.s32.totalorder %s88, %s91
      %p97 = scmp.eq.s32.totalorder %s78, 0
      %p98 = por %p96, %p97
      %p99 = scmp.ne.s32.totalorder %s88, %s91
      %p100 = scmp.eq.s32.totalorder %s83, 1
      %p101 = por %p99, %p100
      %p102 = scmp.ne.s32.totalorder %s91, %s92
      %p103 = scmp.eq.s32.totalorder %s83, 0
      %p104 = por %p102, %p103
      %p105 = scmp.ne.s32.totalorder %s91, %s92
      %p106 = scmp.eq.s32.totalorder %s84, 1
      %p107 = por %p105, %p106
      %p109 = scmp.ne.s32.totalorder %s92, %s108
      %p110 = scmp.eq.s32.totalorder %s84, 0
      %p111 = por %p109, %p110
      %s113 = sadd.s32 %s112, 1
      %p116 = scmp.eq.s32.totalorder %s78, 1
      %p117 = scmp.ne.s32.totalorder %s112, %s114
      %p118 = scmp.eq.s32.totalorder %s78, 0
      %p119 = por %p117, %p118
      %p120 = scmp.ne.s32.totalorder %s112, %s114
      %p121 = scmp.eq.s32.totalorder %s83, 1
      %p122 = por %p120, %p121
      %p123 = scmp.ne.s32.totalorder %s114, %s115
      %p124 = scmp.eq.s32.totalorder %s83, 0
      %p125 = por %p123, %p124
      %p126 = scmp.ne.s32.totalorder %s114, %s115
      %p127 = scmp.eq.s32.totalorder %s84, 1
      %p128 = por %p126, %p127
      %p130 = scmp.ne.s32.totalorder %s115, %s129
      %p131 = scmp.eq.s32.totalorder %s84, 0
      %p132 = por %p130, %p131
      %s134 = sadd.s32 %s133, 1
      %p137 = scmp.eq.s32.totalorder %s78, 1
      %p138 = scmp.ne.s32.totalorder %s133, %s135
      %p139 = scmp.eq.s32.totalorder %s78, 0
      %p140 = por %p138, %p139
      %p141 = scmp.ne.s32.totalorder %s133, %s135
      %p142 = scmp.eq.s32.totalorder %s83, 1
      %p143 = por %p141, %p142
      %p144 = scmp.ne.s32.totalorder %s135, %s136
      %p145 = scmp.eq.s32.totalorder %s83, 0
      %p146 = por %p144, %p145
      %p147 = scmp.ne.s32.totalorder %s135, %s136
      %p148 = scmp.eq.s32.totalorder %s84, 1
      %p149 = por %p147, %p148
      %p151 = scmp.ne.s32.totalorder %s136, %s150
      %p152 = scmp.eq.s32.totalorder %s84, 0
      %p153 = por %p151, %p152
      %s155 = sadd.s32 %s154, 1
      %p158 = scmp.eq.s32.totalorder %s78, 1
      %p159 = scmp.ne.s32.totalorder %s154, %s156
      %p160 = scmp.eq.s32.totalorder %s78, 0
      %p161 = por %p159, %p160
      %p162 = scmp.ne.s32.totalorder %s154, %s156
      %p163 = scmp.eq.s32.totalorder %s83, 1
      %p164 = por %p162, %p163
      %p165 = scmp.ne.s32.totalorder %s156, %s157
      %p166 = scmp.eq.s32.totalorder %s83, 0
      %p167 = por %p165, %p166
      %p168 = scmp.ne.s32.totalorder %s156, %s157
      %p169 = scmp.eq.s32.totalorder %s84, 1
      %p170 = por %p168, %p169
      %p172 = scmp.ne.s32.totalorder %s157, %s171
      %p173 = scmp.eq.s32.totalorder %s84, 0
      %p174 = por %p172, %p173
      %s176 = sadd.s32 %s175, 1
      %p179 = scmp.eq.s32.totalorder %s78, 1
      %p180 = scmp.ne.s32.totalorder %s175, %s177
      %p181 = scmp.eq.s32.totalorder %s78, 0
      %p182 = por %p180, %p181
      %p183 = scmp.ne.s32.totalorder %s175, %s177
      %p184 = scmp.eq.s32.totalorder %s83, 1
      %p185 = por %p183, %p184
      %p186 = scmp.ne.s32.totalorder %s177, %s178
      %p187 = scmp.eq.s32.totalorder %s83, 0
      %p188 = por %p186, %p187
      %p189 = scmp.ne.s32.totalorder %s177, %s178
      %p190 = scmp.eq.s32.totalorder %s84, 1
      %p191 = por %p189, %p190
      %p193 = scmp.ne.s32.totalorder %s178, %s192
      %p194 = scmp.eq.s32.totalorder %s84, 0
      %p195 = por %p193, %p194
      %s197 = sadd.s32 %s196, 1
      %p200 = scmp.eq.s32.totalorder %s78, 1
      %p201 = scmp.ne.s32.totalorder %s196, %s198
      %p202 = scmp.eq.s32.totalorder %s78, 0
      %p203 = por %p201, %p202
      %p204 = scmp.ne.s32.totalorder %s196, %s198
      %p205 = scmp.eq.s32.totalorder %s83, 1
      %p206 = por %p204, %p205
      %p207 = scmp.ne.s32.totalorder %s198, %s199
      %p208 = scmp.eq.s32.totalorder %s83, 0
      %p209 = por %p207, %p208
      %p210 = scmp.ne.s32.totalorder %s198, %s199
      %p211 = scmp.eq.s32.totalorder %s84, 1
      %p212 = por %p210, %p211
      %p214 = scmp.ne.s32.totalorder %s199, %s213
      %p215 = scmp.eq.s32.totalorder %s84, 0
      %p216 = por %p214, %p215
      %s218 = sadd.s32 %s217, 1
      %p221 = scmp.eq.s32.totalorder %s78, 1
      %p222 = scmp.ne.s32.totalorder %s217, %s219
      %p223 = scmp.eq.s32.totalorder %s78, 0
      %p224 = por %p222, %p223
      %p225 = scmp.ne.s32.totalorder %s217, %s219
      %p226 = scmp.eq.s32.totalorder %s83, 1
      %p227 = por %p225, %p226
      %p228 = scmp.ne.s32.totalorder %s219, %s220
      %p229 = scmp.eq.s32.totalorder %s83, 0
      %p230 = por %p228, %p229
      %p231 = scmp.ne.s32.totalorder %s219, %s220
      %p232 = scmp.eq.s32.totalorder %s84, 1
      %p233 = por %p231, %p232
      %p235 = scmp.ne.s32.totalorder %s220, %s234
      %p236 = scmp.eq.s32.totalorder %s84, 0
      %p237 = por %p235, %p236
      %s239 = sadd.s32 %s238, 1
      %p242 = scmp.eq.s32.totalorder %s78, 1
      %p243 = scmp.ne.s32.totalorder %s238, %s240
      %p244 = scmp.eq.s32.totalorder %s78, 0
      %p245 = por %p243, %p244
      %p246 = scmp.ne.s32.totalorder %s238, %s240
      %p247 = scmp.eq.s32.totalorder %s83, 1
      %p248 = por %p246, %p247
      %p249 = scmp.ne.s32.totalorder %s240, %s241
      %p250 = scmp.eq.s32.totalorder %s83, 0
      %p251 = por %p249, %p250
      %p252 = scmp.ne.s32.totalorder %s240, %s241
      %p253 = scmp.eq.s32.totalorder %s84, 1
      %p254 = por %p252, %p253
      %p256 = scmp.ne.s32.totalorder %s241, %s255
      %p257 = scmp.eq.s32.totalorder %s84, 0
      %p258 = por %p256, %p257
      %s260 = sadd.s32 %s259, 1
      %p263 = scmp.eq.s32.totalorder %s78, 1
      %p264 = scmp.ne.s32.totalorder %s259, %s261
      %p265 = scmp.eq.s32.totalorder %s78, 0
      %p266 = por %p264, %p265
      %p267 = scmp.ne.s32.totalorder %s259, %s261
      %p268 = scmp.eq.s32.totalorder %s83, 1
      %p269 = por %p267, %p268
      %p270 = scmp.ne.s32.totalorder %s261, %s262
      %p271 = scmp.eq.s32.totalorder %s83, 0
      %p272 = por %p270, %p271
      %p273 = scmp.ne.s32.totalorder %s261, %s262
      %p274 = scmp.eq.s32.totalorder %s84, 1
      %p275 = por %p273, %p274
      %p277 = scmp.ne.s32.totalorder %s262, %s276
      %p278 = scmp.eq.s32.totalorder %s84, 0
      %p279 = por %p277, %p278
      %s281 = sadd.s32 %s280, 1
      %p284 = scmp.eq.s32.totalorder %s78, 1
      %p285 = scmp.ne.s32.totalorder %s280, %s282
      %p286 = scmp.eq.s32.totalorder %s78, 0
      %p287 = por %p285, %p286
      %p288 = scmp.ne.s32.totalorder %s280, %s282
      %p289 = scmp.eq.s32.totalorder %s83, 1
      %p290 = por %p288, %p289
      %p291 = scmp.ne.s32.totalorder %s282, %s283
      %p292 = scmp.eq.s32.totalorder %s83, 0
      %p293 = por %p291, %p292
      %p294 = scmp.ne.s32.totalorder %s282, %s283
      %p295 = scmp.eq.s32.totalorder %s84, 1
      %p296 = por %p294, %p295
      %p298 = scmp.ne.s32.totalorder %s283, %s297
      %p299 = scmp.eq.s32.totalorder %s84, 0
      %p300 = por %p298, %p299
      %s302 = sadd.s32 %s301, 1
      %p305 = scmp.eq.s32.totalorder %s78, 1
      %p306 = scmp.ne.s32.totalorder %s301, %s303
      %p307 = scmp.eq.s32.totalorder %s78, 0
      %p308 = por %p306, %p307
      %p309 = scmp.ne.s32.totalorder %s301, %s303
      %p310 = scmp.eq.s32.totalorder %s83, 1
      %p311 = por %p309, %p310
      %p312 = scmp.ne.s32.totalorder %s303, %s304
      %p313 = scmp.eq.s32.totalorder %s83, 0
      %p314 = por %p312, %p313
      %p315 = scmp.ne.s32.totalorder %s303, %s304
      %p316 = scmp.eq.s32.totalorder %s84, 1
      %p317 = por %p315, %p316
      %p319 = scmp.ne.s32.totalorder %s304, %s318
      %p320 = scmp.eq.s32.totalorder %s84, 0
      %p321 = por %p319, %p320
      %s323 = sadd.s32 %s322, 1
      %p326 = scmp.eq.s32.totalorder %s78, 1
      %p327 = scmp.ne.s32.totalorder %s322, %s324
      %p328 = scmp.eq.s32.totalorder %s78, 0
      %p329 = por %p327, %p328
      %p330 = scmp.ne.s32.totalorder %s322, %s324
      %p331 = scmp.eq.s32.totalorder %s83, 1
      %p332 = por %p330, %p331
      %p333 = scmp.ne.s32.totalorder %s324, %s325
      %p334 = scmp.eq.s32.totalorder %s83, 0
      %p335 = por %p333, %p334
      %p336 = scmp.ne.s32.totalorder %s324, %s325
      %p337 = scmp.eq.s32.totalorder %s84, 1
      %p338 = por %p336, %p337
      %p340 = scmp.ne.s32.totalorder %s325, %s339
      %p341 = scmp.eq.s32.totalorder %s84, 0
      %p342 = por %p340, %p341
      %s344 = sadd.s32 %s343, 1
      %p347 = scmp.eq.s32.totalorder %s78, 1
      %p348 = scmp.ne.s32.totalorder %s343, %s345
      %p349 = scmp.eq.s32.totalorder %s78, 0
      %p350 = por %p348, %p349
      %p351 = scmp.ne.s32.totalorder %s343, %s345
      %p352 = scmp.eq.s32.totalorder %s83, 1
      %p353 = por %p351, %p352
      %p354 = scmp.ne.s32.totalorder %s345, %s346
      %p355 = scmp.eq.s32.totalorder %s83, 0
      %p356 = por %p354, %p355
      %p357 = scmp.ne.s32.totalorder %s345, %s346
      %p358 = scmp.eq.s32.totalorder %s84, 1
      %p359 = por %p357, %p358
      %p361 = scmp.ne.s32.totalorder %s346, %s360
      %p362 = scmp.eq.s32.totalorder %s84, 0
      %p363 = por %p361, %p362
      %s365 = sadd.s32 %s364, 1
      %p368 = scmp.eq.s32.totalorder %s78, 1
      %p369 = scmp.ne.s32.totalorder %s364, %s366
      %p370 = scmp.eq.s32.totalorder %s78, 0
      %p371 = por %p369, %p370
      %p372 = scmp.ne.s32.totalorder %s364, %s366
      %p373 = scmp.eq.s32.totalorder %s83, 1
      %p374 = por %p372, %p373
      %p375 = scmp.ne.s32.totalorder %s366, %s367
      %p376 = scmp.eq.s32.totalorder %s83, 0
      %p377 = por %p375, %p376
      %p378 = scmp.ne.s32.totalorder %s366, %s367
      %p379 = scmp.eq.s32.totalorder %s84, 1
      %p380 = por %p378, %p379
      %p382 = scmp.ne.s32.totalorder %s367, %s381
      %p383 = scmp.eq.s32.totalorder %s84, 0
      %p384 = por %p382, %p383
      %s386 = sadd.s32 %s385, 1
      %p389 = scmp.eq.s32.totalorder %s78, 1
      %p390 = scmp.ne.s32.totalorder %s385, %s387
      %p391 = scmp.eq.s32.totalorder %s78, 0
      %p392 = por %p390, %p391
      %p393 = scmp.ne.s32.totalorder %s385, %s387
      %p394 = scmp.eq.s32.totalorder %s83, 1
      %p395 = por %p393, %p394
      %p396 = scmp.ne.s32.totalorder %s387, %s388
      %p397 = scmp.eq.s32.totalorder %s83, 0
      %p398 = por %p396, %p397
      %p399 = scmp.ne.s32.totalorder %s387, %s388
      %p400 = scmp.eq.s32.totalorder %s84, 1
      %p401 = por %p399, %p400
      %p403 = scmp.ne.s32.totalorder %s388, %s402
      %p404 = scmp.eq.s32.totalorder %s84, 0
      %p405 = por %p403, %p404
      %s407 = sadd.s32 %s406, 1
      %p410 = scmp.eq.s32.totalorder %s78, 1
      %p411 = scmp.ne.s32.totalorder %s406, %s408
      %p412 = scmp.eq.s32.totalorder %s78, 0
      %p413 = por %p411, %p412
      %p414 = scmp.ne.s32.totalorder %s406, %s408
      %p415 = scmp.eq.s32.totalorder %s83, 1
      %p416 = por %p414, %p415
      %p417 = scmp.ne.s32.totalorder %s408, %s409
      %p418 = scmp.eq.s32.totalorder %s83, 0
      %p419 = por %p417, %p418
      %p420 = scmp.ne.s32.totalorder %s408, %s409
      %p421 = scmp.eq.s32.totalorder %s84, 1
      %p422 = por %p420, %p421
      %p424 = scmp.ne.s32.totalorder %s409, %s423
      %p425 = scmp.eq.s32.totalorder %s84, 0
      %p426 = por %p424, %p425
      %s428 = sadd.s32 %s427, 1
      %p431 = scmp.eq.s32.totalorder %s78, 1
      %p432 = scmp.ne.s32.totalorder %s427, %s429
      %p433 = scmp.eq.s32.totalorder %s78, 0
      %p434 = por %p432, %p433
      %p435 = scmp.ne.s32.totalorder %s427, %s429
      %p436 = scmp.eq.s32.totalorder %s83, 1
      %p437 = por %p435, %p436
      %p438 = scmp.ne.s32.totalorder %s429, %s430
      %p439 = scmp.eq.s32.totalorder %s83, 0
      %p440 = por %p438, %p439
      %p441 = scmp.ne.s32.totalorder %s429, %s430
      %p442 = scmp.eq.s32.totalorder %s84, 1
      %p443 = por %p441, %p442
      %p445 = scmp.ne.s32.totalorder %s430, %s444
      %p446 = scmp.eq.s32.totalorder %s84, 0
      %p447 = por %p445, %p446
      %s449 = sadd.s32 %s448, 1
      %p452 = scmp.eq.s32.totalorder %s78, 1
      %p453 = scmp.ne.s32.totalorder %s448, %s450
      %p454 = scmp.eq.s32.totalorder %s78, 0
      %p455 = por %p453, %p454
      %p456 = scmp.ne.s32.totalorder %s448, %s450
      %p457 = scmp.eq.s32.totalorder %s83, 1
      %p458 = por %p456, %p457
      %p459 = scmp.ne.s32.totalorder %s450, %s451
      %p460 = scmp.eq.s32.totalorder %s83, 0
      %p461 = por %p459, %p460
      %p462 = scmp.ne.s32.totalorder %s450, %s451
      %p463 = scmp.eq.s32.totalorder %s84, 1
      %p464 = por %p462, %p463
      %p466 = scmp.ne.s32.totalorder %s451, %s465
      %p467 = scmp.eq.s32.totalorder %s84, 0
      %p468 = por %p466, %p467
      %s470 = sadd.s32 %s469, 1
      %p473 = scmp.eq.s32.totalorder %s78, 1
      %p474 = scmp.ne.s32.totalorder %s469, %s471
      %p475 = scmp.eq.s32.totalorder %s78, 0
      %p476 = por %p474, %p475
      %p477 = scmp.ne.s32.totalorder %s469, %s471
      %p478 = scmp.eq.s32.totalorder %s83, 1
      %p479 = por %p477, %p478
      %p480 = scmp.ne.s32.totalorder %s471, %s472
      %p481 = scmp.eq.s32.totalorder %s83, 0
      %p482 = por %p480, %p481
      %p483 = scmp.ne.s32.totalorder %s471, %s472
      %p484 = scmp.eq.s32.totalorder %s84, 1
      %p485 = por %p483, %p484
      %p487 = scmp.ne.s32.totalorder %s472, %s486
      %p488 = scmp.eq.s32.totalorder %s84, 0
      %p489 = por %p487, %p488
      %s491 = sadd.s32 %s490, 1
      %p494 = scmp.eq.s32.totalorder %s78, 1
      %p495 = scmp.ne.s32.totalorder %s490, %s492
      %p496 = scmp.eq.s32.totalorder %s78, 0
      %p497 = por %p495, %p496
      %p498 = scmp.ne.s32.totalorder %s490, %s492
      %p499 = scmp.eq.s32.totalorder %s83, 1
      %p500 = por %p498, %p499
      %p501 = scmp.ne.s32.totalorder %s492, %s493
      %p502 = scmp.eq.s32.totalorder %s83, 0
      %p503 = por %p501, %p502
      %p504 = scmp.ne.s32.totalorder %s492, %s493
      %p505 = scmp.eq.s32.totalorder %s84, 1
      %p506 = por %p504, %p505
      %p508 = scmp.ne.s32.totalorder %s493, %s507
      %p509 = scmp.eq.s32.totalorder %s84, 0
      %p510 = por %p508, %p509
      %s512 = sadd.s32 %s511, 1
      %p515 = scmp.eq.s32.totalorder %s78, 1
      %p516 = scmp.ne.s32.totalorder %s511, %s513
      %p517 = scmp.eq.s32.totalorder %s78, 0
      %p518 = por %p516, %p517
      %p519 = scmp.ne.s32.totalorder %s511, %s513
      %p520 = scmp.eq.s32.totalorder %s83, 1
      %p521 = por %p519, %p520
      %p522 = scmp.ne.s32.totalorder %s513, %s514
      %p523 = scmp.eq.s32.totalorder %s83, 0
      %p524 = por %p522, %p523
      %p525 = scmp.ne.s32.totalorder %s513, %s514
      %p526 = scmp.eq.s32.totalorder %s84, 1
      %p527 = por %p525, %p526
      %p529 = scmp.ne.s32.totalorder %s514, %s528
      %p530 = scmp.eq.s32.totalorder %s84, 0
      %p531 = por %p529, %p530
      %s533 = sadd.s32 %s532, 1
      %p536 = scmp.eq.s32.totalorder %s78, 1
      %p537 = scmp.ne.s32.totalorder %s532, %s534
      %p538 = scmp.eq.s32.totalorder %s78, 0
      %p539 = por %p537, %p538
      %p540 = scmp.ne.s32.totalorder %s532, %s534
      %p541 = scmp.eq.s32.totalorder %s83, 1
      %p542 = por %p540, %p541
      %p543 = scmp.ne.s32.totalorder %s534, %s535
      %p544 = scmp.eq.s32.totalorder %s83, 0
      %p545 = por %p543, %p544
      %p546 = scmp.ne.s32.totalorder %s534, %s535
      %p547 = scmp.eq.s32.totalorder %s84, 1
      %p548 = por %p546, %p547
      %p550 = scmp.ne.s32.totalorder %s535, %s549
      %p551 = scmp.eq.s32.totalorder %s84, 0
      %p552 = por %p550, %p551
      %s554 = sadd.s32 %s553, 1
      %p557 = scmp.eq.s32.totalorder %s78, 1
      %p558 = scmp.ne.s32.totalorder %s553, %s555
      %p559 = scmp.eq.s32.totalorder %s78, 0
      %p560 = por %p558, %p559
      %p561 = scmp.ne.s32.totalorder %s553, %s555
      %p562 = scmp.eq.s32.totalorder %s83, 1
      %p563 = por %p561, %p562
      %p564 = scmp.ne.s32.totalorder %s555, %s556
      %p565 = scmp.eq.s32.totalorder %s83, 0
      %p566 = por %p564, %p565
      %p567 = scmp.ne.s32.totalorder %s555, %s556
      %p568 = scmp.eq.s32.totalorder %s84, 1
      %p569 = por %p567, %p568
      %p571 = scmp.ne.s32.totalorder %s556, %s570
      %p572 = scmp.eq.s32.totalorder %s84, 0
      %p573 = por %p571, %p572
      %s575 = sadd.s32 %s574, 1
      %p578 = scmp.eq.s32.totalorder %s78, 1
      %p579 = scmp.ne.s32.totalorder %s574, %s576
      %p580 = scmp.eq.s32.totalorder %s78, 0
      %p581 = por %p579, %p580
      %p582 = scmp.ne.s32.totalorder %s574, %s576
      %p583 = scmp.eq.s32.totalorder %s83, 1
      %p584 = por %p582, %p583
      %p585 = scmp.ne.s32.totalorder %s576, %s577
      %p586 = scmp.eq.s32.totalorder %s83, 0
      %p587 = por %p585, %p586
      %p588 = scmp.ne.s32.totalorder %s576, %s577
      %p589 = scmp.eq.s32.totalorder %s84, 1
      %p590 = por %p588, %p589
      %p592 = scmp.ne.s32.totalorder %s577, %s591
      %p593 = scmp.eq.s32.totalorder %s84, 0
      %p594 = por %p592, %p593
      %s596 = sadd.s32 %s595, 1
      %p599 = scmp.eq.s32.totalorder %s78, 1
      %p600 = scmp.ne.s32.totalorder %s595, %s597
      %p601 = scmp.eq.s32.totalorder %s78, 0
      %p602 = por %p600, %p601
      %p603 = scmp.ne.s32.totalorder %s595, %s597
      %p604 = scmp.eq.s32.totalorder %s83, 1
      %p605 = por %p603, %p604
      %p606 = scmp.ne.s32.totalorder %s597, %s598
      %p607 = scmp.eq.s32.totalorder %s83, 0
      %p608 = por %p606, %p607
      %p609 = scmp.ne.s32.totalorder %s597, %s598
      %p610 = scmp.eq.s32.totalorder %s84, 1
      %p611 = por %p609, %p610
      %p613 = scmp.ne.s32.totalorder %s598, %s612
      %p614 = scmp.eq.s32.totalorder %s84, 0
      %p615 = por %p613, %p614
      %s617 = sadd.s32 %s616, 1
      %p620 = scmp.eq.s32.totalorder %s78, 1
      %p621 = scmp.ne.s32.totalorder %s616, %s618
      %p622 = scmp.eq.s32.totalorder %s78, 0
      %p623 = por %p621, %p622
      %p624 = scmp.ne.s32.totalorder %s616, %s618
      %p625 = scmp.eq.s32.totalorder %s83, 1
      %p626 = por %p624, %p625
      %p627 = scmp.ne.s32.totalorder %s618, %s619
      %p628 = scmp.eq.s32.totalorder %s83, 0
      %p629 = por %p627, %p628
      %p630 = scmp.ne.s32.totalorder %s618, %s619
      %p631 = scmp.eq.s32.totalorder %s84, 1
      %p632 = por %p630, %p631
      %p634 = scmp.ne.s32.totalorder %s619, %s633
      %p635 = scmp.eq.s32.totalorder %s84, 0
      %p636 = por %p634, %p635
      %s638 = sadd.s32 %s637, 1
      %p641 = scmp.eq.s32.totalorder %s78, 1
      %p642 = scmp.ne.s32.totalorder %s637, %s639
      %p643 = scmp.eq.s32.totalorder %s78, 0
      %p644 = por %p642, %p643
      %p645 = scmp.ne.s32.totalorder %s637, %s639
      %p646 = scmp.eq.s32.totalorder %s83, 1
      %p647 = por %p645, %p646
      %p648 = scmp.ne.s32.totalorder %s639, %s640
      %p649 = scmp.eq.s32.totalorder %s83, 0
      %p650 = por %p648, %p649
      %p651 = scmp.ne.s32.totalorder %s639, %s640
      %p652 = scmp.eq.s32.totalorder %s84, 1
      %p653 = por %p651, %p652
      %p655 = scmp.ne.s32.totalorder %s640, %s654
      %p656 = scmp.eq.s32.totalorder %s84, 0
      %p657 = por %p655, %p656
      %s659 = sadd.s32 %s658, 1
      %p662 = scmp.eq.s32.totalorder %s78, 1
      %p663 = scmp.ne.s32.totalorder %s658, %s660
      %p664 = scmp.eq.s32.totalorder %s78, 0
      %p665 = por %p663, %p664
      %p666 = scmp.ne.s32.totalorder %s658, %s660
      %p667 = scmp.eq.s32.totalorder %s83, 1
      %p668 = por %p666, %p667
      %p669 = scmp.ne.s32.totalorder %s660, %s661
      %p670 = scmp.eq.s32.totalorder %s83, 0
      %p671 = por %p669, %p670
      %p672 = scmp.ne.s32.totalorder %s660, %s661
      %p673 = scmp.eq.s32.totalorder %s84, 1
      %p674 = por %p672, %p673
      %p676 = scmp.ne.s32.totalorder %s661, %s675
      %p677 = scmp.eq.s32.totalorder %s84, 0
      %p678 = por %p676, %p677
      %s680 = sadd.s32 %s679, 1
      %p683 = scmp.eq.s32.totalorder %s78, 1
      %p684 = scmp.ne.s32.totalorder %s679, %s681
      %p685 = scmp.eq.s32.totalorder %s78, 0
      %p686 = por %p684, %p685
      %p687 = scmp.ne.s32.totalorder %s679, %s681
      %p688 = scmp.eq.s32.totalorder %s83, 1
      %p689 = por %p687, %p688
      %p690 = scmp.ne.s32.totalorder %s681, %s682
      %p691 = scmp.eq.s32.totalorder %s83, 0
      %p692 = por %p690, %p691
      %p693 = scmp.ne.s32.totalorder %s681, %s682
      %p694 = scmp.eq.s32.totalorder %s84, 1
      %p695 = por %p693, %p694
      %p697 = scmp.ne.s32.totalorder %s682, %s696
      %p698 = scmp.eq.s32.totalorder %s84, 0
      %p699 = por %p697, %p698
      %s701 = sadd.s32 %s700, 1
      %p704 = scmp.eq.s32.totalorder %s78, 1
      %p705 = scmp.ne.s32.totalorder %s700, %s702
      %p706 = scmp.eq.s32.totalorder %s78, 0
      %p707 = por %p705, %p706
      %p708 = scmp.ne.s32.totalorder %s700, %s702
      %p709 = scmp.eq.s32.totalorder %s83, 1
      %p710 = por %p708, %p709
      %p711 = scmp.ne.s32.totalorder %s702, %s703
      %p712 = scmp.eq.s32.totalorder %s83, 0
      %p713 = por %p711, %p712
      %p714 = scmp.ne.s32.totalorder %s702, %s703
      %p715 = scmp.eq.s32.totalorder %s84, 1
      %p716 = por %p714, %p715
      %p718 = scmp.ne.s32.totalorder %s703, %s717
      %p719 = scmp.eq.s32.totalorder %s84, 0
      %p720 = por %p718, %p719
      %s722 = sadd.s32 %s721, 1
      %p725 = scmp.eq.s32.totalorder %s78, 1
      %p726 = scmp.ne.s32.totalorder %s721, %s723
      %p727 = scmp.eq.s32.totalorder %s78, 0
      %p728 = por %p726, %p727
      %p729 = scmp.ne.s32.totalorder %s721, %s723
      %p730 = scmp.eq.s32.totalorder %s83, 1
      %p731 = por %p729, %p730
      %p732 = scmp.ne.s32.totalorder %s723, %s724
      %p733 = scmp.eq.s32.totalorder %s83, 0
      %p734 = por %p732, %p733
      %p735 = scmp.ne.s32.totalorder %s723, %s724
      %p736 = scmp.eq.s32.totalorder %s84, 1
      %p737 = por %p735, %p736
      %p739 = scmp.ne.s32.totalorder %s724, %s738
      %p740 = scmp.eq.s32.totalorder %s84, 0
      %p741 = por %p739, %p740
      %s743 = sadd.s32 %s742, 1
      %p746 = scmp.eq.s32.totalorder %s78, 1
      %p747 = scmp.ne.s32.totalorder %s742, %s744
      %p748 = scmp.eq.s32.totalorder %s78, 0
      %p749 = por %p747, %p748
      %p750 = scmp.ne.s32.totalorder %s742, %s744
      %p751 = scmp.eq.s32.totalorder %s83, 1
      %p752 = por %p750, %p751
      %p753 = scmp.ne.s32.totalorder %s744, %s745
      %p754 = scmp.eq.s32.totalorder %s83, 0
      %p755 = por %p753, %p754
      %p756 = scmp.ne.s32.totalorder %s744, %s745
      %p757 = scmp.eq.s32.totalorder %s84, 1
      %p758 = por %p756, %p757
      %p760 = scmp.ne.s32.totalorder %s745, %s759
      %p761 = scmp.eq.s32.totalorder %s84, 0
      %p762 = por %p760, %p761
      %s764 = sadd.s32 %s763, 1
      %p767 = scmp.eq.s32.totalorder %s78, 1
      %p768 = scmp.ne.s32.totalorder %s763, %s765
      %p769 = scmp.eq.s32.totalorder %s78, 0
      %p770 = por %p768, %p769
      %p771 = scmp.ne.s32.totalorder %s763, %s765
      %p772 = scmp.eq.s32.totalorder %s83, 1
      %p773 = por %p771, %p772
      %p774 = scmp.ne.s32.totalorder %s765, %s766
      %p775 = scmp.eq.s32.totalorder %s83, 0
      %p776 = por %p774, %p775
      %p777 = scmp.ne.s32.totalorder %s765, %s766
      %p778 = scmp.eq.s32.totalorder %s84, 1
      %p779 = por %p777, %p778
      %p781 = scmp.ne.s32.totalorder %s766, %s780
      %p782 = scmp.eq.s32.totalorder %s84, 0
      %p783 = por %p781, %p782
      %s785 = sadd.s32 %s784, 1
      %p788 = scmp.eq.s32.totalorder %s78, 1
      %p789 = scmp.ne.s32.totalorder %s784, %s786
      %p790 = scmp.eq.s32.totalorder %s78, 0
      %p791 = por %p789, %p790
      %p792 = scmp.ne.s32.totalorder %s784, %s786
      %p793 = scmp.eq.s32.totalorder %s83, 1
      %p794 = por %p792, %p793
      %p795 = scmp.ne.s32.totalorder %s786, %s787
      %p796 = scmp.eq.s32.totalorder %s83, 0
      %p797 = por %p795, %p796
      %p798 = scmp.ne.s32.totalorder %s786, %s787
      %p799 = scmp.eq.s32.totalorder %s84, 1
      %p800 = por %p798, %p799
      %p802 = scmp.ne.s32.totalorder %s787, %s801
      %p803 = scmp.eq.s32.totalorder %s84, 0
      %p804 = por %p802, %p803
      %s805 = ssub.s32 %s78, %s85
      %p806 = scmp.eq.s32.totalorder %s805, 0
      %s808 = sadd.s32 %s807, 1
      %s809 = scalar_select %p806, %s807, %s808
      %p812 = pneg %p806
      %p813 = scmp.eq.s32.totalorder %s78, 1
      %p814 = por %p812, %p813
      %p815 = scmp.ne.s32.totalorder %s807, %s810
      %p816 = scmp.eq.s32.totalorder %s78, 0
      %p817 = por %p815, %p816
      %p818 = scmp.ne.s32.totalorder %s807, %s810
      %p819 = scmp.eq.s32.totalorder %s83, 1
      %p820 = por %p818, %p819
      %p821 = scmp.ne.s32.totalorder %s810, %s811
      %p822 = scmp.eq.s32.totalorder %s83, 0
      %p823 = por %p821, %p822
      %p824 = scmp.ne.s32.totalorder %s810, %s811
      %p825 = scmp.eq.s32.totalorder %s84, 1
      %p826 = por %p824, %p825
      %p828 = scmp.ne.s32.totalorder %s811, %s827
      %p829 = scmp.eq.s32.totalorder %s84, 0
      %p830 = por %p828, %p829
      %p831 = scmp.le.s32.totalorder 1, %s78
      %p832 = scmp.lt.s32.totalorder %s78, 3
      %p833 = pnand %p831, %p832
      %p834 = pneg %p833
      // Predicated region
      $region9: #{forward.3} parent=5 // pred_check
        _
      $region10: #{forward.3} parent=5 // pred_check_branch
        %836 = sbr.rel (%p833) target = $region12
      $region11: #{forward.3} parent=5 // pred_region
        %s837 = ssub.s32 %s78, 1
        // Predicated region
        $region13: #{forward.3} parent=11 // pred_check
          %p838 = pneg %p125
        $region14: #{forward.3} parent=11 // pred_check_branch
          %840 = sbr.rel (%p838) target = $region16
        $region15: #{forward.3} parent=11 // pred_region
          _
        $region16: #{forward.3} parent=11 // pred_fallthru
          _
        // Predicated region
        $region17: #{forward.3} parent=11 // pred_check
          %p841 = pneg %p146
        $region18: #{forward.3} parent=11 // pred_check_branch
          %843 = sbr.rel (%p841) target = $region20
        $region19: #{forward.3} parent=11 // pred_region
          _
        $region20: #{forward.3} parent=11 // pred_fallthru
          _
        // Predicated region
        $region21: #{forward.3} parent=11 // pred_check
          %p844 = pneg %p167
        $region22: #{forward.3} parent=11 // pred_check_branch
          %846 = sbr.rel (%p844) target = $region24
        $region23: #{forward.3} parent=11 // pred_region
          _
        $region24: #{forward.3} parent=11 // pred_fallthru
          _
        // Predicated region
        $region25: #{forward.3} parent=11 // pred_check
          %p847 = pneg %p188
        $region26: #{forward.3} parent=11 // pred_check_branch
          %849 = sbr.rel (%p847) target = $region28
        $region27: #{forward.3} parent=11 // pred_region
          _
        $region28: #{forward.3} parent=11 // pred_fallthru
          _
        // Predicated region
        $region29: #{forward.3} parent=11 // pred_check
          %p850 = pneg %p209
        $region30: #{forward.3} parent=11 // pred_check_branch
          %852 = sbr.rel (%p850) target = $region32
        $region31: #{forward.3} parent=11 // pred_region
          _
        $region32: #{forward.3} parent=11 // pred_fallthru
          _
        // Predicated region
        $region33: #{forward.3} parent=11 // pred_check
          %p853 = pneg %p230
        $region34: #{forward.3} parent=11 // pred_check_branch
          %855 = sbr.rel (%p853) target = $region36
        $region35: #{forward.3} parent=11 // pred_region
          _
        $region36: #{forward.3} parent=11 // pred_fallthru
          _
        // Predicated region
        $region37: #{forward.3} parent=11 // pred_check
          %p856 = pneg %p251
        $region38: #{forward.3} parent=11 // pred_check_branch
          %858 = sbr.rel (%p856) target = $region40
        $region39: #{forward.3} parent=11 // pred_region
          _
        $region40: #{forward.3} parent=11 // pred_fallthru
          _
        // Predicated region
        $region41: #{forward.3} parent=11 // pred_check
          %p859 = pneg %p272
        $region42: #{forward.3} parent=11 // pred_check_branch
          %861 = sbr.rel (%p859) target = $region44
        $region43: #{forward.3} parent=11 // pred_region
          _
        $region44: #{forward.3} parent=11 // pred_fallthru
          _
        // Predicated region
        $region45: #{forward.3} parent=11 // pred_check
          %p862 = pneg %p293
        $region46: #{forward.3} parent=11 // pred_check_branch
          %864 = sbr.rel (%p862) target = $region48
        $region47: #{forward.3} parent=11 // pred_region
          _
        $region48: #{forward.3} parent=11 // pred_fallthru
          _
        // Predicated region
        $region49: #{forward.3} parent=11 // pred_check
          %p865 = pneg %p314
        $region50: #{forward.3} parent=11 // pred_check_branch
          %867 = sbr.rel (%p865) target = $region52
        $region51: #{forward.3} parent=11 // pred_region
          _
        $region52: #{forward.3} parent=11 // pred_fallthru
          _
        // Predicated region
        $region53: #{forward.3} parent=11 // pred_check
          %p868 = pneg %p335
        $region54: #{forward.3} parent=11 // pred_check_branch
          %870 = sbr.rel (%p868) target = $region56
        $region55: #{forward.3} parent=11 // pred_region
          _
        $region56: #{forward.3} parent=11 // pred_fallthru
          _
        // Predicated region
        $region57: #{forward.3} parent=11 // pred_check
          %p871 = pneg %p356
        $region58: #{forward.3} parent=11 // pred_check_branch
          %873 = sbr.rel (%p871) target = $region60
        $region59: #{forward.3} parent=11 // pred_region
          _
        $region60: #{forward.3} parent=11 // pred_fallthru
          _
        // Predicated region
        $region61: #{forward.3} parent=11 // pred_check
          %p874 = pneg %p377
        $region62: #{forward.3} parent=11 // pred_check_branch
          %876 = sbr.rel (%p874) target = $region64
        $region63: #{forward.3} parent=11 // pred_region
          _
        $region64: #{forward.3} parent=11 // pred_fallthru
          _
        // Predicated region
        $region65: #{forward.3} parent=11 // pred_check
          %p877 = pneg %p398
        $region66: #{forward.3} parent=11 // pred_check_branch
          %879 = sbr.rel (%p877) target = $region68
        $region67: #{forward.3} parent=11 // pred_region
          _
        $region68: #{forward.3} parent=11 // pred_fallthru
          _
        // Predicated region
        $region69: #{forward.3} parent=11 // pred_check
          %p880 = pneg %p419
        $region70: #{forward.3} parent=11 // pred_check_branch
          %882 = sbr.rel (%p880) target = $region72
        $region71: #{forward.3} parent=11 // pred_region
          _
        $region72: #{forward.3} parent=11 // pred_fallthru
          _
        // Predicated region
        $region73: #{forward.3} parent=11 // pred_check
          %p883 = pneg %p440
        $region74: #{forward.3} parent=11 // pred_check_branch
          %885 = sbr.rel (%p883) target = $region76
        $region75: #{forward.3} parent=11 // pred_region
          _
        $region76: #{forward.3} parent=11 // pred_fallthru
          _
        // Predicated region
        $region77: #{forward.3} parent=11 // pred_check
          %p886 = pneg %p461
        $region78: #{forward.3} parent=11 // pred_check_branch
          %888 = sbr.rel (%p886) target = $region80
        $region79: #{forward.3} parent=11 // pred_region
          _
        $region80: #{forward.3} parent=11 // pred_fallthru
          _
        // Predicated region
        $region81: #{forward.3} parent=11 // pred_check
          %p889 = pneg %p482
        $region82: #{forward.3} parent=11 // pred_check_branch
          %891 = sbr.rel (%p889) target = $region84
        $region83: #{forward.3} parent=11 // pred_region
          _
        $region84: #{forward.3} parent=11 // pred_fallthru
          _
        // Predicated region
        $region85: #{forward.3} parent=11 // pred_check
          %p892 = pneg %p503
        $region86: #{forward.3} parent=11 // pred_check_branch
          %894 = sbr.rel (%p892) target = $region88
        $region87: #{forward.3} parent=11 // pred_region
          _
        $region88: #{forward.3} parent=11 // pred_fallthru
          _
        // Predicated region
        $region89: #{forward.3} parent=11 // pred_check
          %p895 = pneg %p524
        $region90: #{forward.3} parent=11 // pred_check_branch
          %897 = sbr.rel (%p895) target = $region92
        $region91: #{forward.3} parent=11 // pred_region
          _
        $region92: #{forward.3} parent=11 // pred_fallthru
          _
        // Predicated region
        $region93: #{forward.3} parent=11 // pred_check
          %p898 = pneg %p545
        $region94: #{forward.3} parent=11 // pred_check_branch
          %900 = sbr.rel (%p898) target = $region96
        $region95: #{forward.3} parent=11 // pred_region
          _
        $region96: #{forward.3} parent=11 // pred_fallthru
          _
        // Predicated region
        $region97: #{forward.3} parent=11 // pred_check
          %p901 = pneg %p566
        $region98: #{forward.3} parent=11 // pred_check_branch
          %903 = sbr.rel (%p901) target = $region100
        $region99: #{forward.3} parent=11 // pred_region
          _
        $region100: #{forward.3} parent=11 // pred_fallthru
          _
        // Predicated region
        $region101: #{forward.3} parent=11 // pred_check
          %p904 = pneg %p587
        $region102: #{forward.3} parent=11 // pred_check_branch
          %906 = sbr.rel (%p904) target = $region104
        $region103: #{forward.3} parent=11 // pred_region
          _
        $region104: #{forward.3} parent=11 // pred_fallthru
          _
        // Predicated region
        $region105: #{forward.3} parent=11 // pred_check
          %p907 = pneg %p608
        $region106: #{forward.3} parent=11 // pred_check_branch
          %909 = sbr.rel (%p907) target = $region108
        $region107: #{forward.3} parent=11 // pred_region
          _
        $region108: #{forward.3} parent=11 // pred_fallthru
          _
        // Predicated region
        $region109: #{forward.3} parent=11 // pred_check
          %p910 = pneg %p629
        $region110: #{forward.3} parent=11 // pred_check_branch
          %912 = sbr.rel (%p910) target = $region112
        $region111: #{forward.3} parent=11 // pred_region
          _
        $region112: #{forward.3} parent=11 // pred_fallthru
          _
        // Predicated region
        $region113: #{forward.3} parent=11 // pred_check
          %p913 = pneg %p650
        $region114: #{forward.3} parent=11 // pred_check_branch
          %915 = sbr.rel (%p913) target = $region116
        $region115: #{forward.3} parent=11 // pred_region
          _
        $region116: #{forward.3} parent=11 // pred_fallthru
          _
        // Predicated region
        $region117: #{forward.3} parent=11 // pred_check
          %p916 = pneg %p671
        $region118: #{forward.3} parent=11 // pred_check_branch
          %918 = sbr.rel (%p916) target = $region120
        $region119: #{forward.3} parent=11 // pred_region
          _
        $region120: #{forward.3} parent=11 // pred_fallthru
          _
        // Predicated region
        $region121: #{forward.3} parent=11 // pred_check
          %p919 = pneg %p692
        $region122: #{forward.3} parent=11 // pred_check_branch
          %921 = sbr.rel (%p919) target = $region124
        $region123: #{forward.3} parent=11 // pred_region
          _
        $region124: #{forward.3} parent=11 // pred_fallthru
          _
        // Predicated region
        $region125: #{forward.3} parent=11 // pred_check
          %p922 = pneg %p713
        $region126: #{forward.3} parent=11 // pred_check_branch
          %924 = sbr.rel (%p922) target = $region128
        $region127: #{forward.3} parent=11 // pred_region
          _
        $region128: #{forward.3} parent=11 // pred_fallthru
          _
        // Predicated region
        $region129: #{forward.3} parent=11 // pred_check
          %p925 = pneg %p734
        $region130: #{forward.3} parent=11 // pred_check_branch
          %927 = sbr.rel (%p925) target = $region132
        $region131: #{forward.3} parent=11 // pred_region
          _
        $region132: #{forward.3} parent=11 // pred_fallthru
          _
        // Predicated region
        $region133: #{forward.3} parent=11 // pred_check
          %p928 = pneg %p755
        $region134: #{forward.3} parent=11 // pred_check_branch
          %930 = sbr.rel (%p928) target = $region136
        $region135: #{forward.3} parent=11 // pred_region
          _
        $region136: #{forward.3} parent=11 // pred_fallthru
          _
        // Predicated region
        $region137: #{forward.3} parent=11 // pred_check
          %p931 = pneg %p776
        $region138: #{forward.3} parent=11 // pred_check_branch
          %933 = sbr.rel (%p931) target = $region140
        $region139: #{forward.3} parent=11 // pred_region
          _
        $region140: #{forward.3} parent=11 // pred_fallthru
          _
        // Predicated region
        $region141: #{forward.3} parent=11 // pred_check
          %p934 = pneg %p797
        $region142: #{forward.3} parent=11 // pred_check_branch
          %936 = sbr.rel (%p934) target = $region144
        $region143: #{forward.3} parent=11 // pred_region
          _
        $region144: #{forward.3} parent=11 // pred_fallthru
          _
      $region12: #{forward.3} parent=5 // pred_fallthru
        _
      %p937 = scmp.lt.s32.totalorder %s78, 2
      // Predicated region
      $region145: #{forward.3} parent=5 // pred_check
        %p938 = pneg %p937
      $region146: #{forward.3} parent=5 // pred_check_branch
        %940 = sbr.rel (%p938) target = $region148
      $region147: #{forward.3} parent=5 // pred_region
        // Predicated region
        $region149: #{forward.3} parent=147 // pred_check
          %p941 = pneg %p98
        $region150: #{forward.3} parent=147 // pred_check_branch
          %943 = sbr.rel (%p941) target = $region152
        $region151: #{forward.3} parent=147 // pred_region
          %p944 = scmp.lt.s32.totalorder %s78, 1
          %s945 = scalar_select %p944, %s78, 1
          %s946 = smul.addr %s945, 2
          %s947 = smul.addr %s946, 8
          %s948 = scalar_lea.vmem %s1, %s947
        $region152: #{forward.3} parent=147 // pred_fallthru
          _
      $region148: #{forward.3} parent=5 // pred_fallthru
        _
      %p949 = scmp.le.s32.totalorder 1, %s78
      %p950 = scmp.lt.s32.totalorder %s78, 3
      %p951 = pnand %p949, %p950
      %p952 = pneg %p951
      // Predicated region
      $region153: #{forward.3} parent=5 // pred_check
        _
      $region154: #{forward.3} parent=5 // pred_check_branch
        %954 = sbr.rel (%p951) target = $region156
      $region155: #{forward.3} parent=5 // pred_region
        %s955 = ssub.s32 %s78, 1
        %p956 = scmp.lt.s32.totalorder %s83, 1
        %s957 = scalar_select %p956, %s83, 1
        %s958 = smul.addr %s957, 2
        %s959 = smul.addr %s958, 8
        %s960 = scalar_lea.vmem %s1, %s959
        %p961 = pneg %p104
        %p962 = pneg %p101
        %p963 = pneg %p125
        %p964 = pneg %p122
        %p965 = pneg %p146
        %p966 = pneg %p143
        %p967 = pneg %p167
        %p968 = pneg %p164
        %p969 = pneg %p188
        %p970 = pneg %p185
        %p971 = pneg %p209
        %p972 = pneg %p206
        %p973 = pneg %p230
        %p974 = pneg %p227
        %p975 = pneg %p251
        %p976 = pneg %p248
        %p977 = pneg %p272
        %p978 = pneg %p269
        %p979 = pneg %p293
        %p980 = pneg %p290
        %p981 = pneg %p314
        %p982 = pneg %p311
        %p983 = pneg %p335
        %p984 = pneg %p332
        %p985 = pneg %p356
        %p986 = pneg %p353
        %p987 = pneg %p377
        %p988 = pneg %p374
        %p989 = pneg %p398
        %p990 = pneg %p395
        %p991 = pneg %p419
        %p992 = pneg %p416
        %p993 = pneg %p440
        %p994 = pneg %p437
        %p995 = pneg %p461
        %p996 = pneg %p458
        %p997 = pneg %p482
        %p998 = pneg %p479
        %p999 = pneg %p503
        %p1000 = pneg %p500
        %p1001 = pneg %p524
        %p1002 = pneg %p521
        %p1003 = pneg %p545
        %p1004 = pneg %p542
        %p1005 = pneg %p566
        %p1006 = pneg %p563
        %p1007 = pneg %p587
        %p1008 = pneg %p584
        %p1009 = pneg %p608
        %p1010 = pneg %p605
        %p1011 = pneg %p629
        %p1012 = pneg %p626
        %p1013 = pneg %p650
        %p1014 = pneg %p647
        %p1015 = pneg %p671
        %p1016 = pneg %p668
        %p1017 = pneg %p692
        %p1018 = pneg %p689
        %p1019 = pneg %p713
        %p1020 = pneg %p710
        %p1021 = pneg %p734
        %p1022 = pneg %p731
        %p1023 = pneg %p755
        %p1024 = pneg %p752
        %p1025 = pneg %p776
        %p1026 = pneg %p773
        %p1027 = pneg %p797
        %p1028 = pneg %p794
        %p1029 = pneg %p823
        %p1030 = pneg %p820
        %s1031 = sand.u32 %s810, 1
        %s1032 = scalar_lea.sflag [#allocation3], %s1031
        %s1033 = sand.u32 %s810, 1
        %s1034 = scalar_lea.vmem [#allocation2], %s1033
        %p1035 = scmp.lt.s32.totalorder %s83, 1
        %s1036 = scalar_select %p1035, %s83, 1
        %s1037 = smul.addr %s1036, 2
        %s1038 = smul.addr %s1037, 8
        %s1039 = scalar_lea.vmem %s1, %s1038
        %v1041 = vld [vmem:[%s1039] sm:$0xff]
        %v1042 = vld [vmem:[%s1039 + $0x8] sm:$0xff]
        %v1043 = vld [vmem:[%s3] sm:$0x1]
        %v1044 = vld [vmem:[%s5] sm:$0x1]
        %1045 = vadd.xlane.f32.xlu0 %v1041
        %v1046 = vpop.xlane.xlu0 %1045
        %1047 = vadd.xlane.f32.xlu0 %v1042
        %v1048 = vpop.xlane.xlu0 %1047
        %v1049 = vrcp.pop 128.0
        %v1050 = vmul.f32 128.0, %v1049
        %v1051 = vsub.f32 1.0, %v1050
        %v1052 = vmul.f32 %v1049, %v1051
        %v1053 = vadd.f32 %v1049, %v1052
        %vm1054 = vweird.f32 %v1049
        %v1055 = vsel %vm1054, %v1049, %v1053
        %v1056 = vmul.f32 %v1046, %v1055
        %v1057 = vmul.f32 %v1048, %v1055
        %v1058 = vsub.f32 %v1041, %v1056
        %v1059 = vsub.f32 %v1042, %v1057
        %v1060 = vmul.f32 %v1058, %v1058
        %v1061 = vmul.f32 %v1059, %v1059
        %1062 = vadd.xlane.f32.xlu0 %v1060
        %v1063 = vpop.xlane.xlu0 %1062
        %1064 = vadd.xlane.f32.xlu0 %v1061
        %v1065 = vpop.xlane.xlu0 %1064
        %v1066 = vmul.f32 %v1063, %v1055
        %v1067 = vmul.f32 %v1065, %v1055
        %v1068 = vadd.f32 %v1066, 1e-05
        %v1069 = vadd.f32 %v1067, 1e-05
        %v1070 = vrsqrt.pop %v1068
        %v1071 = vmul.f32 %v1070, %v1068
        %v1072 = vmul.f32 %v1071, %v1070
        %v1073 = vmul.f32 0.5, %v1072
        %v1074 = vsub.f32 1.5, %v1073
        %v1075 = vmul.f32 %v1070, %v1074
        %vm1076 = vweird.f32 %v1068
        %vm1077 = vweird.f32 %v1070
        %vm1078 = vmor %vm1076, %vm1077
        %v1079 = vsel %vm1078, %v1070, %v1075
        %v1080 = vrsqrt.pop %v1069
        %v1081 = vmul.f32 %v1080, %v1069
        %v1082 = vmul.f32 %v1081, %v1080
        %v1083 = vmul.f32 0.5, %v1082
        %v1084 = vsub.f32 1.5, %v1083
        %v1085 = vmul.f32 %v1080, %v1084
        %vm1086 = vweird.f32 %v1069
        %vm1087 = vweird.f32 %v1080
        %vm1088 = vmor %vm1086, %vm1087
        %v1089 = vsel %vm1088, %v1080, %v1085
        %v1090 = vmul.f32 %v1058, %v1079
        %v1091 = vmul.f32 %v1059, %v1089
        %v1093 = vperm.slane %v1043, 0
        %v1095 = vmul.f32 %v1090, %v1093
        %v1096 = vmul.f32 %v1091, %v1093
        %v1098 = vperm.slane %v1044, 0
        %v1100 = vadd.f32 %v1095, %v1098
        %v1101 = vadd.f32 %v1096, %v1098
        %v1102 = vpack.c.bf16 %v1101, %v1100
        %v1103 = vld [vmem:[%s7] sm:$0xf]
        %v1104 = vld [vmem:[%s7 + $0x4] sm:$0xf]
        %v1105 = vld [vmem:[%s7 + $0x8] sm:$0xf]
        %v1106 = vld [vmem:[%s7 + $0xc] sm:$0xf]
        %v1107 = vld [vmem:[%s7 + $0x10] sm:$0xf]
        %v1108 = vld [vmem:[%s7 + $0x14] sm:$0xf]
        %v1109 = vld [vmem:[%s7 + $0x18] sm:$0xf]
        %v1110 = vld [vmem:[%s7 + $0x1c] sm:$0xf]
        %v1111 = vld [vmem:[%s7 + $0x20] sm:$0xf]
        %v1112 = vld [vmem:[%s7 + $0x24] sm:$0xf]
        %v1113 = vld [vmem:[%s7 + $0x28] sm:$0xf]
        %v1114 = vld [vmem:[%s7 + $0x2c] sm:$0xf]
        %v1115 = vld [vmem:[%s7 + $0x30] sm:$0xf]
        %v1116 = vld [vmem:[%s7 + $0x34] sm:$0xf]
        %v1117 = vld [vmem:[%s7 + $0x38] sm:$0xf]
        %v1118 = vld [vmem:[%s7 + $0x3c] sm:$0xf]
        %v1135 = vunpack.c.l.b16 %v1103
        %v1136 = vunpack.c.l.b16 %v1104
        %v1137 = vunpack.c.l.b16 %v1105
        %v1138 = vunpack.c.l.b16 %v1106
        %v1139 = vunpack.c.l.b16 %v1107
        %v1140 = vunpack.c.l.b16 %v1108
        %v1141 = vunpack.c.l.b16 %v1109
        %v1142 = vunpack.c.l.b16 %v1110
        %v1143 = vunpack.c.l.b16 %v1111
        %v1144 = vunpack.c.l.b16 %v1112
        %v1145 = vunpack.c.l.b16 %v1113
        %v1146 = vunpack.c.l.b16 %v1114
        %v1147 = vunpack.c.l.b16 %v1115
        %v1148 = vunpack.c.l.b16 %v1116
        %v1149 = vunpack.c.l.b16 %v1117
        %v1150 = vunpack.c.l.b16 %v1118
        %v1151 = vpack.c.b16 %v1136, %v1135
        %v1152 = vpack.c.b16 %v1138, %v1137
        %v1153 = vpack.c.b16 %v1140, %v1139
        %v1154 = vpack.c.b16 %v1142, %v1141
        %v1155 = vpack.c.b16 %v1144, %v1143
        %v1156 = vpack.c.b16 %v1146, %v1145
        %v1157 = vpack.c.b16 %v1148, %v1147
        %v1158 = vpack.c.b16 %v1150, %v1149
        %1167 = vmatpush.bf16.msra.mxu0 %v1158
        %1168 = vmatpush.bf16.msra.mxu0 %v1157
        %1169 = vmatpush.bf16.msra.mxu0 %v1156
        %1170 = vmatpush.bf16.msra.mxu0 %v1155
        %1171 = vmatpush.bf16.msra.mxu0 %v1154
        %1172 = vmatpush.bf16.msra.mxu0 %v1153
        %1173 = vmatpush.bf16.msra.mxu0 %v1152
        %1174 = vmatpush.bf16.msra.mxu0 %v1151
        %1175 = vmatmul.bf16.gmra.mxu0 %v1102
        %v1176 = vpop.f32.mrf.mxu0
        %v1177 = vadd.f32 0.0, %v1176
        %v1178 = vpop.f32.mrf.mxu0
        %v1179 = vadd.f32 0.0, %v1178
        %1180 = vdwg.mxu0
        %v1181 = vld [vmem:[%s9] sm:$0x1]
        %v1182 = vld [vmem:[%s11] sm:$0x1]
        %vm1183 = vcmask 523264
        %v1184 = vsel %vm1183, %v1177, 0.0
        %1185 = vadd.xlane.f32.xlu0 %v1184
        %v1186 = vpop.xlane.xlu0 %1185
        %v1187 = vsel %vm1183, %v1179, 0.0
        %1188 = vadd.xlane.f32.xlu0 %v1187
        %v1189 = vpop.xlane.xlu0 %1188
        %v1190 = vrcp.pop 64.0
        %v1191 = vmul.f32 64.0, %v1190
        %v1192 = vsub.f32 1.0, %v1191
        %v1193 = vmul.f32 %v1190, %v1192
        %v1194 = vadd.f32 %v1190, %v1193
        %vm1195 = vweird.f32 %v1190
        %v1196 = vsel %vm1195, %v1190, %v1194
        %v1197 = vmul.f32 %v1186, %v1196
        %v1198 = vmul.f32 %v1189, %v1196
        %v1199 = vsub.f32 %v1177, %v1197
        %v1200 = vsub.f32 %v1179, %v1198
        %v1201 = vmul.f32 %v1199, %v1199
        %v1202 = vmul.f32 %v1200, %v1200
        %v1203 = vsel %vm1183, %v1201, 0.0
        %1204 = vadd.xlane.f32.xlu0 %v1203
        %v1205 = vpop.xlane.xlu0 %1204
        %v1206 = vsel %vm1183, %v1202, 0.0
        %1207 = vadd.xlane.f32.xlu0 %v1206
        %v1208 = vpop.xlane.xlu0 %1207
        %v1209 = vmul.f32 %v1205, %v1196
        %v1210 = vmul.f32 %v1208, %v1196
        %v1211 = vadd.f32 %v1209, 1e-05
        %v1212 = vadd.f32 %v1210, 1e-05
        %v1213 = vrsqrt.pop %v1211
        %v1214 = vmul.f32 %v1213, %v1211
        %v1215 = vmul.f32 %v1214, %v1213
        %v1216 = vmul.f32 0.5, %v1215
        %v1217 = vsub.f32 1.5, %v1216
        %v1218 = vmul.f32 %v1213, %v1217
        %vm1219 = vweird.f32 %v1211
        %vm1220 = vweird.f32 %v1213
        %vm1221 = vmor %vm1219, %vm1220
        %v1222 = vsel %vm1221, %v1213, %v1218
        %v1223 = vrsqrt.pop %v1212
        %v1224 = vmul.f32 %v1223, %v1212
        %v1225 = vmul.f32 %v1224, %v1223
        %v1226 = vmul.f32 0.5, %v1225
        %v1227 = vsub.f32 1.5, %v1226
        %v1228 = vmul.f32 %v1223, %v1227
        %vm1229 = vweird.f32 %v1212
        %vm1230 = vweird.f32 %v1223
        %vm1231 = vmor %vm1229, %vm1230
        %v1232 = vsel %vm1231, %v1223, %v1228
        %v1233 = vmul.f32 %v1199, %v1222
        %v1234 = vmul.f32 %v1200, %v1232
        %v1236 = vperm.slane %v1181, 0
        %v1238 = vmul.f32 %v1233, %v1236
        %v1239 = vmul.f32 %v1234, %v1236
        %v1241 = vperm.slane %v1182, 0
        %v1243 = vadd.f32 %v1238, %v1241
        %v1244 = vadd.f32 %v1239, %v1241
        %v1245 = vpack.c.bf16 %v1244, %v1243
        %v1246 = vld [vmem:[%s13] sm:$0xff]
        %v1247 = vld [vmem:[%s13 + $0x8] sm:$0xff]
        %v1248 = vld [vmem:[%s13 + $0x10] sm:$0xff]
        %v1249 = vld [vmem:[%s13 + $0x18] sm:$0xff]
        %v1250 = vld [vmem:[%s13 + $0x20] sm:$0xff]
        %v1251 = vld [vmem:[%s13 + $0x28] sm:$0xff]
        %v1252 = vld [vmem:[%s13 + $0x30] sm:$0xff]
        %v1253 = vld [vmem:[%s13 + $0x38] sm:$0xff]
        %v1254 = vld [vmem:[%s15] sm:$0x3]
        %v1256 = vperm.slane %v1254, 0
        %v1257 = vperm.slane %v1254, 1
        %v1268 = vunpack.c.l.b16 %v1246
        %v1269 = vunpack.c.h.b16 %v1246
        %v1270 = vunpack.c.l.b16 %v1247
        %v1271 = vunpack.c.h.b16 %v1247
        %v1272 = vunpack.c.l.b16 %v1248
        %v1273 = vunpack.c.h.b16 %v1248
        %v1274 = vunpack.c.l.b16 %v1249
        %v1275 = vunpack.c.h.b16 %v1249
        %v1276 = vunpack.c.l.b16 %v1250
        %v1277 = vunpack.c.h.b16 %v1250
        %v1278 = vunpack.c.l.b16 %v1251
        %v1279 = vunpack.c.h.b16 %v1251
        %v1280 = vunpack.c.l.b16 %v1252
        %v1281 = vunpack.c.h.b16 %v1252
        %v1282 = vunpack.c.l.b16 %v1253
        %v1283 = vunpack.c.h.b16 %v1253
        %v1284 = vpack.c.b16 %v1270, %v1268
        %v1285 = vpack.c.b16 %v1271, %v1269
        %v1286 = vpack.c.b16 %v1274, %v1272
        %v1287 = vpack.c.b16 %v1275, %v1273
        %v1288 = vpack.c.b16 %v1278, %v1276
        %v1289 = vpack.c.b16 %v1279, %v1277
        %v1290 = vpack.c.b16 %v1282, %v1280
        %v1291 = vpack.c.b16 %v1283, %v1281
        %v1301 = vsel %vm1183, %v1245, 0
        %1303 = vmatpush.bf16.msra.mxu0 0
        %1304 = vmatpush.bf16.msra.mxu0 0
        %1305 = vmatpush.bf16.msra.mxu0 0
        %1306 = vmatpush.bf16.msra.mxu0 0
        %1307 = vmatpush.bf16.msra.mxu0 %v1290
        %1308 = vmatpush.bf16.msra.mxu0 %v1288
        %1309 = vmatpush.bf16.msra.mxu0 %v1286
        %1310 = vmatpush.bf16.msra.mxu0 %v1284
        %1311 = vmatmul.bf16.gmra.mxu0 %v1301
        %v1312 = vpop.f32.mrf.mxu0
        %v1313 = vadd.f32 %v1256, %v1312
        %v1314 = vpop.f32.mrf.mxu0
        %v1315 = vadd.f32 %v1256, %v1314
        %1316 = vdwg.mxu0
        %1317 = vmatpush.bf16.msra.mxu0 0
        %1318 = vmatpush.bf16.msra.mxu0 0
        %1319 = vmatpush.bf16.msra.mxu0 0
        %1320 = vmatpush.bf16.msra.mxu0 0
        %1321 = vmatpush.bf16.msra.mxu0 %v1291
        %1322 = vmatpush.bf16.msra.mxu0 %v1289
        %1323 = vmatpush.bf16.msra.mxu0 %v1287
        %1324 = vmatpush.bf16.msra.mxu0 %v1285
        %1325 = vmatmul.bf16.gmra.mxu0 %v1301
        %v1326 = vpop.f32.mrf.mxu0
        %v1327 = vadd.f32 %v1257, %v1326
        %v1328 = vpop.f32.mrf.mxu0
        %v1329 = vadd.f32 %v1257, %v1328
        %1330 = vdwg.mxu0
        %v1331 = vld [vmem:[%s19] sm:$0xf]
        %v1332 = vld [vmem:[%s19 + $0x4] sm:$0xf]
        %v1333 = vld [vmem:[%s19 + $0x8] sm:$0xf]
        %v1334 = vld [vmem:[%s19 + $0xc] sm:$0xf]
        %v1335 = vld [vmem:[%s19 + $0x10] sm:$0xf]
        %v1336 = vld [vmem:[%s19 + $0x14] sm:$0xf]
        %v1337 = vld [vmem:[%s19 + $0x18] sm:$0xf]
        %v1338 = vld [vmem:[%s19 + $0x1c] sm:$0xf]
        %v1339 = vpack.c.bf16 %v1315, %v1313
        %v1340 = vpack.c.bf16 %v1329, %v1327
        %1342 = vrot.lane.b32.xlu0 %v1339, 64
        %v1343 = vpop.permute.xlu0 %1342
        %vm1344 = vcmask 130048
        %v1346 = vsel %vm1344, %v1339, 0
        %v1349 = vsel %vm1344, %v1343, 0
        %1351 = vmatpush.bf16.xpose.msra.mxu0 0
        %1352 = vmatpush.bf16.xpose.msra.mxu0 0
        %1353 = vmatpush.bf16.xpose.msra.mxu0 0
        %1354 = vmatpush.bf16.xpose.msra.mxu0 0
        %1355 = vmatpush.bf16.xpose.msra.mxu0 0
        %1356 = vmatpush.bf16.xpose.msra.mxu0 0
        %1357 = vmatpush.bf16.xpose.msra.mxu0 0
        %1358 = vmatpush.bf16.xpose.msra.mxu0 %v1349
        %1359 = vmatmul.bf16.gmra.mxu0 %v1346
        %v1360 = vpop.f32.mrf.mxu0
        %v1361 = vadd.f32 0.0, %v1360
        %v1362 = vpop.f32.mrf.mxu0
        %v1363 = vadd.f32 0.0, %v1362
        %1364 = vdwg.mxu0
        %v1365 = vmul.f32 %v1361, 0.25
        %v1366 = vmul.f32 %v1363, 0.25
        %v1367 = vld [vmem:[%s17] sm:$0xff]
        %v1368 = vld [vmem:[%s17 + $0x8] sm:$0xff]
        %v1369 = vadd.f32 %v1365, %v1367
        %v1370 = vadd.f32 %v1366, %v1368
        %v1371 = vsel %vm1344, %v1369, -inf
        %1372 = vmax.xlane.f32.xlu0 %v1371
        %v1373 = vpop.xlane.xlu0 %1372
        %v1374 = vsel %vm1344, %v1370, -inf
        %1375 = vmax.xlane.f32.xlu0 %v1374
        %v1376 = vpop.xlane.xlu0 %1375
        %v1377 = vsub.f32 %v1369, %v1373
        %v1378 = vsub.f32 %v1370, %v1376
        %v1379 = vmul.f32 %v1377, 1.442695
        %v1380 = vpow.pop %v1379
        %v1381 = vmul.f32 %v1378, 1.442695
        %v1382 = vpow.pop %v1381
        %v1383 = vsel %vm1344, %v1380, 0.0
        %1384 = vadd.xlane.f32.xlu0 %v1383
        %v1385 = vpop.xlane.xlu0 %1384
        %v1386 = vsel %vm1344, %v1382, 0.0
        %1387 = vadd.xlane.f32.xlu0 %v1386
        %v1388 = vpop.xlane.xlu0 %1387
        %v1389 = vrcp.pop %v1385
        %v1390 = vmul.f32 %v1385, %v1389
        %v1391 = vsub.f32 1.0, %v1390
        %v1392 = vmul.f32 %v1389, %v1391
        %v1393 = vadd.f32 %v1389, %v1392
        %vm1394 = vweird.f32 %v1385
        %vm1395 = vweird.f32 %v1389
        %vm1396 = vmor %vm1394, %vm1395
        %v1397 = vsel %vm1396, %v1389, %v1393
        %v1398 = vand.u32 2147483647, %v1385
        %vm1399 = vcmp.eq.f32.partialorder %v1398, 8.507059e+37
        %v1400 = vand.u32 %v1385, 2147483648
        %v1401 = vor.u32 1.1754944e-38, %v1400
        %v1402 = vsel %vm1399, %v1401, %v1397
        %v1403 = vmul.f32 %v1380, %v1402
        %v1404 = vrcp.pop %v1388
        %v1405 = vmul.f32 %v1388, %v1404
        %v1406 = vsub.f32 1.0, %v1405
        %v1407 = vmul.f32 %v1404, %v1406
        %v1408 = vadd.f32 %v1404, %v1407
        %vm1409 = vweird.f32 %v1388
        %vm1410 = vweird.f32 %v1404
        %vm1411 = vmor %vm1409, %vm1410
        %v1412 = vsel %vm1411, %v1404, %v1408
        %v1413 = vand.u32 2147483647, %v1388
        %vm1414 = vcmp.eq.f32.partialorder %v1413, 8.507059e+37
        %v1415 = vand.u32 %v1388, 2147483648
        %v1416 = vor.u32 1.1754944e-38, %v1415
        %v1417 = vsel %vm1414, %v1416, %v1412
        %v1418 = vmul.f32 %v1382, %v1417
        %v1419 = vpack.c.bf16 %v1418, %v1403
        %v1421 = vsel %vm1344, %v1419, 0
        %1423 = vmatpush.bf16.msra.mxu0 0
        %1424 = vmatpush.bf16.msra.mxu0 0
        %1425 = vmatpush.bf16.msra.mxu0 0
        %1426 = vmatpush.bf16.msra.mxu0 0
        %1427 = vmatpush.bf16.msra.mxu0 0
        %1428 = vmatpush.bf16.msra.mxu0 0
        %1429 = vmatpush.bf16.msra.mxu0 0
        %1430 = vmatpush.bf16.msra.mxu0 %v1340
        %1431 = vmatmul.bf16.gmra.mxu0 %v1421
        %v1432 = vpop.f32.mrf.mxu0
        %v1433 = vadd.f32 0.0, %v1432
        %v1434 = vpop.f32.mrf.mxu0
        %v1435 = vadd.f32 0.0, %v1434
        %1436 = vdwg.mxu0
        %v1437 = vpack.c.bf16 %v1435, %v1433
        %1438 = vrot.lane.b32.xlu0 %v1339, 112
        %v1439 = vpop.permute.xlu0 %1438
        %1440 = vrot.lane.b32.xlu0 %v1339, 48
        %v1441 = vpop.permute.xlu0 %1440
        %v1443 = vsel %vm1344, %v1439, 0
        %v1446 = vsel %vm1344, %v1441, 0
        %1448 = vmatpush.bf16.xpose.msra.mxu0 0
        %1449 = vmatpush.bf16.xpose.msra.mxu0 0
        %1450 = vmatpush.bf16.xpose.msra.mxu0 0
        %1451 = vmatpush.bf16.xpose.msra.mxu0 0
        %1452 = vmatpush.bf16.xpose.msra.mxu0 0
        %1453 = vmatpush.bf16.xpose.msra.mxu0 0
        %1454 = vmatpush.bf16.xpose.msra.mxu0 0
        %1455 = vmatpush.bf16.xpose.msra.mxu0 %v1446
        %1456 = vmatmul.bf16.gmra.mxu0 %v1443
        %v1457 = vpop.f32.mrf.mxu0
        %v1458 = vadd.f32 0.0, %v1457
        %v1459 = vpop.f32.mrf.mxu0
        %v1460 = vadd.f32 0.0, %v1459
        %1461 = vdwg.mxu0
        %v1462 = vmul.f32 %v1458, 0.25
        %v1463 = vmul.f32 %v1460, 0.25
        %s1464 = scalar_lea.vmem %s17, 16
        %v1465 = vld [vmem:[%s1464] sm:$0xff]
        %v1466 = vld [vmem:[%s1464 + $0x8] sm:$0xff]
        %v1467 = vadd.f32 %v1462, %v1465
        %v1468 = vadd.f32 %v1463, %v1466
        %v1469 = vsel %vm1344, %v1467, -inf
        %1470 = vmax.xlane.f32.xlu0 %v1469
        %v1471 = vpop.xlane.xlu0 %1470
        %v1472 = vsel %vm1344, %v1468, -inf
        %1473 = vmax.xlane.f32.xlu0 %v1472
        %v1474 = vpop.xlane.xlu0 %1473
        %v1475 = vsub.f32 %v1467, %v1471
        %v1476 = vsub.f32 %v1468, %v1474
        %v1477 = vmul.f32 %v1475, 1.442695
        %v1478 = vpow.pop %v1477
        %v1479 = vmul.f32 %v1476, 1.442695
        %v1480 = vpow.pop %v1479
        %v1481 = vsel %vm1344, %v1478, 0.0
        %1482 = vadd.xlane.f32.xlu0 %v1481
        %v1483 = vpop.xlane.xlu0 %1482
        %v1484 = vsel %vm1344, %v1480, 0.0
        %1485 = vadd.xlane.f32.xlu0 %v1484
        %v1486 = vpop.xlane.xlu0 %1485
        %v1487 = vrcp.pop %v1483
        %v1488 = vmul.f32 %v1483, %v1487
        %v1489 = vsub.f32 1.0, %v1488
        %v1490 = vmul.f32 %v1487, %v1489
        %v1491 = vadd.f32 %v1487, %v1490
        %vm1492 = vweird.f32 %v1483
        %vm1493 = vweird.f32 %v1487
        %vm1494 = vmor %vm1492, %vm1493
        %v1495 = vsel %vm1494, %v1487, %v1491
        %v1496 = vand.u32 2147483647, %v1483
        %vm1497 = vcmp.eq.f32.partialorder %v1496, 8.507059e+37
        %v1498 = vand.u32 %v1483, 2147483648
        %v1499 = vor.u32 1.1754944e-38, %v1498
        %v1500 = vsel %vm1497, %v1499, %v1495
        %v1501 = vmul.f32 %v1478, %v1500
        %v1502 = vrcp.pop %v1486
        %v1503 = vmul.f32 %v1486, %v1502
        %v1504 = vsub.f32 1.0, %v1503
        %v1505 = vmul.f32 %v1502, %v1504
        %v1506 = vadd.f32 %v1502, %v1505
        %vm1507 = vweird.f32 %v1486
        %vm1508 = vweird.f32 %v1502
        %vm1509 = vmor %vm1507, %vm1508
        %v1510 = vsel %vm1509, %v1502, %v1506
        %v1511 = vand.u32 2147483647, %v1486
        %vm1512 = vcmp.eq.f32.partialorder %v1511, 8.507059e+37
        %v1513 = vand.u32 %v1486, 2147483648
        %v1514 = vor.u32 1.1754944e-38, %v1513
        %v1515 = vsel %vm1512, %v1514, %v1510
        %v1516 = vmul.f32 %v1480, %v1515
        %v1517 = vpack.c.bf16 %v1516, %v1501
        %1519 = vrot.lane.b32.xlu0 %v1340, 112
        %v1520 = vpop.permute.xlu0 %1519
        %v1523 = vsel %vm1344, %v1517, 0
        %1525 = vmatpush.bf16.msra.mxu0 0
        %1526 = vmatpush.bf16.msra.mxu0 0
        %1527 = vmatpush.bf16.msra.mxu0 0
        %1528 = vmatpush.bf16.msra.mxu0 0
        %1529 = vmatpush.bf16.msra.mxu0 0
        %1530 = vmatpush.bf16.msra.mxu0 0
        %1531 = vmatpush.bf16.msra.mxu0 0
        %1532 = vmatpush.bf16.msra.mxu0 %v1520
        %1533 = vmatmul.bf16.gmra.mxu0 %v1523
        %v1534 = vpop.f32.mrf.mxu0
        %v1535 = vadd.f32 0.0, %v1534
        %v1536 = vpop.f32.mrf.mxu0
        %v1537 = vadd.f32 0.0, %v1536
        %1538 = vdwg.mxu0
        %v1539 = vpack.c.bf16 %v1537, %v1535
        %v1542 = vunpack.c.l.b16 %v1333
        %v1543 = vunpack.c.l.b16 %v1334
        %v1544 = vpack.c.b16 %v1543, %v1542
        %v1547 = vsel %vm1344, %v1539, 0
        %1549 = vmatpush.bf16.msra.mxu0 0
        %1550 = vmatpush.bf16.msra.mxu0 0
        %1551 = vmatpush.bf16.msra.mxu0 0
        %1552 = vmatpush.bf16.msra.mxu0 0
        %1553 = vmatpush.bf16.msra.mxu0 0
        %1554 = vmatpush.bf16.msra.mxu0 0
        %1555 = vmatpush.bf16.msra.mxu0 0
        %1556 = vmatpush.bf16.msra.mxu0 %v1544
        %1557 = vmatmul.bf16.gmra.mxu0 %v1547
        %v1558 = vpop.f32.mrf.mxu0
        %v1559 = vadd.f32 0.0, %v1558
        %v1560 = vpop.f32.mrf.mxu0
        %v1561 = vadd.f32 0.0, %v1560
        %1562 = vdwg.mxu0
        %v1565 = vunpack.c.l.b16 %v1331
        %v1566 = vunpack.c.l.b16 %v1332
        %v1567 = vpack.c.b16 %v1566, %v1565
        %v1570 = vsel %vm1344, %v1437, 0
        %1572 = vmatpush.bf16.msra.mxu0 0
        %1573 = vmatpush.bf16.msra.mxu0 0
        %1574 = vmatpush.bf16.msra.mxu0 0
        %1575 = vmatpush.bf16.msra.mxu0 0
        %1576 = vmatpush.bf16.msra.mxu0 0
        %1577 = vmatpush.bf16.msra.mxu0 0
        %1578 = vmatpush.bf16.msra.mxu0 0
        %1579 = vmatpush.bf16.msra.mxu0 %v1567
        %1580 = vmatmul.bf16.gmra.mxu0 %v1570
        %v1581 = vpop.f32.mrf.mxu0
        %v1582 = vadd.f32 %v1559, %v1581
        %v1583 = vpop.f32.mrf.mxu0
        %v1584 = vadd.f32 %v1561, %v1583
        %1585 = vdwg.mxu0
        %1586 = vrot.lane.b32.xlu0 %v1339, 96
        %v1587 = vpop.permute.xlu0 %1586
        %1588 = vrot.lane.b32.xlu0 %v1339, 32
        %v1589 = vpop.permute.xlu0 %1588
        %v1591 = vsel %vm1344, %v1587, 0
        %v1594 = vsel %vm1344, %v1589, 0
        %1596 = vmatpush.bf16.xpose.msra.mxu0 0
        %1597 = vmatpush.bf16.xpose.msra.mxu0 0
        %1598 = vmatpush.bf16.xpose.msra.mxu0 0
        %1599 = vmatpush.bf16.xpose.msra.mxu0 0
        %1600 = vmatpush.bf16.xpose.msra.mxu0 0
        %1601 = vmatpush.bf16.xpose.msra.mxu0 0
        %1602 = vmatpush.bf16.xpose.msra.mxu0 0
        %1603 = vmatpush.bf16.xpose.msra.mxu0 %v1594
        %1604 = vmatmul.bf16.gmra.mxu0 %v1591
        %v1605 = vpop.f32.mrf.mxu0
        %v1606 = vadd.f32 0.0, %v1605
        %v1607 = vpop.f32.mrf.mxu0
        %v1608 = vadd.f32 0.0, %v1607
        %1609 = vdwg.mxu0
        %v1610 = vmul.f32 %v1606, 0.25
        %v1611 = vmul.f32 %v1608, 0.25
        %s1612 = scalar_lea.vmem %s17, 32
        %v1613 = vld [vmem:[%s1612] sm:$0xff]
        %v1614 = vld [vmem:[%s1612 + $0x8] sm:$0xff]
        %v1615 = vadd.f32 %v1610, %v1613
        %v1616 = vadd.f32 %v1611, %v1614
        %v1617 = vsel %vm1344, %v1615, -inf
        %1618 = vmax.xlane.f32.xlu0 %v1617
        %v1619 = vpop.xlane.xlu0 %1618
        %v1620 = vsel %vm1344, %v1616, -inf
        %1621 = vmax.xlane.f32.xlu0 %v1620
        %v1622 = vpop.xlane.xlu0 %1621
        %v1623 = vsub.f32 %v1615, %v1619
        %v1624 = vsub.f32 %v1616, %v1622
        %v1625 = vmul.f32 %v1623, 1.442695
        %v1626 = vpow.pop %v1625
        %v1627 = vmul.f32 %v1624, 1.442695
        %v1628 = vpow.pop %v1627
        %v1629 = vsel %vm1344, %v1626, 0.0
        %1630 = vadd.xlane.f32.xlu0 %v1629
        %v1631 = vpop.xlane.xlu0 %1630
        %v1632 = vsel %vm1344, %v1628, 0.0
        %1633 = vadd.xlane.f32.xlu0 %v1632
        %v1634 = vpop.xlane.xlu0 %1633
        %v1635 = vrcp.pop %v1631
        %v1636 = vmul.f32 %v1631, %v1635
        %v1637 = vsub.f32 1.0, %v1636
        %v1638 = vmul.f32 %v1635, %v1637
        %v1639 = vadd.f32 %v1635, %v1638
        %vm1640 = vweird.f32 %v1631
        %vm1641 = vweird.f32 %v1635
        %vm1642 = vmor %vm1640, %vm1641
        %v1643 = vsel %vm1642, %v1635, %v1639
        %v1644 = vand.u32 2147483647, %v1631
        %vm1645 = vcmp.eq.f32.partialorder %v1644, 8.507059e+37
        %v1646 = vand.u32 %v1631, 2147483648
        %v1647 = vor.u32 1.1754944e-38, %v1646
        %v1648 = vsel %vm1645, %v1647, %v1643
        %v1649 = vmul.f32 %v1626, %v1648
        %v1650 = vrcp.pop %v1634
        %v1651 = vmul.f32 %v1634, %v1650
        %v1652 = vsub.f32 1.0, %v1651
        %v1653 = vmul.f32 %v1650, %v1652
        %v1654 = vadd.f32 %v1650, %v1653
        %vm1655 = vweird.f32 %v1634
        %vm1656 = vweird.f32 %v1650
        %vm1657 = vmor %vm1655, %vm1656
        %v1658 = vsel %vm1657, %v1650, %v1654
        %v1659 = vand.u32 2147483647, %v1634
        %vm1660 = vcmp.eq.f32.partialorder %v1659, 8.507059e+37
        %v1661 = vand.u32 %v1634, 2147483648
        %v1662 = vor.u32 1.1754944e-38, %v1661
        %v1663 = vsel %vm1660, %v1662, %v1658
        %v1664 = vmul.f32 %v1628, %v1663
        %v1665 = vpack.c.bf16 %v1664, %v1649
        %1666 = vrot.lane.b32.xlu0 %v1340, 96
        %v1667 = vpop.permute.xlu0 %1666
        %v1670 = vsel %vm1344, %v1665, 0
        %1672 = vmatpush.bf16.msra.mxu0 0
        %1673 = vmatpush.bf16.msra.mxu0 0
        %1674 = vmatpush.bf16.msra.mxu0 0
        %1675 = vmatpush.bf16.msra.mxu0 0
        %1676 = vmatpush.bf16.msra.mxu0 0
        %1677 = vmatpush.bf16.msra.mxu0 0
        %1678 = vmatpush.bf16.msra.mxu0 0
        %1679 = vmatpush.bf16.msra.mxu0 %v1667
        %1680 = vmatmul.bf16.gmra.mxu0 %v1670
        %v1681 = vpop.f32.mrf.mxu0
        %v1682 = vadd.f32 0.0, %v1681
        %v1683 = vpop.f32.mrf.mxu0
        %v1684 = vadd.f32 0.0, %v1683
        %1685 = vdwg.mxu0
        %v1686 = vpack.c.bf16 %v1684, %v1682
        %v1689 = vunpack.c.l.b16 %v1335
        %v1690 = vunpack.c.l.b16 %v1336
        %v1691 = vpack.c.b16 %v1690, %v1689
        %v1694 = vsel %vm1344, %v1686, 0
        %1696 = vmatpush.bf16.msra.mxu0 0
        %1697 = vmatpush.bf16.msra.mxu0 0
        %1698 = vmatpush.bf16.msra.mxu0 0
        %1699 = vmatpush.bf16.msra.mxu0 0
        %1700 = vmatpush.bf16.msra.mxu0 0
        %1701 = vmatpush.bf16.msra.mxu0 0
        %1702 = vmatpush.bf16.msra.mxu0 0
        %1703 = vmatpush.bf16.msra.mxu0 %v1691
        %1704 = vmatmul.bf16.gmra.mxu0 %v1694
        %v1705 = vpop.f32.mrf.mxu0
        %v1706 = vadd.f32 0.0, %v1705
        %v1707 = vpop.f32.mrf.mxu0
        %v1708 = vadd.f32 0.0, %v1707
        %1709 = vdwg.mxu0
        %v1710 = vadd.f32 %v1582, %v1706
        %v1711 = vadd.f32 %v1584, %v1708
        %1712 = vrot.lane.b32.xlu0 %v1339, 80
        %v1713 = vpop.permute.xlu0 %1712
        %1714 = vrot.lane.b32.xlu0 %v1339, 16
        %v1715 = vpop.permute.xlu0 %1714
        %v1717 = vsel %vm1344, %v1713, 0
        %v1720 = vsel %vm1344, %v1715, 0
        %1722 = vmatpush.bf16.xpose.msra.mxu0 0
        %1723 = vmatpush.bf16.xpose.msra.mxu0 0
        %1724 = vmatpush.bf16.xpose.msra.mxu0 0
        %1725 = vmatpush.bf16.xpose.msra.mxu0 0
        %1726 = vmatpush.bf16.xpose.msra.mxu0 0
        %1727 = vmatpush.bf16.xpose.msra.mxu0 0
        %1728 = vmatpush.bf16.xpose.msra.mxu0 0
        %1729 = vmatpush.bf16.xpose.msra.mxu0 %v1720
        %1730 = vmatmul.bf16.gmra.mxu0 %v1717
        %v1731 = vpop.f32.mrf.mxu0
        %v1732 = vadd.f32 0.0, %v1731
        %v1733 = vpop.f32.mrf.mxu0
        %v1734 = vadd.f32 0.0, %v1733
        %1735 = vdwg.mxu0
        %v1736 = vmul.f32 %v1732, 0.25
        %v1737 = vmul.f32 %v1734, 0.25
        %s1738 = scalar_lea.vmem %s17, 48
        %v1739 = vld [vmem:[%s1738] sm:$0xff]
        %v1740 = vld [vmem:[%s1738 + $0x8] sm:$0xff]
        %v1741 = vadd.f32 %v1736, %v1739
        %v1742 = vadd.f32 %v1737, %v1740
        %v1743 = vsel %vm1344, %v1741, -inf
        %1744 = vmax.xlane.f32.xlu0 %v1743
        %v1745 = vpop.xlane.xlu0 %1744
        %v1746 = vsel %vm1344, %v1742, -inf
        %1747 = vmax.xlane.f32.xlu0 %v1746
        %v1748 = vpop.xlane.xlu0 %1747
        %v1749 = vsub.f32 %v1741, %v1745
        %v1750 = vsub.f32 %v1742, %v1748
        %v1751 = vmul.f32 %v1749, 1.442695
        %v1752 = vpow.pop %v1751
        %v1753 = vmul.f32 %v1750, 1.442695
        %v1754 = vpow.pop %v1753
        %v1755 = vsel %vm1344, %v1752, 0.0
        %1756 = vadd.xlane.f32.xlu0 %v1755
        %v1757 = vpop.xlane.xlu0 %1756
        %v1758 = vsel %vm1344, %v1754, 0.0
        %1759 = vadd.xlane.f32.xlu0 %v1758
        %v1760 = vpop.xlane.xlu0 %1759
        %v1761 = vrcp.pop %v1757
        %v1762 = vmul.f32 %v1757, %v1761
        %v1763 = vsub.f32 1.0, %v1762
        %v1764 = vmul.f32 %v1761, %v1763
        %v1765 = vadd.f32 %v1761, %v1764
        %vm1766 = vweird.f32 %v1757
        %vm1767 = vweird.f32 %v1761
        %vm1768 = vmor %vm1766, %vm1767
        %v1769 = vsel %vm1768, %v1761, %v1765
        %v1770 = vand.u32 2147483647, %v1757
        %vm1771 = vcmp.eq.f32.partialorder %v1770, 8.507059e+37
        %v1772 = vand.u32 %v1757, 2147483648
        %v1773 = vor.u32 1.1754944e-38, %v1772
        %v1774 = vsel %vm1771, %v1773, %v1769
        %v1775 = vmul.f32 %v1752, %v1774
        %v1776 = vrcp.pop %v1760
        %v1777 = vmul.f32 %v1760, %v1776
        %v1778 = vsub.f32 1.0, %v1777
        %v1779 = vmul.f32 %v1776, %v1778
        %v1780 = vadd.f32 %v1776, %v1779
        %vm1781 = vweird.f32 %v1760
        %vm1782 = vweird.f32 %v1776
        %vm1783 = vmor %vm1781, %vm1782
        %v1784 = vsel %vm1783, %v1776, %v1780
        %v1785 = vand.u32 2147483647, %v1760
        %vm1786 = vcmp.eq.f32.partialorder %v1785, 8.507059e+37
        %v1787 = vand.u32 %v1760, 2147483648
        %v1788 = vor.u32 1.1754944e-38, %v1787
        %v1789 = vsel %vm1786, %v1788, %v1784
        %v1790 = vmul.f32 %v1754, %v1789
        %v1791 = vpack.c.bf16 %v1790, %v1775
        %1792 = vrot.lane.b32.xlu0 %v1340, 80
        %v1793 = vpop.permute.xlu0 %1792
        %v1796 = vsel %vm1344, %v1791, 0
        %1798 = vmatpush.bf16.msra.mxu0 0
        %1799 = vmatpush.bf16.msra.mxu0 0
        %1800 = vmatpush.bf16.msra.mxu0 0
        %1801 = vmatpush.bf16.msra.mxu0 0
        %1802 = vmatpush.bf16.msra.mxu0 0
        %1803 = vmatpush.bf16.msra.mxu0 0
        %1804 = vmatpush.bf16.msra.mxu0 0
        %1805 = vmatpush.bf16.msra.mxu0 %v1793
        %1806 = vmatmul.bf16.gmra.mxu0 %v1796
        %v1807 = vpop.f32.mrf.mxu0
        %v1808 = vadd.f32 0.0, %v1807
        %v1809 = vpop.f32.mrf.mxu0
        %v1810 = vadd.f32 0.0, %v1809
        %1811 = vdwg.mxu0
        %v1812 = vpack.c.bf16 %v1810, %v1808
        %v1815 = vunpack.c.l.b16 %v1337
        %v1816 = vunpack.c.l.b16 %v1338
        %v1817 = vpack.c.b16 %v1816, %v1815
        %v1820 = vsel %vm1344, %v1812, 0
        %1822 = vmatpush.bf16.msra.mxu0 0
        %1823 = vmatpush.bf16.msra.mxu0 0
        %1824 = vmatpush.bf16.msra.mxu0 0
        %1825 = vmatpush.bf16.msra.mxu0 0
        %1826 = vmatpush.bf16.msra.mxu0 0
        %1827 = vmatpush.bf16.msra.mxu0 0
        %1828 = vmatpush.bf16.msra.mxu0 0
        %1829 = vmatpush.bf16.msra.mxu0 %v1817
        %1830 = vmatmul.bf16.gmra.mxu0 %v1820
        %v1831 = vpop.f32.mrf.mxu0
        %v1832 = vadd.f32 0.0, %v1831
        %v1833 = vpop.f32.mrf.mxu0
        %v1834 = vadd.f32 0.0, %v1833
        %1835 = vdwg.mxu0
        %v1836 = vadd.f32 %v1710, %v1832
        %v1837 = vadd.f32 %v1711, %v1834
        %v1838 = vadd.f32 %v1177, %v1836
        %v1839 = vadd.f32 %v1179, %v1837
        %v1840 = vld [vmem:[%s21] sm:$0x1]
        %v1842 = vperm.slane %v1840, 0
        %v1844 = vadd.f32 %v1838, %v1842
        %v1845 = vadd.f32 %v1839, %v1842
        %v1846 = vld [vmem:[%s23] sm:$0x1]
        %v1847 = vld [vmem:[%s25] sm:$0x1]
        %v1848 = vsel %vm1183, %v1844, 0.0
        %1849 = vadd.xlane.f32.xlu0 %v1848
        %v1850 = vpop.xlane.xlu0 %1849
        %v1851 = vsel %vm1183, %v1845, 0.0
        %1852 = vadd.xlane.f32.xlu0 %v1851
        %v1853 = vpop.xlane.xlu0 %1852
        %v1854 = vmul.f32 %v1850, %v1196
        %v1855 = vmul.f32 %v1853, %v1196
        %v1856 = vsub.f32 %v1844, %v1854
        %v1857 = vsub.f32 %v1845, %v1855
        %v1858 = vmul.f32 %v1856, %v1856
        %v1859 = vmul.f32 %v1857, %v1857
        %v1860 = vsel %vm1183, %v1858, 0.0
        %1861 = vadd.xlane.f32.xlu0 %v1860
        %v1862 = vpop.xlane.xlu0 %1861
        %v1863 = vsel %vm1183, %v1859, 0.0
        %1864 = vadd.xlane.f32.xlu0 %v1863
        %v1865 = vpop.xlane.xlu0 %1864
        %v1866 = vmul.f32 %v1862, %v1196
        %v1867 = vmul.f32 %v1865, %v1196
        %v1868 = vadd.f32 %v1866, 1e-05
        %v1869 = vadd.f32 %v1867, 1e-05
        %v1870 = vrsqrt.pop %v1868
        %v1871 = vmul.f32 %v1870, %v1868
        %v1872 = vmul.f32 %v1871, %v1870
        %v1873 = vmul.f32 0.5, %v1872
        %v1874 = vsub.f32 1.5, %v1873
        %v1875 = vmul.f32 %v1870, %v1874
        %vm1876 = vweird.f32 %v1868
        %vm1877 = vweird.f32 %v1870
        %vm1878 = vmor %vm1876, %vm1877
        %v1879 = vsel %vm1878, %v1870, %v1875
        %v1880 = vrsqrt.pop %v1869
        %v1881 = vmul.f32 %v1880, %v1869
        %v1882 = vmul.f32 %v1881, %v1880
        %v1883 = vmul.f32 0.5, %v1882
        %v1884 = vsub.f32 1.5, %v1883
        %v1885 = vmul.f32 %v1880, %v1884
        %vm1886 = vweird.f32 %v1869
        %vm1887 = vweird.f32 %v1880
        %vm1888 = vmor %vm1886, %vm1887
        %v1889 = vsel %vm1888, %v1880, %v1885
        %v1890 = vmul.f32 %v1856, %v1879
        %v1891 = vmul.f32 %v1857, %v1889
        %v1893 = vperm.slane %v1846, 0
        %v1895 = vmul.f32 %v1890, %v1893
        %v1896 = vmul.f32 %v1891, %v1893
        %v1898 = vperm.slane %v1847, 0
        %v1900 = vadd.f32 %v1895, %v1898
        %v1901 = vadd.f32 %v1896, %v1898
        %v1902 = vpack.c.bf16 %v1901, %v1900
        %v1903 = vld [vmem:[%s27] sm:$0xff]
        %v1904 = vld [vmem:[%s27 + $0x8] sm:$0xff]
        %v1905 = vld [vmem:[%s27 + $0x10] sm:$0xff]
        %v1906 = vld [vmem:[%s27 + $0x18] sm:$0xff]
        %v1907 = vld [vmem:[%s27 + $0x20] sm:$0xff]
        %v1908 = vld [vmem:[%s27 + $0x28] sm:$0xff]
        %v1909 = vld [vmem:[%s27 + $0x30] sm:$0xff]
        %v1910 = vld [vmem:[%s27 + $0x38] sm:$0xff]
        %v1911 = vld [vmem:[%s29] sm:$0x3]
        %v1913 = vperm.slane %v1911, 0
        %v1914 = vperm.slane %v1911, 1
        %v1925 = vunpack.c.l.b16 %v1903
        %v1926 = vunpack.c.h.b16 %v1903
        %v1927 = vunpack.c.l.b16 %v1904
        %v1928 = vunpack.c.h.b16 %v1904
        %v1929 = vunpack.c.l.b16 %v1905
        %v1930 = vunpack.c.h.b16 %v1905
        %v1931 = vunpack.c.l.b16 %v1906
        %v1932 = vunpack.c.h.b16 %v1906
        %v1933 = vunpack.c.l.b16 %v1907
        %v1934 = vunpack.c.h.b16 %v1907
        %v1935 = vunpack.c.l.b16 %v1908
        %v1936 = vunpack.c.h.b16 %v1908
        %v1937 = vunpack.c.l.b16 %v1909
        %v1938 = vunpack.c.h.b16 %v1909
        %v1939 = vunpack.c.l.b16 %v1910
        %v1940 = vunpack.c.h.b16 %v1910
        %v1941 = vpack.c.b16 %v1927, %v1925
        %v1942 = vpack.c.b16 %v1928, %v1926
        %v1943 = vpack.c.b16 %v1931, %v1929
        %v1944 = vpack.c.b16 %v1932, %v1930
        %v1945 = vpack.c.b16 %v1935, %v1933
        %v1946 = vpack.c.b16 %v1936, %v1934
        %v1947 = vpack.c.b16 %v1939, %v1937
        %v1948 = vpack.c.b16 %v1940, %v1938
        %v1958 = vsel %vm1183, %v1902, 0
        %1960 = vmatpush.bf16.msra.mxu0 0
        %1961 = vmatpush.bf16.msra.mxu0 0
        %1962 = vmatpush.bf16.msra.mxu0 0
        %1963 = vmatpush.bf16.msra.mxu0 0
        %1964 = vmatpush.bf16.msra.mxu0 %v1947
        %1965 = vmatpush.bf16.msra.mxu0 %v1945
        %1966 = vmatpush.bf16.msra.mxu0 %v1943
        %1967 = vmatpush.bf16.msra.mxu0 %v1941
        %1968 = vmatmul.bf16.gmra.mxu0 %v1958
        %v1969 = vpop.f32.mrf.mxu0
        %v1970 = vadd.f32 %v1913, %v1969
        %v1971 = vpop.f32.mrf.mxu0
        %v1972 = vadd.f32 %v1913, %v1971
        %1973 = vdwg.mxu0
        %1974 = vmatpush.bf16.msra.mxu0 0
        %1975 = vmatpush.bf16.msra.mxu0 0
        %1976 = vmatpush.bf16.msra.mxu0 0
        %1977 = vmatpush.bf16.msra.mxu0 0
        %1978 = vmatpush.bf16.msra.mxu0 %v1948
        %1979 = vmatpush.bf16.msra.mxu0 %v1946
        %1980 = vmatpush.bf16.msra.mxu0 %v1944
        %1981 = vmatpush.bf16.msra.mxu0 %v1942
        %1982 = vmatmul.bf16.gmra.mxu0 %v1958
        %v1983 = vpop.f32.mrf.mxu0
        %v1984 = vadd.f32 %v1914, %v1983
        %v1985 = vpop.f32.mrf.mxu0
        %v1986 = vadd.f32 %v1914, %v1985
        %1987 = vdwg.mxu0
        %v1988 = vmul.f32 %v1970, 0.5
        %v1989 = vmul.f32 %v1984, 0.5
        %v1990 = vmul.f32 %v1972, 0.5
        %v1991 = vmul.f32 %v1986, 0.5
        %v1992 = vmul.f32 %v1970, 0.044715
        %v1993 = vmul.f32 %v1984, 0.044715
        %v1994 = vmul.f32 %v1972, 0.044715
        %v1995 = vmul.f32 %v1986, 0.044715
        %v1996 = vmul.f32 %v1992, %v1970
        %v1997 = vmul.f32 %v1993, %v1984
        %v1998 = vmul.f32 %v1994, %v1972
        %v1999 = vmul.f32 %v1995, %v1986
        %v2000 = vmul.f32 %v1996, %v1970
        %v2001 = vmul.f32 %v1997, %v1984
        %v2002 = vmul.f32 %v1998, %v1972
        %v2003 = vmul.f32 %v1999, %v1986
        %v2004 = vadd.f32 %v1970, %v2000
        %v2005 = vadd.f32 %v1984, %v2001
        %v2006 = vadd.f32 %v1972, %v2002
        %v2007 = vadd.f32 %v1986, %v2003
        %v2008 = vmul.f32 %v2004, 0.7978846
        %v2009 = vmul.f32 %v2005, 0.7978846
        %v2010 = vmul.f32 %v2006, 0.7978846
        %v2011 = vmul.f32 %v2007, 0.7978846
        %v2012 = vtanh.pop %v2008
        %v2013 = vtanh.pop %v2009
        %v2014 = vtanh.pop %v2010
        %v2015 = vtanh.pop %v2011
        %v2016 = vadd.f32 %v2012, 1.0
        %v2017 = vadd.f32 %v2013, 1.0
        %v2018 = vadd.f32 %v2014, 1.0
        %v2019 = vadd.f32 %v2015, 1.0
        %v2020 = vmul.f32 %v1988, %v2016
        %v2021 = vmul.f32 %v1989, %v2017
        %v2022 = vmul.f32 %v1990, %v2018
        %v2023 = vmul.f32 %v1991, %v2019
        %v2024 = vpack.c.bf16 %v2022, %v2020
        %v2025 = vpack.c.bf16 %v2023, %v2021
        %v2026 = vld [vmem:[%s31] sm:$0xf]
        %v2027 = vld [vmem:[%s31 + $0x4] sm:$0xf]
        %v2028 = vld [vmem:[%s31 + $0x8] sm:$0xf]
        %v2029 = vld [vmem:[%s31 + $0xc] sm:$0xf]
        %v2030 = vld [vmem:[%s31 + $0x10] sm:$0xf]
        %v2031 = vld [vmem:[%s31 + $0x14] sm:$0xf]
        %v2032 = vld [vmem:[%s31 + $0x18] sm:$0xf]
        %v2033 = vld [vmem:[%s31 + $0x1c] sm:$0xf]
        %v2034 = vld [vmem:[%s31 + $0x20] sm:$0xf]
        %v2035 = vld [vmem:[%s31 + $0x24] sm:$0xf]
        %v2036 = vld [vmem:[%s31 + $0x28] sm:$0xf]
        %v2037 = vld [vmem:[%s31 + $0x2c] sm:$0xf]
        %v2038 = vld [vmem:[%s31 + $0x30] sm:$0xf]
        %v2039 = vld [vmem:[%s31 + $0x34] sm:$0xf]
        %v2040 = vld [vmem:[%s31 + $0x38] sm:$0xf]
        %v2041 = vld [vmem:[%s31 + $0x3c] sm:$0xf]
        %v2042 = vld [vmem:[%s31 + $0x40] sm:$0xf]
        %v2043 = vld [vmem:[%s31 + $0x44] sm:$0xf]
        %v2044 = vld [vmem:[%s31 + $0x48] sm:$0xf]
        %v2045 = vld [vmem:[%s31 + $0x4c] sm:$0xf]
        %v2046 = vld [vmem:[%s31 + $0x50] sm:$0xf]
        %v2047 = vld [vmem:[%s31 + $0x54] sm:$0xf]
        %v2048 = vld [vmem:[%s31 + $0x58] sm:$0xf]
        %v2049 = vld [vmem:[%s31 + $0x5c] sm:$0xf]
        %v2050 = vld [vmem:[%s31 + $0x60] sm:$0xf]
        %v2051 = vld [vmem:[%s31 + $0x64] sm:$0xf]
        %v2052 = vld [vmem:[%s31 + $0x68] sm:$0xf]
        %v2053 = vld [vmem:[%s31 + $0x6c] sm:$0xf]
        %v2054 = vld [vmem:[%s31 + $0x70] sm:$0xf]
        %v2055 = vld [vmem:[%s31 + $0x74] sm:$0xf]
        %v2056 = vld [vmem:[%s31 + $0x78] sm:$0xf]
        %v2057 = vld [vmem:[%s31 + $0x7c] sm:$0xf]
        %v2058 = vld [vmem:[%s33] sm:$0x1]
        %v2060 = vperm.slane %v2058, 0
        %v2094 = vunpack.c.l.b16 %v2026
        %v2095 = vunpack.c.l.b16 %v2027
        %v2096 = vunpack.c.l.b16 %v2028
        %v2097 = vunpack.c.l.b16 %v2029
        %v2098 = vunpack.c.l.b16 %v2030
        %v2099 = vunpack.c.l.b16 %v2031
        %v2100 = vunpack.c.l.b16 %v2032
        %v2101 = vunpack.c.l.b16 %v2033
        %v2102 = vunpack.c.l.b16 %v2034
        %v2103 = vunpack.c.l.b16 %v2035
        %v2104 = vunpack.c.l.b16 %v2036
        %v2105 = vunpack.c.l.b16 %v2037
        %v2106 = vunpack.c.l.b16 %v2038
        %v2107 = vunpack.c.l.b16 %v2039
        %v2108 = vunpack.c.l.b16 %v2040
        %v2109 = vunpack.c.l.b16 %v2041
        %v2110 = vunpack.c.l.b16 %v2042
        %v2111 = vunpack.c.l.b16 %v2043
        %v2112 = vunpack.c.l.b16 %v2044
        %v2113 = vunpack.c.l.b16 %v2045
        %v2114 = vunpack.c.l.b16 %v2046
        %v2115 = vunpack.c.l.b16 %v2047
        %v2116 = vunpack.c.l.b16 %v2048
        %v2117 = vunpack.c.l.b16 %v2049
        %v2118 = vunpack.c.l.b16 %v2050
        %v2119 = vunpack.c.l.b16 %v2051
        %v2120 = vunpack.c.l.b16 %v2052
        %v2121 = vunpack.c.l.b16 %v2053
        %v2122 = vunpack.c.l.b16 %v2054
        %v2123 = vunpack.c.l.b16 %v2055
        %v2124 = vunpack.c.l.b16 %v2056
        %v2125 = vunpack.c.l.b16 %v2057
        %v2126 = vpack.c.b16 %v2095, %v2094
        %v2127 = vpack.c.b16 %v2097, %v2096
        %v2128 = vpack.c.b16 %v2099, %v2098
        %v2129 = vpack.c.b16 %v2101, %v2100
        %v2130 = vpack.c.b16 %v2103, %v2102
        %v2131 = vpack.c.b16 %v2105, %v2104
        %v2132 = vpack.c.b16 %v2107, %v2106
        %v2133 = vpack.c.b16 %v2109, %v2108
        %v2134 = vpack.c.b16 %v2111, %v2110
        %v2135 = vpack.c.b16 %v2113, %v2112
        %v2136 = vpack.c.b16 %v2115, %v2114
        %v2137 = vpack.c.b16 %v2117, %v2116
        %v2138 = vpack.c.b16 %v2119, %v2118
        %v2139 = vpack.c.b16 %v2121, %v2120
        %v2140 = vpack.c.b16 %v2123, %v2122
        %v2141 = vpack.c.b16 %v2125, %v2124
        %2158 = vmatpush.bf16.msra.mxu0 %v2133
        %2159 = vmatpush.bf16.msra.mxu0 %v2132
        %2160 = vmatpush.bf16.msra.mxu0 %v2131
        %2161 = vmatpush.bf16.msra.mxu0 %v2130
        %2162 = vmatpush.bf16.msra.mxu0 %v2129
        %2163 = vmatpush.bf16.msra.mxu0 %v2128
        %2164 = vmatpush.bf16.msra.mxu0 %v2127
        %2165 = vmatpush.bf16.msra.mxu0 %v2126
        %2166 = vmatmul.bf16.gmra.mxu0 %v2024
        %v2167 = vpop.f32.mrf.mxu0
        %v2168 = vadd.f32 %v2060, %v2167
        %v2169 = vpop.f32.mrf.mxu0
        %v2170 = vadd.f32 %v2060, %v2169
        %2171 = vdwg.mxu0
        %2172 = vmatpush.bf16.msra.mxu0 %v2141
        %2173 = vmatpush.bf16.msra.mxu0 %v2140
        %2174 = vmatpush.bf16.msra.mxu0 %v2139
        %2175 = vmatpush.bf16.msra.mxu0 %v2138
        %2176 = vmatpush.bf16.msra.mxu0 %v2137
        %2177 = vmatpush.bf16.msra.mxu0 %v2136
        %2178 = vmatpush.bf16.msra.mxu0 %v2135
        %2179 = vmatpush.bf16.msra.mxu0 %v2134
        %2180 = vmatmul.bf16.gmra.mxu0 %v2025
        %v2181 = vpop.f32.mrf.mxu0
        %v2182 = vadd.f32 %v2168, %v2181
        %v2183 = vpop.f32.mrf.mxu0
        %v2184 = vadd.f32 %v2170, %v2183
        %2185 = vdwg.mxu0
        %v2186 = vadd.f32 %v1844, %v2182
        %v2187 = vadd.f32 %v1845, %v2184
        %v2188 = vld [vmem:[%s35] sm:$0x1]
        %v2189 = vld [vmem:[%s37] sm:$0x1]
        %v2190 = vsel %vm1183, %v2186, 0.0
        %2191 = vadd.xlane.f32.xlu0 %v2190
        %v2192 = vpop.xlane.xlu0 %2191
        %v2193 = vsel %vm1183, %v2187, 0.0
        %2194 = vadd.xlane.f32.xlu0 %v2193
        %v2195 = vpop.xlane.xlu0 %2194
        %v2196 = vmul.f32 %v2192, %v1196
        %v2197 = vmul.f32 %v2195, %v1196
        %v2198 = vsub.f32 %v2186, %v2196
        %v2199 = vsub.f32 %v2187, %v2197
        %v2200 = vmul.f32 %v2198, %v2198
        %v2201 = vmul.f32 %v2199, %v2199
        %v2202 = vsel %vm1183, %v2200, 0.0
        %2203 = vadd.xlane.f32.xlu0 %v2202
        %v2204 = vpop.xlane.xlu0 %2203
        %v2205 = vsel %vm1183, %v2201, 0.0
        %2206 = vadd.xlane.f32.xlu0 %v2205
        %v2207 = vpop.xlane.xlu0 %2206
        %v2208 = vmul.f32 %v2204, %v1196
        %v2209 = vmul.f32 %v2207, %v1196
        %v2210 = vadd.f32 %v2208, 1e-05
        %v2211 = vadd.f32 %v2209, 1e-05
        %v2212 = vrsqrt.pop %v2210
        %v2213 = vmul.f32 %v2212, %v2210
        %v2214 = vmul.f32 %v2213, %v2212
        %v2215 = vmul.f32 0.5, %v2214
        %v2216 = vsub.f32 1.5, %v2215
        %v2217 = vmul.f32 %v2212, %v2216
        %vm2218 = vweird.f32 %v2210
        %vm2219 = vweird.f32 %v2212
        %vm2220 = vmor %vm2218, %vm2219
        %v2221 = vsel %vm2220, %v2212, %v2217
        %v2222 = vrsqrt.pop %v2211
        %v2223 = vmul.f32 %v2222, %v2211
        %v2224 = vmul.f32 %v2223, %v2222
        %v2225 = vmul.f32 0.5, %v2224
        %v2226 = vsub.f32 1.5, %v2225
        %v2227 = vmul.f32 %v2222, %v2226
        %vm2228 = vweird.f32 %v2211
        %vm2229 = vweird.f32 %v2222
        %vm2230 = vmor %vm2228, %vm2229
        %v2231 = vsel %vm2230, %v2222, %v2227
        %v2232 = vmul.f32 %v2198, %v2221
        %v2233 = vmul.f32 %v2199, %v2231
        %v2235 = vperm.slane %v2188, 0
        %v2237 = vmul.f32 %v2232, %v2235
        %v2238 = vmul.f32 %v2233, %v2235
        %v2240 = vperm.slane %v2189, 0
        %v2242 = vadd.f32 %v2237, %v2240
        %v2243 = vadd.f32 %v2238, %v2240
        %v2244 = vpack.c.bf16 %v2243, %v2242
        %v2245 = vld [vmem:[%s39] sm:$0xff]
        %v2246 = vld [vmem:[%s39 + $0x8] sm:$0xff]
        %v2247 = vld [vmem:[%s39 + $0x10] sm:$0xff]
        %v2248 = vld [vmem:[%s39 + $0x18] sm:$0xff]
        %v2249 = vld [vmem:[%s39 + $0x20] sm:$0xff]
        %v2250 = vld [vmem:[%s39 + $0x28] sm:$0xff]
        %v2251 = vld [vmem:[%s39 + $0x30] sm:$0xff]
        %v2252 = vld [vmem:[%s39 + $0x38] sm:$0xff]
        %v2253 = vld [vmem:[%s41] sm:$0x3]
        %v2255 = vperm.slane %v2253, 0
        %v2256 = vperm.slane %v2253, 1
        %v2267 = vunpack.c.l.b16 %v2245
        %v2268 = vunpack.c.h.b16 %v2245
        %v2269 = vunpack.c.l.b16 %v2246
        %v2270 = vunpack.c.h.b16 %v2246
        %v2271 = vunpack.c.l.b16 %v2247
        %v2272 = vunpack.c.h.b16 %v2247
        %v2273 = vunpack.c.l.b16 %v2248
        %v2274 = vunpack.c.h.b16 %v2248
        %v2275 = vunpack.c.l.b16 %v2249
        %v2276 = vunpack.c.h.b16 %v2249
        %v2277 = vunpack.c.l.b16 %v2250
        %v2278 = vunpack.c.h.b16 %v2250
        %v2279 = vunpack.c.l.b16 %v2251
        %v2280 = vunpack.c.h.b16 %v2251
        %v2281 = vunpack.c.l.b16 %v2252
        %v2282 = vunpack.c.h.b16 %v2252
        %v2283 = vpack.c.b16 %v2269, %v2267
        %v2284 = vpack.c.b16 %v2270, %v2268
        %v2285 = vpack.c.b16 %v2273, %v2271
        %v2286 = vpack.c.b16 %v2274, %v2272
        %v2287 = vpack.c.b16 %v2277, %v2275
        %v2288 = vpack.c.b16 %v2278, %v2276
        %v2289 = vpack.c.b16 %v2281, %v2279
        %v2290 = vpack.c.b16 %v2282, %v2280
        %v2300 = vsel %vm1183, %v2244, 0
        %2302 = vmatpush.bf16.msra.mxu0 0
        %2303 = vmatpush.bf16.msra.mxu0 0
        %2304 = vmatpush.bf16.msra.mxu0 0
        %2305 = vmatpush.bf16.msra.mxu0 0
        %2306 = vmatpush.bf16.msra.mxu0 %v2289
        %2307 = vmatpush.bf16.msra.mxu0 %v2287
        %2308 = vmatpush.bf16.msra.mxu0 %v2285
        %2309 = vmatpush.bf16.msra.mxu0 %v2283
        %2310 = vmatmul.bf16.gmra.mxu0 %v2300
        %v2311 = vpop.f32.mrf.mxu0
        %v2312 = vadd.f32 %v2255, %v2311
        %v2313 = vpop.f32.mrf.mxu0
        %v2314 = vadd.f32 %v2255, %v2313
        %2315 = vdwg.mxu0
        %2316 = vmatpush.bf16.msra.mxu0 0
        %2317 = vmatpush.bf16.msra.mxu0 0
        %2318 = vmatpush.bf16.msra.mxu0 0
        %2319 = vmatpush.bf16.msra.mxu0 0
        %2320 = vmatpush.bf16.msra.mxu0 %v2290
        %2321 = vmatpush.bf16.msra.mxu0 %v2288
        %2322 = vmatpush.bf16.msra.mxu0 %v2286
        %2323 = vmatpush.bf16.msra.mxu0 %v2284
        %2324 = vmatmul.bf16.gmra.mxu0 %v2300
        %v2325 = vpop.f32.mrf.mxu0
        %v2326 = vadd.f32 %v2256, %v2325
        %v2327 = vpop.f32.mrf.mxu0
        %v2328 = vadd.f32 %v2256, %v2327
        %2329 = vdwg.mxu0
        %v2330 = vld [vmem:[%s45] sm:$0xf]
        %v2331 = vld [vmem:[%s45 + $0x4] sm:$0xf]
        %v2332 = vld [vmem:[%s45 + $0x8] sm:$0xf]
        %v2333 = vld [vmem:[%s45 + $0xc] sm:$0xf]
        %v2334 = vld [vmem:[%s45 + $0x10] sm:$0xf]
        %v2335 = vld [vmem:[%s45 + $0x14] sm:$0xf]
        %v2336 = vld [vmem:[%s45 + $0x18] sm:$0xf]
        %v2337 = vld [vmem:[%s45 + $0x1c] sm:$0xf]
        %v2338 = vpack.c.bf16 %v2314, %v2312
        %v2339 = vpack.c.bf16 %v2328, %v2326
        %2341 = vrot.lane.b32.xlu0 %v2338, 64
        %v2342 = vpop.permute.xlu0 %2341
        %v2344 = vsel %vm1344, %v2338, 0
        %v2347 = vsel %vm1344, %v2342, 0
        %2349 = vmatpush.bf16.xpose.msra.mxu0 0
        %2350 = vmatpush.bf16.xpose.msra.mxu0 0
        %2351 = vmatpush.bf16.xpose.msra.mxu0 0
        %2352 = vmatpush.bf16.xpose.msra.mxu0 0
        %2353 = vmatpush.bf16.xpose.msra.mxu0 0
        %2354 = vmatpush.bf16.xpose.msra.mxu0 0
        %2355 = vmatpush.bf16.xpose.msra.mxu0 0
        %2356 = vmatpush.bf16.xpose.msra.mxu0 %v2347
        %2357 = vmatmul.bf16.gmra.mxu0 %v2344
        %v2358 = vpop.f32.mrf.mxu0
        %v2359 = vadd.f32 0.0, %v2358
        %v2360 = vpop.f32.mrf.mxu0
        %v2361 = vadd.f32 0.0, %v2360
        %2362 = vdwg.mxu0
        %v2363 = vmul.f32 %v2359, 0.25
        %v2364 = vmul.f32 %v2361, 0.25
        %v2365 = vld [vmem:[%s43] sm:$0xff]
        %v2366 = vld [vmem:[%s43 + $0x8] sm:$0xff]
        %v2367 = vadd.f32 %v2363, %v2365
        %v2368 = vadd.f32 %v2364, %v2366
        %v2369 = vsel %vm1344, %v2367, -inf
        %2370 = vmax.xlane.f32.xlu0 %v2369
        %v2371 = vpop.xlane.xlu0 %2370
        %v2372 = vsel %vm1344, %v2368, -inf
        %2373 = vmax.xlane.f32.xlu0 %v2372
        %v2374 = vpop.xlane.xlu0 %2373
        %v2375 = vsub.f32 %v2367, %v2371
        %v2376 = vsub.f32 %v2368, %v2374
        %v2377 = vmul.f32 %v2375, 1.442695
        %v2378 = vpow.pop %v2377
        %v2379 = vmul.f32 %v2376, 1.442695
        %v2380 = vpow.pop %v2379
        %v2381 = vsel %vm1344, %v2378, 0.0
        %2382 = vadd.xlane.f32.xlu0 %v2381
        %v2383 = vpop.xlane.xlu0 %2382
        %v2384 = vsel %vm1344, %v2380, 0.0
        %2385 = vadd.xlane.f32.xlu0 %v2384
        %v2386 = vpop.xlane.xlu0 %2385
        %v2387 = vrcp.pop %v2383
        %v2388 = vmul.f32 %v2383, %v2387
        %v2389 = vsub.f32 1.0, %v2388
        %v2390 = vmul.f32 %v2387, %v2389
        %v2391 = vadd.f32 %v2387, %v2390
        %vm2392 = vweird.f32 %v2383
        %vm2393 = vweird.f32 %v2387
        %vm2394 = vmor %vm2392, %vm2393
        %v2395 = vsel %vm2394, %v2387, %v2391
        %v2396 = vand.u32 2147483647, %v2383
        %vm2397 = vcmp.eq.f32.partialorder %v2396, 8.507059e+37
        %v2398 = vand.u32 %v2383, 2147483648
        %v2399 = vor.u32 1.1754944e-38, %v2398
        %v2400 = vsel %vm2397, %v2399, %v2395
        %v2401 = vmul.f32 %v2378, %v2400
        %v2402 = vrcp.pop %v2386
        %v2403 = vmul.f32 %v2386, %v2402
        %v2404 = vsub.f32 1.0, %v2403
        %v2405 = vmul.f32 %v2402, %v2404
        %v2406 = vadd.f32 %v2402, %v2405
        %vm2407 = vweird.f32 %v2386
        %vm2408 = vweird.f32 %v2402
        %vm2409 = vmor %vm2407, %vm2408
        %v2410 = vsel %vm2409, %v2402, %v2406
        %v2411 = vand.u32 2147483647, %v2386
        %vm2412 = vcmp.eq.f32.partialorder %v2411, 8.507059e+37
        %v2413 = vand.u32 %v2386, 2147483648
        %v2414 = vor.u32 1.1754944e-38, %v2413
        %v2415 = vsel %vm2412, %v2414, %v2410
        %v2416 = vmul.f32 %v2380, %v2415
        %v2417 = vpack.c.bf16 %v2416, %v2401
        %v2419 = vsel %vm1344, %v2417, 0
        %2421 = vmatpush.bf16.msra.mxu0 0
        %2422 = vmatpush.bf16.msra.mxu0 0
        %2423 = vmatpush.bf16.msra.mxu0 0
        %2424 = vmatpush.bf16.msra.mxu0 0
        %2425 = vmatpush.bf16.msra.mxu0 0
        %2426 = vmatpush.bf16.msra.mxu0 0
        %2427 = vmatpush.bf16.msra.mxu0 0
        %2428 = vmatpush.bf16.msra.mxu0 %v2339
        %2429 = vmatmul.bf16.gmra.mxu0 %v2419
        %v2430 = vpop.f32.mrf.mxu0
        %v2431 = vadd.f32 0.0, %v2430
        %v2432 = vpop.f32.mrf.mxu0
        %v2433 = vadd.f32 0.0, %v2432
        %2434 = vdwg.mxu0
        %v2435 = vpack.c.bf16 %v2433, %v2431
        %2436 = vrot.lane.b32.xlu0 %v2338, 112
        %v2437 = vpop.permute.xlu0 %2436
        %2438 = vrot.lane.b32.xlu0 %v2338, 48
        %v2439 = vpop.permute.xlu0 %2438
        %v2441 = vsel %vm1344, %v2437, 0
        %v2444 = vsel %vm1344, %v2439, 0
        %2446 = vmatpush.bf16.xpose.msra.mxu0 0
        %2447 = vmatpush.bf16.xpose.msra.mxu0 0
        %2448 = vmatpush.bf16.xpose.msra.mxu0 0
        %2449 = vmatpush.bf16.xpose.msra.mxu0 0
        %2450 = vmatpush.bf16.xpose.msra.mxu0 0
        %2451 = vmatpush.bf16.xpose.msra.mxu0 0
        %2452 = vmatpush.bf16.xpose.msra.mxu0 0
        %2453 = vmatpush.bf16.xpose.msra.mxu0 %v2444
        %2454 = vmatmul.bf16.gmra.mxu0 %v2441
        %v2455 = vpop.f32.mrf.mxu0
        %v2456 = vadd.f32 0.0, %v2455
        %v2457 = vpop.f32.mrf.mxu0
        %v2458 = vadd.f32 0.0, %v2457
        %2459 = vdwg.mxu0
        %v2460 = vmul.f32 %v2456, 0.25
        %v2461 = vmul.f32 %v2458, 0.25
        %s2462 = scalar_lea.vmem %s43, 16
        %v2463 = vld [vmem:[%s2462] sm:$0xff]
        %v2464 = vld [vmem:[%s2462 + $0x8] sm:$0xff]
        %v2465 = vadd.f32 %v2460, %v2463
        %v2466 = vadd.f32 %v2461, %v2464
        %v2467 = vsel %vm1344, %v2465, -inf
        %2468 = vmax.xlane.f32.xlu0 %v2467
        %v2469 = vpop.xlane.xlu0 %2468
        %v2470 = vsel %vm1344, %v2466, -inf
        %2471 = vmax.xlane.f32.xlu0 %v2470
        %v2472 = vpop.xlane.xlu0 %2471
        %v2473 = vsub.f32 %v2465, %v2469
        %v2474 = vsub.f32 %v2466, %v2472
        %v2475 = vmul.f32 %v2473, 1.442695
        %v2476 = vpow.pop %v2475
        %v2477 = vmul.f32 %v2474, 1.442695
        %v2478 = vpow.pop %v2477
        %v2479 = vsel %vm1344, %v2476, 0.0
        %2480 = vadd.xlane.f32.xlu0 %v2479
        %v2481 = vpop.xlane.xlu0 %2480
        %v2482 = vsel %vm1344, %v2478, 0.0
        %2483 = vadd.xlane.f32.xlu0 %v2482
        %v2484 = vpop.xlane.xlu0 %2483
        %v2485 = vrcp.pop %v2481
        %v2486 = vmul.f32 %v2481, %v2485
        %v2487 = vsub.f32 1.0, %v2486
        %v2488 = vmul.f32 %v2485, %v2487
        %v2489 = vadd.f32 %v2485, %v2488
        %vm2490 = vweird.f32 %v2481
        %vm2491 = vweird.f32 %v2485
        %vm2492 = vmor %vm2490, %vm2491
        %v2493 = vsel %vm2492, %v2485, %v2489
        %v2494 = vand.u32 2147483647, %v2481
        %vm2495 = vcmp.eq.f32.partialorder %v2494, 8.507059e+37
        %v2496 = vand.u32 %v2481, 2147483648
        %v2497 = vor.u32 1.1754944e-38, %v2496
        %v2498 = vsel %vm2495, %v2497, %v2493
        %v2499 = vmul.f32 %v2476, %v2498
        %v2500 = vrcp.pop %v2484
        %v2501 = vmul.f32 %v2484, %v2500
        %v2502 = vsub.f32 1.0, %v2501
        %v2503 = vmul.f32 %v2500, %v2502
        %v2504 = vadd.f32 %v2500, %v2503
        %vm2505 = vweird.f32 %v2484
        %vm2506 = vweird.f32 %v2500
        %vm2507 = vmor %vm2505, %vm2506
        %v2508 = vsel %vm2507, %v2500, %v2504
        %v2509 = vand.u32 2147483647, %v2484
        %vm2510 = vcmp.eq.f32.partialorder %v2509, 8.507059e+37
        %v2511 = vand.u32 %v2484, 2147483648
        %v2512 = vor.u32 1.1754944e-38, %v2511
        %v2513 = vsel %vm2510, %v2512, %v2508
        %v2514 = vmul.f32 %v2478, %v2513
        %v2515 = vpack.c.bf16 %v2514, %v2499
        %2517 = vrot.lane.b32.xlu0 %v2339, 112
        %v2518 = vpop.permute.xlu0 %2517
        %v2521 = vsel %vm1344, %v2515, 0
        %2523 = vmatpush.bf16.msra.mxu0 0
        %2524 = vmatpush.bf16.msra.mxu0 0
        %2525 = vmatpush.bf16.msra.mxu0 0
        %2526 = vmatpush.bf16.msra.mxu0 0
        %2527 = vmatpush.bf16.msra.mxu0 0
        %2528 = vmatpush.bf16.msra.mxu0 0
        %2529 = vmatpush.bf16.msra.mxu0 0
        %2530 = vmatpush.bf16.msra.mxu0 %v2518
        %2531 = vmatmul.bf16.gmra.mxu0 %v2521
        %v2532 = vpop.f32.mrf.mxu0
        %v2533 = vadd.f32 0.0, %v2532
        %v2534 = vpop.f32.mrf.mxu0
        %v2535 = vadd.f32 0.0, %v2534
        %2536 = vdwg.mxu0
        %v2537 = vpack.c.bf16 %v2535, %v2533
        %v2540 = vunpack.c.l.b16 %v2332
        %v2541 = vunpack.c.l.b16 %v2333
        %v2542 = vpack.c.b16 %v2541, %v2540
        %v2545 = vsel %vm1344, %v2537, 0
        %2547 = vmatpush.bf16.msra.mxu0 0
        %2548 = vmatpush.bf16.msra.mxu0 0
        %2549 = vmatpush.bf16.msra.mxu0 0
        %2550 = vmatpush.bf16.msra.mxu0 0
        %2551 = vmatpush.bf16.msra.mxu0 0
        %2552 = vmatpush.bf16.msra.mxu0 0
        %2553 = vmatpush.bf16.msra.mxu0 0
        %2554 = vmatpush.bf16.msra.mxu0 %v2542
        %2555 = vmatmul.bf16.gmra.mxu0 %v2545
        %v2556 = vpop.f32.mrf.mxu0
        %v2557 = vadd.f32 0.0, %v2556
        %v2558 = vpop.f32.mrf.mxu0
        %v2559 = vadd.f32 0.0, %v2558
        %2560 = vdwg.mxu0
        %v2563 = vunpack.c.l.b16 %v2330
        %v2564 = vunpack.c.l.b16 %v2331
        %v2565 = vpack.c.b16 %v2564, %v2563
        %v2568 = vsel %vm1344, %v2435, 0
        %2570 = vmatpush.bf16.msra.mxu0 0
        %2571 = vmatpush.bf16.msra.mxu0 0
        %2572 = vmatpush.bf16.msra.mxu0 0
        %2573 = vmatpush.bf16.msra.mxu0 0
        %2574 = vmatpush.bf16.msra.mxu0 0
        %2575 = vmatpush.bf16.msra.mxu0 0
        %2576 = vmatpush.bf16.msra.mxu0 0
        %2577 = vmatpush.bf16.msra.mxu0 %v2565
        %2578 = vmatmul.bf16.gmra.mxu0 %v2568
        %v2579 = vpop.f32.mrf.mxu0
        %v2580 = vadd.f32 %v2557, %v2579
        %v2581 = vpop.f32.mrf.mxu0
        %v2582 = vadd.f32 %v2559, %v2581
        %2583 = vdwg.mxu0
        %2584 = vrot.lane.b32.xlu0 %v2338, 96
        %v2585 = vpop.permute.xlu0 %2584
        %2586 = vrot.lane.b32.xlu0 %v2338, 32
        %v2587 = vpop.permute.xlu0 %2586
        %v2589 = vsel %vm1344, %v2585, 0
        %v2592 = vsel %vm1344, %v2587, 0
        %2594 = vmatpush.bf16.xpose.msra.mxu0 0
        %2595 = vmatpush.bf16.xpose.msra.mxu0 0
        %2596 = vmatpush.bf16.xpose.msra.mxu0 0
        %2597 = vmatpush.bf16.xpose.msra.mxu0 0
        %2598 = vmatpush.bf16.xpose.msra.mxu0 0
        %2599 = vmatpush.bf16.xpose.msra.mxu0 0
        %2600 = vmatpush.bf16.xpose.msra.mxu0 0
        %2601 = vmatpush.bf16.xpose.msra.mxu0 %v2592
        %2602 = vmatmul.bf16.gmra.mxu0 %v2589
        %v2603 = vpop.f32.mrf.mxu0
        %v2604 = vadd.f32 0.0, %v2603
        %v2605 = vpop.f32.mrf.mxu0
        %v2606 = vadd.f32 0.0, %v2605
        %2607 = vdwg.mxu0
        %v2608 = vmul.f32 %v2604, 0.25
        %v2609 = vmul.f32 %v2606, 0.25
        %s2610 = scalar_lea.vmem %s43, 32
        %v2611 = vld [vmem:[%s2610] sm:$0xff]
        %v2612 = vld [vmem:[%s2610 + $0x8] sm:$0xff]
        %v2613 = vadd.f32 %v2608, %v2611
        %v2614 = vadd.f32 %v2609, %v2612
        %v2615 = vsel %vm1344, %v2613, -inf
        %2616 = vmax.xlane.f32.xlu0 %v2615
        %v2617 = vpop.xlane.xlu0 %2616
        %v2618 = vsel %vm1344, %v2614, -inf
        %2619 = vmax.xlane.f32.xlu0 %v2618
        %v2620 = vpop.xlane.xlu0 %2619
        %v2621 = vsub.f32 %v2613, %v2617
        %v2622 = vsub.f32 %v2614, %v2620
        %v2623 = vmul.f32 %v2621, 1.442695
        %v2624 = vpow.pop %v2623
        %v2625 = vmul.f32 %v2622, 1.442695
        %v2626 = vpow.pop %v2625
        %v2627 = vsel %vm1344, %v2624, 0.0
        %2628 = vadd.xlane.f32.xlu0 %v2627
        %v2629 = vpop.xlane.xlu0 %2628
        %v2630 = vsel %vm1344, %v2626, 0.0
        %2631 = vadd.xlane.f32.xlu0 %v2630
        %v2632 = vpop.xlane.xlu0 %2631
        %v2633 = vrcp.pop %v2629
        %v2634 = vmul.f32 %v2629, %v2633
        %v2635 = vsub.f32 1.0, %v2634
        %v2636 = vmul.f32 %v2633, %v2635
        %v2637 = vadd.f32 %v2633, %v2636
        %vm2638 = vweird.f32 %v2629
        %vm2639 = vweird.f32 %v2633
        %vm2640 = vmor %vm2638, %vm2639
        %v2641 = vsel %vm2640, %v2633, %v2637
        %v2642 = vand.u32 2147483647, %v2629
        %vm2643 = vcmp.eq.f32.partialorder %v2642, 8.507059e+37
        %v2644 = vand.u32 %v2629, 2147483648
        %v2645 = vor.u32 1.1754944e-38, %v2644
        %v2646 = vsel %vm2643, %v2645, %v2641
        %v2647 = vmul.f32 %v2624, %v2646
        %v2648 = vrcp.pop %v2632
        %v2649 = vmul.f32 %v2632, %v2648
        %v2650 = vsub.f32 1.0, %v2649
        %v2651 = vmul.f32 %v2648, %v2650
        %v2652 = vadd.f32 %v2648, %v2651
        %vm2653 = vweird.f32 %v2632
        %vm2654 = vweird.f32 %v2648
        %vm2655 = vmor %vm2653, %vm2654
        %v2656 = vsel %vm2655, %v2648, %v2652
        %v2657 = vand.u32 2147483647, %v2632
        %vm2658 = vcmp.eq.f32.partialorder %v2657, 8.507059e+37
        %v2659 = vand.u32 %v2632, 2147483648
        %v2660 = vor.u32 1.1754944e-38, %v2659
        %v2661 = vsel %vm2658, %v2660, %v2656
        %v2662 = vmul.f32 %v2626, %v2661
        %v2663 = vpack.c.bf16 %v2662, %v2647
        %2664 = vrot.lane.b32.xlu0 %v2339, 96
        %v2665 = vpop.permute.xlu0 %2664
        %v2668 = vsel %vm1344, %v2663, 0
        %2670 = vmatpush.bf16.msra.mxu0 0
        %2671 = vmatpush.bf16.msra.mxu0 0
        %2672 = vmatpush.bf16.msra.mxu0 0
        %2673 = vmatpush.bf16.msra.mxu0 0
        %2674 = vmatpush.bf16.msra.mxu0 0
        %2675 = vmatpush.bf16.msra.mxu0 0
        %2676 = vmatpush.bf16.msra.mxu0 0
        %2677 = vmatpush.bf16.msra.mxu0 %v2665
        %2678 = vmatmul.bf16.gmra.mxu0 %v2668
        %v2679 = vpop.f32.mrf.mxu0
        %v2680 = vadd.f32 0.0, %v2679
        %v2681 = vpop.f32.mrf.mxu0
        %v2682 = vadd.f32 0.0, %v2681
        %2683 = vdwg.mxu0
        %v2684 = vpack.c.bf16 %v2682, %v2680
        %v2687 = vunpack.c.l.b16 %v2334
        %v2688 = vunpack.c.l.b16 %v2335
        %v2689 = vpack.c.b16 %v2688, %v2687
        %v2692 = vsel %vm1344, %v2684, 0
        %2694 = vmatpush.bf16.msra.mxu0 0
        %2695 = vmatpush.bf16.msra.mxu0 0
        %2696 = vmatpush.bf16.msra.mxu0 0
        %2697 = vmatpush.bf16.msra.mxu0 0
        %2698 = vmatpush.bf16.msra.mxu0 0
        %2699 = vmatpush.bf16.msra.mxu0 0
        %2700 = vmatpush.bf16.msra.mxu0 0
        %2701 = vmatpush.bf16.msra.mxu0 %v2689
        %2702 = vmatmul.bf16.gmra.mxu0 %v2692
        %v2703 = vpop.f32.mrf.mxu0
        %v2704 = vadd.f32 0.0, %v2703
        %v2705 = vpop.f32.mrf.mxu0
        %v2706 = vadd.f32 0.0, %v2705
        %2707 = vdwg.mxu0
        %v2708 = vadd.f32 %v2580, %v2704
        %v2709 = vadd.f32 %v2582, %v2706
        %2710 = vrot.lane.b32.xlu0 %v2338, 80
        %v2711 = vpop.permute.xlu0 %2710
        %2712 = vrot.lane.b32.xlu0 %v2338, 16
        %v2713 = vpop.permute.xlu0 %2712
        %v2715 = vsel %vm1344, %v2711, 0
        %v2718 = vsel %vm1344, %v2713, 0
        %2720 = vmatpush.bf16.xpose.msra.mxu0 0
        %2721 = vmatpush.bf16.xpose.msra.mxu0 0
        %2722 = vmatpush.bf16.xpose.msra.mxu0 0
        %2723 = vmatpush.bf16.xpose.msra.mxu0 0
        %2724 = vmatpush.bf16.xpose.msra.mxu0 0
        %2725 = vmatpush.bf16.xpose.msra.mxu0 0
        %2726 = vmatpush.bf16.xpose.msra.mxu0 0
        %2727 = vmatpush.bf16.xpose.msra.mxu0 %v2718
        %2728 = vmatmul.bf16.gmra.mxu0 %v2715
        %v2729 = vpop.f32.mrf.mxu0
        %v2730 = vadd.f32 0.0, %v2729
        %v2731 = vpop.f32.mrf.mxu0
        %v2732 = vadd.f32 0.0, %v2731
        %2733 = vdwg.mxu0
        %v2734 = vmul.f32 %v2730, 0.25
        %v2735 = vmul.f32 %v2732, 0.25
        %s2736 = scalar_lea.vmem %s43, 48
        %v2737 = vld [vmem:[%s2736] sm:$0xff]
        %v2738 = vld [vmem:[%s2736 + $0x8] sm:$0xff]
        %v2739 = vadd.f32 %v2734, %v2737
        %v2740 = vadd.f32 %v2735, %v2738
        %v2741 = vsel %vm1344, %v2739, -inf
        %2742 = vmax.xlane.f32.xlu0 %v2741
        %v2743 = vpop.xlane.xlu0 %2742
        %v2744 = vsel %vm1344, %v2740, -inf
        %2745 = vmax.xlane.f32.xlu0 %v2744
        %v2746 = vpop.xlane.xlu0 %2745
        %v2747 = vsub.f32 %v2739, %v2743
        %v2748 = vsub.f32 %v2740, %v2746
        %v2749 = vmul.f32 %v2747, 1.442695
        %v2750 = vpow.pop %v2749
        %v2751 = vmul.f32 %v2748, 1.442695
        %v2752 = vpow.pop %v2751
        %v2753 = vsel %vm1344, %v2750, 0.0
        %2754 = vadd.xlane.f32.xlu0 %v2753
        %v2755 = vpop.xlane.xlu0 %2754
        %v2756 = vsel %vm1344, %v2752, 0.0
        %2757 = vadd.xlane.f32.xlu0 %v2756
        %v2758 = vpop.xlane.xlu0 %2757
        %v2759 = vrcp.pop %v2755
        %v2760 = vmul.f32 %v2755, %v2759
        %v2761 = vsub.f32 1.0, %v2760
        %v2762 = vmul.f32 %v2759, %v2761
        %v2763 = vadd.f32 %v2759, %v2762
        %vm2764 = vweird.f32 %v2755
        %vm2765 = vweird.f32 %v2759
        %vm2766 = vmor %vm2764, %vm2765
        %v2767 = vsel %vm2766, %v2759, %v2763
        %v2768 = vand.u32 2147483647, %v2755
        %vm2769 = vcmp.eq.f32.partialorder %v2768, 8.507059e+37
        %v2770 = vand.u32 %v2755, 2147483648
        %v2771 = vor.u32 1.1754944e-38, %v2770
        %v2772 = vsel %vm2769, %v2771, %v2767
        %v2773 = vmul.f32 %v2750, %v2772
        %v2774 = vrcp.pop %v2758
        %v2775 = vmul.f32 %v2758, %v2774
        %v2776 = vsub.f32 1.0, %v2775
        %v2777 = vmul.f32 %v2774, %v2776
        %v2778 = vadd.f32 %v2774, %v2777
        %vm2779 = vweird.f32 %v2758
        %vm2780 = vweird.f32 %v2774
        %vm2781 = vmor %vm2779, %vm2780
        %v2782 = vsel %vm2781, %v2774, %v2778
        %v2783 = vand.u32 2147483647, %v2758
        %vm2784 = vcmp.eq.f32.partialorder %v2783, 8.507059e+37
        %v2785 = vand.u32 %v2758, 2147483648
        %v2786 = vor.u32 1.1754944e-38, %v2785
        %v2787 = vsel %vm2784, %v2786, %v2782
        %v2788 = vmul.f32 %v2752, %v2787
        %v2789 = vpack.c.bf16 %v2788, %v2773
        %2790 = vrot.lane.b32.xlu0 %v2339, 80
        %v2791 = vpop.permute.xlu0 %2790
        %v2794 = vsel %vm1344, %v2789, 0
        %2796 = vmatpush.bf16.msra.mxu0 0
        %2797 = vmatpush.bf16.msra.mxu0 0
        %2798 = vmatpush.bf16.msra.mxu0 0
        %2799 = vmatpush.bf16.msra.mxu0 0
        %2800 = vmatpush.bf16.msra.mxu0 0
        %2801 = vmatpush.bf16.msra.mxu0 0
        %2802 = vmatpush.bf16.msra.mxu0 0
        %2803 = vmatpush.bf16.msra.mxu0 %v2791
        %2804 = vmatmul.bf16.gmra.mxu0 %v2794
        %v2805 = vpop.f32.mrf.mxu0
        %v2806 = vadd.f32 0.0, %v2805
        %v2807 = vpop.f32.mrf.mxu0
        %v2808 = vadd.f32 0.0, %v2807
        %2809 = vdwg.mxu0
        %v2810 = vpack.c.bf16 %v2808, %v2806
        %v2813 = vunpack.c.l.b16 %v2336
        %v2814 = vunpack.c.l.b16 %v2337
        %v2815 = vpack.c.b16 %v2814, %v2813
        %v2818 = vsel %vm1344, %v2810, 0
        %2820 = vmatpush.bf16.msra.mxu0 0
        %2821 = vmatpush.bf16.msra.mxu0 0
        %2822 = vmatpush.bf16.msra.mxu0 0
        %2823 = vmatpush.bf16.msra.mxu0 0
        %2824 = vmatpush.bf16.msra.mxu0 0
        %2825 = vmatpush.bf16.msra.mxu0 0
        %2826 = vmatpush.bf16.msra.mxu0 0
        %2827 = vmatpush.bf16.msra.mxu0 %v2815
        %2828 = vmatmul.bf16.gmra.mxu0 %v2818
        %v2829 = vpop.f32.mrf.mxu0
        %v2830 = vadd.f32 0.0, %v2829
        %v2831 = vpop.f32.mrf.mxu0
        %v2832 = vadd.f32 0.0, %v2831
        %2833 = vdwg.mxu0
        %v2834 = vadd.f32 %v2708, %v2830
        %v2835 = vadd.f32 %v2709, %v2832
        %v2836 = vadd.f32 %v2186, %v2834
        %v2837 = vadd.f32 %v2187, %v2835
        %v2838 = vld [vmem:[%s47] sm:$0x1]
        %v2840 = vperm.slane %v2838, 0
        %v2842 = vadd.f32 %v2836, %v2840
        %v2843 = vadd.f32 %v2837, %v2840
        %v2844 = vld [vmem:[%s49] sm:$0x1]
        %v2845 = vld [vmem:[%s51] sm:$0x1]
        %v2846 = vsel %vm1183, %v2842, 0.0
        %2847 = vadd.xlane.f32.xlu0 %v2846
        %v2848 = vpop.xlane.xlu0 %2847
        %v2849 = vsel %vm1183, %v2843, 0.0
        %2850 = vadd.xlane.f32.xlu0 %v2849
        %v2851 = vpop.xlane.xlu0 %2850
        %v2852 = vmul.f32 %v2848, %v1196
        %v2853 = vmul.f32 %v2851, %v1196
        %v2854 = vsub.f32 %v2842, %v2852
        %v2855 = vsub.f32 %v2843, %v2853
        %v2856 = vmul.f32 %v2854, %v2854
        %v2857 = vmul.f32 %v2855, %v2855
        %v2858 = vsel %vm1183, %v2856, 0.0
        %2859 = vadd.xlane.f32.xlu0 %v2858
        %v2860 = vpop.xlane.xlu0 %2859
        %v2861 = vsel %vm1183, %v2857, 0.0
        %2862 = vadd.xlane.f32.xlu0 %v2861
        %v2863 = vpop.xlane.xlu0 %2862
        %v2864 = vmul.f32 %v2860, %v1196
        %v2865 = vmul.f32 %v2863, %v1196
        %v2866 = vadd.f32 %v2864, 1e-05
        %v2867 = vadd.f32 %v2865, 1e-05
        %v2868 = vrsqrt.pop %v2866
        %v2869 = vmul.f32 %v2868, %v2866
        %v2870 = vmul.f32 %v2869, %v2868
        %v2871 = vmul.f32 0.5, %v2870
        %v2872 = vsub.f32 1.5, %v2871
        %v2873 = vmul.f32 %v2868, %v2872
        %vm2874 = vweird.f32 %v2866
        %vm2875 = vweird.f32 %v2868
        %vm2876 = vmor %vm2874, %vm2875
        %v2877 = vsel %vm2876, %v2868, %v2873
        %v2878 = vrsqrt.pop %v2867
        %v2879 = vmul.f32 %v2878, %v2867
        %v2880 = vmul.f32 %v2879, %v2878
        %v2881 = vmul.f32 0.5, %v2880
        %v2882 = vsub.f32 1.5, %v2881
        %v2883 = vmul.f32 %v2878, %v2882
        %vm2884 = vweird.f32 %v2867
        %vm2885 = vweird.f32 %v2878
        %vm2886 = vmor %vm2884, %vm2885
        %v2887 = vsel %vm2886, %v2878, %v2883
        %v2888 = vmul.f32 %v2854, %v2877
        %v2889 = vmul.f32 %v2855, %v2887
        %v2891 = vperm.slane %v2844, 0
        %v2893 = vmul.f32 %v2888, %v2891
        %v2894 = vmul.f32 %v2889, %v2891
        %v2896 = vperm.slane %v2845, 0
        %v2898 = vadd.f32 %v2893, %v2896
        %v2899 = vadd.f32 %v2894, %v2896
        %v2900 = vpack.c.bf16 %v2899, %v2898
        %v2901 = vld [vmem:[%s53] sm:$0xff]
        %v2902 = vld [vmem:[%s53 + $0x8] sm:$0xff]
        %v2903 = vld [vmem:[%s53 + $0x10] sm:$0xff]
        %v2904 = vld [vmem:[%s53 + $0x18] sm:$0xff]
        %v2905 = vld [vmem:[%s53 + $0x20] sm:$0xff]
        %v2906 = vld [vmem:[%s53 + $0x28] sm:$0xff]
        %v2907 = vld [vmem:[%s53 + $0x30] sm:$0xff]
        %v2908 = vld [vmem:[%s53 + $0x38] sm:$0xff]
        %v2909 = vld [vmem:[%s55] sm:$0x3]
        %v2911 = vperm.slane %v2909, 0
        %v2912 = vperm.slane %v2909, 1
        %v2923 = vunpack.c.l.b16 %v2901
        %v2924 = vunpack.c.h.b16 %v2901
        %v2925 = vunpack.c.l.b16 %v2902
        %v2926 = vunpack.c.h.b16 %v2902
        %v2927 = vunpack.c.l.b16 %v2903
        %v2928 = vunpack.c.h.b16 %v2903
        %v2929 = vunpack.c.l.b16 %v2904
        %v2930 = vunpack.c.h.b16 %v2904
        %v2931 = vunpack.c.l.b16 %v2905
        %v2932 = vunpack.c.h.b16 %v2905
        %v2933 = vunpack.c.l.b16 %v2906
        %v2934 = vunpack.c.h.b16 %v2906
        %v2935 = vunpack.c.l.b16 %v2907
        %v2936 = vunpack.c.h.b16 %v2907
        %v2937 = vunpack.c.l.b16 %v2908
        %v2938 = vunpack.c.h.b16 %v2908
        %v2939 = vpack.c.b16 %v2925, %v2923
        %v2940 = vpack.c.b16 %v2926, %v2924
        %v2941 = vpack.c.b16 %v2929, %v2927
        %v2942 = vpack.c.b16 %v2930, %v2928
        %v2943 = vpack.c.b16 %v2933, %v2931
        %v2944 = vpack.c.b16 %v2934, %v2932
        %v2945 = vpack.c.b16 %v2937, %v2935
        %v2946 = vpack.c.b16 %v2938, %v2936
        %v2956 = vsel %vm1183, %v2900, 0
        %2958 = vmatpush.bf16.msra.mxu0 0
        %2959 = vmatpush.bf16.msra.mxu0 0
        %2960 = vmatpush.bf16.msra.mxu0 0
        %2961 = vmatpush.bf16.msra.mxu0 0
        %2962 = vmatpush.bf16.msra.mxu0 %v2945
        %2963 = vmatpush.bf16.msra.mxu0 %v2943
        %2964 = vmatpush.bf16.msra.mxu0 %v2941
        %2965 = vmatpush.bf16.msra.mxu0 %v2939
        %2966 = vmatmul.bf16.gmra.mxu0 %v2956
        %v2967 = vpop.f32.mrf.mxu0
        %v2968 = vadd.f32 %v2911, %v2967
        %v2969 = vpop.f32.mrf.mxu0
        %v2970 = vadd.f32 %v2911, %v2969
        %2971 = vdwg.mxu0
        %2972 = vmatpush.bf16.msra.mxu0 0
        %2973 = vmatpush.bf16.msra.mxu0 0
        %2974 = vmatpush.bf16.msra.mxu0 0
        %2975 = vmatpush.bf16.msra.mxu0 0
        %2976 = vmatpush.bf16.msra.mxu0 %v2946
        %2977 = vmatpush.bf16.msra.mxu0 %v2944
        %2978 = vmatpush.bf16.msra.mxu0 %v2942
        %2979 = vmatpush.bf16.msra.mxu0 %v2940
        %2980 = vmatmul.bf16.gmra.mxu0 %v2956
        %v2981 = vpop.f32.mrf.mxu0
        %v2982 = vadd.f32 %v2912, %v2981
        %v2983 = vpop.f32.mrf.mxu0
        %v2984 = vadd.f32 %v2912, %v2983
        %2985 = vdwg.mxu0
        %v2986 = vmul.f32 %v2968, 0.5
        %v2987 = vmul.f32 %v2982, 0.5
        %v2988 = vmul.f32 %v2970, 0.5
        %v2989 = vmul.f32 %v2984, 0.5
        %v2990 = vmul.f32 %v2968, 0.044715
        %v2991 = vmul.f32 %v2982, 0.044715
        %v2992 = vmul.f32 %v2970, 0.044715
        %v2993 = vmul.f32 %v2984, 0.044715
        %v2994 = vmul.f32 %v2990, %v2968
        %v2995 = vmul.f32 %v2991, %v2982
        %v2996 = vmul.f32 %v2992, %v2970
        %v2997 = vmul.f32 %v2993, %v2984
        %v2998 = vmul.f32 %v2994, %v2968
        %v2999 = vmul.f32 %v2995, %v2982
        %v3000 = vmul.f32 %v2996, %v2970
        %v3001 = vmul.f32 %v2997, %v2984
        %v3002 = vadd.f32 %v2968, %v2998
        %v3003 = vadd.f32 %v2982, %v2999
        %v3004 = vadd.f32 %v2970, %v3000
        %v3005 = vadd.f32 %v2984, %v3001
        %v3006 = vmul.f32 %v3002, 0.7978846
        %v3007 = vmul.f32 %v3003, 0.7978846
        %v3008 = vmul.f32 %v3004, 0.7978846
        %v3009 = vmul.f32 %v3005, 0.7978846
        %v3010 = vtanh.pop %v3006
        %v3011 = vtanh.pop %v3007
        %v3012 = vtanh.pop %v3008
        %v3013 = vtanh.pop %v3009
        %v3014 = vadd.f32 %v3010, 1.0
        %v3015 = vadd.f32 %v3011, 1.0
        %v3016 = vadd.f32 %v3012, 1.0
        %v3017 = vadd.f32 %v3013, 1.0
        %v3018 = vmul.f32 %v2986, %v3014
        %v3019 = vmul.f32 %v2987, %v3015
        %v3020 = vmul.f32 %v2988, %v3016
        %v3021 = vmul.f32 %v2989, %v3017
        %v3022 = vpack.c.bf16 %v3020, %v3018
        %v3023 = vpack.c.bf16 %v3021, %v3019
        %v3024 = vld [vmem:[%s57] sm:$0xf]
        %v3025 = vld [vmem:[%s57 + $0x4] sm:$0xf]
        %v3026 = vld [vmem:[%s57 + $0x8] sm:$0xf]
        %v3027 = vld [vmem:[%s57 + $0xc] sm:$0xf]
        %v3028 = vld [vmem:[%s57 + $0x10] sm:$0xf]
        %v3029 = vld [vmem:[%s57 + $0x14] sm:$0xf]
        %v3030 = vld [vmem:[%s57 + $0x18] sm:$0xf]
        %v3031 = vld [vmem:[%s57 + $0x1c] sm:$0xf]
        %v3032 = vld [vmem:[%s57 + $0x20] sm:$0xf]
        %v3033 = vld [vmem:[%s57 + $0x24] sm:$0xf]
        %v3034 = vld [vmem:[%s57 + $0x28] sm:$0xf]
        %v3035 = vld [vmem:[%s57 + $0x2c] sm:$0xf]
        %v3036 = vld [vmem:[%s57 + $0x30] sm:$0xf]
        %v3037 = vld [vmem:[%s57 + $0x34] sm:$0xf]
        %v3038 = vld [vmem:[%s57 + $0x38] sm:$0xf]
        %v3039 = vld [vmem:[%s57 + $0x3c] sm:$0xf]
        %v3040 = vld [vmem:[%s57 + $0x40] sm:$0xf]
        %v3041 = vld [vmem:[%s57 + $0x44] sm:$0xf]
        %v3042 = vld [vmem:[%s57 + $0x48] sm:$0xf]
        %v3043 = vld [vmem:[%s57 + $0x4c] sm:$0xf]
        %v3044 = vld [vmem:[%s57 + $0x50] sm:$0xf]
        %v3045 = vld [vmem:[%s57 + $0x54] sm:$0xf]
        %v3046 = vld [vmem:[%s57 + $0x58] sm:$0xf]
        %v3047 = vld [vmem:[%s57 + $0x5c] sm:$0xf]
        %v3048 = vld [vmem:[%s57 + $0x60] sm:$0xf]
        %v3049 = vld [vmem:[%s57 + $0x64] sm:$0xf]
        %v3050 = vld [vmem:[%s57 + $0x68] sm:$0xf]
        %v3051 = vld [vmem:[%s57 + $0x6c] sm:$0xf]
        %v3052 = vld [vmem:[%s57 + $0x70] sm:$0xf]
        %v3053 = vld [vmem:[%s57 + $0x74] sm:$0xf]
        %v3054 = vld [vmem:[%s57 + $0x78] sm:$0xf]
        %v3055 = vld [vmem:[%s57 + $0x7c] sm:$0xf]
        %v3056 = vld [vmem:[%s59] sm:$0x1]
        %v3058 = vperm.slane %v3056, 0
        %v3092 = vunpack.c.l.b16 %v3024
        %v3093 = vunpack.c.l.b16 %v3025
        %v3094 = vunpack.c.l.b16 %v3026
        %v3095 = vunpack.c.l.b16 %v3027
        %v3096 = vunpack.c.l.b16 %v3028
        %v3097 = vunpack.c.l.b16 %v3029
        %v3098 = vunpack.c.l.b16 %v3030
        %v3099 = vunpack.c.l.b16 %v3031
        %v3100 = vunpack.c.l.b16 %v3032
        %v3101 = vunpack.c.l.b16 %v3033
        %v3102 = vunpack.c.l.b16 %v3034
        %v3103 = vunpack.c.l.b16 %v3035
        %v3104 = vunpack.c.l.b16 %v3036
        %v3105 = vunpack.c.l.b16 %v3037
        %v3106 = vunpack.c.l.b16 %v3038
        %v3107 = vunpack.c.l.b16 %v3039
        %v3108 = vunpack.c.l.b16 %v3040
        %v3109 = vunpack.c.l.b16 %v3041
        %v3110 = vunpack.c.l.b16 %v3042
        %v3111 = vunpack.c.l.b16 %v3043
        %v3112 = vunpack.c.l.b16 %v3044
        %v3113 = vunpack.c.l.b16 %v3045
        %v3114 = vunpack.c.l.b16 %v3046
        %v3115 = vunpack.c.l.b16 %v3047
        %v3116 = vunpack.c.l.b16 %v3048
        %v3117 = vunpack.c.l.b16 %v3049
        %v3118 = vunpack.c.l.b16 %v3050
        %v3119 = vunpack.c.l.b16 %v3051
        %v3120 = vunpack.c.l.b16 %v3052
        %v3121 = vunpack.c.l.b16 %v3053
        %v3122 = vunpack.c.l.b16 %v3054
        %v3123 = vunpack.c.l.b16 %v3055
        %v3124 = vpack.c.b16 %v3093, %v3092
        %v3125 = vpack.c.b16 %v3095, %v3094
        %v3126 = vpack.c.b16 %v3097, %v3096
        %v3127 = vpack.c.b16 %v3099, %v3098
        %v3128 = vpack.c.b16 %v3101, %v3100
        %v3129 = vpack.c.b16 %v3103, %v3102
        %v3130 = vpack.c.b16 %v3105, %v3104
        %v3131 = vpack.c.b16 %v3107, %v3106
        %v3132 = vpack.c.b16 %v3109, %v3108
        %v3133 = vpack.c.b16 %v3111, %v3110
        %v3134 = vpack.c.b16 %v3113, %v3112
        %v3135 = vpack.c.b16 %v3115, %v3114
        %v3136 = vpack.c.b16 %v3117, %v3116
        %v3137 = vpack.c.b16 %v3119, %v3118
        %v3138 = vpack.c.b16 %v3121, %v3120
        %v3139 = vpack.c.b16 %v3123, %v3122
        %3156 = vmatpush.bf16.msra.mxu0 %v3131
        %3157 = vmatpush.bf16.msra.mxu0 %v3130
        %3158 = vmatpush.bf16.msra.mxu0 %v3129
        %3159 = vmatpush.bf16.msra.mxu0 %v3128
        %3160 = vmatpush.bf16.msra.mxu0 %v3127
        %3161 = vmatpush.bf16.msra.mxu0 %v3126
        %3162 = vmatpush.bf16.msra.mxu0 %v3125
        %3163 = vmatpush.bf16.msra.mxu0 %v3124
        %3164 = vmatmul.bf16.gmra.mxu0 %v3022
        %v3165 = vpop.f32.mrf.mxu0
        %v3166 = vadd.f32 %v3058, %v3165
        %v3167 = vpop.f32.mrf.mxu0
        %v3168 = vadd.f32 %v3058, %v3167
        %3169 = vdwg.mxu0
        %3170 = vmatpush.bf16.msra.mxu0 %v3139
        %3171 = vmatpush.bf16.msra.mxu0 %v3138
        %3172 = vmatpush.bf16.msra.mxu0 %v3137
        %3173 = vmatpush.bf16.msra.mxu0 %v3136
        %3174 = vmatpush.bf16.msra.mxu0 %v3135
        %3175 = vmatpush.bf16.msra.mxu0 %v3134
        %3176 = vmatpush.bf16.msra.mxu0 %v3133
        %3177 = vmatpush.bf16.msra.mxu0 %v3132
        %3178 = vmatmul.bf16.gmra.mxu0 %v3023
        %v3179 = vpop.f32.mrf.mxu0
        %v3180 = vadd.f32 %v3166, %v3179
        %v3181 = vpop.f32.mrf.mxu0
        %v3182 = vadd.f32 %v3168, %v3181
        %3183 = vdwg.mxu0
        %v3184 = vadd.f32 %v2842, %v3180
        %v3185 = vadd.f32 %v2843, %v3182
        %v3186 = vld [vmem:[%s61] sm:$0x1]
        %v3187 = vld [vmem:[%s63] sm:$0x1]
        %v3188 = vsel %vm1183, %v3184, 0.0
        %3189 = vadd.xlane.f32.xlu0 %v3188
        %v3190 = vpop.xlane.xlu0 %3189
        %v3191 = vsel %vm1183, %v3185, 0.0
        %3192 = vadd.xlane.f32.xlu0 %v3191
        %v3193 = vpop.xlane.xlu0 %3192
        %v3194 = vmul.f32 %v3190, %v1196
        %v3195 = vmul.f32 %v3193, %v1196
        %v3196 = vsub.f32 %v3184, %v3194
        %v3197 = vsub.f32 %v3185, %v3195
        %v3198 = vmul.f32 %v3196, %v3196
        %v3199 = vmul.f32 %v3197, %v3197
        %v3200 = vsel %vm1183, %v3198, 0.0
        %3201 = vadd.xlane.f32.xlu0 %v3200
        %v3202 = vpop.xlane.xlu0 %3201
        %v3203 = vsel %vm1183, %v3199, 0.0
        %3204 = vadd.xlane.f32.xlu0 %v3203
        %v3205 = vpop.xlane.xlu0 %3204
        %v3206 = vmul.f32 %v3202, %v1196
        %v3207 = vmul.f32 %v3205, %v1196
        %v3208 = vadd.f32 %v3206, 1e-05
        %v3209 = vadd.f32 %v3207, 1e-05
        %v3210 = vrsqrt.pop %v3208
        %v3211 = vmul.f32 %v3210, %v3208
        %v3212 = vmul.f32 %v3211, %v3210
        %v3213 = vmul.f32 0.5, %v3212
        %v3214 = vsub.f32 1.5, %v3213
        %v3215 = vmul.f32 %v3210, %v3214
        %vm3216 = vweird.f32 %v3208
        %vm3217 = vweird.f32 %v3210
        %vm3218 = vmor %vm3216, %vm3217
        %v3219 = vsel %vm3218, %v3210, %v3215
        %v3220 = vrsqrt.pop %v3209
        %v3221 = vmul.f32 %v3220, %v3209
        %v3222 = vmul.f32 %v3221, %v3220
        %v3223 = vmul.f32 0.5, %v3222
        %v3224 = vsub.f32 1.5, %v3223
        %v3225 = vmul.f32 %v3220, %v3224
        %vm3226 = vweird.f32 %v3209
        %vm3227 = vweird.f32 %v3220
        %vm3228 = vmor %vm3226, %vm3227
        %v3229 = vsel %vm3228, %v3220, %v3225
        %v3230 = vmul.f32 %v3196, %v3219
        %v3231 = vmul.f32 %v3197, %v3229
        %v3233 = vperm.slane %v3186, 0
        %v3235 = vmul.f32 %v3230, %v3233
        %v3236 = vmul.f32 %v3231, %v3233
        %v3238 = vperm.slane %v3187, 0
        %v3240 = vadd.f32 %v3235, %v3238
        %v3241 = vadd.f32 %v3236, %v3238
        %v3242 = vsel %vm1183, %v3240, 0.0
        %v3243 = vsel %vm1183, %v3241, 0.0
        %v3244 = vadd.f32 %v3242, %v3243
        %v3245 = vrot.slane %v3244, 4
        %v3246 = vadd.f32 %v3244, %v3245
        %v3247 = vrot.slane %v3246, 2
        %v3248 = vadd.f32 %v3246, %v3247
        %v3249 = vrot.slane %v3248, 1
        %v3250 = vadd.f32 %v3248, %v3249
        %v3251 = vrcp.pop 16.0
        %v3252 = vmul.f32 16.0, %v3251
        %v3253 = vsub.f32 1.0, %v3252
        %v3254 = vmul.f32 %v3251, %v3253
        %v3255 = vadd.f32 %v3251, %v3254
        %vm3256 = vweird.f32 %v3251
        %v3257 = vsel %vm3256, %v3251, %v3255
        %v3258 = vmul.f32 %v3250, %v3257
        %v3259 = vld [vmem:[%s65] sm:$0xff]
        %v3260 = vld [vmem:[%s65 + $0x8] sm:$0xff]
        %v3261 = vld [vmem:[%s65 + $0x10] sm:$0xff]
        %v3262 = vld [vmem:[%s65 + $0x18] sm:$0xff]
        %v3263 = vld [vmem:[%s65 + $0x20] sm:$0xff]
        %v3264 = vld [vmem:[%s65 + $0x28] sm:$0xff]
        %v3265 = vld [vmem:[%s65 + $0x30] sm:$0xff]
        %v3266 = vld [vmem:[%s65 + $0x38] sm:$0xff]
        %v3267 = vld [vmem:[%s67] sm:$0x1]
        %v3269 = vsel %vm1183, %v3258, 0
        %3271 = vmatpush.msra.mxu0 0.0
        %3272 = vmatpush.msra.mxu0 0.0
        %3273 = vmatpush.msra.mxu0 0.0
        %3274 = vmatpush.msra.mxu0 0.0
        %3275 = vmatpush.msra.mxu0 0.0
        %3276 = vmatpush.msra.mxu0 0.0
        %3277 = vmatpush.msra.mxu0 0.0
        %3278 = vmatpush.msra.mxu0 0.0
        %3279 = vmatpush.msra.mxu0 %v3266
        %3280 = vmatpush.msra.mxu0 %v3265
        %3281 = vmatpush.msra.mxu0 %v3264
        %3282 = vmatpush.msra.mxu0 %v3263
        %3283 = vmatpush.msra.mxu0 %v3262
        %3284 = vmatpush.msra.mxu0 %v3261
        %3285 = vmatpush.msra.mxu0 %v3260
        %3286 = vmatpush.msra.mxu0 %v3259
        %3287 = vmatmul.f32.gmra.mxu0 %v3269
        %v3288 = vpop.f32.mrf.mxu0
        %v3289 = vadd.f32 %v3267, %v3288
        %3290 = vdwg.mxu0
        %vm3291 = vcmask 16384
        %v3292 = vsel %vm3291, %v3289, -inf
        %3293 = vmax.xlane.f32.xlu0 %v3292
        %v3294 = vpop.xlane.xlu0 %3293
        %v3295 = vsub.f32 %v3289, %v3294
        %v3296 = vmul.f32 %v3295, 1.442695
        %v3297 = vpow.pop %v3296
        %v3298 = vsel %vm3291, %v3297, 0.0
        %3299 = vadd.xlane.f32.xlu0 %v3298
        %v3300 = vpop.xlane.xlu0 %3299
        %v3301 = vrcp.pop %v3300
        %v3302 = vmul.f32 %v3300, %v3301
        %v3303 = vsub.f32 1.0, %v3302
        %v3304 = vmul.f32 %v3301, %v3303
        %v3305 = vadd.f32 %v3301, %v3304
        %vm3306 = vweird.f32 %v3300
        %vm3307 = vweird.f32 %v3301
        %vm3308 = vmor %vm3306, %vm3307
        %v3309 = vsel %vm3308, %v3301, %v3305
        %v3310 = vand.u32 2147483647, %v3300
        %vm3311 = vcmp.eq.f32.partialorder %v3310, 8.507059e+37
        %v3312 = vand.u32 %v3300, 2147483648
        %v3313 = vor.u32 1.1754944e-38, %v3312
        %v3314 = vsel %vm3311, %v3313, %v3309
        %v3315 = vmul.f32 %v3297, %v3314
        %3316 = vst.msk [vmem:[%s1034] sm:$0x1] %vm3291, %v3315
        %s3317 = sand.u32 %s810, 1
        %s3318 = scalar_lea.sflag [#allocation3], %s3317
        %s3319 = sand.u32 %s810, 1
        %s3320 = scalar_lea.vmem [#allocation2], %s3319
        // Predicated region
        $region157: #{forward.3} parent=155 // pred_check
          %p3321 = pneg %p820
        $region158: #{forward.3} parent=155 // pred_check_branch
          %3323 = sbr.rel (%p3321) target = $region160
        $region159: #{forward.3} parent=155 // pred_region
          %3325 = vsyncadd %s3318, 0
          %s3326 = scalar_lea.hbm %s69, %s83
          %s3328 = sshll.u32 %s3320, 4
          %s3329 = int_to_ptr.vmem [resolvable:$true] %s3328
          %s3330 = sshll.u32 %s3326, 4
          %s3331 = int_to_ptr.hbm [resolvable:$true] %s3330
          %3333 = dma.vmem_to_hbm [thread:$0]  %s3329, 16, %s3331, %s3318
        $region160: #{forward.3} parent=155 // pred_fallthru
          _
      $region156: #{forward.3} parent=5 // pred_fallthru
        _
      %p3334 = scmp.le.s32.totalorder 2, %s78
      // Predicated region
      $region161: #{forward.3} parent=5 // pred_check
        %p3335 = pneg %p3334
      $region162: #{forward.3} parent=5 // pred_check_branch
        %3337 = sbr.rel (%p3335) target = $region164
      $region163: #{forward.3} parent=5 // pred_region
        %s3338 = ssub.s32 %s78, 2
        // Predicated region
        $region165: #{forward.3} parent=163 // pred_check
          %p3339 = pneg %p826
        $region166: #{forward.3} parent=163 // pred_check_branch
          %3341 = sbr.rel (%p3339) target = $region168
        $region167: #{forward.3} parent=163 // pred_region
          %s3342 = sand.u32 %s811, 1
          %s3343 = scalar_lea.sflag [#allocation3], %s3342
          %s3344 = sand.u32 %s811, 1
          %s3345 = scalar_lea.vmem [#allocation2], %s3344
          %3347 = dma.done %s3343, 16
        $region168: #{forward.3} parent=163 // pred_fallthru
          _
      $region164: #{forward.3} parent=5 // pred_fallthru
        _
    $region6: #{forward.3} parent=1 // loop_footer
      %s82 = sadd.s32 1, %s78
    $region7: #{forward.3} parent=1 // loop_footer_branch
      %77 = sbr.rel target = $region3
    $region8: #{forward.3} parent=1 // loop_exit
      _
    %3348 = vsyncpa [#allocation3], 1
    %s3349 = scalar_lea.sflag [#allocation3], 1
    %3350 = vsyncpa %s3349, 1

</llo_original>
